<compile_context>
chip_gen: v7x
topology: tpu7x:2x2x1
jax: 0.10.0
libtpu: 0.0.40
codegen_flags: <defaults>
</compile_context>

<pallas_src>
import jax
import jax.numpy as jnp
import numpy as np
from jax.experimental import pallas as pl
from jax.experimental.pallas import tpu as pltpu

# Problem sizes (shape=(C_IN, L_IN), actions_n=ACTIONS in the PyTorch module).
C_IN = 4
L_IN = 16
K1 = K2 = 5
C_HID = 128
L1 = L_IN - K1 + 1        # 12 (after first conv)
L2 = L1 - K2 + 1          # 8  (after second conv) -> out_size = 128 * 8 = 1024
FC_HID = 512
ACTIONS = 3

TB = 8                    # batch rows per grid step (one sublane tile)


def dqn_conv1d_kernel(x_ref, w1_ref, b1_ref, w2_ref, b2_ref,
                      wh1_ref, bh1_ref, wh2_ref, bh2_ref, out_ref):
    # x_ref: (L_IN*TB, C_IN), position-major: row = l*TB + t (t = row in tile).

    # Conv1d(C_IN -> 128, k=5) + ReLU, one matmul per tap for the whole tile.
    acc1 = jnp.zeros((L1 * TB, C_HID), jnp.float32)
    for k in range(K1):
        acc1 = acc1 + jnp.dot(x_ref[pl.ds(k * TB, L1 * TB), :], w1_ref[k],
                              preferred_element_type=jnp.float32)
    h1 = jnp.maximum(acc1 + b1_ref[...], 0.0)            # (L1*TB, 128)

    # Conv1d(128 -> 128, k=5) + ReLU.  Tap shift = 8-aligned sublane slice.
    acc2 = jnp.zeros((L2 * TB, C_HID), jnp.float32)
    for k in range(K2):
        acc2 = acc2 + jnp.dot(h1[k * TB:k * TB + L2 * TB, :], w2_ref[k],
                              preferred_element_type=jnp.float32)
    h2 = jnp.maximum(acc2 + b2_ref[...], 0.0)            # (L2*TB, 128)

    # Flatten fused into the (head-fused) first FC layer: accumulate the
    # (TB,128) @ (128,1024) contribution of each spatial position l.
    hfc = jnp.zeros((TB, 2 * FC_HID), jnp.float32)
    for l in range(L2):
        hfc = hfc + jnp.dot(h2[l * TB:(l + 1) * TB, :], wh1_ref[l],
                            preferred_element_type=jnp.float32)
    hfc = jnp.maximum(hfc + bh1_ref[...], 0.0)           # (TB, 1024) = [hv | ha]

    # Fused second FC (block-diagonal weight) -> [val | adv], dueling combine.
    va = jnp.dot(hfc, wh2_ref[...],
                 preferred_element_type=jnp.float32) + bh2_ref[...]   # (TB, 1+A)
    val = va[:, 0:1]
    adv = va[:, 1:1 + ACTIONS]
    out_ref[...] = val + adv - jnp.mean(adv, axis=-1, keepdims=True)  # (TB, A)


def _repack_heads(p):
    """Fuse value/advantage head weights (done once, outside the kernel)."""
    wh1 = jnp.concatenate([p["wv1"], p["wa1"]], axis=-1)      # (L2, 128, 1024)
    bh1 = jnp.concatenate([p["bv1"], p["ba1"]], axis=-1)      # (1, 1024)
    wh2 = jnp.zeros((2 * FC_HID, 1 + ACTIONS), jnp.float32)   # block-diagonal
    wh2 = wh2.at[:FC_HID, 0:1].set(p["wv2"])
    wh2 = wh2.at[FC_HID:, 1:].set(p["wa2"])
    bh2 = jnp.concatenate([p["bv2"], p["ba2"]], axis=-1)      # (1, 1+A)
    return wh1, bh1, wh2, bh2


@jax.jit
def dqn_conv1d_forward(x_ncl, params):
    # x_ncl: PyTorch-layout input (N, C_IN, L_IN)
    n = x_ncl.shape[0]
    g = pl.cdiv(n, TB)
    nb = g * TB

    x = jnp.transpose(x_ncl, (0, 2, 1)).astype(jnp.float32)   # (N, L, C)
    if nb != n:
        x = jnp.pad(x, ((0, nb - n), (0, 0), (0, 0)))
    # Position-major packing per batch tile: row = b*(L*TB) + l*TB + t.
    x_pm = (x.reshape(g, TB, L_IN, C_IN)
             .transpose(0, 2, 1, 3)
             .reshape(g * L_IN * TB, C_IN))

    wh1, bh1, wh2, bh2 = _repack_heads(params)
    args = (x_pm, params["w1"], params["b1"], params["w2"], params["b2"],
            wh1, bh1, wh2, bh2)

    def resident(a):           # whole array, same block every step -> stays in VMEM
        return pl.BlockSpec(a.shape, lambda b, _nd=a.ndim: (0,) * _nd)

    in_specs = ([pl.BlockSpec((L_IN * TB, C_IN), lambda b: (b, 0))]
                + [resident(a) for a in args[1:]])

    out = pl.pallas_call(
        dqn_conv1d_kernel,
        out_shape=jax.ShapeDtypeStruct((nb, ACTIONS), jnp.float32),
        grid=(g,),
        in_specs=in_specs,
        out_specs=pl.BlockSpec((TB, ACTIONS), lambda b: (b, 0)),
        compiler_params=pltpu.CompilerParams(
            dimension_semantics=("parallel",),
            vmem_limit_bytes=32 * 1024 * 1024),
    )(*args)
    return out[:n]


def init_params(key):
    ks = jax.random.split(key, 12)

    def rn(k, shape, scale):
        return scale * jax.random.normal(k, shape, jnp.float32)

    return {
        "w1":  rn(ks[0],  (K1, C_IN, C_HID), 0.2),
        "b1":  rn(ks[1],  (1, C_HID), 0.1),
        "w2":  rn(ks[2],  (K2, C_HID, C_HID), 0.05),
        "b2":  rn(ks[3],  (1, C_HID), 0.1),
        "wv1": rn(ks[4],  (L2, C_HID, FC_HID), 0.03),
        "bv1": rn(ks[5],  (1, FC_HID), 0.1),
        "wv2": rn(ks[6],  (FC_HID, 1), 0.05),
        "bv2": rn(ks[7],  (1, 1), 0.1),
        "wa1": rn(ks[8],  (L2, C_HID, FC_HID), 0.03),
        "ba1": rn(ks[9],  (1, FC_HID), 0.1),
        "wa2": rn(ks[10], (FC_HID, ACTIONS), 0.05),
        "ba2": rn(ks[11], (1, ACTIONS), 0.1),
    }


def reference_forward(x_ncl, p):
    """Pure-JAX mirror of the PyTorch forward (same weights / layout)."""
    x = jnp.transpose(x_ncl, (0, 2, 1))              # (N, L, C)

    def conv(h, w, b):
        k_taps = w.shape[0]
        lo = h.shape[1] - k_taps + 1
        out = sum(jnp.einsum('nlc,co->nlo', h[:, k:k + lo, :], w[k])
                  for k in range(k_taps))
        return jax.nn.relu(out + b[None, :, :])

    h1 = conv(x, p["w1"], p["b1"])
    h2 = conv(h1, p["w2"], p["b2"])
    hv = jax.nn.relu(jnp.einsum('nlc,lch->nh', h2, p["wv1"]) + p["bv1"])
    ha = jax.nn.relu(jnp.einsum('nlc,lch->nh', h2, p["wa1"]) + p["ba1"])
    val = hv @ p["wv2"] + p["bv2"]
    adv = ha @ p["wa2"] + p["ba2"]
    return val + adv - adv.mean(axis=1, keepdims=True)


if __name__ == "__main__":
    key = jax.random.PRNGKey(0)
    pkey, xkey, xkey2 = jax.random.split(key, 3)
    params = init_params(pkey)

    # Main check: batch of 16 -> 2 grid steps with resident weights.
    x = jax.random.normal(xkey, (16, C_IN, L_IN), jnp.float32)   # (N, C, L)
    out = jax.block_until_ready(dqn_conv1d_forward(x, params))
    ref = reference_forward(x, params)
    np.testing.assert_allclose(np.asarray(out), np.asarray(ref),
                               rtol=1e-4, atol=1e-4)

    # Padding path: batch of 2 (padded to one TB=8 tile inside the wrapper).
    x2 = jax.random.normal(xkey2, (2, C_IN, L_IN), jnp.float32)
    out2 = jax.block_until_ready(dqn_conv1d_forward(x2, params))
    ref2 = reference_forward(x2, params)
    np.testing.assert_allclose(np.asarray(out2), np.asarray(ref2),
                               rtol=1e-4, atol=1e-4)

    print("KERNEL_OK")
</pallas_src>

<mosaic_0001>
module attributes {stable_mosaic.version = 11 : i64} {
  func.func @dqn_conv1d_kernel(%arg0: i32, %arg1: memref<128x4xf32, #tpu.memory_space<vmem>>, %arg2: memref<5x4x128xf32, #tpu.memory_space<vmem>>, %arg3: memref<1x128xf32, #tpu.memory_space<vmem>>, %arg4: memref<5x128x128xf32, #tpu.memory_space<vmem>>, %arg5: memref<1x128xf32, #tpu.memory_space<vmem>>, %arg6: memref<8x128x1024xf32, #tpu.memory_space<vmem>>, %arg7: memref<1x1024xf32, #tpu.memory_space<vmem>>, %arg8: memref<1024x4xf32, #tpu.memory_space<vmem>>, %arg9: memref<1x4xf32, #tpu.memory_space<vmem>>, %arg10: memref<8x3xf32, #tpu.memory_space<vmem>>) attributes {dimension_semantics = [#tpu.dimension_semantics<parallel>], iteration_bounds = array<i64: 2>, scalar_prefetch = 0 : i64, scratch_operands = 0 : i64, tpu.core_type = #tpu.core_type<tc>, window_params = [{transform_indices = @transform_0, window_bounds = array<i64: 128, 4>}, {pipeline_mode = #tpu.pipeline_mode<synchronous>, transform_indices = @transform_1, window_bounds = array<i64: 5, 4, 128>}, {pipeline_mode = #tpu.pipeline_mode<synchronous>, transform_indices = @transform_2, window_bounds = array<i64: 1, 128>}, {pipeline_mode = #tpu.pipeline_mode<synchronous>, transform_indices = @transform_3, window_bounds = array<i64: 5, 128, 128>}, {pipeline_mode = #tpu.pipeline_mode<synchronous>, transform_indices = @transform_4, window_bounds = array<i64: 1, 128>}, {pipeline_mode = #tpu.pipeline_mode<synchronous>, transform_indices = @transform_5, window_bounds = array<i64: 8, 128, 1024>}, {pipeline_mode = #tpu.pipeline_mode<synchronous>, transform_indices = @transform_6, window_bounds = array<i64: 1, 1024>}, {pipeline_mode = #tpu.pipeline_mode<synchronous>, transform_indices = @transform_7, window_bounds = array<i64: 1024, 4>}, {pipeline_mode = #tpu.pipeline_mode<synchronous>, transform_indices = @transform_8, window_bounds = array<i64: 1, 4>}, {transform_indices = @transform_9, window_bounds = array<i64: 8, 3>}]} {
    %cst = arith.constant 0.000000e+00 : f32
    %0 = vector.broadcast %cst : f32 to vector<96x128xf32>
    %c0 = arith.constant 0 : index
    %c0_0 = arith.constant 0 : index
    %1 = vector.load %arg1[%c0, %c0_0] : memref<128x4xf32, #tpu.memory_space<vmem>>, vector<96x4xf32>
    %c0_1 = arith.constant 0 : index
    %c0_2 = arith.constant 0 : index
    %c0_3 = arith.constant 0 : index
    %2 = vector.load %arg2[%c0_1, %c0_2, %c0_3] : memref<5x4x128xf32, #tpu.memory_space<vmem>>, vector<1x4x128xf32>
    %3 = vector.shape_cast %2 : vector<1x4x128xf32> to vector<4x128xf32>
    %cst_4 = arith.constant dense<0.000000e+00> : vector<96x128xf32>
    %4 = tpu.matmul %1, %3, %cst_4 {dimension_numbers = #tpu.dot_dimension_numbers<[1], [0], [0], [1], [0, 0, 1, 1], [], []>} : vector<96x4xf32>, vector<4x128xf32>, vector<96x128xf32> -> vector<96x128xf32>
    %5 = arith.addf %0, %4 : vector<96x128xf32>
    %c8 = arith.constant 8 : index
    %c0_5 = arith.constant 0 : index
    %6 = vector.load %arg1[%c8, %c0_5] : memref<128x4xf32, #tpu.memory_space<vmem>>, vector<96x4xf32>
    %c1 = arith.constant 1 : index
    %c0_6 = arith.constant 0 : index
    %c0_7 = arith.constant 0 : index
    %7 = vector.load %arg2[%c1, %c0_6, %c0_7] : memref<5x4x128xf32, #tpu.memory_space<vmem>>, vector<1x4x128xf32>
    %8 = vector.shape_cast %7 : vector<1x4x128xf32> to vector<4x128xf32>
    %cst_8 = arith.constant dense<0.000000e+00> : vector<96x128xf32>
    %9 = tpu.matmul %6, %8, %cst_8 {dimension_numbers = #tpu.dot_dimension_numbers<[1], [0], [0], [1], [0, 0, 1, 1], [], []>} : vector<96x4xf32>, vector<4x128xf32>, vector<96x128xf32> -> vector<96x128xf32>
    %10 = arith.addf %5, %9 : vector<96x128xf32>
    %c16 = arith.constant 16 : index
    %c0_9 = arith.constant 0 : index
    %11 = vector.load %arg1[%c16, %c0_9] : memref<128x4xf32, #tpu.memory_space<vmem>>, vector<96x4xf32>
    %c2 = arith.constant 2 : index
    %c0_10 = arith.constant 0 : index
    %c0_11 = arith.constant 0 : index
    %12 = vector.load %arg2[%c2, %c0_10, %c0_11] : memref<5x4x128xf32, #tpu.memory_space<vmem>>, vector<1x4x128xf32>
    %13 = vector.shape_cast %12 : vector<1x4x128xf32> to vector<4x128xf32>
    %cst_12 = arith.constant dense<0.000000e+00> : vector<96x128xf32>
    %14 = tpu.matmul %11, %13, %cst_12 {dimension_numbers = #tpu.dot_dimension_numbers<[1], [0], [0], [1], [0, 0, 1, 1], [], []>} : vector<96x4xf32>, vector<4x128xf32>, vector<96x128xf32> -> vector<96x128xf32>
    %15 = arith.addf %10, %14 : vector<96x128xf32>
    %c24 = arith.constant 24 : index
    %c0_13 = arith.constant 0 : index
    %16 = vector.load %arg1[%c24, %c0_13] : memref<128x4xf32, #tpu.memory_space<vmem>>, vector<96x4xf32>
    %c3 = arith.constant 3 : index
    %c0_14 = arith.constant 0 : index
    %c0_15 = arith.constant 0 : index
    %17 = vector.load %arg2[%c3, %c0_14, %c0_15] : memref<5x4x128xf32, #tpu.memory_space<vmem>>, vector<1x4x128xf32>
    %18 = vector.shape_cast %17 : vector<1x4x128xf32> to vector<4x128xf32>
    %cst_16 = arith.constant dense<0.000000e+00> : vector<96x128xf32>
    %19 = tpu.matmul %16, %18, %cst_16 {dimension_numbers = #tpu.dot_dimension_numbers<[1], [0], [0], [1], [0, 0, 1, 1], [], []>} : vector<96x4xf32>, vector<4x128xf32>, vector<96x128xf32> -> vector<96x128xf32>
    %20 = arith.addf %15, %19 : vector<96x128xf32>
    %c32 = arith.constant 32 : index
    %c0_17 = arith.constant 0 : index
    %21 = vector.load %arg1[%c32, %c0_17] : memref<128x4xf32, #tpu.memory_space<vmem>>, vector<96x4xf32>
    %c4 = arith.constant 4 : index
    %c0_18 = arith.constant 0 : index
    %c0_19 = arith.constant 0 : index
    %22 = vector.load %arg2[%c4, %c0_18, %c0_19] : memref<5x4x128xf32, #tpu.memory_space<vmem>>, vector<1x4x128xf32>
    %23 = vector.shape_cast %22 : vector<1x4x128xf32> to vector<4x128xf32>
    %cst_20 = arith.constant dense<0.000000e+00> : vector<96x128xf32>
    %24 = tpu.matmul %21, %23, %cst_20 {dimension_numbers = #tpu.dot_dimension_numbers<[1], [0], [0], [1], [0, 0, 1, 1], [], []>} : vector<96x4xf32>, vector<4x128xf32>, vector<96x128xf32> -> vector<96x128xf32>
    %25 = arith.addf %20, %24 : vector<96x128xf32>
    %c0_21 = arith.constant 0 : index
    %c0_22 = arith.constant 0 : index
    %26 = vector.load %arg3[%c0_21, %c0_22] : memref<1x128xf32, #tpu.memory_space<vmem>>, vector<1x128xf32>
    %27 = vector.broadcast %26 : vector<1x128xf32> to vector<96x128xf32>
    %28 = arith.addf %25, %27 : vector<96x128xf32>
    %cst_23 = arith.constant 0.000000e+00 : f32
    %29 = vector.broadcast %cst_23 : f32 to vector<96x128xf32>
    %30 = arith.maximumf %28, %29 : vector<96x128xf32>
    %cst_24 = arith.constant 0.000000e+00 : f32
    %31 = vector.broadcast %cst_24 : f32 to vector<64x128xf32>
    %32 = vector.extract_strided_slice %30 {offsets = [0, 0], sizes = [64, 128], strides = [1, 1]} : vector<96x128xf32> to vector<64x128xf32>
    %c0_25 = arith.constant 0 : index
    %c0_26 = arith.constant 0 : index
    %c0_27 = arith.constant 0 : index
    %33 = vector.load %arg4[%c0_25, %c0_26, %c0_27] : memref<5x128x128xf32, #tpu.memory_space<vmem>>, vector<1x128x128xf32>
    %34 = vector.shape_cast %33 : vector<1x128x128xf32> to vector<128x128xf32>
    %cst_28 = arith.constant dense<0.000000e+00> : vector<64x128xf32>
    %35 = tpu.matmul %32, %34, %cst_28 {dimension_numbers = #tpu.dot_dimension_numbers<[1], [0], [0], [1], [0, 0, 1, 1], [], []>} : vector<64x128xf32>, vector<128x128xf32>, vector<64x128xf32> -> vector<64x128xf32>
    %36 = arith.addf %31, %35 : vector<64x128xf32>
    %37 = vector.extract_strided_slice %30 {offsets = [8, 0], sizes = [64, 128], strides = [1, 1]} : vector<96x128xf32> to vector<64x128xf32>
    %c1_29 = arith.constant 1 : index
    %c0_30 = arith.constant 0 : index
    %c0_31 = arith.constant 0 : index
    %38 = vector.load %arg4[%c1_29, %c0_30, %c0_31] : memref<5x128x128xf32, #tpu.memory_space<vmem>>, vector<1x128x128xf32>
    %39 = vector.shape_cast %38 : vector<1x128x128xf32> to vector<128x128xf32>
    %cst_32 = arith.constant dense<0.000000e+00> : vector<64x128xf32>
    %40 = tpu.matmul %37, %39, %cst_32 {dimension_numbers = #tpu.dot_dimension_numbers<[1], [0], [0], [1], [0, 0, 1, 1], [], []>} : vector<64x128xf32>, vector<128x128xf32>, vector<64x128xf32> -> vector<64x128xf32>
    %41 = arith.addf %36, %40 : vector<64x128xf32>
    %42 = vector.extract_strided_slice %30 {offsets = [16, 0], sizes = [64, 128], strides = [1, 1]} : vector<96x128xf32> to vector<64x128xf32>
    %c2_33 = arith.constant 2 : index
    %c0_34 = arith.constant 0 : index
    %c0_35 = arith.constant 0 : index
    %43 = vector.load %arg4[%c2_33, %c0_34, %c0_35] : memref<5x128x128xf32, #tpu.memory_space<vmem>>, vector<1x128x128xf32>
    %44 = vector.shape_cast %43 : vector<1x128x128xf32> to vector<128x128xf32>
    %cst_36 = arith.constant dense<0.000000e+00> : vector<64x128xf32>
    %45 = tpu.matmul %42, %44, %cst_36 {dimension_numbers = #tpu.dot_dimension_numbers<[1], [0], [0], [1], [0, 0, 1, 1], [], []>} : vector<64x128xf32>, vector<128x128xf32>, vector<64x128xf32> -> vector<64x128xf32>
    %46 = arith.addf %41, %45 : vector<64x128xf32>
    %47 = vector.extract_strided_slice %30 {offsets = [24, 0], sizes = [64, 128], strides = [1, 1]} : vector<96x128xf32> to vector<64x128xf32>
    %c3_37 = arith.constant 3 : index
    %c0_38 = arith.constant 0 : index
    %c0_39 = arith.constant 0 : index
    %48 = vector.load %arg4[%c3_37, %c0_38, %c0_39] : memref<5x128x128xf32, #tpu.memory_space<vmem>>, vector<1x128x128xf32>
    %49 = vector.shape_cast %48 : vector<1x128x128xf32> to vector<128x128xf32>
    %cst_40 = arith.constant dense<0.000000e+00> : vector<64x128xf32>
    %50 = tpu.matmul %47, %49, %cst_40 {dimension_numbers = #tpu.dot_dimension_numbers<[1], [0], [0], [1], [0, 0, 1, 1], [], []>} : vector<64x128xf32>, vector<128x128xf32>, vector<64x128xf32> -> vector<64x128xf32>
    %51 = arith.addf %46, %50 : vector<64x128xf32>
    %52 = vector.extract_strided_slice %30 {offsets = [32, 0], sizes = [64, 128], strides = [1, 1]} : vector<96x128xf32> to vector<64x128xf32>
    %c4_41 = arith.constant 4 : index
    %c0_42 = arith.constant 0 : index
    %c0_43 = arith.constant 0 : index
    %53 = vector.load %arg4[%c4_41, %c0_42, %c0_43] : memref<5x128x128xf32, #tpu.memory_space<vmem>>, vector<1x128x128xf32>
    %54 = vector.shape_cast %53 : vector<1x128x128xf32> to vector<128x128xf32>
    %cst_44 = arith.constant dense<0.000000e+00> : vector<64x128xf32>
    %55 = tpu.matmul %52, %54, %cst_44 {dimension_numbers = #tpu.dot_dimension_numbers<[1], [0], [0], [1], [0, 0, 1, 1], [], []>} : vector<64x128xf32>, vector<128x128xf32>, vector<64x128xf32> -> vector<64x128xf32>
    %56 = arith.addf %51, %55 : vector<64x128xf32>
    %c0_45 = arith.constant 0 : index
    %c0_46 = arith.constant 0 : index
    %57 = vector.load %arg5[%c0_45, %c0_46] : memref<1x128xf32, #tpu.memory_space<vmem>>, vector<1x128xf32>
    %58 = vector.broadcast %57 : vector<1x128xf32> to vector<64x128xf32>
    %59 = arith.addf %56, %58 : vector<64x128xf32>
    %cst_47 = arith.constant 0.000000e+00 : f32
    %60 = vector.broadcast %cst_47 : f32 to vector<64x128xf32>
    %61 = arith.maximumf %59, %60 : vector<64x128xf32>
    %cst_48 = arith.constant 0.000000e+00 : f32
    %62 = vector.broadcast %cst_48 : f32 to vector<8x1024xf32>
    %63 = vector.extract_strided_slice %61 {offsets = [0, 0], sizes = [8, 128], strides = [1, 1]} : vector<64x128xf32> to vector<8x128xf32>
    %c0_49 = arith.constant 0 : index
    %c0_50 = arith.constant 0 : index
    %c0_51 = arith.constant 0 : index
    %64 = vector.load %arg6[%c0_49, %c0_50, %c0_51] : memref<8x128x1024xf32, #tpu.memory_space<vmem>>, vector<1x128x1024xf32>
    %65 = vector.shape_cast %64 : vector<1x128x1024xf32> to vector<128x1024xf32>
    %cst_52 = arith.constant dense<0.000000e+00> : vector<8x1024xf32>
    %66 = tpu.matmul %63, %65, %cst_52 {dimension_numbers = #tpu.dot_dimension_numbers<[1], [0], [0], [1], [0, 0, 1, 1], [], []>} : vector<8x128xf32>, vector<128x1024xf32>, vector<8x1024xf32> -> vector<8x1024xf32>
    %67 = arith.addf %62, %66 : vector<8x1024xf32>
    %68 = vector.extract_strided_slice %61 {offsets = [8, 0], sizes = [8, 128], strides = [1, 1]} : vector<64x128xf32> to vector<8x128xf32>
    %c1_53 = arith.constant 1 : index
    %c0_54 = arith.constant 0 : index
    %c0_55 = arith.constant 0 : index
    %69 = vector.load %arg6[%c1_53, %c0_54, %c0_55] : memref<8x128x1024xf32, #tpu.memory_space<vmem>>, vector<1x128x1024xf32>
    %70 = vector.shape_cast %69 : vector<1x128x1024xf32> to vector<128x1024xf32>
    %cst_56 = arith.constant dense<0.000000e+00> : vector<8x1024xf32>
    %71 = tpu.matmul %68, %70, %cst_56 {dimension_numbers = #tpu.dot_dimension_numbers<[1], [0], [0], [1], [0, 0, 1, 1], [], []>} : vector<8x128xf32>, vector<128x1024xf32>, vector<8x1024xf32> -> vector<8x1024xf32>
    %72 = arith.addf %67, %71 : vector<8x1024xf32>
    %73 = vector.extract_strided_slice %61 {offsets = [16, 0], sizes = [8, 128], strides = [1, 1]} : vector<64x128xf32> to vector<8x128xf32>
    %c2_57 = arith.constant 2 : index
    %c0_58 = arith.constant 0 : index
    %c0_59 = arith.constant 0 : index
    %74 = vector.load %arg6[%c2_57, %c0_58, %c0_59] : memref<8x128x1024xf32, #tpu.memory_space<vmem>>, vector<1x128x1024xf32>
    %75 = vector.shape_cast %74 : vector<1x128x1024xf32> to vector<128x1024xf32>
    %cst_60 = arith.constant dense<0.000000e+00> : vector<8x1024xf32>
    %76 = tpu.matmul %73, %75, %cst_60 {dimension_numbers = #tpu.dot_dimension_numbers<[1], [0], [0], [1], [0, 0, 1, 1], [], []>} : vector<8x128xf32>, vector<128x1024xf32>, vector<8x1024xf32> -> vector<8x1024xf32>
    %77 = arith.addf %72, %76 : vector<8x1024xf32>
    %78 = vector.extract_strided_slice %61 {offsets = [24, 0], sizes = [8, 128], strides = [1, 1]} : vector<64x128xf32> to vector<8x128xf32>
    %c3_61 = arith.constant 3 : index
    %c0_62 = arith.constant 0 : index
    %c0_63 = arith.constant 0 : index
    %79 = vector.load %arg6[%c3_61, %c0_62, %c0_63] : memref<8x128x1024xf32, #tpu.memory_space<vmem>>, vector<1x128x1024xf32>
    %80 = vector.shape_cast %79 : vector<1x128x1024xf32> to vector<128x1024xf32>
    %cst_64 = arith.constant dense<0.000000e+00> : vector<8x1024xf32>
    %81 = tpu.matmul %78, %80, %cst_64 {dimension_numbers = #tpu.dot_dimension_numbers<[1], [0], [0], [1], [0, 0, 1, 1], [], []>} : vector<8x128xf32>, vector<128x1024xf32>, vector<8x1024xf32> -> vector<8x1024xf32>
    %82 = arith.addf %77, %81 : vector<8x1024xf32>
    %83 = vector.extract_strided_slice %61 {offsets = [32, 0], sizes = [8, 128], strides = [1, 1]} : vector<64x128xf32> to vector<8x128xf32>
    %c4_65 = arith.constant 4 : index
    %c0_66 = arith.constant 0 : index
    %c0_67 = arith.constant 0 : index
    %84 = vector.load %arg6[%c4_65, %c0_66, %c0_67] : memref<8x128x1024xf32, #tpu.memory_space<vmem>>, vector<1x128x1024xf32>
    %85 = vector.shape_cast %84 : vector<1x128x1024xf32> to vector<128x1024xf32>
    %cst_68 = arith.constant dense<0.000000e+00> : vector<8x1024xf32>
    %86 = tpu.matmul %83, %85, %cst_68 {dimension_numbers = #tpu.dot_dimension_numbers<[1], [0], [0], [1], [0, 0, 1, 1], [], []>} : vector<8x128xf32>, vector<128x1024xf32>, vector<8x1024xf32> -> vector<8x1024xf32>
    %87 = arith.addf %82, %86 : vector<8x1024xf32>
    %88 = vector.extract_strided_slice %61 {offsets = [40, 0], sizes = [8, 128], strides = [1, 1]} : vector<64x128xf32> to vector<8x128xf32>
    %c5 = arith.constant 5 : index
    %c0_69 = arith.constant 0 : index
    %c0_70 = arith.constant 0 : index
    %89 = vector.load %arg6[%c5, %c0_69, %c0_70] : memref<8x128x1024xf32, #tpu.memory_space<vmem>>, vector<1x128x1024xf32>
    %90 = vector.shape_cast %89 : vector<1x128x1024xf32> to vector<128x1024xf32>
    %cst_71 = arith.constant dense<0.000000e+00> : vector<8x1024xf32>
    %91 = tpu.matmul %88, %90, %cst_71 {dimension_numbers = #tpu.dot_dimension_numbers<[1], [0], [0], [1], [0, 0, 1, 1], [], []>} : vector<8x128xf32>, vector<128x1024xf32>, vector<8x1024xf32> -> vector<8x1024xf32>
    %92 = arith.addf %87, %91 : vector<8x1024xf32>
    %93 = vector.extract_strided_slice %61 {offsets = [48, 0], sizes = [8, 128], strides = [1, 1]} : vector<64x128xf32> to vector<8x128xf32>
    %c6 = arith.constant 6 : index
    %c0_72 = arith.constant 0 : index
    %c0_73 = arith.constant 0 : index
    %94 = vector.load %arg6[%c6, %c0_72, %c0_73] : memref<8x128x1024xf32, #tpu.memory_space<vmem>>, vector<1x128x1024xf32>
    %95 = vector.shape_cast %94 : vector<1x128x1024xf32> to vector<128x1024xf32>
    %cst_74 = arith.constant dense<0.000000e+00> : vector<8x1024xf32>
    %96 = tpu.matmul %93, %95, %cst_74 {dimension_numbers = #tpu.dot_dimension_numbers<[1], [0], [0], [1], [0, 0, 1, 1], [], []>} : vector<8x128xf32>, vector<128x1024xf32>, vector<8x1024xf32> -> vector<8x1024xf32>
    %97 = arith.addf %92, %96 : vector<8x1024xf32>
    %98 = vector.extract_strided_slice %61 {offsets = [56, 0], sizes = [8, 128], strides = [1, 1]} : vector<64x128xf32> to vector<8x128xf32>
    %c7 = arith.constant 7 : index
    %c0_75 = arith.constant 0 : index
    %c0_76 = arith.constant 0 : index
    %99 = vector.load %arg6[%c7, %c0_75, %c0_76] : memref<8x128x1024xf32, #tpu.memory_space<vmem>>, vector<1x128x1024xf32>
    %100 = vector.shape_cast %99 : vector<1x128x1024xf32> to vector<128x1024xf32>
    %cst_77 = arith.constant dense<0.000000e+00> : vector<8x1024xf32>
    %101 = tpu.matmul %98, %100, %cst_77 {dimension_numbers = #tpu.dot_dimension_numbers<[1], [0], [0], [1], [0, 0, 1, 1], [], []>} : vector<8x128xf32>, vector<128x1024xf32>, vector<8x1024xf32> -> vector<8x1024xf32>
    %102 = arith.addf %97, %101 : vector<8x1024xf32>
    %c0_78 = arith.constant 0 : index
    %c0_79 = arith.constant 0 : index
    %103 = vector.load %arg7[%c0_78, %c0_79] : memref<1x1024xf32, #tpu.memory_space<vmem>>, vector<1x1024xf32>
    %104 = vector.broadcast %103 : vector<1x1024xf32> to vector<8x1024xf32>
    %105 = arith.addf %102, %104 : vector<8x1024xf32>
    %cst_80 = arith.constant 0.000000e+00 : f32
    %106 = vector.broadcast %cst_80 : f32 to vector<8x1024xf32>
    %107 = arith.maximumf %105, %106 : vector<8x1024xf32>
    %c0_81 = arith.constant 0 : index
    %c0_82 = arith.constant 0 : index
    %108 = vector.load %arg8[%c0_81, %c0_82] : memref<1024x4xf32, #tpu.memory_space<vmem>>, vector<1024x4xf32>
    %cst_83 = arith.constant dense<0.000000e+00> : vector<8x4xf32>
    %109 = tpu.matmul %107, %108, %cst_83 {dimension_numbers = #tpu.dot_dimension_numbers<[1], [0], [0], [1], [0, 0, 1, 1], [], []>} : vector<8x1024xf32>, vector<1024x4xf32>, vector<8x4xf32> -> vector<8x4xf32>
    %c0_84 = arith.constant 0 : index
    %c0_85 = arith.constant 0 : index
    %110 = vector.load %arg9[%c0_84, %c0_85] : memref<1x4xf32, #tpu.memory_space<vmem>>, vector<1x4xf32>
    %111 = vector.broadcast %110 : vector<1x4xf32> to vector<8x4xf32>
    %112 = arith.addf %109, %111 : vector<8x4xf32>
    %113 = vector.extract_strided_slice %112 {offsets = [0, 0], sizes = [8, 1], strides = [1, 1]} : vector<8x4xf32> to vector<8x1xf32>
    %114 = vector.extract_strided_slice %112 {offsets = [0, 1], sizes = [8, 3], strides = [1, 1]} : vector<8x4xf32> to vector<8x3xf32>
    %115 = vector.broadcast %113 : vector<8x1xf32> to vector<8x3xf32>
    %116 = arith.addf %115, %114 : vector<8x3xf32>
    %cst_86 = arith.constant dense<0.000000e+00> : vector<8xf32>
    %117 = vector.multi_reduction <add>, %114, %cst_86 [1] : vector<8x3xf32> to vector<8xf32>
    %118 = vector.shape_cast %117 : vector<8xf32> to vector<8x1xf32>
    %cst_87 = arith.constant 3.000000e+00 : f32
    %119 = vector.broadcast %cst_87 : f32 to vector<8x1xf32>
    %120 = arith.divf %118, %119 : vector<8x1xf32>
    %121 = vector.broadcast %120 : vector<8x1xf32> to vector<8x3xf32>
    %122 = arith.subf %116, %121 : vector<8x3xf32>
    %c0_88 = arith.constant 0 : index
    %c0_89 = arith.constant 0 : index
    %123 = vector.load %arg10[%c0_88, %c0_89] : memref<8x3xf32, #tpu.memory_space<vmem>>, vector<8x3xf32>
    tpu.vector_store %arg10[%c0_88, %c0_89], %122 {strides = array<i32>} : memref<8x3xf32, #tpu.memory_space<vmem>>, vector<8x3xf32>,
    return
  }
  func.func @transform_0(%arg0: i32) -> (i32, i32) {
    %c0_i32 = arith.constant 0 : i32
    %c0_i32_0 = arith.constant 0 : i32
    return %arg0, %c0_i32 : i32, i32
  }
  func.func @transform_1(%arg0: i32) -> (i32, i32, i32) {
    %c0_i32 = arith.constant 0 : i32
    %c0_i32_0 = arith.constant 0 : i32
    %c0_i32_1 = arith.constant 0 : i32
    %c0_i32_2 = arith.constant 0 : i32
    return %c0_i32, %c0_i32_0, %c0_i32_1 : i32, i32, i32
  }
  func.func @transform_2(%arg0: i32) -> (i32, i32) {
    %c0_i32 = arith.constant 0 : i32
    %c0_i32_0 = arith.constant 0 : i32
    %c0_i32_1 = arith.constant 0 : i32
    return %c0_i32, %c0_i32_0 : i32, i32
  }
  func.func @transform_3(%arg0: i32) -> (i32, i32, i32) {
    %c0_i32 = arith.constant 0 : i32
    %c0_i32_0 = arith.constant 0 : i32
    %c0_i32_1 = arith.constant 0 : i32
    %c0_i32_2 = arith.constant 0 : i32
    return %c0_i32, %c0_i32_0, %c0_i32_1 : i32, i32, i32
  }
  func.func @transform_4(%arg0: i32) -> (i32, i32) {
    %c0_i32 = arith.constant 0 : i32
    %c0_i32_0 = arith.constant 0 : i32
    %c0_i32_1 = arith.constant 0 : i32
    return %c0_i32, %c0_i32_0 : i32, i32
  }
  func.func @transform_5(%arg0: i32) -> (i32, i32, i32) {
    %c0_i32 = arith.constant 0 : i32
    %c0_i32_0 = arith.constant 0 : i32
    %c0_i32_1 = arith.constant 0 : i32
    %c0_i32_2 = arith.constant 0 : i32
    return %c0_i32, %c0_i32_0, %c0_i32_1 : i32, i32, i32
  }
  func.func @transform_6(%arg0: i32) -> (i32, i32) {
    %c0_i32 = arith.constant 0 : i32
    %c0_i32_0 = arith.constant 0 : i32
    %c0_i32_1 = arith.constant 0 : i32
    return %c0_i32, %c0_i32_0 : i32, i32
  }
  func.func @transform_7(%arg0: i32) -> (i32, i32) {
    %c0_i32 = arith.constant 0 : i32
    %c0_i32_0 = arith.constant 0 : i32
    %c0_i32_1 = arith.constant 0 : i32
    return %c0_i32, %c0_i32_0 : i32, i32
  }
  func.func @transform_8(%arg0: i32) -> (i32, i32) {
    %c0_i32 = arith.constant 0 : i32
    %c0_i32_0 = arith.constant 0 : i32
    %c0_i32_1 = arith.constant 0 : i32
    return %c0_i32, %c0_i32_0 : i32, i32
  }
  func.func @transform_9(%arg0: i32) -> (i32, i32) {
    %c0_i32 = arith.constant 0 : i32
    %c0_i32_0 = arith.constant 0 : i32
    return %arg0, %c0_i32 : i32, i32
  }
}

</mosaic_0001>

<llo_original>
// kernel: dqn_conv1d_forward.1
$region0: #{dqn_conv1d_forward.1}
  #allocation0 [shape = 'u32[]', space=smem, size = 0x4, offset = 0x4, fixed_abs, tag = 'smem constant byte address 0x4 - core index']
  #allocation1 [shape = 'u32[144,128]{1,0:T(1,128)}', space=vmem, size = 0x12000, scoped, tag = 'internal scratch']
  %s0 = inlined_call_operand.vmem [shape: f32[256,4], index: 0, kind: input, shape index: {}]
  %s1 = inlined_call_operand.vmem [shape: f32[5,4,128], index: 1, kind: input, shape index: {}]
  %s2 = inlined_call_operand.vmem [shape: f32[1,128], index: 2, kind: input, shape index: {}]
  %s3 = inlined_call_operand.vmem [shape: f32[5,128,128], index: 3, kind: input, shape index: {}]
  %s4 = inlined_call_operand.vmem [shape: f32[1,128], index: 4, kind: input, shape index: {}]
  %s5 = inlined_call_operand.vmem [shape: f32[8,128,1024], index: 5, kind: input, shape index: {}]
  %s6 = inlined_call_operand.vmem [shape: f32[1,1024], index: 6, kind: input, shape index: {}]
  %s7 = inlined_call_operand.vmem [shape: f32[1024,4], index: 7, kind: input, shape index: {}]
  %s8 = inlined_call_operand.vmem [shape: f32[1,4], index: 8, kind: input, shape index: {}]
  %s9 = inlined_call_operand.vmem [shape: f32[16,3], index: 9, kind: output, shape index: {}]
  %s10 = sld [smem:[#allocation0]]
  $region69: #{dqn_conv1d_forward.1} parent=0
    _
  %s12 = ssub.s32 1, %s10
  %s13 = scalar_select 0, %s12, %s10
  loop: start=0, step=1, limit=4
  $region2: #{dqn_conv1d_forward.1} parent=0 // loop_pre_header
    _
  $region3: #{dqn_conv1d_forward.1} parent=0 // loop_header
    %s15 = sphi 0, %s19
    %p16 = scmp.ge.s32.totalorder %s15, 4
    %s25 = sphi 0, %s27
    %s28 = sphi 0, %s25
    %s29 = sphi 0, %s28
    %s45 = sphi 0, %s29
    %s49 = sphi 0, %s49
    %s51 = sphi 0, %s49
    %s52 = sphi 0, %s51
    %s66 = sphi 0, %s52
    %s70 = sphi 0, %s70
    %s72 = sphi 0, %s70
    %s73 = sphi 0, %s72
    %s87 = sphi 0, %s73
    %s91 = sphi 0, %s91
    %s93 = sphi 0, %s91
    %s94 = sphi 0, %s93
    %s108 = sphi 0, %s94
    %s112 = sphi 0, %s112
    %s114 = sphi 0, %s112
    %s115 = sphi 0, %s114
    %s129 = sphi 0, %s115
    %s133 = sphi 0, %s133
    %s135 = sphi 0, %s133
    %s136 = sphi 0, %s135
    %s150 = sphi 0, %s136
    %s154 = sphi 0, %s154
    %s156 = sphi 0, %s154
    %s157 = sphi 0, %s156
    %s171 = sphi 0, %s157
    %s175 = sphi 0, %s175
    %s177 = sphi 0, %s175
    %s178 = sphi 0, %s177
    %s192 = sphi 0, %s178
    %s196 = sphi 0, %s196
    %s198 = sphi 0, %s196
    %s199 = sphi 0, %s198
    %s213 = sphi 0, %s199
    %s219 = sphi 0, %s221
    %s222 = sphi 0, %s219
    %s223 = sphi 0, %s222
    %s239 = sphi 0, %s223
  $region4: #{dqn_conv1d_forward.1} parent=0 // loop_header_branch
    %18 = sbr.rel (%p16) target = $region8
  $region5: #{dqn_conv1d_forward.1} parent=0 // loop_body
    %s20 = ssub.s32 %s15, 1
    %s21 = ssub.s32 %s15, 2
    %s22 = sadd.s32 %s15, 1
    %s23 = ssub.s32 %s15, %s22
    %p24 = scmp.eq.s32.totalorder %s23, 0
    %s26 = sadd.s32 %s25, 1
    %s27 = scalar_select %p24, %s25, %s26
    %p30 = pneg %p24
    %p31 = scmp.eq.s32.totalorder %s15, 1
    %p32 = por %p30, %p31
    %p33 = scmp.ne.s32.totalorder %s25, %s28
    %p34 = scmp.eq.s32.totalorder %s15, 0
    %p35 = por %p33, %p34
    %p36 = scmp.ne.s32.totalorder %s25, %s28
    %p37 = scmp.eq.s32.totalorder %s20, 1
    %p38 = por %p36, %p37
    %p39 = scmp.ne.s32.totalorder %s28, %s29
    %p40 = scmp.eq.s32.totalorder %s20, 0
    %p41 = por %p39, %p40
    %p42 = scmp.ne.s32.totalorder %s28, %s29
    %p43 = scmp.eq.s32.totalorder %s21, 1
    %p44 = por %p42, %p43
    %p46 = scmp.ne.s32.totalorder %s29, %s45
    %p47 = scmp.eq.s32.totalorder %s21, 0
    %p48 = por %p46, %p47
    %s50 = sadd.s32 %s49, 1
    %p53 = scmp.eq.s32.totalorder %s15, 1
    %p54 = scmp.ne.s32.totalorder %s49, %s51
    %p55 = scmp.eq.s32.totalorder %s15, 0
    %p56 = por %p54, %p55
    %p57 = scmp.ne.s32.totalorder %s49, %s51
    %p58 = scmp.eq.s32.totalorder %s20, 1
    %p59 = por %p57, %p58
    %p60 = scmp.ne.s32.totalorder %s51, %s52
    %p61 = scmp.eq.s32.totalorder %s20, 0
    %p62 = por %p60, %p61
    %p63 = scmp.ne.s32.totalorder %s51, %s52
    %p64 = scmp.eq.s32.totalorder %s21, 1
    %p65 = por %p63, %p64
    %p67 = scmp.ne.s32.totalorder %s52, %s66
    %p68 = scmp.eq.s32.totalorder %s21, 0
    %p69 = por %p67, %p68
    %s71 = sadd.s32 %s70, 1
    %p74 = scmp.eq.s32.totalorder %s15, 1
    %p75 = scmp.ne.s32.totalorder %s70, %s72
    %p76 = scmp.eq.s32.totalorder %s15, 0
    %p77 = por %p75, %p76
    %p78 = scmp.ne.s32.totalorder %s70, %s72
    %p79 = scmp.eq.s32.totalorder %s20, 1
    %p80 = por %p78, %p79
    %p81 = scmp.ne.s32.totalorder %s72, %s73
    %p82 = scmp.eq.s32.totalorder %s20, 0
    %p83 = por %p81, %p82
    %p84 = scmp.ne.s32.totalorder %s72, %s73
    %p85 = scmp.eq.s32.totalorder %s21, 1
    %p86 = por %p84, %p85
    %p88 = scmp.ne.s32.totalorder %s73, %s87
    %p89 = scmp.eq.s32.totalorder %s21, 0
    %p90 = por %p88, %p89
    %s92 = sadd.s32 %s91, 1
    %p95 = scmp.eq.s32.totalorder %s15, 1
    %p96 = scmp.ne.s32.totalorder %s91, %s93
    %p97 = scmp.eq.s32.totalorder %s15, 0
    %p98 = por %p96, %p97
    %p99 = scmp.ne.s32.totalorder %s91, %s93
    %p100 = scmp.eq.s32.totalorder %s20, 1
    %p101 = por %p99, %p100
    %p102 = scmp.ne.s32.totalorder %s93, %s94
    %p103 = scmp.eq.s32.totalorder %s20, 0
    %p104 = por %p102, %p103
    %p105 = scmp.ne.s32.totalorder %s93, %s94
    %p106 = scmp.eq.s32.totalorder %s21, 1
    %p107 = por %p105, %p106
    %p109 = scmp.ne.s32.totalorder %s94, %s108
    %p110 = scmp.eq.s32.totalorder %s21, 0
    %p111 = por %p109, %p110
    %s113 = sadd.s32 %s112, 1
    %p116 = scmp.eq.s32.totalorder %s15, 1
    %p117 = scmp.ne.s32.totalorder %s112, %s114
    %p118 = scmp.eq.s32.totalorder %s15, 0
    %p119 = por %p117, %p118
    %p120 = scmp.ne.s32.totalorder %s112, %s114
    %p121 = scmp.eq.s32.totalorder %s20, 1
    %p122 = por %p120, %p121
    %p123 = scmp.ne.s32.totalorder %s114, %s115
    %p124 = scmp.eq.s32.totalorder %s20, 0
    %p125 = por %p123, %p124
    %p126 = scmp.ne.s32.totalorder %s114, %s115
    %p127 = scmp.eq.s32.totalorder %s21, 1
    %p128 = por %p126, %p127
    %p130 = scmp.ne.s32.totalorder %s115, %s129
    %p131 = scmp.eq.s32.totalorder %s21, 0
    %p132 = por %p130, %p131
    %s134 = sadd.s32 %s133, 1
    %p137 = scmp.eq.s32.totalorder %s15, 1
    %p138 = scmp.ne.s32.totalorder %s133, %s135
    %p139 = scmp.eq.s32.totalorder %s15, 0
    %p140 = por %p138, %p139
    %p141 = scmp.ne.s32.totalorder %s133, %s135
    %p142 = scmp.eq.s32.totalorder %s20, 1
    %p143 = por %p141, %p142
    %p144 = scmp.ne.s32.totalorder %s135, %s136
    %p145 = scmp.eq.s32.totalorder %s20, 0
    %p146 = por %p144, %p145
    %p147 = scmp.ne.s32.totalorder %s135, %s136
    %p148 = scmp.eq.s32.totalorder %s21, 1
    %p149 = por %p147, %p148
    %p151 = scmp.ne.s32.totalorder %s136, %s150
    %p152 = scmp.eq.s32.totalorder %s21, 0
    %p153 = por %p151, %p152
    %s155 = sadd.s32 %s154, 1
    %p158 = scmp.eq.s32.totalorder %s15, 1
    %p159 = scmp.ne.s32.totalorder %s154, %s156
    %p160 = scmp.eq.s32.totalorder %s15, 0
    %p161 = por %p159, %p160
    %p162 = scmp.ne.s32.totalorder %s154, %s156
    %p163 = scmp.eq.s32.totalorder %s20, 1
    %p164 = por %p162, %p163
    %p165 = scmp.ne.s32.totalorder %s156, %s157
    %p166 = scmp.eq.s32.totalorder %s20, 0
    %p167 = por %p165, %p166
    %p168 = scmp.ne.s32.totalorder %s156, %s157
    %p169 = scmp.eq.s32.totalorder %s21, 1
    %p170 = por %p168, %p169
    %p172 = scmp.ne.s32.totalorder %s157, %s171
    %p173 = scmp.eq.s32.totalorder %s21, 0
    %p174 = por %p172, %p173
    %s176 = sadd.s32 %s175, 1
    %p179 = scmp.eq.s32.totalorder %s15, 1
    %p180 = scmp.ne.s32.totalorder %s175, %s177
    %p181 = scmp.eq.s32.totalorder %s15, 0
    %p182 = por %p180, %p181
    %p183 = scmp.ne.s32.totalorder %s175, %s177
    %p184 = scmp.eq.s32.totalorder %s20, 1
    %p185 = por %p183, %p184
    %p186 = scmp.ne.s32.totalorder %s177, %s178
    %p187 = scmp.eq.s32.totalorder %s20, 0
    %p188 = por %p186, %p187
    %p189 = scmp.ne.s32.totalorder %s177, %s178
    %p190 = scmp.eq.s32.totalorder %s21, 1
    %p191 = por %p189, %p190
    %p193 = scmp.ne.s32.totalorder %s178, %s192
    %p194 = scmp.eq.s32.totalorder %s21, 0
    %p195 = por %p193, %p194
    %s197 = sadd.s32 %s196, 1
    %p200 = scmp.eq.s32.totalorder %s15, 1
    %p201 = scmp.ne.s32.totalorder %s196, %s198
    %p202 = scmp.eq.s32.totalorder %s15, 0
    %p203 = por %p201, %p202
    %p204 = scmp.ne.s32.totalorder %s196, %s198
    %p205 = scmp.eq.s32.totalorder %s20, 1
    %p206 = por %p204, %p205
    %p207 = scmp.ne.s32.totalorder %s198, %s199
    %p208 = scmp.eq.s32.totalorder %s20, 0
    %p209 = por %p207, %p208
    %p210 = scmp.ne.s32.totalorder %s198, %s199
    %p211 = scmp.eq.s32.totalorder %s21, 1
    %p212 = por %p210, %p211
    %p214 = scmp.ne.s32.totalorder %s199, %s213
    %p215 = scmp.eq.s32.totalorder %s21, 0
    %p216 = por %p214, %p215
    %s217 = ssub.s32 %s15, %s22
    %p218 = scmp.eq.s32.totalorder %s217, 0
    %s220 = sadd.s32 %s219, 1
    %s221 = scalar_select %p218, %s219, %s220
    %p224 = pneg %p218
    %p225 = scmp.eq.s32.totalorder %s15, 1
    %p226 = por %p224, %p225
    %p227 = scmp.ne.s32.totalorder %s219, %s222
    %p228 = scmp.eq.s32.totalorder %s15, 0
    %p229 = por %p227, %p228
    %p230 = scmp.ne.s32.totalorder %s219, %s222
    %p231 = scmp.eq.s32.totalorder %s20, 1
    %p232 = por %p230, %p231
    %p233 = scmp.ne.s32.totalorder %s222, %s223
    %p234 = scmp.eq.s32.totalorder %s20, 0
    %p235 = por %p233, %p234
    %p236 = scmp.ne.s32.totalorder %s222, %s223
    %p237 = scmp.eq.s32.totalorder %s21, 1
    %p238 = por %p236, %p237
    %p240 = scmp.ne.s32.totalorder %s223, %s239
    %p241 = scmp.eq.s32.totalorder %s21, 0
    %p242 = por %p240, %p241
    %p243 = scmp.le.s32.totalorder 1, %s15
    %p244 = scmp.lt.s32.totalorder %s15, 3
    %p245 = pnand %p243, %p244
    %p246 = pneg %p245
    // Predicated region
    $region9: #{dqn_conv1d_forward.1} parent=5 // pred_check
      _
    $region10: #{dqn_conv1d_forward.1} parent=5 // pred_check_branch
      %248 = sbr.rel (%p245) target = $region12
    $region11: #{dqn_conv1d_forward.1} parent=5 // pred_region
      %s249 = ssub.s32 %s15, 1
      // Predicated region
      $region13: #{dqn_conv1d_forward.1} parent=11 // pred_check
        %p250 = pneg %p62
      $region14: #{dqn_conv1d_forward.1} parent=11 // pred_check_branch
        %252 = sbr.rel (%p250) target = $region16
      $region15: #{dqn_conv1d_forward.1} parent=11 // pred_region
        _
      $region16: #{dqn_conv1d_forward.1} parent=11 // pred_fallthru
        _
      // Predicated region
      $region17: #{dqn_conv1d_forward.1} parent=11 // pred_check
        %p253 = pneg %p83
      $region18: #{dqn_conv1d_forward.1} parent=11 // pred_check_branch
        %255 = sbr.rel (%p253) target = $region20
      $region19: #{dqn_conv1d_forward.1} parent=11 // pred_region
        _
      $region20: #{dqn_conv1d_forward.1} parent=11 // pred_fallthru
        _
      // Predicated region
      $region21: #{dqn_conv1d_forward.1} parent=11 // pred_check
        %p256 = pneg %p104
      $region22: #{dqn_conv1d_forward.1} parent=11 // pred_check_branch
        %258 = sbr.rel (%p256) target = $region24
      $region23: #{dqn_conv1d_forward.1} parent=11 // pred_region
        _
      $region24: #{dqn_conv1d_forward.1} parent=11 // pred_fallthru
        _
      // Predicated region
      $region25: #{dqn_conv1d_forward.1} parent=11 // pred_check
        %p259 = pneg %p125
      $region26: #{dqn_conv1d_forward.1} parent=11 // pred_check_branch
        %261 = sbr.rel (%p259) target = $region28
      $region27: #{dqn_conv1d_forward.1} parent=11 // pred_region
        _
      $region28: #{dqn_conv1d_forward.1} parent=11 // pred_fallthru
        _
      // Predicated region
      $region29: #{dqn_conv1d_forward.1} parent=11 // pred_check
        %p262 = pneg %p146
      $region30: #{dqn_conv1d_forward.1} parent=11 // pred_check_branch
        %264 = sbr.rel (%p262) target = $region32
      $region31: #{dqn_conv1d_forward.1} parent=11 // pred_region
        _
      $region32: #{dqn_conv1d_forward.1} parent=11 // pred_fallthru
        _
      // Predicated region
      $region33: #{dqn_conv1d_forward.1} parent=11 // pred_check
        %p265 = pneg %p167
      $region34: #{dqn_conv1d_forward.1} parent=11 // pred_check_branch
        %267 = sbr.rel (%p265) target = $region36
      $region35: #{dqn_conv1d_forward.1} parent=11 // pred_region
        _
      $region36: #{dqn_conv1d_forward.1} parent=11 // pred_fallthru
        _
      // Predicated region
      $region37: #{dqn_conv1d_forward.1} parent=11 // pred_check
        %p268 = pneg %p188
      $region38: #{dqn_conv1d_forward.1} parent=11 // pred_check_branch
        %270 = sbr.rel (%p268) target = $region40
      $region39: #{dqn_conv1d_forward.1} parent=11 // pred_region
        _
      $region40: #{dqn_conv1d_forward.1} parent=11 // pred_fallthru
        _
      // Predicated region
      $region41: #{dqn_conv1d_forward.1} parent=11 // pred_check
        %p271 = pneg %p209
      $region42: #{dqn_conv1d_forward.1} parent=11 // pred_check_branch
        %273 = sbr.rel (%p271) target = $region44
      $region43: #{dqn_conv1d_forward.1} parent=11 // pred_region
        _
      $region44: #{dqn_conv1d_forward.1} parent=11 // pred_fallthru
        _
    $region12: #{dqn_conv1d_forward.1} parent=5 // pred_fallthru
      _
    %p274 = scmp.lt.s32.totalorder %s15, 2
    // Predicated region
    $region45: #{dqn_conv1d_forward.1} parent=5 // pred_check
      %p275 = pneg %p274
    $region46: #{dqn_conv1d_forward.1} parent=5 // pred_check_branch
      %277 = sbr.rel (%p275) target = $region48
    $region47: #{dqn_conv1d_forward.1} parent=5 // pred_region
      // Predicated region
      $region49: #{dqn_conv1d_forward.1} parent=47 // pred_check
        %p278 = pneg %p35
      $region50: #{dqn_conv1d_forward.1} parent=47 // pred_check_branch
        %280 = sbr.rel (%p278) target = $region52
      $region51: #{dqn_conv1d_forward.1} parent=47 // pred_region
        %s281 = smul.u32 16, %s15
        %p282 = scmp.lt.s32.totalorder %s281, 31
        %s283 = scalar_select %p282, %s281, 31
        %s284 = smul.addr %s283, 8
        %s285 = scalar_lea.vmem %s0, %s284
        %s286 = smul.u32 16, %s15
      $region52: #{dqn_conv1d_forward.1} parent=47 // pred_fallthru
        _
    $region48: #{dqn_conv1d_forward.1} parent=5 // pred_fallthru
      _
    %p287 = scmp.le.s32.totalorder 1, %s15
    %p288 = scmp.lt.s32.totalorder %s15, 3
    %p289 = pnand %p287, %p288
    %p290 = pneg %p289
    // Predicated region
    $region53: #{dqn_conv1d_forward.1} parent=5 // pred_check
      _
    $region54: #{dqn_conv1d_forward.1} parent=5 // pred_check_branch
      %292 = sbr.rel (%p289) target = $region56
    $region55: #{dqn_conv1d_forward.1} parent=5 // pred_region
      %s293 = ssub.s32 %s15, 1
      %s294 = smul.u32 16, %s20
      %p295 = scmp.lt.s32.totalorder %s294, 31
      %s296 = scalar_select %p295, %s294, 31
      %s297 = smul.addr %s296, 8
      %s298 = scalar_lea.vmem %s0, %s297
      %p299 = pneg %p41
      %p300 = pneg %p38
      %p301 = pneg %p62
      %p302 = pneg %p59
      %p303 = pneg %p83
      %p304 = pneg %p80
      %p305 = pneg %p104
      %p306 = pneg %p101
      %p307 = pneg %p125
      %p308 = pneg %p122
      %p309 = pneg %p146
      %p310 = pneg %p143
      %p311 = pneg %p167
      %p312 = pneg %p164
      %p313 = pneg %p188
      %p314 = pneg %p185
      %p315 = pneg %p209
      %p316 = pneg %p206
      %p317 = pneg %p235
      %p318 = pneg %p232
      %p319 = scmp.lt.s32.totalorder %s20, 1
      %s320 = scalar_select %p319, %s20, 1
      %s321 = smul.addr %s320, 8
      %s322 = scalar_lea.vmem %s9, %s321
      %s323 = smul.u32 16, %s20
      %p324 = scmp.lt.s32.totalorder %s323, 31
      %s325 = scalar_select %p324, %s323, 31
      %s326 = smul.addr %s325, 8
      %s327 = scalar_lea.vmem %s0, %s326
      %s328 = smul.u32 16, %s20
      %p329 = scmp.lt.s32.totalorder %s20, 1
      %s330 = scalar_select %p329, %s20, 1
      %s331 = smul.addr %s330, 8
      %s332 = scalar_lea.vmem %s9, %s331
      %v333 = vld [vmem:[%s327] sm:$0xff]
      %v334 = vld [vmem:[%s327 + $0x8] sm:$0xff]
      %v335 = vld [vmem:[%s327 + $0x10] sm:$0xff]
      %v336 = vld [vmem:[%s327 + $0x18] sm:$0xff]
      %v337 = vld [vmem:[%s327 + $0x20] sm:$0xff]
      %v338 = vld [vmem:[%s327 + $0x28] sm:$0xff]
      %v339 = vld [vmem:[%s327 + $0x30] sm:$0xff]
      %v340 = vld [vmem:[%s327 + $0x38] sm:$0xff]
      %v341 = vld [vmem:[%s327 + $0x40] sm:$0xff]
      %v342 = vld [vmem:[%s327 + $0x48] sm:$0xff]
      %v343 = vld [vmem:[%s327 + $0x50] sm:$0xff]
      %v344 = vld [vmem:[%s327 + $0x58] sm:$0xff]
      %v345 = vld [vmem:[%s1] sm:$0xf]
      %v346 = vld [vmem:[%s327 + $0x60] sm:$0xff]
      %s347 = scalar_lea.vmem %s1, 4
      %v348 = vld [vmem:[%s347] sm:$0xf]
      %vm349 = vcmask 31744
      %v351 = vsel %vm349, %v334, 0
      %v354 = vsel %vm349, %v335, 0
      %v357 = vsel %vm349, %v336, 0
      %v360 = vsel %vm349, %v337, 0
      %v363 = vsel %vm349, %v338, 0
      %v366 = vsel %vm349, %v339, 0
      %v369 = vsel %vm349, %v340, 0
      %v372 = vsel %vm349, %v341, 0
      %v375 = vsel %vm349, %v342, 0
      %v378 = vsel %vm349, %v343, 0
      %v381 = vsel %vm349, %v344, 0
      %v384 = vsel %vm349, %v346, 0
      %vm386 = vcmask 1043456
      %v388 = vsel %vm386, %v348, 0
      %390 = vmatprep.subr.mxu0 0.0
      %391 = vmatpush1.msra.mxu0 %v388
      %392 = vmatprep.subr.mxu0 0.0
      %393 = vmatpush1.msra.mxu0 0.0
      %394 = vmatprep.subr.mxu0 0.0
      %395 = vmatpush1.msra.mxu0 0.0
      %396 = vmatprep.subr.mxu0 0.0
      %397 = vmatpush1.msra.mxu0 0.0
      %398 = vmatprep.subr.mxu0 0.0
      %399 = vmatpush1.msra.mxu0 0.0
      %400 = vmatprep.subr.mxu0 0.0
      %401 = vmatpush1.msra.mxu0 0.0
      %402 = vmatprep.subr.mxu0 0.0
      %403 = vmatpush1.msra.mxu0 0.0
      %404 = vmatprep.subr.mxu0 0.0
      %405 = vmatpush1.msra.mxu0 0.0
      %406 = vmatprep.subr.mxu0 0.0
      %407 = vmatpush1.msra.mxu0 0.0
      %408 = vmatprep.subr.mxu0 0.0
      %409 = vmatpush1.msra.mxu0 0.0
      %410 = vmatprep.subr.mxu0 0.0
      %411 = vmatpush1.msra.mxu0 0.0
      %412 = vmatprep.subr.mxu0 0.0
      %413 = vmatpush1.msra.mxu0 0.0
      %414 = vmatprep.subr.mxu0 0.0
      %415 = vmatpush1.msra.mxu0 0.0
      %416 = vmatprep.subr.mxu0 0.0
      %417 = vmatpush1.msra.mxu0 0.0
      %418 = vmatprep.subr.mxu0 0.0
      %419 = vmatpush1.msra.mxu0 0.0
      %420 = vmatprep.subr.mxu0 0.0
      %421 = vmatpush1.msra.mxu0 0.0
      %422 = vmatprep.subr.mxu0 0.0
      %423 = vmatpush1.msra.mxu0 0.0
      %424 = vmatprep.subr.mxu0 0.0
      %425 = vmatpush1.msra.mxu0 0.0
      %426 = vmatprep.subr.mxu0 0.0
      %427 = vmatpush1.msra.mxu0 0.0
      %428 = vmatprep.subr.mxu0 0.0
      %429 = vmatpush1.msra.mxu0 0.0
      %430 = vmatprep.subr.mxu0 0.0
      %431 = vmatpush1.msra.mxu0 0.0
      %432 = vmatprep.subr.mxu0 0.0
      %433 = vmatpush1.msra.mxu0 0.0
      %434 = vmatprep.subr.mxu0 0.0
      %435 = vmatpush1.msra.mxu0 0.0
      %436 = vmatprep.subr.mxu0 0.0
      %437 = vmatpush1.msra.mxu0 0.0
      %438 = vmatprep.subr.mxu0 0.0
      %439 = vmatpush1.msra.mxu0 0.0
      %440 = vmatprep.subr.mxu0 0.0
      %441 = vmatpush1.msra.mxu0 0.0
      %442 = vmatprep.subr.mxu0 0.0
      %443 = vmatpush1.msra.mxu0 0.0
      %444 = vmatprep.subr.mxu0 0.0
      %445 = vmatpush1.msra.mxu0 0.0
      %446 = vmatprep.subr.mxu0 0.0
      %447 = vmatpush1.msra.mxu0 0.0
      %448 = vmatprep.subr.mxu0 0.0
      %449 = vmatpush1.msra.mxu0 0.0
      %450 = vmatprep.subr.mxu0 0.0
      %451 = vmatpush1.msra.mxu0 0.0
      %452 = vmatprep.subr.mxu0 0.0
      %453 = vmatpush1.msra.mxu0 0.0
      %454 = vmatprep.mubr.f32.mxu0 0.0
      %455 = vmatmul.mubr.f32.gmra.mrb[0].mxu0 %v351
      %v456 = vpop.f32.mrb[0].mxu0
      %v457 = vadd.f32 0.0, %v456
      %v458 = vpop.f32.mrb[0].mxu0
      %459 = vmatprep.mubr.f32.mxu0 0.0
      %460 = vmatmul.mubr.f32.gmra.mrb[0].mxu0 %v354
      %v461 = vpop.f32.mrb[0].mxu0
      %v462 = vadd.f32 0.0, %v461
      %v463 = vpop.f32.mrb[0].mxu0
      %464 = vmatprep.mubr.f32.mxu0 0.0
      %465 = vmatmul.mubr.f32.gmra.mrb[0].mxu0 %v357
      %v466 = vpop.f32.mrb[0].mxu0
      %v467 = vadd.f32 0.0, %v466
      %v468 = vpop.f32.mrb[0].mxu0
      %469 = vmatprep.mubr.f32.mxu0 0.0
      %470 = vmatmul.mubr.f32.gmra.mrb[0].mxu0 %v360
      %v471 = vpop.f32.mrb[0].mxu0
      %v472 = vadd.f32 0.0, %v471
      %v473 = vpop.f32.mrb[0].mxu0
      %474 = vmatprep.mubr.f32.mxu0 0.0
      %475 = vmatmul.mubr.f32.gmra.mrb[0].mxu0 %v363
      %v476 = vpop.f32.mrb[0].mxu0
      %v477 = vadd.f32 0.0, %v476
      %v478 = vpop.f32.mrb[0].mxu0
      %479 = vmatprep.mubr.f32.mxu0 0.0
      %480 = vmatmul.mubr.f32.gmra.mrb[0].mxu0 %v366
      %v481 = vpop.f32.mrb[0].mxu0
      %v482 = vadd.f32 0.0, %v481
      %v483 = vpop.f32.mrb[0].mxu0
      %484 = vmatprep.mubr.f32.mxu0 0.0
      %485 = vmatmul.mubr.f32.gmra.mrb[0].mxu0 %v369
      %v486 = vpop.f32.mrb[0].mxu0
      %v487 = vadd.f32 0.0, %v486
      %v488 = vpop.f32.mrb[0].mxu0
      %489 = vmatprep.mubr.f32.mxu0 0.0
      %490 = vmatmul.mubr.f32.gmra.mrb[0].mxu0 %v372
      %v491 = vpop.f32.mrb[0].mxu0
      %v492 = vadd.f32 0.0, %v491
      %v493 = vpop.f32.mrb[0].mxu0
      %494 = vmatprep.mubr.f32.mxu0 0.0
      %495 = vmatmul.mubr.f32.gmra.mrb[0].mxu0 %v375
      %v496 = vpop.f32.mrb[0].mxu0
      %v497 = vadd.f32 0.0, %v496
      %v498 = vpop.f32.mrb[0].mxu0
      %499 = vmatprep.mubr.f32.mxu0 0.0
      %500 = vmatmul.mubr.f32.gmra.mrb[0].mxu0 %v378
      %v501 = vpop.f32.mrb[0].mxu0
      %v502 = vadd.f32 0.0, %v501
      %v503 = vpop.f32.mrb[0].mxu0
      %504 = vmatprep.mubr.f32.mxu0 0.0
      %505 = vmatmul.mubr.f32.gmra.mrb[0].mxu0 %v381
      %v506 = vpop.f32.mrb[0].mxu0
      %v507 = vadd.f32 0.0, %v506
      %v508 = vpop.f32.mrb[0].mxu0
      %509 = vmatprep.mubr.f32.mxu0 0.0
      %510 = vmatmul.mubr.f32.gmra.mrb[0].mxu0 %v384
      %v511 = vpop.f32.mrb[0].mxu0
      %v512 = vadd.f32 0.0, %v511
      %v513 = vpop.f32.mrb[0].mxu0
      %514 = vdwg.mxu0
      %v516 = vsel %vm349, %v333, 0
      %v519 = vsel %vm386, %v345, 0
      %521 = vmatprep.subr.mxu0 0.0
      %522 = vmatpush1.msra.mxu0 %v519
      %523 = vmatprep.subr.mxu0 0.0
      %524 = vmatpush1.msra.mxu0 0.0
      %525 = vmatprep.subr.mxu0 0.0
      %526 = vmatpush1.msra.mxu0 0.0
      %527 = vmatprep.subr.mxu0 0.0
      %528 = vmatpush1.msra.mxu0 0.0
      %529 = vmatprep.subr.mxu0 0.0
      %530 = vmatpush1.msra.mxu0 0.0
      %531 = vmatprep.subr.mxu0 0.0
      %532 = vmatpush1.msra.mxu0 0.0
      %533 = vmatprep.subr.mxu0 0.0
      %534 = vmatpush1.msra.mxu0 0.0
      %535 = vmatprep.subr.mxu0 0.0
      %536 = vmatpush1.msra.mxu0 0.0
      %537 = vmatprep.subr.mxu0 0.0
      %538 = vmatpush1.msra.mxu0 0.0
      %539 = vmatprep.subr.mxu0 0.0
      %540 = vmatpush1.msra.mxu0 0.0
      %541 = vmatprep.subr.mxu0 0.0
      %542 = vmatpush1.msra.mxu0 0.0
      %543 = vmatprep.subr.mxu0 0.0
      %544 = vmatpush1.msra.mxu0 0.0
      %545 = vmatprep.subr.mxu0 0.0
      %546 = vmatpush1.msra.mxu0 0.0
      %547 = vmatprep.subr.mxu0 0.0
      %548 = vmatpush1.msra.mxu0 0.0
      %549 = vmatprep.subr.mxu0 0.0
      %550 = vmatpush1.msra.mxu0 0.0
      %551 = vmatprep.subr.mxu0 0.0
      %552 = vmatpush1.msra.mxu0 0.0
      %553 = vmatprep.subr.mxu0 0.0
      %554 = vmatpush1.msra.mxu0 0.0
      %555 = vmatprep.subr.mxu0 0.0
      %556 = vmatpush1.msra.mxu0 0.0
      %557 = vmatprep.subr.mxu0 0.0
      %558 = vmatpush1.msra.mxu0 0.0
      %559 = vmatprep.subr.mxu0 0.0
      %560 = vmatpush1.msra.mxu0 0.0
      %561 = vmatprep.subr.mxu0 0.0
      %562 = vmatpush1.msra.mxu0 0.0
      %563 = vmatprep.subr.mxu0 0.0
      %564 = vmatpush1.msra.mxu0 0.0
      %565 = vmatprep.subr.mxu0 0.0
      %566 = vmatpush1.msra.mxu0 0.0
      %567 = vmatprep.subr.mxu0 0.0
      %568 = vmatpush1.msra.mxu0 0.0
      %569 = vmatprep.subr.mxu0 0.0
      %570 = vmatpush1.msra.mxu0 0.0
      %571 = vmatprep.subr.mxu0 0.0
      %572 = vmatpush1.msra.mxu0 0.0
      %573 = vmatprep.subr.mxu0 0.0
      %574 = vmatpush1.msra.mxu0 0.0
      %575 = vmatprep.subr.mxu0 0.0
      %576 = vmatpush1.msra.mxu0 0.0
      %577 = vmatprep.subr.mxu0 0.0
      %578 = vmatpush1.msra.mxu0 0.0
      %579 = vmatprep.subr.mxu0 0.0
      %580 = vmatpush1.msra.mxu0 0.0
      %581 = vmatprep.subr.mxu0 0.0
      %582 = vmatpush1.msra.mxu0 0.0
      %583 = vmatprep.subr.mxu0 0.0
      %584 = vmatpush1.msra.mxu0 0.0
      %585 = vmatprep.mubr.f32.mxu0 0.0
      %586 = vmatmul.mubr.f32.gmra.mrb[0].mxu0 %v516
      %v587 = vpop.f32.mrb[0].mxu0
      %v588 = vadd.f32 %v457, %v587
      %v589 = vpop.f32.mrb[0].mxu0
      %590 = vmatprep.mubr.f32.mxu0 0.0
      %591 = vmatmul.mubr.f32.gmra.mrb[0].mxu0 %v351
      %v592 = vpop.f32.mrb[0].mxu0
      %v593 = vadd.f32 %v462, %v592
      %v594 = vpop.f32.mrb[0].mxu0
      %595 = vmatprep.mubr.f32.mxu0 0.0
      %596 = vmatmul.mubr.f32.gmra.mrb[0].mxu0 %v354
      %v597 = vpop.f32.mrb[0].mxu0
      %v598 = vadd.f32 %v467, %v597
      %v599 = vpop.f32.mrb[0].mxu0
      %600 = vmatprep.mubr.f32.mxu0 0.0
      %601 = vmatmul.mubr.f32.gmra.mrb[0].mxu0 %v357
      %v602 = vpop.f32.mrb[0].mxu0
      %v603 = vadd.f32 %v472, %v602
      %v604 = vpop.f32.mrb[0].mxu0
      %605 = vmatprep.mubr.f32.mxu0 0.0
      %606 = vmatmul.mubr.f32.gmra.mrb[0].mxu0 %v360
      %v607 = vpop.f32.mrb[0].mxu0
      %v608 = vadd.f32 %v477, %v607
      %v609 = vpop.f32.mrb[0].mxu0
      %610 = vmatprep.mubr.f32.mxu0 0.0
      %611 = vmatmul.mubr.f32.gmra.mrb[0].mxu0 %v363
      %v612 = vpop.f32.mrb[0].mxu0
      %v613 = vadd.f32 %v482, %v612
      %v614 = vpop.f32.mrb[0].mxu0
      %615 = vmatprep.mubr.f32.mxu0 0.0
      %616 = vmatmul.mubr.f32.gmra.mrb[0].mxu0 %v366
      %v617 = vpop.f32.mrb[0].mxu0
      %v618 = vadd.f32 %v487, %v617
      %v619 = vpop.f32.mrb[0].mxu0
      %620 = vmatprep.mubr.f32.mxu0 0.0
      %621 = vmatmul.mubr.f32.gmra.mrb[0].mxu0 %v369
      %v622 = vpop.f32.mrb[0].mxu0
      %v623 = vadd.f32 %v492, %v622
      %v624 = vpop.f32.mrb[0].mxu0
      %625 = vmatprep.mubr.f32.mxu0 0.0
      %626 = vmatmul.mubr.f32.gmra.mrb[0].mxu0 %v372
      %v627 = vpop.f32.mrb[0].mxu0
      %v628 = vadd.f32 %v497, %v627
      %v629 = vpop.f32.mrb[0].mxu0
      %630 = vmatprep.mubr.f32.mxu0 0.0
      %631 = vmatmul.mubr.f32.gmra.mrb[0].mxu0 %v375
      %v632 = vpop.f32.mrb[0].mxu0
      %v633 = vadd.f32 %v502, %v632
      %v634 = vpop.f32.mrb[0].mxu0
      %635 = vmatprep.mubr.f32.mxu0 0.0
      %636 = vmatmul.mubr.f32.gmra.mrb[0].mxu0 %v378
      %v637 = vpop.f32.mrb[0].mxu0
      %v638 = vadd.f32 %v507, %v637
      %v639 = vpop.f32.mrb[0].mxu0
      %640 = vmatprep.mubr.f32.mxu0 0.0
      %641 = vmatmul.mubr.f32.gmra.mrb[0].mxu0 %v381
      %v642 = vpop.f32.mrb[0].mxu0
      %v643 = vadd.f32 %v512, %v642
      %v644 = vpop.f32.mrb[0].mxu0
      %645 = vdwg.mxu0
      %v646 = vld [vmem:[%s327 + $0x10] sm:$0xff]
      %v647 = vld [vmem:[%s327 + $0x18] sm:$0xff]
      %v648 = vld [vmem:[%s327 + $0x20] sm:$0xff]
      %v649 = vld [vmem:[%s327 + $0x28] sm:$0xff]
      %v650 = vld [vmem:[%s327 + $0x30] sm:$0xff]
      %v651 = vld [vmem:[%s327 + $0x38] sm:$0xff]
      %v652 = vld [vmem:[%s327 + $0x40] sm:$0xff]
      %v653 = vld [vmem:[%s327 + $0x48] sm:$0xff]
      %v654 = vld [vmem:[%s327 + $0x50] sm:$0xff]
      %v655 = vld [vmem:[%s327 + $0x58] sm:$0xff]
      %v656 = vld [vmem:[%s327 + $0x60] sm:$0xff]
      %v657 = vld [vmem:[%s327 + $0x68] sm:$0xff]
      %s658 = scalar_lea.vmem %s1, 8
      %v659 = vld [vmem:[%s658] sm:$0xf]
      %v661 = vsel %vm349, %v646, 0
      %v664 = vsel %vm349, %v647, 0
      %v667 = vsel %vm349, %v648, 0
      %v670 = vsel %vm349, %v649, 0
      %v673 = vsel %vm349, %v650, 0
      %v676 = vsel %vm349, %v651, 0
      %v679 = vsel %vm349, %v652, 0
      %v682 = vsel %vm349, %v653, 0
      %v685 = vsel %vm349, %v654, 0
      %v688 = vsel %vm349, %v655, 0
      %v691 = vsel %vm349, %v656, 0
      %v694 = vsel %vm349, %v657, 0
      %v697 = vsel %vm386, %v659, 0
      %699 = vmatprep.subr.mxu0 0.0
      %700 = vmatpush1.msra.mxu0 %v697
      %701 = vmatprep.subr.mxu0 0.0
      %702 = vmatpush1.msra.mxu0 0.0
      %703 = vmatprep.subr.mxu0 0.0
      %704 = vmatpush1.msra.mxu0 0.0
      %705 = vmatprep.subr.mxu0 0.0
      %706 = vmatpush1.msra.mxu0 0.0
      %707 = vmatprep.subr.mxu0 0.0
      %708 = vmatpush1.msra.mxu0 0.0
      %709 = vmatprep.subr.mxu0 0.0
      %710 = vmatpush1.msra.mxu0 0.0
      %711 = vmatprep.subr.mxu0 0.0
      %712 = vmatpush1.msra.mxu0 0.0
      %713 = vmatprep.subr.mxu0 0.0
      %714 = vmatpush1.msra.mxu0 0.0
      %715 = vmatprep.subr.mxu0 0.0
      %716 = vmatpush1.msra.mxu0 0.0
      %717 = vmatprep.subr.mxu0 0.0
      %718 = vmatpush1.msra.mxu0 0.0
      %719 = vmatprep.subr.mxu0 0.0
      %720 = vmatpush1.msra.mxu0 0.0
      %721 = vmatprep.subr.mxu0 0.0
      %722 = vmatpush1.msra.mxu0 0.0
      %723 = vmatprep.subr.mxu0 0.0
      %724 = vmatpush1.msra.mxu0 0.0
      %725 = vmatprep.subr.mxu0 0.0
      %726 = vmatpush1.msra.mxu0 0.0
      %727 = vmatprep.subr.mxu0 0.0
      %728 = vmatpush1.msra.mxu0 0.0
      %729 = vmatprep.subr.mxu0 0.0
      %730 = vmatpush1.msra.mxu0 0.0
      %731 = vmatprep.subr.mxu0 0.0
      %732 = vmatpush1.msra.mxu0 0.0
      %733 = vmatprep.subr.mxu0 0.0
      %734 = vmatpush1.msra.mxu0 0.0
      %735 = vmatprep.subr.mxu0 0.0
      %736 = vmatpush1.msra.mxu0 0.0
      %737 = vmatprep.subr.mxu0 0.0
      %738 = vmatpush1.msra.mxu0 0.0
      %739 = vmatprep.subr.mxu0 0.0
      %740 = vmatpush1.msra.mxu0 0.0
      %741 = vmatprep.subr.mxu0 0.0
      %742 = vmatpush1.msra.mxu0 0.0
      %743 = vmatprep.subr.mxu0 0.0
      %744 = vmatpush1.msra.mxu0 0.0
      %745 = vmatprep.subr.mxu0 0.0
      %746 = vmatpush1.msra.mxu0 0.0
      %747 = vmatprep.subr.mxu0 0.0
      %748 = vmatpush1.msra.mxu0 0.0
      %749 = vmatprep.subr.mxu0 0.0
      %750 = vmatpush1.msra.mxu0 0.0
      %751 = vmatprep.subr.mxu0 0.0
      %752 = vmatpush1.msra.mxu0 0.0
      %753 = vmatprep.subr.mxu0 0.0
      %754 = vmatpush1.msra.mxu0 0.0
      %755 = vmatprep.subr.mxu0 0.0
      %756 = vmatpush1.msra.mxu0 0.0
      %757 = vmatprep.subr.mxu0 0.0
      %758 = vmatpush1.msra.mxu0 0.0
      %759 = vmatprep.subr.mxu0 0.0
      %760 = vmatpush1.msra.mxu0 0.0
      %761 = vmatprep.subr.mxu0 0.0
      %762 = vmatpush1.msra.mxu0 0.0
      %763 = vmatprep.mubr.f32.mxu0 0.0
      %764 = vmatmul.mubr.f32.gmra.mrb[0].mxu0 %v661
      %v765 = vpop.f32.mrb[0].mxu0
      %v766 = vadd.f32 0.0, %v765
      %v767 = vpop.f32.mrb[0].mxu0
      %768 = vmatprep.mubr.f32.mxu0 0.0
      %769 = vmatmul.mubr.f32.gmra.mrb[0].mxu0 %v664
      %v770 = vpop.f32.mrb[0].mxu0
      %v771 = vadd.f32 0.0, %v770
      %v772 = vpop.f32.mrb[0].mxu0
      %773 = vmatprep.mubr.f32.mxu0 0.0
      %774 = vmatmul.mubr.f32.gmra.mrb[0].mxu0 %v667
      %v775 = vpop.f32.mrb[0].mxu0
      %v776 = vadd.f32 0.0, %v775
      %v777 = vpop.f32.mrb[0].mxu0
      %778 = vmatprep.mubr.f32.mxu0 0.0
      %779 = vmatmul.mubr.f32.gmra.mrb[0].mxu0 %v670
      %v780 = vpop.f32.mrb[0].mxu0
      %v781 = vadd.f32 0.0, %v780
      %v782 = vpop.f32.mrb[0].mxu0
      %783 = vmatprep.mubr.f32.mxu0 0.0
      %784 = vmatmul.mubr.f32.gmra.mrb[0].mxu0 %v673
      %v785 = vpop.f32.mrb[0].mxu0
      %v786 = vadd.f32 0.0, %v785
      %v787 = vpop.f32.mrb[0].mxu0
      %788 = vmatprep.mubr.f32.mxu0 0.0
      %789 = vmatmul.mubr.f32.gmra.mrb[0].mxu0 %v676
      %v790 = vpop.f32.mrb[0].mxu0
      %v791 = vadd.f32 0.0, %v790
      %v792 = vpop.f32.mrb[0].mxu0
      %793 = vmatprep.mubr.f32.mxu0 0.0
      %794 = vmatmul.mubr.f32.gmra.mrb[0].mxu0 %v679
      %v795 = vpop.f32.mrb[0].mxu0
      %v796 = vadd.f32 0.0, %v795
      %v797 = vpop.f32.mrb[0].mxu0
      %798 = vmatprep.mubr.f32.mxu0 0.0
      %799 = vmatmul.mubr.f32.gmra.mrb[0].mxu0 %v682
      %v800 = vpop.f32.mrb[0].mxu0
      %v801 = vadd.f32 0.0, %v800
      %v802 = vpop.f32.mrb[0].mxu0
      %803 = vmatprep.mubr.f32.mxu0 0.0
      %804 = vmatmul.mubr.f32.gmra.mrb[0].mxu0 %v685
      %v805 = vpop.f32.mrb[0].mxu0
      %v806 = vadd.f32 0.0, %v805
      %v807 = vpop.f32.mrb[0].mxu0
      %808 = vmatprep.mubr.f32.mxu0 0.0
      %809 = vmatmul.mubr.f32.gmra.mrb[0].mxu0 %v688
      %v810 = vpop.f32.mrb[0].mxu0
      %v811 = vadd.f32 0.0, %v810
      %v812 = vpop.f32.mrb[0].mxu0
      %813 = vmatprep.mubr.f32.mxu0 0.0
      %814 = vmatmul.mubr.f32.gmra.mrb[0].mxu0 %v691
      %v815 = vpop.f32.mrb[0].mxu0
      %v816 = vadd.f32 0.0, %v815
      %v817 = vpop.f32.mrb[0].mxu0
      %818 = vmatprep.mubr.f32.mxu0 0.0
      %819 = vmatmul.mubr.f32.gmra.mrb[0].mxu0 %v694
      %v820 = vpop.f32.mrb[0].mxu0
      %v821 = vadd.f32 0.0, %v820
      %v822 = vpop.f32.mrb[0].mxu0
      %823 = vdwg.mxu0
      %v824 = vadd.f32 %v588, %v766
      %v825 = vadd.f32 %v593, %v771
      %v826 = vadd.f32 %v598, %v776
      %v827 = vadd.f32 %v603, %v781
      %v828 = vadd.f32 %v608, %v786
      %v829 = vadd.f32 %v613, %v791
      %v830 = vadd.f32 %v618, %v796
      %v831 = vadd.f32 %v623, %v801
      %v832 = vadd.f32 %v628, %v806
      %v833 = vadd.f32 %v633, %v811
      %v834 = vadd.f32 %v638, %v816
      %v835 = vadd.f32 %v643, %v821
      %v836 = vld [vmem:[%s327 + $0x18] sm:$0xff]
      %v837 = vld [vmem:[%s327 + $0x20] sm:$0xff]
      %v838 = vld [vmem:[%s327 + $0x28] sm:$0xff]
      %v839 = vld [vmem:[%s327 + $0x30] sm:$0xff]
      %v840 = vld [vmem:[%s327 + $0x38] sm:$0xff]
      %v841 = vld [vmem:[%s327 + $0x40] sm:$0xff]
      %v842 = vld [vmem:[%s327 + $0x48] sm:$0xff]
      %v843 = vld [vmem:[%s327 + $0x50] sm:$0xff]
      %v844 = vld [vmem:[%s327 + $0x58] sm:$0xff]
      %v845 = vld [vmem:[%s327 + $0x60] sm:$0xff]
      %v846 = vld [vmem:[%s327 + $0x68] sm:$0xff]
      %v847 = vld [vmem:[%s327 + $0x70] sm:$0xff]
      %s848 = scalar_lea.vmem %s1, 12
      %v849 = vld [vmem:[%s848] sm:$0xf]
      %v851 = vsel %vm349, %v836, 0
      %v854 = vsel %vm349, %v837, 0
      %v857 = vsel %vm349, %v838, 0
      %v860 = vsel %vm349, %v839, 0
      %v863 = vsel %vm349, %v840, 0
      %v866 = vsel %vm349, %v841, 0
      %v869 = vsel %vm349, %v842, 0
      %v872 = vsel %vm349, %v843, 0
      %v875 = vsel %vm349, %v844, 0
      %v878 = vsel %vm349, %v845, 0
      %v881 = vsel %vm349, %v846, 0
      %v884 = vsel %vm349, %v847, 0
      %v887 = vsel %vm386, %v849, 0
      %889 = vmatprep.subr.mxu0 0.0
      %890 = vmatpush1.msra.mxu0 %v887
      %891 = vmatprep.subr.mxu0 0.0
      %892 = vmatpush1.msra.mxu0 0.0
      %893 = vmatprep.subr.mxu0 0.0
      %894 = vmatpush1.msra.mxu0 0.0
      %895 = vmatprep.subr.mxu0 0.0
      %896 = vmatpush1.msra.mxu0 0.0
      %897 = vmatprep.subr.mxu0 0.0
      %898 = vmatpush1.msra.mxu0 0.0
      %899 = vmatprep.subr.mxu0 0.0
      %900 = vmatpush1.msra.mxu0 0.0
      %901 = vmatprep.subr.mxu0 0.0
      %902 = vmatpush1.msra.mxu0 0.0
      %903 = vmatprep.subr.mxu0 0.0
      %904 = vmatpush1.msra.mxu0 0.0
      %905 = vmatprep.subr.mxu0 0.0
      %906 = vmatpush1.msra.mxu0 0.0
      %907 = vmatprep.subr.mxu0 0.0
      %908 = vmatpush1.msra.mxu0 0.0
      %909 = vmatprep.subr.mxu0 0.0
      %910 = vmatpush1.msra.mxu0 0.0
      %911 = vmatprep.subr.mxu0 0.0
      %912 = vmatpush1.msra.mxu0 0.0
      %913 = vmatprep.subr.mxu0 0.0
      %914 = vmatpush1.msra.mxu0 0.0
      %915 = vmatprep.subr.mxu0 0.0
      %916 = vmatpush1.msra.mxu0 0.0
      %917 = vmatprep.subr.mxu0 0.0
      %918 = vmatpush1.msra.mxu0 0.0
      %919 = vmatprep.subr.mxu0 0.0
      %920 = vmatpush1.msra.mxu0 0.0
      %921 = vmatprep.subr.mxu0 0.0
      %922 = vmatpush1.msra.mxu0 0.0
      %923 = vmatprep.subr.mxu0 0.0
      %924 = vmatpush1.msra.mxu0 0.0
      %925 = vmatprep.subr.mxu0 0.0
      %926 = vmatpush1.msra.mxu0 0.0
      %927 = vmatprep.subr.mxu0 0.0
      %928 = vmatpush1.msra.mxu0 0.0
      %929 = vmatprep.subr.mxu0 0.0
      %930 = vmatpush1.msra.mxu0 0.0
      %931 = vmatprep.subr.mxu0 0.0
      %932 = vmatpush1.msra.mxu0 0.0
      %933 = vmatprep.subr.mxu0 0.0
      %934 = vmatpush1.msra.mxu0 0.0
      %935 = vmatprep.subr.mxu0 0.0
      %936 = vmatpush1.msra.mxu0 0.0
      %937 = vmatprep.subr.mxu0 0.0
      %938 = vmatpush1.msra.mxu0 0.0
      %939 = vmatprep.subr.mxu0 0.0
      %940 = vmatpush1.msra.mxu0 0.0
      %941 = vmatprep.subr.mxu0 0.0
      %942 = vmatpush1.msra.mxu0 0.0
      %943 = vmatprep.subr.mxu0 0.0
      %944 = vmatpush1.msra.mxu0 0.0
      %945 = vmatprep.subr.mxu0 0.0
      %946 = vmatpush1.msra.mxu0 0.0
      %947 = vmatprep.subr.mxu0 0.0
      %948 = vmatpush1.msra.mxu0 0.0
      %949 = vmatprep.subr.mxu0 0.0
      %950 = vmatpush1.msra.mxu0 0.0
      %951 = vmatprep.subr.mxu0 0.0
      %952 = vmatpush1.msra.mxu0 0.0
      %953 = vmatprep.mubr.f32.mxu0 0.0
      %954 = vmatmul.mubr.f32.gmra.mrb[0].mxu0 %v851
      %v955 = vpop.f32.mrb[0].mxu0
      %v956 = vadd.f32 0.0, %v955
      %v957 = vpop.f32.mrb[0].mxu0
      %958 = vmatprep.mubr.f32.mxu0 0.0
      %959 = vmatmul.mubr.f32.gmra.mrb[0].mxu0 %v854
      %v960 = vpop.f32.mrb[0].mxu0
      %v961 = vadd.f32 0.0, %v960
      %v962 = vpop.f32.mrb[0].mxu0
      %963 = vmatprep.mubr.f32.mxu0 0.0
      %964 = vmatmul.mubr.f32.gmra.mrb[0].mxu0 %v857
      %v965 = vpop.f32.mrb[0].mxu0
      %v966 = vadd.f32 0.0, %v965
      %v967 = vpop.f32.mrb[0].mxu0
      %968 = vmatprep.mubr.f32.mxu0 0.0
      %969 = vmatmul.mubr.f32.gmra.mrb[0].mxu0 %v860
      %v970 = vpop.f32.mrb[0].mxu0
      %v971 = vadd.f32 0.0, %v970
      %v972 = vpop.f32.mrb[0].mxu0
      %973 = vmatprep.mubr.f32.mxu0 0.0
      %974 = vmatmul.mubr.f32.gmra.mrb[0].mxu0 %v863
      %v975 = vpop.f32.mrb[0].mxu0
      %v976 = vadd.f32 0.0, %v975
      %v977 = vpop.f32.mrb[0].mxu0
      %978 = vmatprep.mubr.f32.mxu0 0.0
      %979 = vmatmul.mubr.f32.gmra.mrb[0].mxu0 %v866
      %v980 = vpop.f32.mrb[0].mxu0
      %v981 = vadd.f32 0.0, %v980
      %v982 = vpop.f32.mrb[0].mxu0
      %983 = vmatprep.mubr.f32.mxu0 0.0
      %984 = vmatmul.mubr.f32.gmra.mrb[0].mxu0 %v869
      %v985 = vpop.f32.mrb[0].mxu0
      %v986 = vadd.f32 0.0, %v985
      %v987 = vpop.f32.mrb[0].mxu0
      %988 = vmatprep.mubr.f32.mxu0 0.0
      %989 = vmatmul.mubr.f32.gmra.mrb[0].mxu0 %v872
      %v990 = vpop.f32.mrb[0].mxu0
      %v991 = vadd.f32 0.0, %v990
      %v992 = vpop.f32.mrb[0].mxu0
      %993 = vmatprep.mubr.f32.mxu0 0.0
      %994 = vmatmul.mubr.f32.gmra.mrb[0].mxu0 %v875
      %v995 = vpop.f32.mrb[0].mxu0
      %v996 = vadd.f32 0.0, %v995
      %v997 = vpop.f32.mrb[0].mxu0
      %998 = vmatprep.mubr.f32.mxu0 0.0
      %999 = vmatmul.mubr.f32.gmra.mrb[0].mxu0 %v878
      %v1000 = vpop.f32.mrb[0].mxu0
      %v1001 = vadd.f32 0.0, %v1000
      %v1002 = vpop.f32.mrb[0].mxu0
      %1003 = vmatprep.mubr.f32.mxu0 0.0
      %1004 = vmatmul.mubr.f32.gmra.mrb[0].mxu0 %v881
      %v1005 = vpop.f32.mrb[0].mxu0
      %v1006 = vadd.f32 0.0, %v1005
      %v1007 = vpop.f32.mrb[0].mxu0
      %1008 = vmatprep.mubr.f32.mxu0 0.0
      %1009 = vmatmul.mubr.f32.gmra.mrb[0].mxu0 %v884
      %v1010 = vpop.f32.mrb[0].mxu0
      %v1011 = vadd.f32 0.0, %v1010
      %v1012 = vpop.f32.mrb[0].mxu0
      %1013 = vdwg.mxu0
      %v1014 = vadd.f32 %v824, %v956
      %v1015 = vadd.f32 %v825, %v961
      %v1016 = vadd.f32 %v826, %v966
      %v1017 = vadd.f32 %v827, %v971
      %v1018 = vadd.f32 %v828, %v976
      %v1019 = vadd.f32 %v829, %v981
      %v1020 = vadd.f32 %v830, %v986
      %v1021 = vadd.f32 %v831, %v991
      %v1022 = vadd.f32 %v832, %v996
      %v1023 = vadd.f32 %v833, %v1001
      %v1024 = vadd.f32 %v834, %v1006
      %v1025 = vadd.f32 %v835, %v1011
      %v1026 = vld [vmem:[%s327 + $0x20] sm:$0xff]
      %v1027 = vld [vmem:[%s327 + $0x28] sm:$0xff]
      %v1028 = vld [vmem:[%s327 + $0x30] sm:$0xff]
      %v1029 = vld [vmem:[%s327 + $0x38] sm:$0xff]
      %v1030 = vld [vmem:[%s327 + $0x40] sm:$0xff]
      %v1031 = vld [vmem:[%s327 + $0x48] sm:$0xff]
      %v1032 = vld [vmem:[%s327 + $0x50] sm:$0xff]
      %v1033 = vld [vmem:[%s327 + $0x58] sm:$0xff]
      %v1034 = vld [vmem:[%s327 + $0x60] sm:$0xff]
      %v1035 = vld [vmem:[%s327 + $0x68] sm:$0xff]
      %v1036 = vld [vmem:[%s327 + $0x70] sm:$0xff]
      %v1037 = vld [vmem:[%s327 + $0x78] sm:$0xff]
      %s1038 = scalar_lea.vmem %s1, 16
      %v1039 = vld [vmem:[%s1038] sm:$0xf]
      %v1041 = vsel %vm349, %v1026, 0
      %v1044 = vsel %vm349, %v1027, 0
      %v1047 = vsel %vm349, %v1028, 0
      %v1050 = vsel %vm349, %v1029, 0
      %v1053 = vsel %vm349, %v1030, 0
      %v1056 = vsel %vm349, %v1031, 0
      %v1059 = vsel %vm349, %v1032, 0
      %v1062 = vsel %vm349, %v1033, 0
      %v1065 = vsel %vm349, %v1034, 0
      %v1068 = vsel %vm349, %v1035, 0
      %v1071 = vsel %vm349, %v1036, 0
      %v1074 = vsel %vm349, %v1037, 0
      %v1077 = vsel %vm386, %v1039, 0
      %1079 = vmatprep.subr.mxu0 0.0
      %1080 = vmatpush1.msra.mxu0 %v1077
      %1081 = vmatprep.subr.mxu0 0.0
      %1082 = vmatpush1.msra.mxu0 0.0
      %1083 = vmatprep.subr.mxu0 0.0
      %1084 = vmatpush1.msra.mxu0 0.0
      %1085 = vmatprep.subr.mxu0 0.0
      %1086 = vmatpush1.msra.mxu0 0.0
      %1087 = vmatprep.subr.mxu0 0.0
      %1088 = vmatpush1.msra.mxu0 0.0
      %1089 = vmatprep.subr.mxu0 0.0
      %1090 = vmatpush1.msra.mxu0 0.0
      %1091 = vmatprep.subr.mxu0 0.0
      %1092 = vmatpush1.msra.mxu0 0.0
      %1093 = vmatprep.subr.mxu0 0.0
      %1094 = vmatpush1.msra.mxu0 0.0
      %1095 = vmatprep.subr.mxu0 0.0
      %1096 = vmatpush1.msra.mxu0 0.0
      %1097 = vmatprep.subr.mxu0 0.0
      %1098 = vmatpush1.msra.mxu0 0.0
      %1099 = vmatprep.subr.mxu0 0.0
      %1100 = vmatpush1.msra.mxu0 0.0
      %1101 = vmatprep.subr.mxu0 0.0
      %1102 = vmatpush1.msra.mxu0 0.0
      %1103 = vmatprep.subr.mxu0 0.0
      %1104 = vmatpush1.msra.mxu0 0.0
      %1105 = vmatprep.subr.mxu0 0.0
      %1106 = vmatpush1.msra.mxu0 0.0
      %1107 = vmatprep.subr.mxu0 0.0
      %1108 = vmatpush1.msra.mxu0 0.0
      %1109 = vmatprep.subr.mxu0 0.0
      %1110 = vmatpush1.msra.mxu0 0.0
      %1111 = vmatprep.subr.mxu0 0.0
      %1112 = vmatpush1.msra.mxu0 0.0
      %1113 = vmatprep.subr.mxu0 0.0
      %1114 = vmatpush1.msra.mxu0 0.0
      %1115 = vmatprep.subr.mxu0 0.0
      %1116 = vmatpush1.msra.mxu0 0.0
      %1117 = vmatprep.subr.mxu0 0.0
      %1118 = vmatpush1.msra.mxu0 0.0
      %1119 = vmatprep.subr.mxu0 0.0
      %1120 = vmatpush1.msra.mxu0 0.0
      %1121 = vmatprep.subr.mxu0 0.0
      %1122 = vmatpush1.msra.mxu0 0.0
      %1123 = vmatprep.subr.mxu0 0.0
      %1124 = vmatpush1.msra.mxu0 0.0
      %1125 = vmatprep.subr.mxu0 0.0
      %1126 = vmatpush1.msra.mxu0 0.0
      %1127 = vmatprep.subr.mxu0 0.0
      %1128 = vmatpush1.msra.mxu0 0.0
      %1129 = vmatprep.subr.mxu0 0.0
      %1130 = vmatpush1.msra.mxu0 0.0
      %1131 = vmatprep.subr.mxu0 0.0
      %1132 = vmatpush1.msra.mxu0 0.0
      %1133 = vmatprep.subr.mxu0 0.0
      %1134 = vmatpush1.msra.mxu0 0.0
      %1135 = vmatprep.subr.mxu0 0.0
      %1136 = vmatpush1.msra.mxu0 0.0
      %1137 = vmatprep.subr.mxu0 0.0
      %1138 = vmatpush1.msra.mxu0 0.0
      %1139 = vmatprep.subr.mxu0 0.0
      %1140 = vmatpush1.msra.mxu0 0.0
      %1141 = vmatprep.subr.mxu0 0.0
      %1142 = vmatpush1.msra.mxu0 0.0
      %1143 = vmatprep.mubr.f32.mxu0 0.0
      %1144 = vmatmul.mubr.f32.gmra.mrb[0].mxu0 %v1041
      %v1145 = vpop.f32.mrb[0].mxu0
      %v1146 = vadd.f32 0.0, %v1145
      %v1147 = vpop.f32.mrb[0].mxu0
      %1148 = vmatprep.mubr.f32.mxu0 0.0
      %1149 = vmatmul.mubr.f32.gmra.mrb[0].mxu0 %v1044
      %v1150 = vpop.f32.mrb[0].mxu0
      %v1151 = vadd.f32 0.0, %v1150
      %v1152 = vpop.f32.mrb[0].mxu0
      %1153 = vmatprep.mubr.f32.mxu0 0.0
      %1154 = vmatmul.mubr.f32.gmra.mrb[0].mxu0 %v1047
      %v1155 = vpop.f32.mrb[0].mxu0
      %v1156 = vadd.f32 0.0, %v1155
      %v1157 = vpop.f32.mrb[0].mxu0
      %1158 = vmatprep.mubr.f32.mxu0 0.0
      %1159 = vmatmul.mubr.f32.gmra.mrb[0].mxu0 %v1050
      %v1160 = vpop.f32.mrb[0].mxu0
      %v1161 = vadd.f32 0.0, %v1160
      %v1162 = vpop.f32.mrb[0].mxu0
      %1163 = vmatprep.mubr.f32.mxu0 0.0
      %1164 = vmatmul.mubr.f32.gmra.mrb[0].mxu0 %v1053
      %v1165 = vpop.f32.mrb[0].mxu0
      %v1166 = vadd.f32 0.0, %v1165
      %v1167 = vpop.f32.mrb[0].mxu0
      %1168 = vmatprep.mubr.f32.mxu0 0.0
      %1169 = vmatmul.mubr.f32.gmra.mrb[0].mxu0 %v1056
      %v1170 = vpop.f32.mrb[0].mxu0
      %v1171 = vadd.f32 0.0, %v1170
      %v1172 = vpop.f32.mrb[0].mxu0
      %1173 = vmatprep.mubr.f32.mxu0 0.0
      %1174 = vmatmul.mubr.f32.gmra.mrb[0].mxu0 %v1059
      %v1175 = vpop.f32.mrb[0].mxu0
      %v1176 = vadd.f32 0.0, %v1175
      %v1177 = vpop.f32.mrb[0].mxu0
      %1178 = vmatprep.mubr.f32.mxu0 0.0
      %1179 = vmatmul.mubr.f32.gmra.mrb[0].mxu0 %v1062
      %v1180 = vpop.f32.mrb[0].mxu0
      %v1181 = vadd.f32 0.0, %v1180
      %v1182 = vpop.f32.mrb[0].mxu0
      %1183 = vmatprep.mubr.f32.mxu0 0.0
      %1184 = vmatmul.mubr.f32.gmra.mrb[0].mxu0 %v1065
      %v1185 = vpop.f32.mrb[0].mxu0
      %v1186 = vadd.f32 0.0, %v1185
      %v1187 = vpop.f32.mrb[0].mxu0
      %1188 = vmatprep.mubr.f32.mxu0 0.0
      %1189 = vmatmul.mubr.f32.gmra.mrb[0].mxu0 %v1068
      %v1190 = vpop.f32.mrb[0].mxu0
      %v1191 = vadd.f32 0.0, %v1190
      %v1192 = vpop.f32.mrb[0].mxu0
      %1193 = vmatprep.mubr.f32.mxu0 0.0
      %1194 = vmatmul.mubr.f32.gmra.mrb[0].mxu0 %v1071
      %v1195 = vpop.f32.mrb[0].mxu0
      %v1196 = vadd.f32 0.0, %v1195
      %v1197 = vpop.f32.mrb[0].mxu0
      %1198 = vmatprep.mubr.f32.mxu0 0.0
      %1199 = vmatmul.mubr.f32.gmra.mrb[0].mxu0 %v1074
      %v1200 = vpop.f32.mrb[0].mxu0
      %v1201 = vadd.f32 0.0, %v1200
      %v1202 = vpop.f32.mrb[0].mxu0
      %1203 = vdwg.mxu0
      %v1204 = vadd.f32 %v1014, %v1146
      %v1205 = vadd.f32 %v1015, %v1151
      %v1206 = vadd.f32 %v1016, %v1156
      %v1207 = vadd.f32 %v1017, %v1161
      %v1208 = vadd.f32 %v1018, %v1166
      %v1209 = vadd.f32 %v1019, %v1171
      %v1210 = vadd.f32 %v1020, %v1176
      %v1211 = vadd.f32 %v1021, %v1181
      %v1212 = vadd.f32 %v1022, %v1186
      %v1213 = vadd.f32 %v1023, %v1191
      %v1214 = vadd.f32 %v1024, %v1196
      %v1215 = vadd.f32 %v1025, %v1201
      %v1216 = vld [vmem:[%s2] sm:$0x1]
      %v1218 = vlaneseq
      %v1219 = vshrl.u32 %v1218, 7
      %v1220 = vsub.s32 0, %v1219
      %v1221 = vrot.slane %v1216, %v1220
      %v1223 = vadd.f32 %v1204, %v1221
      %v1224 = vadd.f32 %v1205, %v1221
      %v1225 = vadd.f32 %v1206, %v1221
      %v1226 = vadd.f32 %v1207, %v1221
      %v1227 = vadd.f32 %v1208, %v1221
      %v1228 = vadd.f32 %v1209, %v1221
      %v1229 = vadd.f32 %v1210, %v1221
      %v1230 = vadd.f32 %v1211, %v1221
      %v1231 = vadd.f32 %v1212, %v1221
      %v1232 = vadd.f32 %v1213, %v1221
      %v1233 = vadd.f32 %v1214, %v1221
      %v1234 = vadd.f32 %v1215, %v1221
      %v1235 = vmax.f32 %v1223, 0.0
      %v1236 = vmax.f32 %v1224, 0.0
      %v1237 = vmax.f32 %v1225, 0.0
      %v1238 = vmax.f32 %v1226, 0.0
      %v1239 = vmax.f32 %v1227, 0.0
      %v1240 = vmax.f32 %v1228, 0.0
      %v1241 = vmax.f32 %v1229, 0.0
      %v1242 = vmax.f32 %v1230, 0.0
      %v1243 = vmax.f32 %v1231, 0.0
      %v1244 = vmax.f32 %v1232, 0.0
      %v1245 = vmax.f32 %v1233, 0.0
      %v1246 = vmax.f32 %v1234, 0.0
      %v1247 = vld [vmem:[%s3] sm:$0xff]
      %v1248 = vld [vmem:[%s3 + $0x8] sm:$0xff]
      %v1249 = vld [vmem:[%s3 + $0x10] sm:$0xff]
      %v1250 = vld [vmem:[%s3 + $0x18] sm:$0xff]
      %v1251 = vld [vmem:[%s3 + $0x20] sm:$0xff]
      %v1252 = vld [vmem:[%s3 + $0x28] sm:$0xff]
      %v1253 = vld [vmem:[%s3 + $0x30] sm:$0xff]
      %v1254 = vld [vmem:[%s3 + $0x38] sm:$0xff]
      %v1255 = vld [vmem:[%s3 + $0x40] sm:$0xff]
      %v1256 = vld [vmem:[%s3 + $0x48] sm:$0xff]
      %v1257 = vld [vmem:[%s3 + $0x50] sm:$0xff]
      %v1258 = vld [vmem:[%s3 + $0x58] sm:$0xff]
      %v1259 = vld [vmem:[%s3 + $0x60] sm:$0xff]
      %v1260 = vld [vmem:[%s3 + $0x68] sm:$0xff]
      %v1261 = vld [vmem:[%s3 + $0x70] sm:$0xff]
      %v1262 = vld [vmem:[%s3 + $0x78] sm:$0xff]
      %s1263 = scalar_lea.vmem %s3, 128
      %v1264 = vld [vmem:[%s1263] sm:$0xff]
      %v1265 = vld [vmem:[%s1263 + $0x8] sm:$0xff]
      %v1266 = vld [vmem:[%s1263 + $0x10] sm:$0xff]
      %v1267 = vld [vmem:[%s1263 + $0x18] sm:$0xff]
      %v1268 = vld [vmem:[%s1263 + $0x20] sm:$0xff]
      %v1269 = vld [vmem:[%s1263 + $0x28] sm:$0xff]
      %v1270 = vld [vmem:[%s1263 + $0x30] sm:$0xff]
      %v1271 = vld [vmem:[%s1263 + $0x38] sm:$0xff]
      %v1272 = vld [vmem:[%s1263 + $0x40] sm:$0xff]
      %v1273 = vld [vmem:[%s1263 + $0x48] sm:$0xff]
      %v1274 = vld [vmem:[%s1263 + $0x50] sm:$0xff]
      %v1275 = vld [vmem:[%s1263 + $0x58] sm:$0xff]
      %v1276 = vld [vmem:[%s1263 + $0x60] sm:$0xff]
      %v1277 = vld [vmem:[%s1263 + $0x68] sm:$0xff]
      %v1278 = vld [vmem:[%s1263 + $0x70] sm:$0xff]
      %v1279 = vld [vmem:[%s1263 + $0x78] sm:$0xff]
      %1280 = vmatprep.subr.mxu0 0.0
      %1281 = vmatpush1.msra.mxu0 %v1264
      %1282 = vmatprep.subr.mxu0 0.0
      %1283 = vmatpush1.msra.mxu0 %v1265
      %1284 = vmatprep.subr.mxu0 0.0
      %1285 = vmatpush1.msra.mxu0 %v1266
      %1286 = vmatprep.subr.mxu0 0.0
      %1287 = vmatpush1.msra.mxu0 %v1267
      %1288 = vmatprep.subr.mxu0 0.0
      %1289 = vmatpush1.msra.mxu0 %v1268
      %1290 = vmatprep.subr.mxu0 0.0
      %1291 = vmatpush1.msra.mxu0 %v1269
      %1292 = vmatprep.subr.mxu0 0.0
      %1293 = vmatpush1.msra.mxu0 %v1270
      %1294 = vmatprep.subr.mxu0 0.0
      %1295 = vmatpush1.msra.mxu0 %v1271
      %1296 = vmatprep.subr.mxu0 0.0
      %1297 = vmatpush1.msra.mxu0 %v1272
      %1298 = vmatprep.subr.mxu0 0.0
      %1299 = vmatpush1.msra.mxu0 %v1273
      %1300 = vmatprep.subr.mxu0 0.0
      %1301 = vmatpush1.msra.mxu0 %v1274
      %1302 = vmatprep.subr.mxu0 0.0
      %1303 = vmatpush1.msra.mxu0 %v1275
      %1304 = vmatprep.subr.mxu0 0.0
      %1305 = vmatpush1.msra.mxu0 %v1276
      %1306 = vmatprep.subr.mxu0 0.0
      %1307 = vmatpush1.msra.mxu0 %v1277
      %1308 = vmatprep.subr.mxu0 0.0
      %1309 = vmatpush1.msra.mxu0 %v1278
      %1310 = vmatprep.subr.mxu0 0.0
      %1311 = vmatpush1.msra.mxu0 %v1279
      %1312 = vmatprep.subr.mxu0 0.0
      %1313 = vmatpush1.msra.mxu0 0.0
      %1314 = vmatprep.subr.mxu0 0.0
      %1315 = vmatpush1.msra.mxu0 0.0
      %1316 = vmatprep.subr.mxu0 0.0
      %1317 = vmatpush1.msra.mxu0 0.0
      %1318 = vmatprep.subr.mxu0 0.0
      %1319 = vmatpush1.msra.mxu0 0.0
      %1320 = vmatprep.subr.mxu0 0.0
      %1321 = vmatpush1.msra.mxu0 0.0
      %1322 = vmatprep.subr.mxu0 0.0
      %1323 = vmatpush1.msra.mxu0 0.0
      %1324 = vmatprep.subr.mxu0 0.0
      %1325 = vmatpush1.msra.mxu0 0.0
      %1326 = vmatprep.subr.mxu0 0.0
      %1327 = vmatpush1.msra.mxu0 0.0
      %1328 = vmatprep.subr.mxu0 0.0
      %1329 = vmatpush1.msra.mxu0 0.0
      %1330 = vmatprep.subr.mxu0 0.0
      %1331 = vmatpush1.msra.mxu0 0.0
      %1332 = vmatprep.subr.mxu0 0.0
      %1333 = vmatpush1.msra.mxu0 0.0
      %1334 = vmatprep.subr.mxu0 0.0
      %1335 = vmatpush1.msra.mxu0 0.0
      %1336 = vmatprep.subr.mxu0 0.0
      %1337 = vmatpush1.msra.mxu0 0.0
      %1338 = vmatprep.subr.mxu0 0.0
      %1339 = vmatpush1.msra.mxu0 0.0
      %1340 = vmatprep.subr.mxu0 0.0
      %1341 = vmatpush1.msra.mxu0 0.0
      %1342 = vmatprep.subr.mxu0 0.0
      %1343 = vmatpush1.msra.mxu0 0.0
      %1344 = vmatprep.mubr.f32.mxu0 0.0
      %1345 = vmatmul.mubr.f32.gmra.mrb[0].mxu0 %v1236
      %v1346 = vpop.f32.mrb[0].mxu0
      %v1347 = vadd.f32 0.0, %v1346
      %v1348 = vpop.f32.mrb[0].mxu0
      %1349 = vmatprep.mubr.f32.mxu0 0.0
      %1350 = vmatmul.mubr.f32.gmra.mrb[0].mxu0 %v1237
      %v1351 = vpop.f32.mrb[0].mxu0
      %v1352 = vadd.f32 0.0, %v1351
      %v1353 = vpop.f32.mrb[0].mxu0
      %1354 = vmatprep.mubr.f32.mxu0 0.0
      %1355 = vmatmul.mubr.f32.gmra.mrb[0].mxu0 %v1238
      %v1356 = vpop.f32.mrb[0].mxu0
      %v1357 = vadd.f32 0.0, %v1356
      %v1358 = vpop.f32.mrb[0].mxu0
      %1359 = vmatprep.mubr.f32.mxu0 0.0
      %1360 = vmatmul.mubr.f32.gmra.mrb[0].mxu0 %v1239
      %v1361 = vpop.f32.mrb[0].mxu0
      %v1362 = vadd.f32 0.0, %v1361
      %v1363 = vpop.f32.mrb[0].mxu0
      %1364 = vmatprep.mubr.f32.mxu0 0.0
      %1365 = vmatmul.mubr.f32.gmra.mrb[0].mxu0 %v1240
      %v1366 = vpop.f32.mrb[0].mxu0
      %v1367 = vadd.f32 0.0, %v1366
      %v1368 = vpop.f32.mrb[0].mxu0
      %1369 = vmatprep.mubr.f32.mxu0 0.0
      %1370 = vmatmul.mubr.f32.gmra.mrb[0].mxu0 %v1241
      %v1371 = vpop.f32.mrb[0].mxu0
      %v1372 = vadd.f32 0.0, %v1371
      %v1373 = vpop.f32.mrb[0].mxu0
      %1374 = vmatprep.mubr.f32.mxu0 0.0
      %1375 = vmatmul.mubr.f32.gmra.mrb[0].mxu0 %v1242
      %v1376 = vpop.f32.mrb[0].mxu0
      %v1377 = vadd.f32 0.0, %v1376
      %v1378 = vpop.f32.mrb[0].mxu0
      %1379 = vmatprep.mubr.f32.mxu0 0.0
      %1380 = vmatmul.mubr.f32.gmra.mrb[0].mxu0 %v1243
      %v1381 = vpop.f32.mrb[0].mxu0
      %v1382 = vadd.f32 0.0, %v1381
      %v1383 = vpop.f32.mrb[0].mxu0
      %1384 = vdwg.mxu0
      %1385 = vmatprep.subr.mxu0 0.0
      %1386 = vmatpush1.msra.mxu0 %v1247
      %1387 = vmatprep.subr.mxu0 0.0
      %1388 = vmatpush1.msra.mxu0 %v1248
      %1389 = vmatprep.subr.mxu0 0.0
      %1390 = vmatpush1.msra.mxu0 %v1249
      %1391 = vmatprep.subr.mxu0 0.0
      %1392 = vmatpush1.msra.mxu0 %v1250
      %1393 = vmatprep.subr.mxu0 0.0
      %1394 = vmatpush1.msra.mxu0 %v1251
      %1395 = vmatprep.subr.mxu0 0.0
      %1396 = vmatpush1.msra.mxu0 %v1252
      %1397 = vmatprep.subr.mxu0 0.0
      %1398 = vmatpush1.msra.mxu0 %v1253
      %1399 = vmatprep.subr.mxu0 0.0
      %1400 = vmatpush1.msra.mxu0 %v1254
      %1401 = vmatprep.subr.mxu0 0.0
      %1402 = vmatpush1.msra.mxu0 %v1255
      %1403 = vmatprep.subr.mxu0 0.0
      %1404 = vmatpush1.msra.mxu0 %v1256
      %1405 = vmatprep.subr.mxu0 0.0
      %1406 = vmatpush1.msra.mxu0 %v1257
      %1407 = vmatprep.subr.mxu0 0.0
      %1408 = vmatpush1.msra.mxu0 %v1258
      %1409 = vmatprep.subr.mxu0 0.0
      %1410 = vmatpush1.msra.mxu0 %v1259
      %1411 = vmatprep.subr.mxu0 0.0
      %1412 = vmatpush1.msra.mxu0 %v1260
      %1413 = vmatprep.subr.mxu0 0.0
      %1414 = vmatpush1.msra.mxu0 %v1261
      %1415 = vmatprep.subr.mxu0 0.0
      %1416 = vmatpush1.msra.mxu0 %v1262
      %1417 = vmatprep.subr.mxu0 0.0
      %1418 = vmatpush1.msra.mxu0 0.0
      %1419 = vmatprep.subr.mxu0 0.0
      %1420 = vmatpush1.msra.mxu0 0.0
      %1421 = vmatprep.subr.mxu0 0.0
      %1422 = vmatpush1.msra.mxu0 0.0
      %1423 = vmatprep.subr.mxu0 0.0
      %1424 = vmatpush1.msra.mxu0 0.0
      %1425 = vmatprep.subr.mxu0 0.0
      %1426 = vmatpush1.msra.mxu0 0.0
      %1427 = vmatprep.subr.mxu0 0.0
      %1428 = vmatpush1.msra.mxu0 0.0
      %1429 = vmatprep.subr.mxu0 0.0
      %1430 = vmatpush1.msra.mxu0 0.0
      %1431 = vmatprep.subr.mxu0 0.0
      %1432 = vmatpush1.msra.mxu0 0.0
      %1433 = vmatprep.subr.mxu0 0.0
      %1434 = vmatpush1.msra.mxu0 0.0
      %1435 = vmatprep.subr.mxu0 0.0
      %1436 = vmatpush1.msra.mxu0 0.0
      %1437 = vmatprep.subr.mxu0 0.0
      %1438 = vmatpush1.msra.mxu0 0.0
      %1439 = vmatprep.subr.mxu0 0.0
      %1440 = vmatpush1.msra.mxu0 0.0
      %1441 = vmatprep.subr.mxu0 0.0
      %1442 = vmatpush1.msra.mxu0 0.0
      %1443 = vmatprep.subr.mxu0 0.0
      %1444 = vmatpush1.msra.mxu0 0.0
      %1445 = vmatprep.subr.mxu0 0.0
      %1446 = vmatpush1.msra.mxu0 0.0
      %1447 = vmatprep.subr.mxu0 0.0
      %1448 = vmatpush1.msra.mxu0 0.0
      %1449 = vmatprep.mubr.f32.mxu0 0.0
      %1450 = vmatmul.mubr.f32.gmra.mrb[0].mxu0 %v1235
      %v1451 = vpop.f32.mrb[0].mxu0
      %v1452 = vadd.f32 %v1347, %v1451
      %v1453 = vpop.f32.mrb[0].mxu0
      %1454 = vmatprep.mubr.f32.mxu0 0.0
      %1455 = vmatmul.mubr.f32.gmra.mrb[0].mxu0 %v1236
      %v1456 = vpop.f32.mrb[0].mxu0
      %v1457 = vadd.f32 %v1352, %v1456
      %v1458 = vpop.f32.mrb[0].mxu0
      %1459 = vmatprep.mubr.f32.mxu0 0.0
      %1460 = vmatmul.mubr.f32.gmra.mrb[0].mxu0 %v1237
      %v1461 = vpop.f32.mrb[0].mxu0
      %v1462 = vadd.f32 %v1357, %v1461
      %v1463 = vpop.f32.mrb[0].mxu0
      %1464 = vmatprep.mubr.f32.mxu0 0.0
      %1465 = vmatmul.mubr.f32.gmra.mrb[0].mxu0 %v1238
      %v1466 = vpop.f32.mrb[0].mxu0
      %v1467 = vadd.f32 %v1362, %v1466
      %v1468 = vpop.f32.mrb[0].mxu0
      %1469 = vmatprep.mubr.f32.mxu0 0.0
      %1470 = vmatmul.mubr.f32.gmra.mrb[0].mxu0 %v1239
      %v1471 = vpop.f32.mrb[0].mxu0
      %v1472 = vadd.f32 %v1367, %v1471
      %v1473 = vpop.f32.mrb[0].mxu0
      %1474 = vmatprep.mubr.f32.mxu0 0.0
      %1475 = vmatmul.mubr.f32.gmra.mrb[0].mxu0 %v1240
      %v1476 = vpop.f32.mrb[0].mxu0
      %v1477 = vadd.f32 %v1372, %v1476
      %v1478 = vpop.f32.mrb[0].mxu0
      %1479 = vmatprep.mubr.f32.mxu0 0.0
      %1480 = vmatmul.mubr.f32.gmra.mrb[0].mxu0 %v1241
      %v1481 = vpop.f32.mrb[0].mxu0
      %v1482 = vadd.f32 %v1377, %v1481
      %v1483 = vpop.f32.mrb[0].mxu0
      %1484 = vmatprep.mubr.f32.mxu0 0.0
      %1485 = vmatmul.mubr.f32.gmra.mrb[0].mxu0 %v1242
      %v1486 = vpop.f32.mrb[0].mxu0
      %v1487 = vadd.f32 %v1382, %v1486
      %v1488 = vpop.f32.mrb[0].mxu0
      %1489 = vdwg.mxu0
      %s1490 = scalar_lea.vmem %s3, 256
      %v1491 = vld [vmem:[%s1490] sm:$0xff]
      %v1492 = vld [vmem:[%s1490 + $0x8] sm:$0xff]
      %v1493 = vld [vmem:[%s1490 + $0x10] sm:$0xff]
      %v1494 = vld [vmem:[%s1490 + $0x18] sm:$0xff]
      %v1495 = vld [vmem:[%s1490 + $0x20] sm:$0xff]
      %v1496 = vld [vmem:[%s1490 + $0x28] sm:$0xff]
      %v1497 = vld [vmem:[%s1490 + $0x30] sm:$0xff]
      %v1498 = vld [vmem:[%s1490 + $0x38] sm:$0xff]
      %v1499 = vld [vmem:[%s1490 + $0x40] sm:$0xff]
      %v1500 = vld [vmem:[%s1490 + $0x48] sm:$0xff]
      %v1501 = vld [vmem:[%s1490 + $0x50] sm:$0xff]
      %v1502 = vld [vmem:[%s1490 + $0x58] sm:$0xff]
      %v1503 = vld [vmem:[%s1490 + $0x60] sm:$0xff]
      %v1504 = vld [vmem:[%s1490 + $0x68] sm:$0xff]
      %v1505 = vld [vmem:[%s1490 + $0x70] sm:$0xff]
      %v1506 = vld [vmem:[%s1490 + $0x78] sm:$0xff]
      %1507 = vmatprep.subr.mxu0 0.0
      %1508 = vmatpush1.msra.mxu0 %v1491
      %1509 = vmatprep.subr.mxu0 0.0
      %1510 = vmatpush1.msra.mxu0 %v1492
      %1511 = vmatprep.subr.mxu0 0.0
      %1512 = vmatpush1.msra.mxu0 %v1493
      %1513 = vmatprep.subr.mxu0 0.0
      %1514 = vmatpush1.msra.mxu0 %v1494
      %1515 = vmatprep.subr.mxu0 0.0
      %1516 = vmatpush1.msra.mxu0 %v1495
      %1517 = vmatprep.subr.mxu0 0.0
      %1518 = vmatpush1.msra.mxu0 %v1496
      %1519 = vmatprep.subr.mxu0 0.0
      %1520 = vmatpush1.msra.mxu0 %v1497
      %1521 = vmatprep.subr.mxu0 0.0
      %1522 = vmatpush1.msra.mxu0 %v1498
      %1523 = vmatprep.subr.mxu0 0.0
      %1524 = vmatpush1.msra.mxu0 %v1499
      %1525 = vmatprep.subr.mxu0 0.0
      %1526 = vmatpush1.msra.mxu0 %v1500
      %1527 = vmatprep.subr.mxu0 0.0
      %1528 = vmatpush1.msra.mxu0 %v1501
      %1529 = vmatprep.subr.mxu0 0.0
      %1530 = vmatpush1.msra.mxu0 %v1502
      %1531 = vmatprep.subr.mxu0 0.0
      %1532 = vmatpush1.msra.mxu0 %v1503
      %1533 = vmatprep.subr.mxu0 0.0
      %1534 = vmatpush1.msra.mxu0 %v1504
      %1535 = vmatprep.subr.mxu0 0.0
      %1536 = vmatpush1.msra.mxu0 %v1505
      %1537 = vmatprep.subr.mxu0 0.0
      %1538 = vmatpush1.msra.mxu0 %v1506
      %1539 = vmatprep.subr.mxu0 0.0
      %1540 = vmatpush1.msra.mxu0 0.0
      %1541 = vmatprep.subr.mxu0 0.0
      %1542 = vmatpush1.msra.mxu0 0.0
      %1543 = vmatprep.subr.mxu0 0.0
      %1544 = vmatpush1.msra.mxu0 0.0
      %1545 = vmatprep.subr.mxu0 0.0
      %1546 = vmatpush1.msra.mxu0 0.0
      %1547 = vmatprep.subr.mxu0 0.0
      %1548 = vmatpush1.msra.mxu0 0.0
      %1549 = vmatprep.subr.mxu0 0.0
      %1550 = vmatpush1.msra.mxu0 0.0
      %1551 = vmatprep.subr.mxu0 0.0
      %1552 = vmatpush1.msra.mxu0 0.0
      %1553 = vmatprep.subr.mxu0 0.0
      %1554 = vmatpush1.msra.mxu0 0.0
      %1555 = vmatprep.subr.mxu0 0.0
      %1556 = vmatpush1.msra.mxu0 0.0
      %1557 = vmatprep.subr.mxu0 0.0
      %1558 = vmatpush1.msra.mxu0 0.0
      %1559 = vmatprep.subr.mxu0 0.0
      %1560 = vmatpush1.msra.mxu0 0.0
      %1561 = vmatprep.subr.mxu0 0.0
      %1562 = vmatpush1.msra.mxu0 0.0
      %1563 = vmatprep.subr.mxu0 0.0
      %1564 = vmatpush1.msra.mxu0 0.0
      %1565 = vmatprep.subr.mxu0 0.0
      %1566 = vmatpush1.msra.mxu0 0.0
      %1567 = vmatprep.subr.mxu0 0.0
      %1568 = vmatpush1.msra.mxu0 0.0
      %1569 = vmatprep.subr.mxu0 0.0
      %1570 = vmatpush1.msra.mxu0 0.0
      %1571 = vmatprep.mubr.f32.mxu0 0.0
      %1572 = vmatmul.mubr.f32.gmra.mrb[0].mxu0 %v1237
      %v1573 = vpop.f32.mrb[0].mxu0
      %v1574 = vadd.f32 0.0, %v1573
      %v1575 = vpop.f32.mrb[0].mxu0
      %1576 = vmatprep.mubr.f32.mxu0 0.0
      %1577 = vmatmul.mubr.f32.gmra.mrb[0].mxu0 %v1238
      %v1578 = vpop.f32.mrb[0].mxu0
      %v1579 = vadd.f32 0.0, %v1578
      %v1580 = vpop.f32.mrb[0].mxu0
      %1581 = vmatprep.mubr.f32.mxu0 0.0
      %1582 = vmatmul.mubr.f32.gmra.mrb[0].mxu0 %v1239
      %v1583 = vpop.f32.mrb[0].mxu0
      %v1584 = vadd.f32 0.0, %v1583
      %v1585 = vpop.f32.mrb[0].mxu0
      %1586 = vmatprep.mubr.f32.mxu0 0.0
      %1587 = vmatmul.mubr.f32.gmra.mrb[0].mxu0 %v1240
      %v1588 = vpop.f32.mrb[0].mxu0
      %v1589 = vadd.f32 0.0, %v1588
      %v1590 = vpop.f32.mrb[0].mxu0
      %1591 = vmatprep.mubr.f32.mxu0 0.0
      %1592 = vmatmul.mubr.f32.gmra.mrb[0].mxu0 %v1241
      %v1593 = vpop.f32.mrb[0].mxu0
      %v1594 = vadd.f32 0.0, %v1593
      %v1595 = vpop.f32.mrb[0].mxu0
      %1596 = vmatprep.mubr.f32.mxu0 0.0
      %1597 = vmatmul.mubr.f32.gmra.mrb[0].mxu0 %v1242
      %v1598 = vpop.f32.mrb[0].mxu0
      %v1599 = vadd.f32 0.0, %v1598
      %v1600 = vpop.f32.mrb[0].mxu0
      %1601 = vmatprep.mubr.f32.mxu0 0.0
      %1602 = vmatmul.mubr.f32.gmra.mrb[0].mxu0 %v1243
      %v1603 = vpop.f32.mrb[0].mxu0
      %v1604 = vadd.f32 0.0, %v1603
      %v1605 = vpop.f32.mrb[0].mxu0
      %1606 = vmatprep.mubr.f32.mxu0 0.0
      %1607 = vmatmul.mubr.f32.gmra.mrb[0].mxu0 %v1244
      %v1608 = vpop.f32.mrb[0].mxu0
      %v1609 = vadd.f32 0.0, %v1608
      %v1610 = vpop.f32.mrb[0].mxu0
      %1611 = vdwg.mxu0
      %v1612 = vadd.f32 %v1452, %v1574
      %v1613 = vadd.f32 %v1457, %v1579
      %v1614 = vadd.f32 %v1462, %v1584
      %v1615 = vadd.f32 %v1467, %v1589
      %v1616 = vadd.f32 %v1472, %v1594
      %v1617 = vadd.f32 %v1477, %v1599
      %v1618 = vadd.f32 %v1482, %v1604
      %v1619 = vadd.f32 %v1487, %v1609
      %s1620 = scalar_lea.vmem %s3, 384
      %v1621 = vld [vmem:[%s1620] sm:$0xff]
      %v1622 = vld [vmem:[%s1620 + $0x8] sm:$0xff]
      %v1623 = vld [vmem:[%s1620 + $0x10] sm:$0xff]
      %v1624 = vld [vmem:[%s1620 + $0x18] sm:$0xff]
      %v1625 = vld [vmem:[%s1620 + $0x20] sm:$0xff]
      %v1626 = vld [vmem:[%s1620 + $0x28] sm:$0xff]
      %v1627 = vld [vmem:[%s1620 + $0x30] sm:$0xff]
      %v1628 = vld [vmem:[%s1620 + $0x38] sm:$0xff]
      %v1629 = vld [vmem:[%s1620 + $0x40] sm:$0xff]
      %v1630 = vld [vmem:[%s1620 + $0x48] sm:$0xff]
      %v1631 = vld [vmem:[%s1620 + $0x50] sm:$0xff]
      %v1632 = vld [vmem:[%s1620 + $0x58] sm:$0xff]
      %v1633 = vld [vmem:[%s1620 + $0x60] sm:$0xff]
      %v1634 = vld [vmem:[%s1620 + $0x68] sm:$0xff]
      %v1635 = vld [vmem:[%s1620 + $0x70] sm:$0xff]
      %v1636 = vld [vmem:[%s1620 + $0x78] sm:$0xff]
      %1637 = vmatprep.subr.mxu0 0.0
      %1638 = vmatpush1.msra.mxu0 %v1621
      %1639 = vmatprep.subr.mxu0 0.0
      %1640 = vmatpush1.msra.mxu0 %v1622
      %1641 = vmatprep.subr.mxu0 0.0
      %1642 = vmatpush1.msra.mxu0 %v1623
      %1643 = vmatprep.subr.mxu0 0.0
      %1644 = vmatpush1.msra.mxu0 %v1624
      %1645 = vmatprep.subr.mxu0 0.0
      %1646 = vmatpush1.msra.mxu0 %v1625
      %1647 = vmatprep.subr.mxu0 0.0
      %1648 = vmatpush1.msra.mxu0 %v1626
      %1649 = vmatprep.subr.mxu0 0.0
      %1650 = vmatpush1.msra.mxu0 %v1627
      %1651 = vmatprep.subr.mxu0 0.0
      %1652 = vmatpush1.msra.mxu0 %v1628
      %1653 = vmatprep.subr.mxu0 0.0
      %1654 = vmatpush1.msra.mxu0 %v1629
      %1655 = vmatprep.subr.mxu0 0.0
      %1656 = vmatpush1.msra.mxu0 %v1630
      %1657 = vmatprep.subr.mxu0 0.0
      %1658 = vmatpush1.msra.mxu0 %v1631
      %1659 = vmatprep.subr.mxu0 0.0
      %1660 = vmatpush1.msra.mxu0 %v1632
      %1661 = vmatprep.subr.mxu0 0.0
      %1662 = vmatpush1.msra.mxu0 %v1633
      %1663 = vmatprep.subr.mxu0 0.0
      %1664 = vmatpush1.msra.mxu0 %v1634
      %1665 = vmatprep.subr.mxu0 0.0
      %1666 = vmatpush1.msra.mxu0 %v1635
      %1667 = vmatprep.subr.mxu0 0.0
      %1668 = vmatpush1.msra.mxu0 %v1636
      %1669 = vmatprep.subr.mxu0 0.0
      %1670 = vmatpush1.msra.mxu0 0.0
      %1671 = vmatprep.subr.mxu0 0.0
      %1672 = vmatpush1.msra.mxu0 0.0
      %1673 = vmatprep.subr.mxu0 0.0
      %1674 = vmatpush1.msra.mxu0 0.0
      %1675 = vmatprep.subr.mxu0 0.0
      %1676 = vmatpush1.msra.mxu0 0.0
      %1677 = vmatprep.subr.mxu0 0.0
      %1678 = vmatpush1.msra.mxu0 0.0
      %1679 = vmatprep.subr.mxu0 0.0
      %1680 = vmatpush1.msra.mxu0 0.0
      %1681 = vmatprep.subr.mxu0 0.0
      %1682 = vmatpush1.msra.mxu0 0.0
      %1683 = vmatprep.subr.mxu0 0.0
      %1684 = vmatpush1.msra.mxu0 0.0
      %1685 = vmatprep.subr.mxu0 0.0
      %1686 = vmatpush1.msra.mxu0 0.0
      %1687 = vmatprep.subr.mxu0 0.0
      %1688 = vmatpush1.msra.mxu0 0.0
      %1689 = vmatprep.subr.mxu0 0.0
      %1690 = vmatpush1.msra.mxu0 0.0
      %1691 = vmatprep.subr.mxu0 0.0
      %1692 = vmatpush1.msra.mxu0 0.0
      %1693 = vmatprep.subr.mxu0 0.0
      %1694 = vmatpush1.msra.mxu0 0.0
      %1695 = vmatprep.subr.mxu0 0.0
      %1696 = vmatpush1.msra.mxu0 0.0
      %1697 = vmatprep.subr.mxu0 0.0
      %1698 = vmatpush1.msra.mxu0 0.0
      %1699 = vmatprep.subr.mxu0 0.0
      %1700 = vmatpush1.msra.mxu0 0.0
      %1701 = vmatprep.mubr.f32.mxu0 0.0
      %1702 = vmatmul.mubr.f32.gmra.mrb[0].mxu0 %v1238
      %v1703 = vpop.f32.mrb[0].mxu0
      %v1704 = vadd.f32 0.0, %v1703
      %v1705 = vpop.f32.mrb[0].mxu0
      %1706 = vmatprep.mubr.f32.mxu0 0.0
      %1707 = vmatmul.mubr.f32.gmra.mrb[0].mxu0 %v1239
      %v1708 = vpop.f32.mrb[0].mxu0
      %v1709 = vadd.f32 0.0, %v1708
      %v1710 = vpop.f32.mrb[0].mxu0
      %1711 = vmatprep.mubr.f32.mxu0 0.0
      %1712 = vmatmul.mubr.f32.gmra.mrb[0].mxu0 %v1240
      %v1713 = vpop.f32.mrb[0].mxu0
      %v1714 = vadd.f32 0.0, %v1713
      %v1715 = vpop.f32.mrb[0].mxu0
      %1716 = vmatprep.mubr.f32.mxu0 0.0
      %1717 = vmatmul.mubr.f32.gmra.mrb[0].mxu0 %v1241
      %v1718 = vpop.f32.mrb[0].mxu0
      %v1719 = vadd.f32 0.0, %v1718
      %v1720 = vpop.f32.mrb[0].mxu0
      %1721 = vmatprep.mubr.f32.mxu0 0.0
      %1722 = vmatmul.mubr.f32.gmra.mrb[0].mxu0 %v1242
      %v1723 = vpop.f32.mrb[0].mxu0
      %v1724 = vadd.f32 0.0, %v1723
      %v1725 = vpop.f32.mrb[0].mxu0
      %1726 = vmatprep.mubr.f32.mxu0 0.0
      %1727 = vmatmul.mubr.f32.gmra.mrb[0].mxu0 %v1243
      %v1728 = vpop.f32.mrb[0].mxu0
      %v1729 = vadd.f32 0.0, %v1728
      %v1730 = vpop.f32.mrb[0].mxu0
      %1731 = vmatprep.mubr.f32.mxu0 0.0
      %1732 = vmatmul.mubr.f32.gmra.mrb[0].mxu0 %v1244
      %v1733 = vpop.f32.mrb[0].mxu0
      %v1734 = vadd.f32 0.0, %v1733
      %v1735 = vpop.f32.mrb[0].mxu0
      %1736 = vmatprep.mubr.f32.mxu0 0.0
      %1737 = vmatmul.mubr.f32.gmra.mrb[0].mxu0 %v1245
      %v1738 = vpop.f32.mrb[0].mxu0
      %v1739 = vadd.f32 0.0, %v1738
      %v1740 = vpop.f32.mrb[0].mxu0
      %1741 = vdwg.mxu0
      %v1742 = vadd.f32 %v1612, %v1704
      %v1743 = vadd.f32 %v1613, %v1709
      %v1744 = vadd.f32 %v1614, %v1714
      %v1745 = vadd.f32 %v1615, %v1719
      %v1746 = vadd.f32 %v1616, %v1724
      %v1747 = vadd.f32 %v1617, %v1729
      %v1748 = vadd.f32 %v1618, %v1734
      %v1749 = vadd.f32 %v1619, %v1739
      %s1750 = scalar_lea.vmem %s3, 512
      %v1751 = vld [vmem:[%s1750] sm:$0xff]
      %v1752 = vld [vmem:[%s1750 + $0x8] sm:$0xff]
      %v1753 = vld [vmem:[%s1750 + $0x10] sm:$0xff]
      %v1754 = vld [vmem:[%s1750 + $0x18] sm:$0xff]
      %v1755 = vld [vmem:[%s1750 + $0x20] sm:$0xff]
      %v1756 = vld [vmem:[%s1750 + $0x28] sm:$0xff]
      %v1757 = vld [vmem:[%s1750 + $0x30] sm:$0xff]
      %v1758 = vld [vmem:[%s1750 + $0x38] sm:$0xff]
      %v1759 = vld [vmem:[%s1750 + $0x40] sm:$0xff]
      %v1760 = vld [vmem:[%s1750 + $0x48] sm:$0xff]
      %v1761 = vld [vmem:[%s1750 + $0x50] sm:$0xff]
      %v1762 = vld [vmem:[%s1750 + $0x58] sm:$0xff]
      %v1763 = vld [vmem:[%s1750 + $0x60] sm:$0xff]
      %v1764 = vld [vmem:[%s1750 + $0x68] sm:$0xff]
      %v1765 = vld [vmem:[%s1750 + $0x70] sm:$0xff]
      %v1766 = vld [vmem:[%s1750 + $0x78] sm:$0xff]
      %1767 = vmatprep.subr.mxu0 0.0
      %1768 = vmatpush1.msra.mxu0 %v1751
      %1769 = vmatprep.subr.mxu0 0.0
      %1770 = vmatpush1.msra.mxu0 %v1752
      %1771 = vmatprep.subr.mxu0 0.0
      %1772 = vmatpush1.msra.mxu0 %v1753
      %1773 = vmatprep.subr.mxu0 0.0
      %1774 = vmatpush1.msra.mxu0 %v1754
      %1775 = vmatprep.subr.mxu0 0.0
      %1776 = vmatpush1.msra.mxu0 %v1755
      %1777 = vmatprep.subr.mxu0 0.0
      %1778 = vmatpush1.msra.mxu0 %v1756
      %1779 = vmatprep.subr.mxu0 0.0
      %1780 = vmatpush1.msra.mxu0 %v1757
      %1781 = vmatprep.subr.mxu0 0.0
      %1782 = vmatpush1.msra.mxu0 %v1758
      %1783 = vmatprep.subr.mxu0 0.0
      %1784 = vmatpush1.msra.mxu0 %v1759
      %1785 = vmatprep.subr.mxu0 0.0
      %1786 = vmatpush1.msra.mxu0 %v1760
      %1787 = vmatprep.subr.mxu0 0.0
      %1788 = vmatpush1.msra.mxu0 %v1761
      %1789 = vmatprep.subr.mxu0 0.0
      %1790 = vmatpush1.msra.mxu0 %v1762
      %1791 = vmatprep.subr.mxu0 0.0
      %1792 = vmatpush1.msra.mxu0 %v1763
      %1793 = vmatprep.subr.mxu0 0.0
      %1794 = vmatpush1.msra.mxu0 %v1764
      %1795 = vmatprep.subr.mxu0 0.0
      %1796 = vmatpush1.msra.mxu0 %v1765
      %1797 = vmatprep.subr.mxu0 0.0
      %1798 = vmatpush1.msra.mxu0 %v1766
      %1799 = vmatprep.subr.mxu0 0.0
      %1800 = vmatpush1.msra.mxu0 0.0
      %1801 = vmatprep.subr.mxu0 0.0
      %1802 = vmatpush1.msra.mxu0 0.0
      %1803 = vmatprep.subr.mxu0 0.0
      %1804 = vmatpush1.msra.mxu0 0.0
      %1805 = vmatprep.subr.mxu0 0.0
      %1806 = vmatpush1.msra.mxu0 0.0
      %1807 = vmatprep.subr.mxu0 0.0
      %1808 = vmatpush1.msra.mxu0 0.0
      %1809 = vmatprep.subr.mxu0 0.0
      %1810 = vmatpush1.msra.mxu0 0.0
      %1811 = vmatprep.subr.mxu0 0.0
      %1812 = vmatpush1.msra.mxu0 0.0
      %1813 = vmatprep.subr.mxu0 0.0
      %1814 = vmatpush1.msra.mxu0 0.0
      %1815 = vmatprep.subr.mxu0 0.0
      %1816 = vmatpush1.msra.mxu0 0.0
      %1817 = vmatprep.subr.mxu0 0.0
      %1818 = vmatpush1.msra.mxu0 0.0
      %1819 = vmatprep.subr.mxu0 0.0
      %1820 = vmatpush1.msra.mxu0 0.0
      %1821 = vmatprep.subr.mxu0 0.0
      %1822 = vmatpush1.msra.mxu0 0.0
      %1823 = vmatprep.subr.mxu0 0.0
      %1824 = vmatpush1.msra.mxu0 0.0
      %1825 = vmatprep.subr.mxu0 0.0
      %1826 = vmatpush1.msra.mxu0 0.0
      %1827 = vmatprep.subr.mxu0 0.0
      %1828 = vmatpush1.msra.mxu0 0.0
      %1829 = vmatprep.subr.mxu0 0.0
      %1830 = vmatpush1.msra.mxu0 0.0
      %1831 = vmatprep.mubr.f32.mxu0 0.0
      %1832 = vmatmul.mubr.f32.gmra.mrb[0].mxu0 %v1239
      %v1833 = vpop.f32.mrb[0].mxu0
      %v1834 = vadd.f32 0.0, %v1833
      %v1835 = vpop.f32.mrb[0].mxu0
      %1836 = vmatprep.mubr.f32.mxu0 0.0
      %1837 = vmatmul.mubr.f32.gmra.mrb[0].mxu0 %v1240
      %v1838 = vpop.f32.mrb[0].mxu0
      %v1839 = vadd.f32 0.0, %v1838
      %v1840 = vpop.f32.mrb[0].mxu0
      %1841 = vmatprep.mubr.f32.mxu0 0.0
      %1842 = vmatmul.mubr.f32.gmra.mrb[0].mxu0 %v1241
      %v1843 = vpop.f32.mrb[0].mxu0
      %v1844 = vadd.f32 0.0, %v1843
      %v1845 = vpop.f32.mrb[0].mxu0
      %1846 = vmatprep.mubr.f32.mxu0 0.0
      %1847 = vmatmul.mubr.f32.gmra.mrb[0].mxu0 %v1242
      %v1848 = vpop.f32.mrb[0].mxu0
      %v1849 = vadd.f32 0.0, %v1848
      %v1850 = vpop.f32.mrb[0].mxu0
      %1851 = vmatprep.mubr.f32.mxu0 0.0
      %1852 = vmatmul.mubr.f32.gmra.mrb[0].mxu0 %v1243
      %v1853 = vpop.f32.mrb[0].mxu0
      %v1854 = vadd.f32 0.0, %v1853
      %v1855 = vpop.f32.mrb[0].mxu0
      %1856 = vmatprep.mubr.f32.mxu0 0.0
      %1857 = vmatmul.mubr.f32.gmra.mrb[0].mxu0 %v1244
      %v1858 = vpop.f32.mrb[0].mxu0
      %v1859 = vadd.f32 0.0, %v1858
      %v1860 = vpop.f32.mrb[0].mxu0
      %1861 = vmatprep.mubr.f32.mxu0 0.0
      %1862 = vmatmul.mubr.f32.gmra.mrb[0].mxu0 %v1245
      %v1863 = vpop.f32.mrb[0].mxu0
      %v1864 = vadd.f32 0.0, %v1863
      %v1865 = vpop.f32.mrb[0].mxu0
      %1866 = vmatprep.mubr.f32.mxu0 0.0
      %1867 = vmatmul.mubr.f32.gmra.mrb[0].mxu0 %v1246
      %v1868 = vpop.f32.mrb[0].mxu0
      %v1869 = vadd.f32 0.0, %v1868
      %v1870 = vpop.f32.mrb[0].mxu0
      %1871 = vdwg.mxu0
      %v1872 = vadd.f32 %v1742, %v1834
      %v1873 = vadd.f32 %v1743, %v1839
      %v1874 = vadd.f32 %v1744, %v1844
      %v1875 = vadd.f32 %v1745, %v1849
      %v1876 = vadd.f32 %v1746, %v1854
      %v1877 = vadd.f32 %v1747, %v1859
      %v1878 = vadd.f32 %v1748, %v1864
      %v1879 = vadd.f32 %v1749, %v1869
      %v1880 = vld [vmem:[%s4] sm:$0x1]
      %v1882 = vlaneseq
      %v1883 = vshrl.u32 %v1882, 7
      %v1884 = vsub.s32 0, %v1883
      %v1885 = vrot.slane %v1880, %v1884
      %v1887 = vadd.f32 %v1872, %v1885
      %v1888 = vadd.f32 %v1873, %v1885
      %v1889 = vadd.f32 %v1874, %v1885
      %v1890 = vadd.f32 %v1875, %v1885
      %v1891 = vadd.f32 %v1876, %v1885
      %v1892 = vadd.f32 %v1877, %v1885
      %v1893 = vadd.f32 %v1878, %v1885
      %v1894 = vadd.f32 %v1879, %v1885
      %v1895 = vmax.f32 %v1887, 0.0
      %v1896 = vmax.f32 %v1888, 0.0
      %v1897 = vmax.f32 %v1889, 0.0
      %v1898 = vmax.f32 %v1890, 0.0
      %v1899 = vmax.f32 %v1891, 0.0
      %v1900 = vmax.f32 %v1892, 0.0
      %v1901 = vmax.f32 %v1893, 0.0
      %v1902 = vmax.f32 %v1894, 0.0
      %v1903 = vld [vmem:[%s5] sm:$0xff]
      %v1904 = vld [vmem:[%s5 + $0x8] sm:$0xff]
      %v1905 = vld [vmem:[%s5 + $0x10] sm:$0xff]
      %v1906 = vld [vmem:[%s5 + $0x18] sm:$0xff]
      %v1907 = vld [vmem:[%s5 + $0x20] sm:$0xff]
      %v1908 = vld [vmem:[%s5 + $0x28] sm:$0xff]
      %v1909 = vld [vmem:[%s5 + $0x30] sm:$0xff]
      %v1910 = vld [vmem:[%s5 + $0x38] sm:$0xff]
      %v1911 = vld [vmem:[%s5 + $0x40] sm:$0xff]
      %v1912 = vld [vmem:[%s5 + $0x48] sm:$0xff]
      %v1913 = vld [vmem:[%s5 + $0x50] sm:$0xff]
      %v1914 = vld [vmem:[%s5 + $0x58] sm:$0xff]
      %v1915 = vld [vmem:[%s5 + $0x60] sm:$0xff]
      %v1916 = vld [vmem:[%s5 + $0x68] sm:$0xff]
      %v1917 = vld [vmem:[%s5 + $0x70] sm:$0xff]
      %v1918 = vld [vmem:[%s5 + $0x78] sm:$0xff]
      %v1919 = vld [vmem:[%s5 + $0x80] sm:$0xff]
      %v1920 = vld [vmem:[%s5 + $0x88] sm:$0xff]
      %v1921 = vld [vmem:[%s5 + $0x90] sm:$0xff]
      %v1922 = vld [vmem:[%s5 + $0x98] sm:$0xff]
      %v1923 = vld [vmem:[%s5 + $0xa0] sm:$0xff]
      %v1924 = vld [vmem:[%s5 + $0xa8] sm:$0xff]
      %v1925 = vld [vmem:[%s5 + $0xb0] sm:$0xff]
      %v1926 = vld [vmem:[%s5 + $0xb8] sm:$0xff]
      %v1927 = vld [vmem:[%s5 + $0xc0] sm:$0xff]
      %v1928 = vld [vmem:[%s5 + $0xc8] sm:$0xff]
      %v1929 = vld [vmem:[%s5 + $0xd0] sm:$0xff]
      %v1930 = vld [vmem:[%s5 + $0xd8] sm:$0xff]
      %v1931 = vld [vmem:[%s5 + $0xe0] sm:$0xff]
      %v1932 = vld [vmem:[%s5 + $0xe8] sm:$0xff]
      %v1933 = vld [vmem:[%s5 + $0xf0] sm:$0xff]
      %v1934 = vld [vmem:[%s5 + $0xf8] sm:$0xff]
      %v1935 = vld [vmem:[%s5 + $0x100] sm:$0xff]
      %v1936 = vld [vmem:[%s5 + $0x108] sm:$0xff]
      %v1937 = vld [vmem:[%s5 + $0x110] sm:$0xff]
      %v1938 = vld [vmem:[%s5 + $0x118] sm:$0xff]
      %v1939 = vld [vmem:[%s5 + $0x120] sm:$0xff]
      %v1940 = vld [vmem:[%s5 + $0x128] sm:$0xff]
      %v1941 = vld [vmem:[%s5 + $0x130] sm:$0xff]
      %v1942 = vld [vmem:[%s5 + $0x138] sm:$0xff]
      %v1943 = vld [vmem:[%s5 + $0x140] sm:$0xff]
      %v1944 = vld [vmem:[%s5 + $0x148] sm:$0xff]
      %v1945 = vld [vmem:[%s5 + $0x150] sm:$0xff]
      %v1946 = vld [vmem:[%s5 + $0x158] sm:$0xff]
      %v1947 = vld [vmem:[%s5 + $0x160] sm:$0xff]
      %v1948 = vld [vmem:[%s5 + $0x168] sm:$0xff]
      %v1949 = vld [vmem:[%s5 + $0x170] sm:$0xff]
      %v1950 = vld [vmem:[%s5 + $0x178] sm:$0xff]
      %v1951 = vld [vmem:[%s5 + $0x180] sm:$0xff]
      %v1952 = vld [vmem:[%s5 + $0x188] sm:$0xff]
      %v1953 = vld [vmem:[%s5 + $0x190] sm:$0xff]
      %v1954 = vld [vmem:[%s5 + $0x198] sm:$0xff]
      %v1955 = vld [vmem:[%s5 + $0x1a0] sm:$0xff]
      %v1956 = vld [vmem:[%s5 + $0x1a8] sm:$0xff]
      %v1957 = vld [vmem:[%s5 + $0x1b0] sm:$0xff]
      %v1958 = vld [vmem:[%s5 + $0x1b8] sm:$0xff]
      %v1959 = vld [vmem:[%s5 + $0x1c0] sm:$0xff]
      %v1960 = vld [vmem:[%s5 + $0x1c8] sm:$0xff]
      %v1961 = vld [vmem:[%s5 + $0x1d0] sm:$0xff]
      %v1962 = vld [vmem:[%s5 + $0x1d8] sm:$0xff]
      %v1963 = vld [vmem:[%s5 + $0x1e0] sm:$0xff]
      %v1964 = vld [vmem:[%s5 + $0x1e8] sm:$0xff]
      %v1965 = vld [vmem:[%s5 + $0x1f0] sm:$0xff]
      %v1966 = vld [vmem:[%s5 + $0x1f8] sm:$0xff]
      %v1967 = vld [vmem:[%s5 + $0x200] sm:$0xff]
      %v1968 = vld [vmem:[%s5 + $0x208] sm:$0xff]
      %v1969 = vld [vmem:[%s5 + $0x210] sm:$0xff]
      %v1970 = vld [vmem:[%s5 + $0x218] sm:$0xff]
      %v1971 = vld [vmem:[%s5 + $0x220] sm:$0xff]
      %v1972 = vld [vmem:[%s5 + $0x228] sm:$0xff]
      %v1973 = vld [vmem:[%s5 + $0x230] sm:$0xff]
      %v1974 = vld [vmem:[%s5 + $0x238] sm:$0xff]
      %v1975 = vld [vmem:[%s5 + $0x240] sm:$0xff]
      %v1976 = vld [vmem:[%s5 + $0x248] sm:$0xff]
      %v1977 = vld [vmem:[%s5 + $0x250] sm:$0xff]
      %v1978 = vld [vmem:[%s5 + $0x258] sm:$0xff]
      %v1979 = vld [vmem:[%s5 + $0x260] sm:$0xff]
      %v1980 = vld [vmem:[%s5 + $0x268] sm:$0xff]
      %v1981 = vld [vmem:[%s5 + $0x270] sm:$0xff]
      %v1982 = vld [vmem:[%s5 + $0x278] sm:$0xff]
      %v1983 = vld [vmem:[%s5 + $0x280] sm:$0xff]
      %v1984 = vld [vmem:[%s5 + $0x288] sm:$0xff]
      %v1985 = vld [vmem:[%s5 + $0x290] sm:$0xff]
      %v1986 = vld [vmem:[%s5 + $0x298] sm:$0xff]
      %v1987 = vld [vmem:[%s5 + $0x2a0] sm:$0xff]
      %v1988 = vld [vmem:[%s5 + $0x2a8] sm:$0xff]
      %v1989 = vld [vmem:[%s5 + $0x2b0] sm:$0xff]
      %v1990 = vld [vmem:[%s5 + $0x2b8] sm:$0xff]
      %v1991 = vld [vmem:[%s5 + $0x2c0] sm:$0xff]
      %v1992 = vld [vmem:[%s5 + $0x2c8] sm:$0xff]
      %v1993 = vld [vmem:[%s5 + $0x2d0] sm:$0xff]
      %v1994 = vld [vmem:[%s5 + $0x2d8] sm:$0xff]
      %v1995 = vld [vmem:[%s5 + $0x2e0] sm:$0xff]
      %v1996 = vld [vmem:[%s5 + $0x2e8] sm:$0xff]
      %v1997 = vld [vmem:[%s5 + $0x2f0] sm:$0xff]
      %v1998 = vld [vmem:[%s5 + $0x2f8] sm:$0xff]
      %v1999 = vld [vmem:[%s5 + $0x300] sm:$0xff]
      %v2000 = vld [vmem:[%s5 + $0x308] sm:$0xff]
      %v2001 = vld [vmem:[%s5 + $0x310] sm:$0xff]
      %v2002 = vld [vmem:[%s5 + $0x318] sm:$0xff]
      %v2003 = vld [vmem:[%s5 + $0x320] sm:$0xff]
      %v2004 = vld [vmem:[%s5 + $0x328] sm:$0xff]
      %v2005 = vld [vmem:[%s5 + $0x330] sm:$0xff]
      %v2006 = vld [vmem:[%s5 + $0x338] sm:$0xff]
      %v2007 = vld [vmem:[%s5 + $0x340] sm:$0xff]
      %v2008 = vld [vmem:[%s5 + $0x348] sm:$0xff]
      %v2009 = vld [vmem:[%s5 + $0x350] sm:$0xff]
      %v2010 = vld [vmem:[%s5 + $0x358] sm:$0xff]
      %v2011 = vld [vmem:[%s5 + $0x360] sm:$0xff]
      %v2012 = vld [vmem:[%s5 + $0x368] sm:$0xff]
      %v2013 = vld [vmem:[%s5 + $0x370] sm:$0xff]
      %v2014 = vld [vmem:[%s5 + $0x378] sm:$0xff]
      %v2015 = vld [vmem:[%s5 + $0x380] sm:$0xff]
      %v2016 = vld [vmem:[%s5 + $0x388] sm:$0xff]
      %v2017 = vld [vmem:[%s5 + $0x390] sm:$0xff]
      %v2018 = vld [vmem:[%s5 + $0x398] sm:$0xff]
      %v2019 = vld [vmem:[%s5 + $0x3a0] sm:$0xff]
      %v2020 = vld [vmem:[%s5 + $0x3a8] sm:$0xff]
      %v2021 = vld [vmem:[%s5 + $0x3b0] sm:$0xff]
      %v2022 = vld [vmem:[%s5 + $0x3b8] sm:$0xff]
      %v2023 = vld [vmem:[%s5 + $0x3c0] sm:$0xff]
      %v2024 = vld [vmem:[%s5 + $0x3c8] sm:$0xff]
      %v2025 = vld [vmem:[%s5 + $0x3d0] sm:$0xff]
      %v2026 = vld [vmem:[%s5 + $0x3d8] sm:$0xff]
      %v2027 = vld [vmem:[%s5 + $0x3e0] sm:$0xff]
      %v2028 = vld [vmem:[%s5 + $0x3e8] sm:$0xff]
      %v2029 = vld [vmem:[%s5 + $0x3f0] sm:$0xff]
      %v2030 = vld [vmem:[%s5 + $0x3f8] sm:$0xff]
      %s2031 = scalar_lea.vmem %s5, 1024
      %v2032 = vld [vmem:[%s2031] sm:$0xff]
      %v2033 = vld [vmem:[%s2031 + $0x8] sm:$0xff]
      %v2034 = vld [vmem:[%s2031 + $0x10] sm:$0xff]
      %v2035 = vld [vmem:[%s2031 + $0x18] sm:$0xff]
      %v2036 = vld [vmem:[%s2031 + $0x20] sm:$0xff]
      %v2037 = vld [vmem:[%s2031 + $0x28] sm:$0xff]
      %v2038 = vld [vmem:[%s2031 + $0x30] sm:$0xff]
      %v2039 = vld [vmem:[%s2031 + $0x38] sm:$0xff]
      %v2040 = vld [vmem:[%s2031 + $0x40] sm:$0xff]
      %v2041 = vld [vmem:[%s2031 + $0x48] sm:$0xff]
      %v2042 = vld [vmem:[%s2031 + $0x50] sm:$0xff]
      %v2043 = vld [vmem:[%s2031 + $0x58] sm:$0xff]
      %v2044 = vld [vmem:[%s2031 + $0x60] sm:$0xff]
      %v2045 = vld [vmem:[%s2031 + $0x68] sm:$0xff]
      %v2046 = vld [vmem:[%s2031 + $0x70] sm:$0xff]
      %v2047 = vld [vmem:[%s2031 + $0x78] sm:$0xff]
      %v2048 = vld [vmem:[%s2031 + $0x80] sm:$0xff]
      %v2049 = vld [vmem:[%s2031 + $0x88] sm:$0xff]
      %v2050 = vld [vmem:[%s2031 + $0x90] sm:$0xff]
      %v2051 = vld [vmem:[%s2031 + $0x98] sm:$0xff]
      %v2052 = vld [vmem:[%s2031 + $0xa0] sm:$0xff]
      %v2053 = vld [vmem:[%s2031 + $0xa8] sm:$0xff]
      %v2054 = vld [vmem:[%s2031 + $0xb0] sm:$0xff]
      %v2055 = vld [vmem:[%s2031 + $0xb8] sm:$0xff]
      %v2056 = vld [vmem:[%s2031 + $0xc0] sm:$0xff]
      %v2057 = vld [vmem:[%s2031 + $0xc8] sm:$0xff]
      %v2058 = vld [vmem:[%s2031 + $0xd0] sm:$0xff]
      %v2059 = vld [vmem:[%s2031 + $0xd8] sm:$0xff]
      %v2060 = vld [vmem:[%s2031 + $0xe0] sm:$0xff]
      %v2061 = vld [vmem:[%s2031 + $0xe8] sm:$0xff]
      %v2062 = vld [vmem:[%s2031 + $0xf0] sm:$0xff]
      %v2063 = vld [vmem:[%s2031 + $0xf8] sm:$0xff]
      %v2064 = vld [vmem:[%s2031 + $0x100] sm:$0xff]
      %v2065 = vld [vmem:[%s2031 + $0x108] sm:$0xff]
      %v2066 = vld [vmem:[%s2031 + $0x110] sm:$0xff]
      %v2067 = vld [vmem:[%s2031 + $0x118] sm:$0xff]
      %v2068 = vld [vmem:[%s2031 + $0x120] sm:$0xff]
      %v2069 = vld [vmem:[%s2031 + $0x128] sm:$0xff]
      %v2070 = vld [vmem:[%s2031 + $0x130] sm:$0xff]
      %v2071 = vld [vmem:[%s2031 + $0x138] sm:$0xff]
      %v2072 = vld [vmem:[%s2031 + $0x140] sm:$0xff]
      %v2073 = vld [vmem:[%s2031 + $0x148] sm:$0xff]
      %v2074 = vld [vmem:[%s2031 + $0x150] sm:$0xff]
      %v2075 = vld [vmem:[%s2031 + $0x158] sm:$0xff]
      %v2076 = vld [vmem:[%s2031 + $0x160] sm:$0xff]
      %v2077 = vld [vmem:[%s2031 + $0x168] sm:$0xff]
      %v2078 = vld [vmem:[%s2031 + $0x170] sm:$0xff]
      %v2079 = vld [vmem:[%s2031 + $0x178] sm:$0xff]
      %v2080 = vld [vmem:[%s2031 + $0x180] sm:$0xff]
      %v2081 = vld [vmem:[%s2031 + $0x188] sm:$0xff]
      %v2082 = vld [vmem:[%s2031 + $0x190] sm:$0xff]
      %v2083 = vld [vmem:[%s2031 + $0x198] sm:$0xff]
      %v2084 = vld [vmem:[%s2031 + $0x1a0] sm:$0xff]
      %v2085 = vld [vmem:[%s2031 + $0x1a8] sm:$0xff]
      %v2086 = vld [vmem:[%s2031 + $0x1b0] sm:$0xff]
      %v2087 = vld [vmem:[%s2031 + $0x1b8] sm:$0xff]
      %v2088 = vld [vmem:[%s2031 + $0x1c0] sm:$0xff]
      %v2089 = vld [vmem:[%s2031 + $0x1c8] sm:$0xff]
      %v2090 = vld [vmem:[%s2031 + $0x1d0] sm:$0xff]
      %v2091 = vld [vmem:[%s2031 + $0x1d8] sm:$0xff]
      %v2092 = vld [vmem:[%s2031 + $0x1e0] sm:$0xff]
      %v2093 = vld [vmem:[%s2031 + $0x1e8] sm:$0xff]
      %v2094 = vld [vmem:[%s2031 + $0x1f0] sm:$0xff]
      %v2095 = vld [vmem:[%s2031 + $0x1f8] sm:$0xff]
      %v2096 = vld [vmem:[%s2031 + $0x200] sm:$0xff]
      %v2097 = vld [vmem:[%s2031 + $0x208] sm:$0xff]
      %v2098 = vld [vmem:[%s2031 + $0x210] sm:$0xff]
      %v2099 = vld [vmem:[%s2031 + $0x218] sm:$0xff]
      %v2100 = vld [vmem:[%s2031 + $0x220] sm:$0xff]
      %v2101 = vld [vmem:[%s2031 + $0x228] sm:$0xff]
      %v2102 = vld [vmem:[%s2031 + $0x230] sm:$0xff]
      %v2103 = vld [vmem:[%s2031 + $0x238] sm:$0xff]
      %v2104 = vld [vmem:[%s2031 + $0x240] sm:$0xff]
      %v2105 = vld [vmem:[%s2031 + $0x248] sm:$0xff]
      %v2106 = vld [vmem:[%s2031 + $0x250] sm:$0xff]
      %v2107 = vld [vmem:[%s2031 + $0x258] sm:$0xff]
      %v2108 = vld [vmem:[%s2031 + $0x260] sm:$0xff]
      %v2109 = vld [vmem:[%s2031 + $0x268] sm:$0xff]
      %v2110 = vld [vmem:[%s2031 + $0x270] sm:$0xff]
      %v2111 = vld [vmem:[%s2031 + $0x278] sm:$0xff]
      %v2112 = vld [vmem:[%s2031 + $0x280] sm:$0xff]
      %v2113 = vld [vmem:[%s2031 + $0x288] sm:$0xff]
      %v2114 = vld [vmem:[%s2031 + $0x290] sm:$0xff]
      %v2115 = vld [vmem:[%s2031 + $0x298] sm:$0xff]
      %v2116 = vld [vmem:[%s2031 + $0x2a0] sm:$0xff]
      %v2117 = vld [vmem:[%s2031 + $0x2a8] sm:$0xff]
      %v2118 = vld [vmem:[%s2031 + $0x2b0] sm:$0xff]
      %v2119 = vld [vmem:[%s2031 + $0x2b8] sm:$0xff]
      %v2120 = vld [vmem:[%s2031 + $0x2c0] sm:$0xff]
      %v2121 = vld [vmem:[%s2031 + $0x2c8] sm:$0xff]
      %v2122 = vld [vmem:[%s2031 + $0x2d0] sm:$0xff]
      %v2123 = vld [vmem:[%s2031 + $0x2d8] sm:$0xff]
      %v2124 = vld [vmem:[%s2031 + $0x2e0] sm:$0xff]
      %v2125 = vld [vmem:[%s2031 + $0x2e8] sm:$0xff]
      %v2126 = vld [vmem:[%s2031 + $0x2f0] sm:$0xff]
      %v2127 = vld [vmem:[%s2031 + $0x2f8] sm:$0xff]
      %v2128 = vld [vmem:[%s2031 + $0x300] sm:$0xff]
      %v2129 = vld [vmem:[%s2031 + $0x308] sm:$0xff]
      %v2130 = vld [vmem:[%s2031 + $0x310] sm:$0xff]
      %v2131 = vld [vmem:[%s2031 + $0x318] sm:$0xff]
      %v2132 = vld [vmem:[%s2031 + $0x320] sm:$0xff]
      %v2133 = vld [vmem:[%s2031 + $0x328] sm:$0xff]
      %v2134 = vld [vmem:[%s2031 + $0x330] sm:$0xff]
      %v2135 = vld [vmem:[%s2031 + $0x338] sm:$0xff]
      %v2136 = vld [vmem:[%s2031 + $0x340] sm:$0xff]
      %v2137 = vld [vmem:[%s2031 + $0x348] sm:$0xff]
      %v2138 = vld [vmem:[%s2031 + $0x350] sm:$0xff]
      %v2139 = vld [vmem:[%s2031 + $0x358] sm:$0xff]
      %v2140 = vld [vmem:[%s2031 + $0x360] sm:$0xff]
      %v2141 = vld [vmem:[%s2031 + $0x368] sm:$0xff]
      %v2142 = vld [vmem:[%s2031 + $0x370] sm:$0xff]
      %v2143 = vld [vmem:[%s2031 + $0x378] sm:$0xff]
      %v2144 = vld [vmem:[%s2031 + $0x380] sm:$0xff]
      %v2145 = vld [vmem:[%s2031 + $0x388] sm:$0xff]
      %v2146 = vld [vmem:[%s2031 + $0x390] sm:$0xff]
      %v2147 = vld [vmem:[%s2031 + $0x398] sm:$0xff]
      %v2148 = vld [vmem:[%s2031 + $0x3a0] sm:$0xff]
      %v2149 = vld [vmem:[%s2031 + $0x3a8] sm:$0xff]
      %v2150 = vld [vmem:[%s2031 + $0x3b0] sm:$0xff]
      %v2151 = vld [vmem:[%s2031 + $0x3b8] sm:$0xff]
      %v2152 = vld [vmem:[%s2031 + $0x3c0] sm:$0xff]
      %v2153 = vld [vmem:[%s2031 + $0x3c8] sm:$0xff]
      %v2154 = vld [vmem:[%s2031 + $0x3d0] sm:$0xff]
      %v2155 = vld [vmem:[%s2031 + $0x3d8] sm:$0xff]
      %v2156 = vld [vmem:[%s2031 + $0x3e0] sm:$0xff]
      %v2157 = vld [vmem:[%s2031 + $0x3e8] sm:$0xff]
      %v2158 = vld [vmem:[%s2031 + $0x3f0] sm:$0xff]
      %v2159 = vld [vmem:[%s2031 + $0x3f8] sm:$0xff]
      %2160 = vmatprep.subr.mxu0 %v2033
      %2161 = vmatpush1.msra.mxu0 %v2032
      %2162 = vmatprep.subr.mxu0 %v2041
      %2163 = vmatpush1.msra.mxu0 %v2040
      %2164 = vmatprep.subr.mxu0 %v2049
      %2165 = vmatpush1.msra.mxu0 %v2048
      %2166 = vmatprep.subr.mxu0 %v2057
      %2167 = vmatpush1.msra.mxu0 %v2056
      %2168 = vmatprep.subr.mxu0 %v2065
      %2169 = vmatpush1.msra.mxu0 %v2064
      %2170 = vmatprep.subr.mxu0 %v2073
      %2171 = vmatpush1.msra.mxu0 %v2072
      %2172 = vmatprep.subr.mxu0 %v2081
      %2173 = vmatpush1.msra.mxu0 %v2080
      %2174 = vmatprep.subr.mxu0 %v2089
      %2175 = vmatpush1.msra.mxu0 %v2088
      %2176 = vmatprep.subr.mxu0 %v2097
      %2177 = vmatpush1.msra.mxu0 %v2096
      %2178 = vmatprep.subr.mxu0 %v2105
      %2179 = vmatpush1.msra.mxu0 %v2104
      %2180 = vmatprep.subr.mxu0 %v2113
      %2181 = vmatpush1.msra.mxu0 %v2112
      %2182 = vmatprep.subr.mxu0 %v2121
      %2183 = vmatpush1.msra.mxu0 %v2120
      %2184 = vmatprep.subr.mxu0 %v2129
      %2185 = vmatpush1.msra.mxu0 %v2128
      %2186 = vmatprep.subr.mxu0 %v2137
      %2187 = vmatpush1.msra.mxu0 %v2136
      %2188 = vmatprep.subr.mxu0 %v2145
      %2189 = vmatpush1.msra.mxu0 %v2144
      %2190 = vmatprep.subr.mxu0 %v2153
      %2191 = vmatpush1.msra.mxu0 %v2152
      %2192 = vmatprep.subr.mxu0 0.0
      %2193 = vmatpush1.msra.mxu0 0.0
      %2194 = vmatprep.subr.mxu0 0.0
      %2195 = vmatpush1.msra.mxu0 0.0
      %2196 = vmatprep.subr.mxu0 0.0
      %2197 = vmatpush1.msra.mxu0 0.0
      %2198 = vmatprep.subr.mxu0 0.0
      %2199 = vmatpush1.msra.mxu0 0.0
      %2200 = vmatprep.subr.mxu0 0.0
      %2201 = vmatpush1.msra.mxu0 0.0
      %2202 = vmatprep.subr.mxu0 0.0
      %2203 = vmatpush1.msra.mxu0 0.0
      %2204 = vmatprep.subr.mxu0 0.0
      %2205 = vmatpush1.msra.mxu0 0.0
      %2206 = vmatprep.subr.mxu0 0.0
      %2207 = vmatpush1.msra.mxu0 0.0
      %2208 = vmatprep.subr.mxu0 0.0
      %2209 = vmatpush1.msra.mxu0 0.0
      %2210 = vmatprep.subr.mxu0 0.0
      %2211 = vmatpush1.msra.mxu0 0.0
      %2212 = vmatprep.subr.mxu0 0.0
      %2213 = vmatpush1.msra.mxu0 0.0
      %2214 = vmatprep.subr.mxu0 0.0
      %2215 = vmatpush1.msra.mxu0 0.0
      %2216 = vmatprep.subr.mxu0 0.0
      %2217 = vmatpush1.msra.mxu0 0.0
      %2218 = vmatprep.subr.mxu0 0.0
      %2219 = vmatpush1.msra.mxu0 0.0
      %2220 = vmatprep.subr.mxu0 0.0
      %2221 = vmatpush1.msra.mxu0 0.0
      %2222 = vmatprep.subr.mxu0 0.0
      %2223 = vmatpush1.msra.mxu0 0.0
      %2224 = vmatprep.mubr.f32.mxu0 0.0
      %2225 = vmatmul.mubr.f32.gmra.mrb[0].mxu0 %v1896
      %v2226 = vpop.f32.mrb[0].mxu0
      %v2227 = vadd.f32 0.0, %v2226
      %v2228 = vpop.f32.mrb[0].mxu0
      %v2229 = vadd.f32 0.0, %v2228
      %2230 = vdwg.mxu0
      %2231 = vmatprep.subr.mxu0 %v2035
      %2232 = vmatpush1.msra.mxu0 %v2034
      %2233 = vmatprep.subr.mxu0 %v2043
      %2234 = vmatpush1.msra.mxu0 %v2042
      %2235 = vmatprep.subr.mxu0 %v2051
      %2236 = vmatpush1.msra.mxu0 %v2050
      %2237 = vmatprep.subr.mxu0 %v2059
      %2238 = vmatpush1.msra.mxu0 %v2058
      %2239 = vmatprep.subr.mxu0 %v2067
      %2240 = vmatpush1.msra.mxu0 %v2066
      %2241 = vmatprep.subr.mxu0 %v2075
      %2242 = vmatpush1.msra.mxu0 %v2074
      %2243 = vmatprep.subr.mxu0 %v2083
      %2244 = vmatpush1.msra.mxu0 %v2082
      %2245 = vmatprep.subr.mxu0 %v2091
      %2246 = vmatpush1.msra.mxu0 %v2090
      %2247 = vmatprep.subr.mxu0 %v2099
      %2248 = vmatpush1.msra.mxu0 %v2098
      %2249 = vmatprep.subr.mxu0 %v2107
      %2250 = vmatpush1.msra.mxu0 %v2106
      %2251 = vmatprep.subr.mxu0 %v2115
      %2252 = vmatpush1.msra.mxu0 %v2114
      %2253 = vmatprep.subr.mxu0 %v2123
      %2254 = vmatpush1.msra.mxu0 %v2122
      %2255 = vmatprep.subr.mxu0 %v2131
      %2256 = vmatpush1.msra.mxu0 %v2130
      %2257 = vmatprep.subr.mxu0 %v2139
      %2258 = vmatpush1.msra.mxu0 %v2138
      %2259 = vmatprep.subr.mxu0 %v2147
      %2260 = vmatpush1.msra.mxu0 %v2146
      %2261 = vmatprep.subr.mxu0 %v2155
      %2262 = vmatpush1.msra.mxu0 %v2154
      %2263 = vmatprep.subr.mxu0 0.0
      %2264 = vmatpush1.msra.mxu0 0.0
      %2265 = vmatprep.subr.mxu0 0.0
      %2266 = vmatpush1.msra.mxu0 0.0
      %2267 = vmatprep.subr.mxu0 0.0
      %2268 = vmatpush1.msra.mxu0 0.0
      %2269 = vmatprep.subr.mxu0 0.0
      %2270 = vmatpush1.msra.mxu0 0.0
      %2271 = vmatprep.subr.mxu0 0.0
      %2272 = vmatpush1.msra.mxu0 0.0
      %2273 = vmatprep.subr.mxu0 0.0
      %2274 = vmatpush1.msra.mxu0 0.0
      %2275 = vmatprep.subr.mxu0 0.0
      %2276 = vmatpush1.msra.mxu0 0.0
      %2277 = vmatprep.subr.mxu0 0.0
      %2278 = vmatpush1.msra.mxu0 0.0
      %2279 = vmatprep.subr.mxu0 0.0
      %2280 = vmatpush1.msra.mxu0 0.0
      %2281 = vmatprep.subr.mxu0 0.0
      %2282 = vmatpush1.msra.mxu0 0.0
      %2283 = vmatprep.subr.mxu0 0.0
      %2284 = vmatpush1.msra.mxu0 0.0
      %2285 = vmatprep.subr.mxu0 0.0
      %2286 = vmatpush1.msra.mxu0 0.0
      %2287 = vmatprep.subr.mxu0 0.0
      %2288 = vmatpush1.msra.mxu0 0.0
      %2289 = vmatprep.subr.mxu0 0.0
      %2290 = vmatpush1.msra.mxu0 0.0
      %2291 = vmatprep.subr.mxu0 0.0
      %2292 = vmatpush1.msra.mxu0 0.0
      %2293 = vmatprep.subr.mxu0 0.0
      %2294 = vmatpush1.msra.mxu0 0.0
      %2295 = vmatprep.mubr.f32.mxu0 0.0
      %2296 = vmatmul.mubr.f32.gmra.mrb[0].mxu0 %v1896
      %v2297 = vpop.f32.mrb[0].mxu0
      %v2298 = vadd.f32 0.0, %v2297
      %v2299 = vpop.f32.mrb[0].mxu0
      %v2300 = vadd.f32 0.0, %v2299
      %2301 = vdwg.mxu0
      %2302 = vmatprep.subr.mxu0 %v2037
      %2303 = vmatpush1.msra.mxu0 %v2036
      %2304 = vmatprep.subr.mxu0 %v2045
      %2305 = vmatpush1.msra.mxu0 %v2044
      %2306 = vmatprep.subr.mxu0 %v2053
      %2307 = vmatpush1.msra.mxu0 %v2052
      %2308 = vmatprep.subr.mxu0 %v2061
      %2309 = vmatpush1.msra.mxu0 %v2060
      %2310 = vmatprep.subr.mxu0 %v2069
      %2311 = vmatpush1.msra.mxu0 %v2068
      %2312 = vmatprep.subr.mxu0 %v2077
      %2313 = vmatpush1.msra.mxu0 %v2076
      %2314 = vmatprep.subr.mxu0 %v2085
      %2315 = vmatpush1.msra.mxu0 %v2084
      %2316 = vmatprep.subr.mxu0 %v2093
      %2317 = vmatpush1.msra.mxu0 %v2092
      %2318 = vmatprep.subr.mxu0 %v2101
      %2319 = vmatpush1.msra.mxu0 %v2100
      %2320 = vmatprep.subr.mxu0 %v2109
      %2321 = vmatpush1.msra.mxu0 %v2108
      %2322 = vmatprep.subr.mxu0 %v2117
      %2323 = vmatpush1.msra.mxu0 %v2116
      %2324 = vmatprep.subr.mxu0 %v2125
      %2325 = vmatpush1.msra.mxu0 %v2124
      %2326 = vmatprep.subr.mxu0 %v2133
      %2327 = vmatpush1.msra.mxu0 %v2132
      %2328 = vmatprep.subr.mxu0 %v2141
      %2329 = vmatpush1.msra.mxu0 %v2140
      %2330 = vmatprep.subr.mxu0 %v2149
      %2331 = vmatpush1.msra.mxu0 %v2148
      %2332 = vmatprep.subr.mxu0 %v2157
      %2333 = vmatpush1.msra.mxu0 %v2156
      %2334 = vmatprep.subr.mxu0 0.0
      %2335 = vmatpush1.msra.mxu0 0.0
      %2336 = vmatprep.subr.mxu0 0.0
      %2337 = vmatpush1.msra.mxu0 0.0
      %2338 = vmatprep.subr.mxu0 0.0
      %2339 = vmatpush1.msra.mxu0 0.0
      %2340 = vmatprep.subr.mxu0 0.0
      %2341 = vmatpush1.msra.mxu0 0.0
      %2342 = vmatprep.subr.mxu0 0.0
      %2343 = vmatpush1.msra.mxu0 0.0
      %2344 = vmatprep.subr.mxu0 0.0
      %2345 = vmatpush1.msra.mxu0 0.0
      %2346 = vmatprep.subr.mxu0 0.0
      %2347 = vmatpush1.msra.mxu0 0.0
      %2348 = vmatprep.subr.mxu0 0.0
      %2349 = vmatpush1.msra.mxu0 0.0
      %2350 = vmatprep.subr.mxu0 0.0
      %2351 = vmatpush1.msra.mxu0 0.0
      %2352 = vmatprep.subr.mxu0 0.0
      %2353 = vmatpush1.msra.mxu0 0.0
      %2354 = vmatprep.subr.mxu0 0.0
      %2355 = vmatpush1.msra.mxu0 0.0
      %2356 = vmatprep.subr.mxu0 0.0
      %2357 = vmatpush1.msra.mxu0 0.0
      %2358 = vmatprep.subr.mxu0 0.0
      %2359 = vmatpush1.msra.mxu0 0.0
      %2360 = vmatprep.subr.mxu0 0.0
      %2361 = vmatpush1.msra.mxu0 0.0
      %2362 = vmatprep.subr.mxu0 0.0
      %2363 = vmatpush1.msra.mxu0 0.0
      %2364 = vmatprep.subr.mxu0 0.0
      %2365 = vmatpush1.msra.mxu0 0.0
      %2366 = vmatprep.mubr.f32.mxu0 0.0
      %2367 = vmatmul.mubr.f32.gmra.mrb[0].mxu0 %v1896
      %v2368 = vpop.f32.mrb[0].mxu0
      %v2369 = vadd.f32 0.0, %v2368
      %v2370 = vpop.f32.mrb[0].mxu0
      %v2371 = vadd.f32 0.0, %v2370
      %2372 = vdwg.mxu0
      %2373 = vmatprep.subr.mxu0 %v2039
      %2374 = vmatpush1.msra.mxu0 %v2038
      %2375 = vmatprep.subr.mxu0 %v2047
      %2376 = vmatpush1.msra.mxu0 %v2046
      %2377 = vmatprep.subr.mxu0 %v2055
      %2378 = vmatpush1.msra.mxu0 %v2054
      %2379 = vmatprep.subr.mxu0 %v2063
      %2380 = vmatpush1.msra.mxu0 %v2062
      %2381 = vmatprep.subr.mxu0 %v2071
      %2382 = vmatpush1.msra.mxu0 %v2070
      %2383 = vmatprep.subr.mxu0 %v2079
      %2384 = vmatpush1.msra.mxu0 %v2078
      %2385 = vmatprep.subr.mxu0 %v2087
      %2386 = vmatpush1.msra.mxu0 %v2086
      %2387 = vmatprep.subr.mxu0 %v2095
      %2388 = vmatpush1.msra.mxu0 %v2094
      %2389 = vmatprep.subr.mxu0 %v2103
      %2390 = vmatpush1.msra.mxu0 %v2102
      %2391 = vmatprep.subr.mxu0 %v2111
      %2392 = vmatpush1.msra.mxu0 %v2110
      %2393 = vmatprep.subr.mxu0 %v2119
      %2394 = vmatpush1.msra.mxu0 %v2118
      %2395 = vmatprep.subr.mxu0 %v2127
      %2396 = vmatpush1.msra.mxu0 %v2126
      %2397 = vmatprep.subr.mxu0 %v2135
      %2398 = vmatpush1.msra.mxu0 %v2134
      %2399 = vmatprep.subr.mxu0 %v2143
      %2400 = vmatpush1.msra.mxu0 %v2142
      %2401 = vmatprep.subr.mxu0 %v2151
      %2402 = vmatpush1.msra.mxu0 %v2150
      %2403 = vmatprep.subr.mxu0 %v2159
      %2404 = vmatpush1.msra.mxu0 %v2158
      %2405 = vmatprep.subr.mxu0 0.0
      %2406 = vmatpush1.msra.mxu0 0.0
      %2407 = vmatprep.subr.mxu0 0.0
      %2408 = vmatpush1.msra.mxu0 0.0
      %2409 = vmatprep.subr.mxu0 0.0
      %2410 = vmatpush1.msra.mxu0 0.0
      %2411 = vmatprep.subr.mxu0 0.0
      %2412 = vmatpush1.msra.mxu0 0.0
      %2413 = vmatprep.subr.mxu0 0.0
      %2414 = vmatpush1.msra.mxu0 0.0
      %2415 = vmatprep.subr.mxu0 0.0
      %2416 = vmatpush1.msra.mxu0 0.0
      %2417 = vmatprep.subr.mxu0 0.0
      %2418 = vmatpush1.msra.mxu0 0.0
      %2419 = vmatprep.subr.mxu0 0.0
      %2420 = vmatpush1.msra.mxu0 0.0
      %2421 = vmatprep.subr.mxu0 0.0
      %2422 = vmatpush1.msra.mxu0 0.0
      %2423 = vmatprep.subr.mxu0 0.0
      %2424 = vmatpush1.msra.mxu0 0.0
      %2425 = vmatprep.subr.mxu0 0.0
      %2426 = vmatpush1.msra.mxu0 0.0
      %2427 = vmatprep.subr.mxu0 0.0
      %2428 = vmatpush1.msra.mxu0 0.0
      %2429 = vmatprep.subr.mxu0 0.0
      %2430 = vmatpush1.msra.mxu0 0.0
      %2431 = vmatprep.subr.mxu0 0.0
      %2432 = vmatpush1.msra.mxu0 0.0
      %2433 = vmatprep.subr.mxu0 0.0
      %2434 = vmatpush1.msra.mxu0 0.0
      %2435 = vmatprep.subr.mxu0 0.0
      %2436 = vmatpush1.msra.mxu0 0.0
      %2437 = vmatprep.mubr.f32.mxu0 0.0
      %2438 = vmatmul.mubr.f32.gmra.mrb[0].mxu0 %v1896
      %v2439 = vpop.f32.mrb[0].mxu0
      %v2440 = vadd.f32 0.0, %v2439
      %v2441 = vpop.f32.mrb[0].mxu0
      %v2442 = vadd.f32 0.0, %v2441
      %2443 = vdwg.mxu0
      %2444 = vmatprep.subr.mxu0 %v1904
      %2445 = vmatpush1.msra.mxu0 %v1903
      %2446 = vmatprep.subr.mxu0 %v1912
      %2447 = vmatpush1.msra.mxu0 %v1911
      %2448 = vmatprep.subr.mxu0 %v1920
      %2449 = vmatpush1.msra.mxu0 %v1919
      %2450 = vmatprep.subr.mxu0 %v1928
      %2451 = vmatpush1.msra.mxu0 %v1927
      %2452 = vmatprep.subr.mxu0 %v1936
      %2453 = vmatpush1.msra.mxu0 %v1935
      %2454 = vmatprep.subr.mxu0 %v1944
      %2455 = vmatpush1.msra.mxu0 %v1943
      %2456 = vmatprep.subr.mxu0 %v1952
      %2457 = vmatpush1.msra.mxu0 %v1951
      %2458 = vmatprep.subr.mxu0 %v1960
      %2459 = vmatpush1.msra.mxu0 %v1959
      %2460 = vmatprep.subr.mxu0 %v1968
      %2461 = vmatpush1.msra.mxu0 %v1967
      %2462 = vmatprep.subr.mxu0 %v1976
      %2463 = vmatpush1.msra.mxu0 %v1975
      %2464 = vmatprep.subr.mxu0 %v1984
      %2465 = vmatpush1.msra.mxu0 %v1983
      %2466 = vmatprep.subr.mxu0 %v1992
      %2467 = vmatpush1.msra.mxu0 %v1991
      %2468 = vmatprep.subr.mxu0 %v2000
      %2469 = vmatpush1.msra.mxu0 %v1999
      %2470 = vmatprep.subr.mxu0 %v2008
      %2471 = vmatpush1.msra.mxu0 %v2007
      %2472 = vmatprep.subr.mxu0 %v2016
      %2473 = vmatpush1.msra.mxu0 %v2015
      %2474 = vmatprep.subr.mxu0 %v2024
      %2475 = vmatpush1.msra.mxu0 %v2023
      %2476 = vmatprep.subr.mxu0 0.0
      %2477 = vmatpush1.msra.mxu0 0.0
      %2478 = vmatprep.subr.mxu0 0.0
      %2479 = vmatpush1.msra.mxu0 0.0
      %2480 = vmatprep.subr.mxu0 0.0
      %2481 = vmatpush1.msra.mxu0 0.0
      %2482 = vmatprep.subr.mxu0 0.0
      %2483 = vmatpush1.msra.mxu0 0.0
      %2484 = vmatprep.subr.mxu0 0.0
      %2485 = vmatpush1.msra.mxu0 0.0
      %2486 = vmatprep.subr.mxu0 0.0
      %2487 = vmatpush1.msra.mxu0 0.0
      %2488 = vmatprep.subr.mxu0 0.0
      %2489 = vmatpush1.msra.mxu0 0.0
      %2490 = vmatprep.subr.mxu0 0.0
      %2491 = vmatpush1.msra.mxu0 0.0
      %2492 = vmatprep.subr.mxu0 0.0
      %2493 = vmatpush1.msra.mxu0 0.0
      %2494 = vmatprep.subr.mxu0 0.0
      %2495 = vmatpush1.msra.mxu0 0.0
      %2496 = vmatprep.subr.mxu0 0.0
      %2497 = vmatpush1.msra.mxu0 0.0
      %2498 = vmatprep.subr.mxu0 0.0
      %2499 = vmatpush1.msra.mxu0 0.0
      %2500 = vmatprep.subr.mxu0 0.0
      %2501 = vmatpush1.msra.mxu0 0.0
      %2502 = vmatprep.subr.mxu0 0.0
      %2503 = vmatpush1.msra.mxu0 0.0
      %2504 = vmatprep.subr.mxu0 0.0
      %2505 = vmatpush1.msra.mxu0 0.0
      %2506 = vmatprep.subr.mxu0 0.0
      %2507 = vmatpush1.msra.mxu0 0.0
      %2508 = vmatprep.mubr.f32.mxu0 0.0
      %2509 = vmatmul.mubr.f32.gmra.mrb[0].mxu0 %v1895
      %v2510 = vpop.f32.mrb[0].mxu0
      %v2511 = vadd.f32 %v2227, %v2510
      %v2512 = vpop.f32.mrb[0].mxu0
      %v2513 = vadd.f32 %v2229, %v2512
      %2514 = vdwg.mxu0
      %2515 = vmatprep.subr.mxu0 %v1906
      %2516 = vmatpush1.msra.mxu0 %v1905
      %2517 = vmatprep.subr.mxu0 %v1914
      %2518 = vmatpush1.msra.mxu0 %v1913
      %2519 = vmatprep.subr.mxu0 %v1922
      %2520 = vmatpush1.msra.mxu0 %v1921
      %2521 = vmatprep.subr.mxu0 %v1930
      %2522 = vmatpush1.msra.mxu0 %v1929
      %2523 = vmatprep.subr.mxu0 %v1938
      %2524 = vmatpush1.msra.mxu0 %v1937
      %2525 = vmatprep.subr.mxu0 %v1946
      %2526 = vmatpush1.msra.mxu0 %v1945
      %2527 = vmatprep.subr.mxu0 %v1954
      %2528 = vmatpush1.msra.mxu0 %v1953
      %2529 = vmatprep.subr.mxu0 %v1962
      %2530 = vmatpush1.msra.mxu0 %v1961
      %2531 = vmatprep.subr.mxu0 %v1970
      %2532 = vmatpush1.msra.mxu0 %v1969
      %2533 = vmatprep.subr.mxu0 %v1978
      %2534 = vmatpush1.msra.mxu0 %v1977
      %2535 = vmatprep.subr.mxu0 %v1986
      %2536 = vmatpush1.msra.mxu0 %v1985
      %2537 = vmatprep.subr.mxu0 %v1994
      %2538 = vmatpush1.msra.mxu0 %v1993
      %2539 = vmatprep.subr.mxu0 %v2002
      %2540 = vmatpush1.msra.mxu0 %v2001
      %2541 = vmatprep.subr.mxu0 %v2010
      %2542 = vmatpush1.msra.mxu0 %v2009
      %2543 = vmatprep.subr.mxu0 %v2018
      %2544 = vmatpush1.msra.mxu0 %v2017
      %2545 = vmatprep.subr.mxu0 %v2026
      %2546 = vmatpush1.msra.mxu0 %v2025
      %2547 = vmatprep.subr.mxu0 0.0
      %2548 = vmatpush1.msra.mxu0 0.0
      %2549 = vmatprep.subr.mxu0 0.0
      %2550 = vmatpush1.msra.mxu0 0.0
      %2551 = vmatprep.subr.mxu0 0.0
      %2552 = vmatpush1.msra.mxu0 0.0
      %2553 = vmatprep.subr.mxu0 0.0
      %2554 = vmatpush1.msra.mxu0 0.0
      %2555 = vmatprep.subr.mxu0 0.0
      %2556 = vmatpush1.msra.mxu0 0.0
      %2557 = vmatprep.subr.mxu0 0.0
      %2558 = vmatpush1.msra.mxu0 0.0
      %2559 = vmatprep.subr.mxu0 0.0
      %2560 = vmatpush1.msra.mxu0 0.0
      %2561 = vmatprep.subr.mxu0 0.0
      %2562 = vmatpush1.msra.mxu0 0.0
      %2563 = vmatprep.subr.mxu0 0.0
      %2564 = vmatpush1.msra.mxu0 0.0
      %2565 = vmatprep.subr.mxu0 0.0
      %2566 = vmatpush1.msra.mxu0 0.0
      %2567 = vmatprep.subr.mxu0 0.0
      %2568 = vmatpush1.msra.mxu0 0.0
      %2569 = vmatprep.subr.mxu0 0.0
      %2570 = vmatpush1.msra.mxu0 0.0
      %2571 = vmatprep.subr.mxu0 0.0
      %2572 = vmatpush1.msra.mxu0 0.0
      %2573 = vmatprep.subr.mxu0 0.0
      %2574 = vmatpush1.msra.mxu0 0.0
      %2575 = vmatprep.subr.mxu0 0.0
      %2576 = vmatpush1.msra.mxu0 0.0
      %2577 = vmatprep.subr.mxu0 0.0
      %2578 = vmatpush1.msra.mxu0 0.0
      %2579 = vmatprep.mubr.f32.mxu0 0.0
      %2580 = vmatmul.mubr.f32.gmra.mrb[0].mxu0 %v1895
      %v2581 = vpop.f32.mrb[0].mxu0
      %v2582 = vadd.f32 %v2298, %v2581
      %v2583 = vpop.f32.mrb[0].mxu0
      %v2584 = vadd.f32 %v2300, %v2583
      %2585 = vdwg.mxu0
      %2586 = vmatprep.subr.mxu0 %v1908
      %2587 = vmatpush1.msra.mxu0 %v1907
      %2588 = vmatprep.subr.mxu0 %v1916
      %2589 = vmatpush1.msra.mxu0 %v1915
      %2590 = vmatprep.subr.mxu0 %v1924
      %2591 = vmatpush1.msra.mxu0 %v1923
      %2592 = vmatprep.subr.mxu0 %v1932
      %2593 = vmatpush1.msra.mxu0 %v1931
      %2594 = vmatprep.subr.mxu0 %v1940
      %2595 = vmatpush1.msra.mxu0 %v1939
      %2596 = vmatprep.subr.mxu0 %v1948
      %2597 = vmatpush1.msra.mxu0 %v1947
      %2598 = vmatprep.subr.mxu0 %v1956
      %2599 = vmatpush1.msra.mxu0 %v1955
      %2600 = vmatprep.subr.mxu0 %v1964
      %2601 = vmatpush1.msra.mxu0 %v1963
      %2602 = vmatprep.subr.mxu0 %v1972
      %2603 = vmatpush1.msra.mxu0 %v1971
      %2604 = vmatprep.subr.mxu0 %v1980
      %2605 = vmatpush1.msra.mxu0 %v1979
      %2606 = vmatprep.subr.mxu0 %v1988
      %2607 = vmatpush1.msra.mxu0 %v1987
      %2608 = vmatprep.subr.mxu0 %v1996
      %2609 = vmatpush1.msra.mxu0 %v1995
      %2610 = vmatprep.subr.mxu0 %v2004
      %2611 = vmatpush1.msra.mxu0 %v2003
      %2612 = vmatprep.subr.mxu0 %v2012
      %2613 = vmatpush1.msra.mxu0 %v2011
      %2614 = vmatprep.subr.mxu0 %v2020
      %2615 = vmatpush1.msra.mxu0 %v2019
      %2616 = vmatprep.subr.mxu0 %v2028
      %2617 = vmatpush1.msra.mxu0 %v2027
      %2618 = vmatprep.subr.mxu0 0.0
      %2619 = vmatpush1.msra.mxu0 0.0
      %2620 = vmatprep.subr.mxu0 0.0
      %2621 = vmatpush1.msra.mxu0 0.0
      %2622 = vmatprep.subr.mxu0 0.0
      %2623 = vmatpush1.msra.mxu0 0.0
      %2624 = vmatprep.subr.mxu0 0.0
      %2625 = vmatpush1.msra.mxu0 0.0
      %2626 = vmatprep.subr.mxu0 0.0
      %2627 = vmatpush1.msra.mxu0 0.0
      %2628 = vmatprep.subr.mxu0 0.0
      %2629 = vmatpush1.msra.mxu0 0.0
      %2630 = vmatprep.subr.mxu0 0.0
      %2631 = vmatpush1.msra.mxu0 0.0
      %2632 = vmatprep.subr.mxu0 0.0
      %2633 = vmatpush1.msra.mxu0 0.0
      %2634 = vmatprep.subr.mxu0 0.0
      %2635 = vmatpush1.msra.mxu0 0.0
      %2636 = vmatprep.subr.mxu0 0.0
      %2637 = vmatpush1.msra.mxu0 0.0
      %2638 = vmatprep.subr.mxu0 0.0
      %2639 = vmatpush1.msra.mxu0 0.0
      %2640 = vmatprep.subr.mxu0 0.0
      %2641 = vmatpush1.msra.mxu0 0.0
      %2642 = vmatprep.subr.mxu0 0.0
      %2643 = vmatpush1.msra.mxu0 0.0
      %2644 = vmatprep.subr.mxu0 0.0
      %2645 = vmatpush1.msra.mxu0 0.0
      %2646 = vmatprep.subr.mxu0 0.0
      %2647 = vmatpush1.msra.mxu0 0.0
      %2648 = vmatprep.subr.mxu0 0.0
      %2649 = vmatpush1.msra.mxu0 0.0
      %2650 = vmatprep.mubr.f32.mxu0 0.0
      %2651 = vmatmul.mubr.f32.gmra.mrb[0].mxu0 %v1895
      %v2652 = vpop.f32.mrb[0].mxu0
      %v2653 = vadd.f32 %v2369, %v2652
      %v2654 = vpop.f32.mrb[0].mxu0
      %v2655 = vadd.f32 %v2371, %v2654
      %2656 = vdwg.mxu0
      %2657 = vmatprep.subr.mxu0 %v1910
      %2658 = vmatpush1.msra.mxu0 %v1909
      %2659 = vmatprep.subr.mxu0 %v1918
      %2660 = vmatpush1.msra.mxu0 %v1917
      %2661 = vmatprep.subr.mxu0 %v1926
      %2662 = vmatpush1.msra.mxu0 %v1925
      %2663 = vmatprep.subr.mxu0 %v1934
      %2664 = vmatpush1.msra.mxu0 %v1933
      %2665 = vmatprep.subr.mxu0 %v1942
      %2666 = vmatpush1.msra.mxu0 %v1941
      %2667 = vmatprep.subr.mxu0 %v1950
      %2668 = vmatpush1.msra.mxu0 %v1949
      %2669 = vmatprep.subr.mxu0 %v1958
      %2670 = vmatpush1.msra.mxu0 %v1957
      %2671 = vmatprep.subr.mxu0 %v1966
      %2672 = vmatpush1.msra.mxu0 %v1965
      %2673 = vmatprep.subr.mxu0 %v1974
      %2674 = vmatpush1.msra.mxu0 %v1973
      %2675 = vmatprep.subr.mxu0 %v1982
      %2676 = vmatpush1.msra.mxu0 %v1981
      %2677 = vmatprep.subr.mxu0 %v1990
      %2678 = vmatpush1.msra.mxu0 %v1989
      %2679 = vmatprep.subr.mxu0 %v1998
      %2680 = vmatpush1.msra.mxu0 %v1997
      %2681 = vmatprep.subr.mxu0 %v2006
      %2682 = vmatpush1.msra.mxu0 %v2005
      %2683 = vmatprep.subr.mxu0 %v2014
      %2684 = vmatpush1.msra.mxu0 %v2013
      %2685 = vmatprep.subr.mxu0 %v2022
      %2686 = vmatpush1.msra.mxu0 %v2021
      %2687 = vmatprep.subr.mxu0 %v2030
      %2688 = vmatpush1.msra.mxu0 %v2029
      %2689 = vmatprep.subr.mxu0 0.0
      %2690 = vmatpush1.msra.mxu0 0.0
      %2691 = vmatprep.subr.mxu0 0.0
      %2692 = vmatpush1.msra.mxu0 0.0
      %2693 = vmatprep.subr.mxu0 0.0
      %2694 = vmatpush1.msra.mxu0 0.0
      %2695 = vmatprep.subr.mxu0 0.0
      %2696 = vmatpush1.msra.mxu0 0.0
      %2697 = vmatprep.subr.mxu0 0.0
      %2698 = vmatpush1.msra.mxu0 0.0
      %2699 = vmatprep.subr.mxu0 0.0
      %2700 = vmatpush1.msra.mxu0 0.0
      %2701 = vmatprep.subr.mxu0 0.0
      %2702 = vmatpush1.msra.mxu0 0.0
      %2703 = vmatprep.subr.mxu0 0.0
      %2704 = vmatpush1.msra.mxu0 0.0
      %2705 = vmatprep.subr.mxu0 0.0
      %2706 = vmatpush1.msra.mxu0 0.0
      %2707 = vmatprep.subr.mxu0 0.0
      %2708 = vmatpush1.msra.mxu0 0.0
      %2709 = vmatprep.subr.mxu0 0.0
      %2710 = vmatpush1.msra.mxu0 0.0
      %2711 = vmatprep.subr.mxu0 0.0
      %2712 = vmatpush1.msra.mxu0 0.0
      %2713 = vmatprep.subr.mxu0 0.0
      %2714 = vmatpush1.msra.mxu0 0.0
      %2715 = vmatprep.subr.mxu0 0.0
      %2716 = vmatpush1.msra.mxu0 0.0
      %2717 = vmatprep.subr.mxu0 0.0
      %2718 = vmatpush1.msra.mxu0 0.0
      %2719 = vmatprep.subr.mxu0 0.0
      %2720 = vmatpush1.msra.mxu0 0.0
      %2721 = vmatprep.mubr.f32.mxu0 0.0
      %2722 = vmatmul.mubr.f32.gmra.mrb[0].mxu0 %v1895
      %v2723 = vpop.f32.mrb[0].mxu0
      %v2724 = vadd.f32 %v2440, %v2723
      %v2725 = vpop.f32.mrb[0].mxu0
      %v2726 = vadd.f32 %v2442, %v2725
      %2727 = vdwg.mxu0
      %s2728 = scalar_lea.vmem %s5, 2048
      %v2729 = vld [vmem:[%s2728] sm:$0xff]
      %v2730 = vld [vmem:[%s2728 + $0x8] sm:$0xff]
      %v2731 = vld [vmem:[%s2728 + $0x10] sm:$0xff]
      %v2732 = vld [vmem:[%s2728 + $0x18] sm:$0xff]
      %v2733 = vld [vmem:[%s2728 + $0x20] sm:$0xff]
      %v2734 = vld [vmem:[%s2728 + $0x28] sm:$0xff]
      %v2735 = vld [vmem:[%s2728 + $0x30] sm:$0xff]
      %v2736 = vld [vmem:[%s2728 + $0x38] sm:$0xff]
      %v2737 = vld [vmem:[%s2728 + $0x40] sm:$0xff]
      %v2738 = vld [vmem:[%s2728 + $0x48] sm:$0xff]
      %v2739 = vld [vmem:[%s2728 + $0x50] sm:$0xff]
      %v2740 = vld [vmem:[%s2728 + $0x58] sm:$0xff]
      %v2741 = vld [vmem:[%s2728 + $0x60] sm:$0xff]
      %v2742 = vld [vmem:[%s2728 + $0x68] sm:$0xff]
      %v2743 = vld [vmem:[%s2728 + $0x70] sm:$0xff]
      %v2744 = vld [vmem:[%s2728 + $0x78] sm:$0xff]
      %v2745 = vld [vmem:[%s2728 + $0x80] sm:$0xff]
      %v2746 = vld [vmem:[%s2728 + $0x88] sm:$0xff]
      %v2747 = vld [vmem:[%s2728 + $0x90] sm:$0xff]
      %v2748 = vld [vmem:[%s2728 + $0x98] sm:$0xff]
      %v2749 = vld [vmem:[%s2728 + $0xa0] sm:$0xff]
      %v2750 = vld [vmem:[%s2728 + $0xa8] sm:$0xff]
      %v2751 = vld [vmem:[%s2728 + $0xb0] sm:$0xff]
      %v2752 = vld [vmem:[%s2728 + $0xb8] sm:$0xff]
      %v2753 = vld [vmem:[%s2728 + $0xc0] sm:$0xff]
      %v2754 = vld [vmem:[%s2728 + $0xc8] sm:$0xff]
      %v2755 = vld [vmem:[%s2728 + $0xd0] sm:$0xff]
      %v2756 = vld [vmem:[%s2728 + $0xd8] sm:$0xff]
      %v2757 = vld [vmem:[%s2728 + $0xe0] sm:$0xff]
      %v2758 = vld [vmem:[%s2728 + $0xe8] sm:$0xff]
      %v2759 = vld [vmem:[%s2728 + $0xf0] sm:$0xff]
      %v2760 = vld [vmem:[%s2728 + $0xf8] sm:$0xff]
      %v2761 = vld [vmem:[%s2728 + $0x100] sm:$0xff]
      %v2762 = vld [vmem:[%s2728 + $0x108] sm:$0xff]
      %v2763 = vld [vmem:[%s2728 + $0x110] sm:$0xff]
      %v2764 = vld [vmem:[%s2728 + $0x118] sm:$0xff]
      %v2765 = vld [vmem:[%s2728 + $0x120] sm:$0xff]
      %v2766 = vld [vmem:[%s2728 + $0x128] sm:$0xff]
      %v2767 = vld [vmem:[%s2728 + $0x130] sm:$0xff]
      %v2768 = vld [vmem:[%s2728 + $0x138] sm:$0xff]
      %v2769 = vld [vmem:[%s2728 + $0x140] sm:$0xff]
      %v2770 = vld [vmem:[%s2728 + $0x148] sm:$0xff]
      %v2771 = vld [vmem:[%s2728 + $0x150] sm:$0xff]
      %v2772 = vld [vmem:[%s2728 + $0x158] sm:$0xff]
      %v2773 = vld [vmem:[%s2728 + $0x160] sm:$0xff]
      %v2774 = vld [vmem:[%s2728 + $0x168] sm:$0xff]
      %v2775 = vld [vmem:[%s2728 + $0x170] sm:$0xff]
      %v2776 = vld [vmem:[%s2728 + $0x178] sm:$0xff]
      %v2777 = vld [vmem:[%s2728 + $0x180] sm:$0xff]
      %v2778 = vld [vmem:[%s2728 + $0x188] sm:$0xff]
      %v2779 = vld [vmem:[%s2728 + $0x190] sm:$0xff]
      %v2780 = vld [vmem:[%s2728 + $0x198] sm:$0xff]
      %v2781 = vld [vmem:[%s2728 + $0x1a0] sm:$0xff]
      %v2782 = vld [vmem:[%s2728 + $0x1a8] sm:$0xff]
      %v2783 = vld [vmem:[%s2728 + $0x1b0] sm:$0xff]
      %v2784 = vld [vmem:[%s2728 + $0x1b8] sm:$0xff]
      %v2785 = vld [vmem:[%s2728 + $0x1c0] sm:$0xff]
      %v2786 = vld [vmem:[%s2728 + $0x1c8] sm:$0xff]
      %v2787 = vld [vmem:[%s2728 + $0x1d0] sm:$0xff]
      %v2788 = vld [vmem:[%s2728 + $0x1d8] sm:$0xff]
      %v2789 = vld [vmem:[%s2728 + $0x1e0] sm:$0xff]
      %v2790 = vld [vmem:[%s2728 + $0x1e8] sm:$0xff]
      %v2791 = vld [vmem:[%s2728 + $0x1f0] sm:$0xff]
      %v2792 = vld [vmem:[%s2728 + $0x1f8] sm:$0xff]
      %v2793 = vld [vmem:[%s2728 + $0x200] sm:$0xff]
      %v2794 = vld [vmem:[%s2728 + $0x208] sm:$0xff]
      %v2795 = vld [vmem:[%s2728 + $0x210] sm:$0xff]
      %v2796 = vld [vmem:[%s2728 + $0x218] sm:$0xff]
      %v2797 = vld [vmem:[%s2728 + $0x220] sm:$0xff]
      %v2798 = vld [vmem:[%s2728 + $0x228] sm:$0xff]
      %v2799 = vld [vmem:[%s2728 + $0x230] sm:$0xff]
      %v2800 = vld [vmem:[%s2728 + $0x238] sm:$0xff]
      %v2801 = vld [vmem:[%s2728 + $0x240] sm:$0xff]
      %v2802 = vld [vmem:[%s2728 + $0x248] sm:$0xff]
      %v2803 = vld [vmem:[%s2728 + $0x250] sm:$0xff]
      %v2804 = vld [vmem:[%s2728 + $0x258] sm:$0xff]
      %v2805 = vld [vmem:[%s2728 + $0x260] sm:$0xff]
      %v2806 = vld [vmem:[%s2728 + $0x268] sm:$0xff]
      %v2807 = vld [vmem:[%s2728 + $0x270] sm:$0xff]
      %v2808 = vld [vmem:[%s2728 + $0x278] sm:$0xff]
      %v2809 = vld [vmem:[%s2728 + $0x280] sm:$0xff]
      %v2810 = vld [vmem:[%s2728 + $0x288] sm:$0xff]
      %v2811 = vld [vmem:[%s2728 + $0x290] sm:$0xff]
      %v2812 = vld [vmem:[%s2728 + $0x298] sm:$0xff]
      %v2813 = vld [vmem:[%s2728 + $0x2a0] sm:$0xff]
      %v2814 = vld [vmem:[%s2728 + $0x2a8] sm:$0xff]
      %v2815 = vld [vmem:[%s2728 + $0x2b0] sm:$0xff]
      %v2816 = vld [vmem:[%s2728 + $0x2b8] sm:$0xff]
      %v2817 = vld [vmem:[%s2728 + $0x2c0] sm:$0xff]
      %v2818 = vld [vmem:[%s2728 + $0x2c8] sm:$0xff]
      %v2819 = vld [vmem:[%s2728 + $0x2d0] sm:$0xff]
      %v2820 = vld [vmem:[%s2728 + $0x2d8] sm:$0xff]
      %v2821 = vld [vmem:[%s2728 + $0x2e0] sm:$0xff]
      %v2822 = vld [vmem:[%s2728 + $0x2e8] sm:$0xff]
      %v2823 = vld [vmem:[%s2728 + $0x2f0] sm:$0xff]
      %v2824 = vld [vmem:[%s2728 + $0x2f8] sm:$0xff]
      %v2825 = vld [vmem:[%s2728 + $0x300] sm:$0xff]
      %v2826 = vld [vmem:[%s2728 + $0x308] sm:$0xff]
      %v2827 = vld [vmem:[%s2728 + $0x310] sm:$0xff]
      %v2828 = vld [vmem:[%s2728 + $0x318] sm:$0xff]
      %v2829 = vld [vmem:[%s2728 + $0x320] sm:$0xff]
      %v2830 = vld [vmem:[%s2728 + $0x328] sm:$0xff]
      %v2831 = vld [vmem:[%s2728 + $0x330] sm:$0xff]
      %v2832 = vld [vmem:[%s2728 + $0x338] sm:$0xff]
      %v2833 = vld [vmem:[%s2728 + $0x340] sm:$0xff]
      %v2834 = vld [vmem:[%s2728 + $0x348] sm:$0xff]
      %v2835 = vld [vmem:[%s2728 + $0x350] sm:$0xff]
      %v2836 = vld [vmem:[%s2728 + $0x358] sm:$0xff]
      %v2837 = vld [vmem:[%s2728 + $0x360] sm:$0xff]
      %v2838 = vld [vmem:[%s2728 + $0x368] sm:$0xff]
      %v2839 = vld [vmem:[%s2728 + $0x370] sm:$0xff]
      %v2840 = vld [vmem:[%s2728 + $0x378] sm:$0xff]
      %v2841 = vld [vmem:[%s2728 + $0x380] sm:$0xff]
      %v2842 = vld [vmem:[%s2728 + $0x388] sm:$0xff]
      %v2843 = vld [vmem:[%s2728 + $0x390] sm:$0xff]
      %v2844 = vld [vmem:[%s2728 + $0x398] sm:$0xff]
      %v2845 = vld [vmem:[%s2728 + $0x3a0] sm:$0xff]
      %v2846 = vld [vmem:[%s2728 + $0x3a8] sm:$0xff]
      %v2847 = vld [vmem:[%s2728 + $0x3b0] sm:$0xff]
      %v2848 = vld [vmem:[%s2728 + $0x3b8] sm:$0xff]
      %v2849 = vld [vmem:[%s2728 + $0x3c0] sm:$0xff]
      %v2850 = vld [vmem:[%s2728 + $0x3c8] sm:$0xff]
      %v2851 = vld [vmem:[%s2728 + $0x3d0] sm:$0xff]
      %v2852 = vld [vmem:[%s2728 + $0x3d8] sm:$0xff]
      %v2853 = vld [vmem:[%s2728 + $0x3e0] sm:$0xff]
      %v2854 = vld [vmem:[%s2728 + $0x3e8] sm:$0xff]
      %v2855 = vld [vmem:[%s2728 + $0x3f0] sm:$0xff]
      %v2856 = vld [vmem:[%s2728 + $0x3f8] sm:$0xff]
      %2857 = vmatprep.subr.mxu0 %v2730
      %2858 = vmatpush1.msra.mxu0 %v2729
      %2859 = vmatprep.subr.mxu0 %v2738
      %2860 = vmatpush1.msra.mxu0 %v2737
      %2861 = vmatprep.subr.mxu0 %v2746
      %2862 = vmatpush1.msra.mxu0 %v2745
      %2863 = vmatprep.subr.mxu0 %v2754
      %2864 = vmatpush1.msra.mxu0 %v2753
      %2865 = vmatprep.subr.mxu0 %v2762
      %2866 = vmatpush1.msra.mxu0 %v2761
      %2867 = vmatprep.subr.mxu0 %v2770
      %2868 = vmatpush1.msra.mxu0 %v2769
      %2869 = vmatprep.subr.mxu0 %v2778
      %2870 = vmatpush1.msra.mxu0 %v2777
      %2871 = vmatprep.subr.mxu0 %v2786
      %2872 = vmatpush1.msra.mxu0 %v2785
      %2873 = vmatprep.subr.mxu0 %v2794
      %2874 = vmatpush1.msra.mxu0 %v2793
      %2875 = vmatprep.subr.mxu0 %v2802
      %2876 = vmatpush1.msra.mxu0 %v2801
      %2877 = vmatprep.subr.mxu0 %v2810
      %2878 = vmatpush1.msra.mxu0 %v2809
      %2879 = vmatprep.subr.mxu0 %v2818
      %2880 = vmatpush1.msra.mxu0 %v2817
      %2881 = vmatprep.subr.mxu0 %v2826
      %2882 = vmatpush1.msra.mxu0 %v2825
      %2883 = vmatprep.subr.mxu0 %v2834
      %2884 = vmatpush1.msra.mxu0 %v2833
      %2885 = vmatprep.subr.mxu0 %v2842
      %2886 = vmatpush1.msra.mxu0 %v2841
      %2887 = vmatprep.subr.mxu0 %v2850
      %2888 = vmatpush1.msra.mxu0 %v2849
      %2889 = vmatprep.subr.mxu0 0.0
      %2890 = vmatpush1.msra.mxu0 0.0
      %2891 = vmatprep.subr.mxu0 0.0
      %2892 = vmatpush1.msra.mxu0 0.0
      %2893 = vmatprep.subr.mxu0 0.0
      %2894 = vmatpush1.msra.mxu0 0.0
      %2895 = vmatprep.subr.mxu0 0.0
      %2896 = vmatpush1.msra.mxu0 0.0
      %2897 = vmatprep.subr.mxu0 0.0
      %2898 = vmatpush1.msra.mxu0 0.0
      %2899 = vmatprep.subr.mxu0 0.0
      %2900 = vmatpush1.msra.mxu0 0.0
      %2901 = vmatprep.subr.mxu0 0.0
      %2902 = vmatpush1.msra.mxu0 0.0
      %2903 = vmatprep.subr.mxu0 0.0
      %2904 = vmatpush1.msra.mxu0 0.0
      %2905 = vmatprep.subr.mxu0 0.0
      %2906 = vmatpush1.msra.mxu0 0.0
      %2907 = vmatprep.subr.mxu0 0.0
      %2908 = vmatpush1.msra.mxu0 0.0
      %2909 = vmatprep.subr.mxu0 0.0
      %2910 = vmatpush1.msra.mxu0 0.0
      %2911 = vmatprep.subr.mxu0 0.0
      %2912 = vmatpush1.msra.mxu0 0.0
      %2913 = vmatprep.subr.mxu0 0.0
      %2914 = vmatpush1.msra.mxu0 0.0
      %2915 = vmatprep.subr.mxu0 0.0
      %2916 = vmatpush1.msra.mxu0 0.0
      %2917 = vmatprep.subr.mxu0 0.0
      %2918 = vmatpush1.msra.mxu0 0.0
      %2919 = vmatprep.subr.mxu0 0.0
      %2920 = vmatpush1.msra.mxu0 0.0
      %2921 = vmatprep.mubr.f32.mxu0 0.0
      %2922 = vmatmul.mubr.f32.gmra.mrb[0].mxu0 %v1897
      %v2923 = vpop.f32.mrb[0].mxu0
      %v2924 = vadd.f32 0.0, %v2923
      %v2925 = vpop.f32.mrb[0].mxu0
      %v2926 = vadd.f32 0.0, %v2925
      %2927 = vdwg.mxu0
      %2928 = vmatprep.subr.mxu0 %v2732
      %2929 = vmatpush1.msra.mxu0 %v2731
      %2930 = vmatprep.subr.mxu0 %v2740
      %2931 = vmatpush1.msra.mxu0 %v2739
      %2932 = vmatprep.subr.mxu0 %v2748
      %2933 = vmatpush1.msra.mxu0 %v2747
      %2934 = vmatprep.subr.mxu0 %v2756
      %2935 = vmatpush1.msra.mxu0 %v2755
      %2936 = vmatprep.subr.mxu0 %v2764
      %2937 = vmatpush1.msra.mxu0 %v2763
      %2938 = vmatprep.subr.mxu0 %v2772
      %2939 = vmatpush1.msra.mxu0 %v2771
      %2940 = vmatprep.subr.mxu0 %v2780
      %2941 = vmatpush1.msra.mxu0 %v2779
      %2942 = vmatprep.subr.mxu0 %v2788
      %2943 = vmatpush1.msra.mxu0 %v2787
      %2944 = vmatprep.subr.mxu0 %v2796
      %2945 = vmatpush1.msra.mxu0 %v2795
      %2946 = vmatprep.subr.mxu0 %v2804
      %2947 = vmatpush1.msra.mxu0 %v2803
      %2948 = vmatprep.subr.mxu0 %v2812
      %2949 = vmatpush1.msra.mxu0 %v2811
      %2950 = vmatprep.subr.mxu0 %v2820
      %2951 = vmatpush1.msra.mxu0 %v2819
      %2952 = vmatprep.subr.mxu0 %v2828
      %2953 = vmatpush1.msra.mxu0 %v2827
      %2954 = vmatprep.subr.mxu0 %v2836
      %2955 = vmatpush1.msra.mxu0 %v2835
      %2956 = vmatprep.subr.mxu0 %v2844
      %2957 = vmatpush1.msra.mxu0 %v2843
      %2958 = vmatprep.subr.mxu0 %v2852
      %2959 = vmatpush1.msra.mxu0 %v2851
      %2960 = vmatprep.subr.mxu0 0.0
      %2961 = vmatpush1.msra.mxu0 0.0
      %2962 = vmatprep.subr.mxu0 0.0
      %2963 = vmatpush1.msra.mxu0 0.0
      %2964 = vmatprep.subr.mxu0 0.0
      %2965 = vmatpush1.msra.mxu0 0.0
      %2966 = vmatprep.subr.mxu0 0.0
      %2967 = vmatpush1.msra.mxu0 0.0
      %2968 = vmatprep.subr.mxu0 0.0
      %2969 = vmatpush1.msra.mxu0 0.0
      %2970 = vmatprep.subr.mxu0 0.0
      %2971 = vmatpush1.msra.mxu0 0.0
      %2972 = vmatprep.subr.mxu0 0.0
      %2973 = vmatpush1.msra.mxu0 0.0
      %2974 = vmatprep.subr.mxu0 0.0
      %2975 = vmatpush1.msra.mxu0 0.0
      %2976 = vmatprep.subr.mxu0 0.0
      %2977 = vmatpush1.msra.mxu0 0.0
      %2978 = vmatprep.subr.mxu0 0.0
      %2979 = vmatpush1.msra.mxu0 0.0
      %2980 = vmatprep.subr.mxu0 0.0
      %2981 = vmatpush1.msra.mxu0 0.0
      %2982 = vmatprep.subr.mxu0 0.0
      %2983 = vmatpush1.msra.mxu0 0.0
      %2984 = vmatprep.subr.mxu0 0.0
      %2985 = vmatpush1.msra.mxu0 0.0
      %2986 = vmatprep.subr.mxu0 0.0
      %2987 = vmatpush1.msra.mxu0 0.0
      %2988 = vmatprep.subr.mxu0 0.0
      %2989 = vmatpush1.msra.mxu0 0.0
      %2990 = vmatprep.subr.mxu0 0.0
      %2991 = vmatpush1.msra.mxu0 0.0
      %2992 = vmatprep.mubr.f32.mxu0 0.0
      %2993 = vmatmul.mubr.f32.gmra.mrb[0].mxu0 %v1897
      %v2994 = vpop.f32.mrb[0].mxu0
      %v2995 = vadd.f32 0.0, %v2994
      %v2996 = vpop.f32.mrb[0].mxu0
      %v2997 = vadd.f32 0.0, %v2996
      %2998 = vdwg.mxu0
      %2999 = vmatprep.subr.mxu0 %v2734
      %3000 = vmatpush1.msra.mxu0 %v2733
      %3001 = vmatprep.subr.mxu0 %v2742
      %3002 = vmatpush1.msra.mxu0 %v2741
      %3003 = vmatprep.subr.mxu0 %v2750
      %3004 = vmatpush1.msra.mxu0 %v2749
      %3005 = vmatprep.subr.mxu0 %v2758
      %3006 = vmatpush1.msra.mxu0 %v2757
      %3007 = vmatprep.subr.mxu0 %v2766
      %3008 = vmatpush1.msra.mxu0 %v2765
      %3009 = vmatprep.subr.mxu0 %v2774
      %3010 = vmatpush1.msra.mxu0 %v2773
      %3011 = vmatprep.subr.mxu0 %v2782
      %3012 = vmatpush1.msra.mxu0 %v2781
      %3013 = vmatprep.subr.mxu0 %v2790
      %3014 = vmatpush1.msra.mxu0 %v2789
      %3015 = vmatprep.subr.mxu0 %v2798
      %3016 = vmatpush1.msra.mxu0 %v2797
      %3017 = vmatprep.subr.mxu0 %v2806
      %3018 = vmatpush1.msra.mxu0 %v2805
      %3019 = vmatprep.subr.mxu0 %v2814
      %3020 = vmatpush1.msra.mxu0 %v2813
      %3021 = vmatprep.subr.mxu0 %v2822
      %3022 = vmatpush1.msra.mxu0 %v2821
      %3023 = vmatprep.subr.mxu0 %v2830
      %3024 = vmatpush1.msra.mxu0 %v2829
      %3025 = vmatprep.subr.mxu0 %v2838
      %3026 = vmatpush1.msra.mxu0 %v2837
      %3027 = vmatprep.subr.mxu0 %v2846
      %3028 = vmatpush1.msra.mxu0 %v2845
      %3029 = vmatprep.subr.mxu0 %v2854
      %3030 = vmatpush1.msra.mxu0 %v2853
      %3031 = vmatprep.subr.mxu0 0.0
      %3032 = vmatpush1.msra.mxu0 0.0
      %3033 = vmatprep.subr.mxu0 0.0
      %3034 = vmatpush1.msra.mxu0 0.0
      %3035 = vmatprep.subr.mxu0 0.0
      %3036 = vmatpush1.msra.mxu0 0.0
      %3037 = vmatprep.subr.mxu0 0.0
      %3038 = vmatpush1.msra.mxu0 0.0
      %3039 = vmatprep.subr.mxu0 0.0
      %3040 = vmatpush1.msra.mxu0 0.0
      %3041 = vmatprep.subr.mxu0 0.0
      %3042 = vmatpush1.msra.mxu0 0.0
      %3043 = vmatprep.subr.mxu0 0.0
      %3044 = vmatpush1.msra.mxu0 0.0
      %3045 = vmatprep.subr.mxu0 0.0
      %3046 = vmatpush1.msra.mxu0 0.0
      %3047 = vmatprep.subr.mxu0 0.0
      %3048 = vmatpush1.msra.mxu0 0.0
      %3049 = vmatprep.subr.mxu0 0.0
      %3050 = vmatpush1.msra.mxu0 0.0
      %3051 = vmatprep.subr.mxu0 0.0
      %3052 = vmatpush1.msra.mxu0 0.0
      %3053 = vmatprep.subr.mxu0 0.0
      %3054 = vmatpush1.msra.mxu0 0.0
      %3055 = vmatprep.subr.mxu0 0.0
      %3056 = vmatpush1.msra.mxu0 0.0
      %3057 = vmatprep.subr.mxu0 0.0
      %3058 = vmatpush1.msra.mxu0 0.0
      %3059 = vmatprep.subr.mxu0 0.0
      %3060 = vmatpush1.msra.mxu0 0.0
      %3061 = vmatprep.subr.mxu0 0.0
      %3062 = vmatpush1.msra.mxu0 0.0
      %3063 = vmatprep.mubr.f32.mxu0 0.0
      %3064 = vmatmul.mubr.f32.gmra.mrb[0].mxu0 %v1897
      %v3065 = vpop.f32.mrb[0].mxu0
      %v3066 = vadd.f32 0.0, %v3065
      %v3067 = vpop.f32.mrb[0].mxu0
      %v3068 = vadd.f32 0.0, %v3067
      %3069 = vdwg.mxu0
      %3070 = vmatprep.subr.mxu0 %v2736
      %3071 = vmatpush1.msra.mxu0 %v2735
      %3072 = vmatprep.subr.mxu0 %v2744
      %3073 = vmatpush1.msra.mxu0 %v2743
      %3074 = vmatprep.subr.mxu0 %v2752
      %3075 = vmatpush1.msra.mxu0 %v2751
      %3076 = vmatprep.subr.mxu0 %v2760
      %3077 = vmatpush1.msra.mxu0 %v2759
      %3078 = vmatprep.subr.mxu0 %v2768
      %3079 = vmatpush1.msra.mxu0 %v2767
      %3080 = vmatprep.subr.mxu0 %v2776
      %3081 = vmatpush1.msra.mxu0 %v2775
      %3082 = vmatprep.subr.mxu0 %v2784
      %3083 = vmatpush1.msra.mxu0 %v2783
      %3084 = vmatprep.subr.mxu0 %v2792
      %3085 = vmatpush1.msra.mxu0 %v2791
      %3086 = vmatprep.subr.mxu0 %v2800
      %3087 = vmatpush1.msra.mxu0 %v2799
      %3088 = vmatprep.subr.mxu0 %v2808
      %3089 = vmatpush1.msra.mxu0 %v2807
      %3090 = vmatprep.subr.mxu0 %v2816
      %3091 = vmatpush1.msra.mxu0 %v2815
      %3092 = vmatprep.subr.mxu0 %v2824
      %3093 = vmatpush1.msra.mxu0 %v2823
      %3094 = vmatprep.subr.mxu0 %v2832
      %3095 = vmatpush1.msra.mxu0 %v2831
      %3096 = vmatprep.subr.mxu0 %v2840
      %3097 = vmatpush1.msra.mxu0 %v2839
      %3098 = vmatprep.subr.mxu0 %v2848
      %3099 = vmatpush1.msra.mxu0 %v2847
      %3100 = vmatprep.subr.mxu0 %v2856
      %3101 = vmatpush1.msra.mxu0 %v2855
      %3102 = vmatprep.subr.mxu0 0.0
      %3103 = vmatpush1.msra.mxu0 0.0
      %3104 = vmatprep.subr.mxu0 0.0
      %3105 = vmatpush1.msra.mxu0 0.0
      %3106 = vmatprep.subr.mxu0 0.0
      %3107 = vmatpush1.msra.mxu0 0.0
      %3108 = vmatprep.subr.mxu0 0.0
      %3109 = vmatpush1.msra.mxu0 0.0
      %3110 = vmatprep.subr.mxu0 0.0
      %3111 = vmatpush1.msra.mxu0 0.0
      %3112 = vmatprep.subr.mxu0 0.0
      %3113 = vmatpush1.msra.mxu0 0.0
      %3114 = vmatprep.subr.mxu0 0.0
      %3115 = vmatpush1.msra.mxu0 0.0
      %3116 = vmatprep.subr.mxu0 0.0
      %3117 = vmatpush1.msra.mxu0 0.0
      %3118 = vmatprep.subr.mxu0 0.0
      %3119 = vmatpush1.msra.mxu0 0.0
      %3120 = vmatprep.subr.mxu0 0.0
      %3121 = vmatpush1.msra.mxu0 0.0
      %3122 = vmatprep.subr.mxu0 0.0
      %3123 = vmatpush1.msra.mxu0 0.0
      %3124 = vmatprep.subr.mxu0 0.0
      %3125 = vmatpush1.msra.mxu0 0.0
      %3126 = vmatprep.subr.mxu0 0.0
      %3127 = vmatpush1.msra.mxu0 0.0
      %3128 = vmatprep.subr.mxu0 0.0
      %3129 = vmatpush1.msra.mxu0 0.0
      %3130 = vmatprep.subr.mxu0 0.0
      %3131 = vmatpush1.msra.mxu0 0.0
      %3132 = vmatprep.subr.mxu0 0.0
      %3133 = vmatpush1.msra.mxu0 0.0
      %3134 = vmatprep.mubr.f32.mxu0 0.0
      %3135 = vmatmul.mubr.f32.gmra.mrb[0].mxu0 %v1897
      %v3136 = vpop.f32.mrb[0].mxu0
      %v3137 = vadd.f32 0.0, %v3136
      %v3138 = vpop.f32.mrb[0].mxu0
      %v3139 = vadd.f32 0.0, %v3138
      %3140 = vdwg.mxu0
      %v3141 = vadd.f32 %v2511, %v2924
      %v3142 = vadd.f32 %v2513, %v2926
      %v3143 = vadd.f32 %v2582, %v2995
      %v3144 = vadd.f32 %v2584, %v2997
      %v3145 = vadd.f32 %v2653, %v3066
      %v3146 = vadd.f32 %v2655, %v3068
      %v3147 = vadd.f32 %v2724, %v3137
      %v3148 = vadd.f32 %v2726, %v3139
      %s3149 = scalar_lea.vmem %s5, 3072
      %v3150 = vld [vmem:[%s3149] sm:$0xff]
      %v3151 = vld [vmem:[%s3149 + $0x8] sm:$0xff]
      %v3152 = vld [vmem:[%s3149 + $0x10] sm:$0xff]
      %v3153 = vld [vmem:[%s3149 + $0x18] sm:$0xff]
      %v3154 = vld [vmem:[%s3149 + $0x20] sm:$0xff]
      %v3155 = vld [vmem:[%s3149 + $0x28] sm:$0xff]
      %v3156 = vld [vmem:[%s3149 + $0x30] sm:$0xff]
      %v3157 = vld [vmem:[%s3149 + $0x38] sm:$0xff]
      %v3158 = vld [vmem:[%s3149 + $0x40] sm:$0xff]
      %v3159 = vld [vmem:[%s3149 + $0x48] sm:$0xff]
      %v3160 = vld [vmem:[%s3149 + $0x50] sm:$0xff]
      %v3161 = vld [vmem:[%s3149 + $0x58] sm:$0xff]
      %v3162 = vld [vmem:[%s3149 + $0x60] sm:$0xff]
      %v3163 = vld [vmem:[%s3149 + $0x68] sm:$0xff]
      %v3164 = vld [vmem:[%s3149 + $0x70] sm:$0xff]
      %v3165 = vld [vmem:[%s3149 + $0x78] sm:$0xff]
      %v3166 = vld [vmem:[%s3149 + $0x80] sm:$0xff]
      %v3167 = vld [vmem:[%s3149 + $0x88] sm:$0xff]
      %v3168 = vld [vmem:[%s3149 + $0x90] sm:$0xff]
      %v3169 = vld [vmem:[%s3149 + $0x98] sm:$0xff]
      %v3170 = vld [vmem:[%s3149 + $0xa0] sm:$0xff]
      %v3171 = vld [vmem:[%s3149 + $0xa8] sm:$0xff]
      %v3172 = vld [vmem:[%s3149 + $0xb0] sm:$0xff]
      %v3173 = vld [vmem:[%s3149 + $0xb8] sm:$0xff]
      %v3174 = vld [vmem:[%s3149 + $0xc0] sm:$0xff]
      %v3175 = vld [vmem:[%s3149 + $0xc8] sm:$0xff]
      %v3176 = vld [vmem:[%s3149 + $0xd0] sm:$0xff]
      %v3177 = vld [vmem:[%s3149 + $0xd8] sm:$0xff]
      %v3178 = vld [vmem:[%s3149 + $0xe0] sm:$0xff]
      %v3179 = vld [vmem:[%s3149 + $0xe8] sm:$0xff]
      %v3180 = vld [vmem:[%s3149 + $0xf0] sm:$0xff]
      %v3181 = vld [vmem:[%s3149 + $0xf8] sm:$0xff]
      %v3182 = vld [vmem:[%s3149 + $0x100] sm:$0xff]
      %v3183 = vld [vmem:[%s3149 + $0x108] sm:$0xff]
      %v3184 = vld [vmem:[%s3149 + $0x110] sm:$0xff]
      %v3185 = vld [vmem:[%s3149 + $0x118] sm:$0xff]
      %v3186 = vld [vmem:[%s3149 + $0x120] sm:$0xff]
      %v3187 = vld [vmem:[%s3149 + $0x128] sm:$0xff]
      %v3188 = vld [vmem:[%s3149 + $0x130] sm:$0xff]
      %v3189 = vld [vmem:[%s3149 + $0x138] sm:$0xff]
      %v3190 = vld [vmem:[%s3149 + $0x140] sm:$0xff]
      %v3191 = vld [vmem:[%s3149 + $0x148] sm:$0xff]
      %v3192 = vld [vmem:[%s3149 + $0x150] sm:$0xff]
      %v3193 = vld [vmem:[%s3149 + $0x158] sm:$0xff]
      %v3194 = vld [vmem:[%s3149 + $0x160] sm:$0xff]
      %v3195 = vld [vmem:[%s3149 + $0x168] sm:$0xff]
      %v3196 = vld [vmem:[%s3149 + $0x170] sm:$0xff]
      %v3197 = vld [vmem:[%s3149 + $0x178] sm:$0xff]
      %v3198 = vld [vmem:[%s3149 + $0x180] sm:$0xff]
      %v3199 = vld [vmem:[%s3149 + $0x188] sm:$0xff]
      %v3200 = vld [vmem:[%s3149 + $0x190] sm:$0xff]
      %v3201 = vld [vmem:[%s3149 + $0x198] sm:$0xff]
      %v3202 = vld [vmem:[%s3149 + $0x1a0] sm:$0xff]
      %v3203 = vld [vmem:[%s3149 + $0x1a8] sm:$0xff]
      %v3204 = vld [vmem:[%s3149 + $0x1b0] sm:$0xff]
      %v3205 = vld [vmem:[%s3149 + $0x1b8] sm:$0xff]
      %v3206 = vld [vmem:[%s3149 + $0x1c0] sm:$0xff]
      %v3207 = vld [vmem:[%s3149 + $0x1c8] sm:$0xff]
      %v3208 = vld [vmem:[%s3149 + $0x1d0] sm:$0xff]
      %v3209 = vld [vmem:[%s3149 + $0x1d8] sm:$0xff]
      %v3210 = vld [vmem:[%s3149 + $0x1e0] sm:$0xff]
      %v3211 = vld [vmem:[%s3149 + $0x1e8] sm:$0xff]
      %v3212 = vld [vmem:[%s3149 + $0x1f0] sm:$0xff]
      %v3213 = vld [vmem:[%s3149 + $0x1f8] sm:$0xff]
      %v3214 = vld [vmem:[%s3149 + $0x200] sm:$0xff]
      %v3215 = vld [vmem:[%s3149 + $0x208] sm:$0xff]
      %v3216 = vld [vmem:[%s3149 + $0x210] sm:$0xff]
      %v3217 = vld [vmem:[%s3149 + $0x218] sm:$0xff]
      %v3218 = vld [vmem:[%s3149 + $0x220] sm:$0xff]
      %v3219 = vld [vmem:[%s3149 + $0x228] sm:$0xff]
      %v3220 = vld [vmem:[%s3149 + $0x230] sm:$0xff]
      %v3221 = vld [vmem:[%s3149 + $0x238] sm:$0xff]
      %v3222 = vld [vmem:[%s3149 + $0x240] sm:$0xff]
      %v3223 = vld [vmem:[%s3149 + $0x248] sm:$0xff]
      %v3224 = vld [vmem:[%s3149 + $0x250] sm:$0xff]
      %v3225 = vld [vmem:[%s3149 + $0x258] sm:$0xff]
      %v3226 = vld [vmem:[%s3149 + $0x260] sm:$0xff]
      %v3227 = vld [vmem:[%s3149 + $0x268] sm:$0xff]
      %v3228 = vld [vmem:[%s3149 + $0x270] sm:$0xff]
      %v3229 = vld [vmem:[%s3149 + $0x278] sm:$0xff]
      %v3230 = vld [vmem:[%s3149 + $0x280] sm:$0xff]
      %v3231 = vld [vmem:[%s3149 + $0x288] sm:$0xff]
      %v3232 = vld [vmem:[%s3149 + $0x290] sm:$0xff]
      %v3233 = vld [vmem:[%s3149 + $0x298] sm:$0xff]
      %v3234 = vld [vmem:[%s3149 + $0x2a0] sm:$0xff]
      %v3235 = vld [vmem:[%s3149 + $0x2a8] sm:$0xff]
      %v3236 = vld [vmem:[%s3149 + $0x2b0] sm:$0xff]
      %v3237 = vld [vmem:[%s3149 + $0x2b8] sm:$0xff]
      %v3238 = vld [vmem:[%s3149 + $0x2c0] sm:$0xff]
      %v3239 = vld [vmem:[%s3149 + $0x2c8] sm:$0xff]
      %v3240 = vld [vmem:[%s3149 + $0x2d0] sm:$0xff]
      %v3241 = vld [vmem:[%s3149 + $0x2d8] sm:$0xff]
      %v3242 = vld [vmem:[%s3149 + $0x2e0] sm:$0xff]
      %v3243 = vld [vmem:[%s3149 + $0x2e8] sm:$0xff]
      %v3244 = vld [vmem:[%s3149 + $0x2f0] sm:$0xff]
      %v3245 = vld [vmem:[%s3149 + $0x2f8] sm:$0xff]
      %v3246 = vld [vmem:[%s3149 + $0x300] sm:$0xff]
      %v3247 = vld [vmem:[%s3149 + $0x308] sm:$0xff]
      %v3248 = vld [vmem:[%s3149 + $0x310] sm:$0xff]
      %v3249 = vld [vmem:[%s3149 + $0x318] sm:$0xff]
      %v3250 = vld [vmem:[%s3149 + $0x320] sm:$0xff]
      %v3251 = vld [vmem:[%s3149 + $0x328] sm:$0xff]
      %v3252 = vld [vmem:[%s3149 + $0x330] sm:$0xff]
      %v3253 = vld [vmem:[%s3149 + $0x338] sm:$0xff]
      %v3254 = vld [vmem:[%s3149 + $0x340] sm:$0xff]
      %v3255 = vld [vmem:[%s3149 + $0x348] sm:$0xff]
      %v3256 = vld [vmem:[%s3149 + $0x350] sm:$0xff]
      %v3257 = vld [vmem:[%s3149 + $0x358] sm:$0xff]
      %v3258 = vld [vmem:[%s3149 + $0x360] sm:$0xff]
      %v3259 = vld [vmem:[%s3149 + $0x368] sm:$0xff]
      %v3260 = vld [vmem:[%s3149 + $0x370] sm:$0xff]
      %v3261 = vld [vmem:[%s3149 + $0x378] sm:$0xff]
      %v3262 = vld [vmem:[%s3149 + $0x380] sm:$0xff]
      %v3263 = vld [vmem:[%s3149 + $0x388] sm:$0xff]
      %v3264 = vld [vmem:[%s3149 + $0x390] sm:$0xff]
      %v3265 = vld [vmem:[%s3149 + $0x398] sm:$0xff]
      %v3266 = vld [vmem:[%s3149 + $0x3a0] sm:$0xff]
      %v3267 = vld [vmem:[%s3149 + $0x3a8] sm:$0xff]
      %v3268 = vld [vmem:[%s3149 + $0x3b0] sm:$0xff]
      %v3269 = vld [vmem:[%s3149 + $0x3b8] sm:$0xff]
      %v3270 = vld [vmem:[%s3149 + $0x3c0] sm:$0xff]
      %v3271 = vld [vmem:[%s3149 + $0x3c8] sm:$0xff]
      %v3272 = vld [vmem:[%s3149 + $0x3d0] sm:$0xff]
      %v3273 = vld [vmem:[%s3149 + $0x3d8] sm:$0xff]
      %v3274 = vld [vmem:[%s3149 + $0x3e0] sm:$0xff]
      %v3275 = vld [vmem:[%s3149 + $0x3e8] sm:$0xff]
      %v3276 = vld [vmem:[%s3149 + $0x3f0] sm:$0xff]
      %v3277 = vld [vmem:[%s3149 + $0x3f8] sm:$0xff]
      %3278 = vmatprep.subr.mxu0 %v3151
      %3279 = vmatpush1.msra.mxu0 %v3150
      %3280 = vmatprep.subr.mxu0 %v3159
      %3281 = vmatpush1.msra.mxu0 %v3158
      %3282 = vmatprep.subr.mxu0 %v3167
      %3283 = vmatpush1.msra.mxu0 %v3166
      %3284 = vmatprep.subr.mxu0 %v3175
      %3285 = vmatpush1.msra.mxu0 %v3174
      %3286 = vmatprep.subr.mxu0 %v3183
      %3287 = vmatpush1.msra.mxu0 %v3182
      %3288 = vmatprep.subr.mxu0 %v3191
      %3289 = vmatpush1.msra.mxu0 %v3190
      %3290 = vmatprep.subr.mxu0 %v3199
      %3291 = vmatpush1.msra.mxu0 %v3198
      %3292 = vmatprep.subr.mxu0 %v3207
      %3293 = vmatpush1.msra.mxu0 %v3206
      %3294 = vmatprep.subr.mxu0 %v3215
      %3295 = vmatpush1.msra.mxu0 %v3214
      %3296 = vmatprep.subr.mxu0 %v3223
      %3297 = vmatpush1.msra.mxu0 %v3222
      %3298 = vmatprep.subr.mxu0 %v3231
      %3299 = vmatpush1.msra.mxu0 %v3230
      %3300 = vmatprep.subr.mxu0 %v3239
      %3301 = vmatpush1.msra.mxu0 %v3238
      %3302 = vmatprep.subr.mxu0 %v3247
      %3303 = vmatpush1.msra.mxu0 %v3246
      %3304 = vmatprep.subr.mxu0 %v3255
      %3305 = vmatpush1.msra.mxu0 %v3254
      %3306 = vmatprep.subr.mxu0 %v3263
      %3307 = vmatpush1.msra.mxu0 %v3262
      %3308 = vmatprep.subr.mxu0 %v3271
      %3309 = vmatpush1.msra.mxu0 %v3270
      %3310 = vmatprep.subr.mxu0 0.0
      %3311 = vmatpush1.msra.mxu0 0.0
      %3312 = vmatprep.subr.mxu0 0.0
      %3313 = vmatpush1.msra.mxu0 0.0
      %3314 = vmatprep.subr.mxu0 0.0
      %3315 = vmatpush1.msra.mxu0 0.0
      %3316 = vmatprep.subr.mxu0 0.0
      %3317 = vmatpush1.msra.mxu0 0.0
      %3318 = vmatprep.subr.mxu0 0.0
      %3319 = vmatpush1.msra.mxu0 0.0
      %3320 = vmatprep.subr.mxu0 0.0
      %3321 = vmatpush1.msra.mxu0 0.0
      %3322 = vmatprep.subr.mxu0 0.0
      %3323 = vmatpush1.msra.mxu0 0.0
      %3324 = vmatprep.subr.mxu0 0.0
      %3325 = vmatpush1.msra.mxu0 0.0
      %3326 = vmatprep.subr.mxu0 0.0
      %3327 = vmatpush1.msra.mxu0 0.0
      %3328 = vmatprep.subr.mxu0 0.0
      %3329 = vmatpush1.msra.mxu0 0.0
      %3330 = vmatprep.subr.mxu0 0.0
      %3331 = vmatpush1.msra.mxu0 0.0
      %3332 = vmatprep.subr.mxu0 0.0
      %3333 = vmatpush1.msra.mxu0 0.0
      %3334 = vmatprep.subr.mxu0 0.0
      %3335 = vmatpush1.msra.mxu0 0.0
      %3336 = vmatprep.subr.mxu0 0.0
      %3337 = vmatpush1.msra.mxu0 0.0
      %3338 = vmatprep.subr.mxu0 0.0
      %3339 = vmatpush1.msra.mxu0 0.0
      %3340 = vmatprep.subr.mxu0 0.0
      %3341 = vmatpush1.msra.mxu0 0.0
      %3342 = vmatprep.mubr.f32.mxu0 0.0
      %3343 = vmatmul.mubr.f32.gmra.mrb[0].mxu0 %v1898
      %v3344 = vpop.f32.mrb[0].mxu0
      %v3345 = vadd.f32 0.0, %v3344
      %v3346 = vpop.f32.mrb[0].mxu0
      %v3347 = vadd.f32 0.0, %v3346
      %3348 = vdwg.mxu0
      %3349 = vmatprep.subr.mxu0 %v3153
      %3350 = vmatpush1.msra.mxu0 %v3152
      %3351 = vmatprep.subr.mxu0 %v3161
      %3352 = vmatpush1.msra.mxu0 %v3160
      %3353 = vmatprep.subr.mxu0 %v3169
      %3354 = vmatpush1.msra.mxu0 %v3168
      %3355 = vmatprep.subr.mxu0 %v3177
      %3356 = vmatpush1.msra.mxu0 %v3176
      %3357 = vmatprep.subr.mxu0 %v3185
      %3358 = vmatpush1.msra.mxu0 %v3184
      %3359 = vmatprep.subr.mxu0 %v3193
      %3360 = vmatpush1.msra.mxu0 %v3192
      %3361 = vmatprep.subr.mxu0 %v3201
      %3362 = vmatpush1.msra.mxu0 %v3200
      %3363 = vmatprep.subr.mxu0 %v3209
      %3364 = vmatpush1.msra.mxu0 %v3208
      %3365 = vmatprep.subr.mxu0 %v3217
      %3366 = vmatpush1.msra.mxu0 %v3216
      %3367 = vmatprep.subr.mxu0 %v3225
      %3368 = vmatpush1.msra.mxu0 %v3224
      %3369 = vmatprep.subr.mxu0 %v3233
      %3370 = vmatpush1.msra.mxu0 %v3232
      %3371 = vmatprep.subr.mxu0 %v3241
      %3372 = vmatpush1.msra.mxu0 %v3240
      %3373 = vmatprep.subr.mxu0 %v3249
      %3374 = vmatpush1.msra.mxu0 %v3248
      %3375 = vmatprep.subr.mxu0 %v3257
      %3376 = vmatpush1.msra.mxu0 %v3256
      %3377 = vmatprep.subr.mxu0 %v3265
      %3378 = vmatpush1.msra.mxu0 %v3264
      %3379 = vmatprep.subr.mxu0 %v3273
      %3380 = vmatpush1.msra.mxu0 %v3272
      %3381 = vmatprep.subr.mxu0 0.0
      %3382 = vmatpush1.msra.mxu0 0.0
      %3383 = vmatprep.subr.mxu0 0.0
      %3384 = vmatpush1.msra.mxu0 0.0
      %3385 = vmatprep.subr.mxu0 0.0
      %3386 = vmatpush1.msra.mxu0 0.0
      %3387 = vmatprep.subr.mxu0 0.0
      %3388 = vmatpush1.msra.mxu0 0.0
      %3389 = vmatprep.subr.mxu0 0.0
      %3390 = vmatpush1.msra.mxu0 0.0
      %3391 = vmatprep.subr.mxu0 0.0
      %3392 = vmatpush1.msra.mxu0 0.0
      %3393 = vmatprep.subr.mxu0 0.0
      %3394 = vmatpush1.msra.mxu0 0.0
      %3395 = vmatprep.subr.mxu0 0.0
      %3396 = vmatpush1.msra.mxu0 0.0
      %3397 = vmatprep.subr.mxu0 0.0
      %3398 = vmatpush1.msra.mxu0 0.0
      %3399 = vmatprep.subr.mxu0 0.0
      %3400 = vmatpush1.msra.mxu0 0.0
      %3401 = vmatprep.subr.mxu0 0.0
      %3402 = vmatpush1.msra.mxu0 0.0
      %3403 = vmatprep.subr.mxu0 0.0
      %3404 = vmatpush1.msra.mxu0 0.0
      %3405 = vmatprep.subr.mxu0 0.0
      %3406 = vmatpush1.msra.mxu0 0.0
      %3407 = vmatprep.subr.mxu0 0.0
      %3408 = vmatpush1.msra.mxu0 0.0
      %3409 = vmatprep.subr.mxu0 0.0
      %3410 = vmatpush1.msra.mxu0 0.0
      %3411 = vmatprep.subr.mxu0 0.0
      %3412 = vmatpush1.msra.mxu0 0.0
      %3413 = vmatprep.mubr.f32.mxu0 0.0
      %3414 = vmatmul.mubr.f32.gmra.mrb[0].mxu0 %v1898
      %v3415 = vpop.f32.mrb[0].mxu0
      %v3416 = vadd.f32 0.0, %v3415
      %v3417 = vpop.f32.mrb[0].mxu0
      %v3418 = vadd.f32 0.0, %v3417
      %3419 = vdwg.mxu0
      %3420 = vmatprep.subr.mxu0 %v3155
      %3421 = vmatpush1.msra.mxu0 %v3154
      %3422 = vmatprep.subr.mxu0 %v3163
      %3423 = vmatpush1.msra.mxu0 %v3162
      %3424 = vmatprep.subr.mxu0 %v3171
      %3425 = vmatpush1.msra.mxu0 %v3170
      %3426 = vmatprep.subr.mxu0 %v3179
      %3427 = vmatpush1.msra.mxu0 %v3178
      %3428 = vmatprep.subr.mxu0 %v3187
      %3429 = vmatpush1.msra.mxu0 %v3186
      %3430 = vmatprep.subr.mxu0 %v3195
      %3431 = vmatpush1.msra.mxu0 %v3194
      %3432 = vmatprep.subr.mxu0 %v3203
      %3433 = vmatpush1.msra.mxu0 %v3202
      %3434 = vmatprep.subr.mxu0 %v3211
      %3435 = vmatpush1.msra.mxu0 %v3210
      %3436 = vmatprep.subr.mxu0 %v3219
      %3437 = vmatpush1.msra.mxu0 %v3218
      %3438 = vmatprep.subr.mxu0 %v3227
      %3439 = vmatpush1.msra.mxu0 %v3226
      %3440 = vmatprep.subr.mxu0 %v3235
      %3441 = vmatpush1.msra.mxu0 %v3234
      %3442 = vmatprep.subr.mxu0 %v3243
      %3443 = vmatpush1.msra.mxu0 %v3242
      %3444 = vmatprep.subr.mxu0 %v3251
      %3445 = vmatpush1.msra.mxu0 %v3250
      %3446 = vmatprep.subr.mxu0 %v3259
      %3447 = vmatpush1.msra.mxu0 %v3258
      %3448 = vmatprep.subr.mxu0 %v3267
      %3449 = vmatpush1.msra.mxu0 %v3266
      %3450 = vmatprep.subr.mxu0 %v3275
      %3451 = vmatpush1.msra.mxu0 %v3274
      %3452 = vmatprep.subr.mxu0 0.0
      %3453 = vmatpush1.msra.mxu0 0.0
      %3454 = vmatprep.subr.mxu0 0.0
      %3455 = vmatpush1.msra.mxu0 0.0
      %3456 = vmatprep.subr.mxu0 0.0
      %3457 = vmatpush1.msra.mxu0 0.0
      %3458 = vmatprep.subr.mxu0 0.0
      %3459 = vmatpush1.msra.mxu0 0.0
      %3460 = vmatprep.subr.mxu0 0.0
      %3461 = vmatpush1.msra.mxu0 0.0
      %3462 = vmatprep.subr.mxu0 0.0
      %3463 = vmatpush1.msra.mxu0 0.0
      %3464 = vmatprep.subr.mxu0 0.0
      %3465 = vmatpush1.msra.mxu0 0.0
      %3466 = vmatprep.subr.mxu0 0.0
      %3467 = vmatpush1.msra.mxu0 0.0
      %3468 = vmatprep.subr.mxu0 0.0
      %3469 = vmatpush1.msra.mxu0 0.0
      %3470 = vmatprep.subr.mxu0 0.0
      %3471 = vmatpush1.msra.mxu0 0.0
      %3472 = vmatprep.subr.mxu0 0.0
      %3473 = vmatpush1.msra.mxu0 0.0
      %3474 = vmatprep.subr.mxu0 0.0
      %3475 = vmatpush1.msra.mxu0 0.0
      %3476 = vmatprep.subr.mxu0 0.0
      %3477 = vmatpush1.msra.mxu0 0.0
      %3478 = vmatprep.subr.mxu0 0.0
      %3479 = vmatpush1.msra.mxu0 0.0
      %3480 = vmatprep.subr.mxu0 0.0
      %3481 = vmatpush1.msra.mxu0 0.0
      %3482 = vmatprep.subr.mxu0 0.0
      %3483 = vmatpush1.msra.mxu0 0.0
      %3484 = vmatprep.mubr.f32.mxu0 0.0
      %3485 = vmatmul.mubr.f32.gmra.mrb[0].mxu0 %v1898
      %v3486 = vpop.f32.mrb[0].mxu0
      %v3487 = vadd.f32 0.0, %v3486
      %v3488 = vpop.f32.mrb[0].mxu0
      %v3489 = vadd.f32 0.0, %v3488
      %3490 = vdwg.mxu0
      %3491 = vmatprep.subr.mxu0 %v3157
      %3492 = vmatpush1.msra.mxu0 %v3156
      %3493 = vmatprep.subr.mxu0 %v3165
      %3494 = vmatpush1.msra.mxu0 %v3164
      %3495 = vmatprep.subr.mxu0 %v3173
      %3496 = vmatpush1.msra.mxu0 %v3172
      %3497 = vmatprep.subr.mxu0 %v3181
      %3498 = vmatpush1.msra.mxu0 %v3180
      %3499 = vmatprep.subr.mxu0 %v3189
      %3500 = vmatpush1.msra.mxu0 %v3188
      %3501 = vmatprep.subr.mxu0 %v3197
      %3502 = vmatpush1.msra.mxu0 %v3196
      %3503 = vmatprep.subr.mxu0 %v3205
      %3504 = vmatpush1.msra.mxu0 %v3204
      %3505 = vmatprep.subr.mxu0 %v3213
      %3506 = vmatpush1.msra.mxu0 %v3212
      %3507 = vmatprep.subr.mxu0 %v3221
      %3508 = vmatpush1.msra.mxu0 %v3220
      %3509 = vmatprep.subr.mxu0 %v3229
      %3510 = vmatpush1.msra.mxu0 %v3228
      %3511 = vmatprep.subr.mxu0 %v3237
      %3512 = vmatpush1.msra.mxu0 %v3236
      %3513 = vmatprep.subr.mxu0 %v3245
      %3514 = vmatpush1.msra.mxu0 %v3244
      %3515 = vmatprep.subr.mxu0 %v3253
      %3516 = vmatpush1.msra.mxu0 %v3252
      %3517 = vmatprep.subr.mxu0 %v3261
      %3518 = vmatpush1.msra.mxu0 %v3260
      %3519 = vmatprep.subr.mxu0 %v3269
      %3520 = vmatpush1.msra.mxu0 %v3268
      %3521 = vmatprep.subr.mxu0 %v3277
      %3522 = vmatpush1.msra.mxu0 %v3276
      %3523 = vmatprep.subr.mxu0 0.0
      %3524 = vmatpush1.msra.mxu0 0.0
      %3525 = vmatprep.subr.mxu0 0.0
      %3526 = vmatpush1.msra.mxu0 0.0
      %3527 = vmatprep.subr.mxu0 0.0
      %3528 = vmatpush1.msra.mxu0 0.0
      %3529 = vmatprep.subr.mxu0 0.0
      %3530 = vmatpush1.msra.mxu0 0.0
      %3531 = vmatprep.subr.mxu0 0.0
      %3532 = vmatpush1.msra.mxu0 0.0
      %3533 = vmatprep.subr.mxu0 0.0
      %3534 = vmatpush1.msra.mxu0 0.0
      %3535 = vmatprep.subr.mxu0 0.0
      %3536 = vmatpush1.msra.mxu0 0.0
      %3537 = vmatprep.subr.mxu0 0.0
      %3538 = vmatpush1.msra.mxu0 0.0
      %3539 = vmatprep.subr.mxu0 0.0
      %3540 = vmatpush1.msra.mxu0 0.0
      %3541 = vmatprep.subr.mxu0 0.0
      %3542 = vmatpush1.msra.mxu0 0.0
      %3543 = vmatprep.subr.mxu0 0.0
      %3544 = vmatpush1.msra.mxu0 0.0
      %3545 = vmatprep.subr.mxu0 0.0
      %3546 = vmatpush1.msra.mxu0 0.0
      %3547 = vmatprep.subr.mxu0 0.0
      %3548 = vmatpush1.msra.mxu0 0.0
      %3549 = vmatprep.subr.mxu0 0.0
      %3550 = vmatpush1.msra.mxu0 0.0
      %3551 = vmatprep.subr.mxu0 0.0
      %3552 = vmatpush1.msra.mxu0 0.0
      %3553 = vmatprep.subr.mxu0 0.0
      %3554 = vmatpush1.msra.mxu0 0.0
      %3555 = vmatprep.mubr.f32.mxu0 0.0
      %3556 = vmatmul.mubr.f32.gmra.mrb[0].mxu0 %v1898
      %v3557 = vpop.f32.mrb[0].mxu0
      %v3558 = vadd.f32 0.0, %v3557
      %v3559 = vpop.f32.mrb[0].mxu0
      %v3560 = vadd.f32 0.0, %v3559
      %3561 = vdwg.mxu0
      %v3562 = vadd.f32 %v3141, %v3345
      %v3563 = vadd.f32 %v3142, %v3347
      %v3564 = vadd.f32 %v3143, %v3416
      %v3565 = vadd.f32 %v3144, %v3418
      %v3566 = vadd.f32 %v3145, %v3487
      %v3567 = vadd.f32 %v3146, %v3489
      %v3568 = vadd.f32 %v3147, %v3558
      %v3569 = vadd.f32 %v3148, %v3560
      %s3570 = scalar_lea.vmem %s5, 4096
      %v3571 = vld [vmem:[%s3570] sm:$0xff]
      %v3572 = vld [vmem:[%s3570 + $0x8] sm:$0xff]
      %v3573 = vld [vmem:[%s3570 + $0x10] sm:$0xff]
      %v3574 = vld [vmem:[%s3570 + $0x18] sm:$0xff]
      %v3575 = vld [vmem:[%s3570 + $0x20] sm:$0xff]
      %v3576 = vld [vmem:[%s3570 + $0x28] sm:$0xff]
      %v3577 = vld [vmem:[%s3570 + $0x30] sm:$0xff]
      %v3578 = vld [vmem:[%s3570 + $0x38] sm:$0xff]
      %v3579 = vld [vmem:[%s3570 + $0x40] sm:$0xff]
      %v3580 = vld [vmem:[%s3570 + $0x48] sm:$0xff]
      %v3581 = vld [vmem:[%s3570 + $0x50] sm:$0xff]
      %v3582 = vld [vmem:[%s3570 + $0x58] sm:$0xff]
      %v3583 = vld [vmem:[%s3570 + $0x60] sm:$0xff]
      %v3584 = vld [vmem:[%s3570 + $0x68] sm:$0xff]
      %v3585 = vld [vmem:[%s3570 + $0x70] sm:$0xff]
      %v3586 = vld [vmem:[%s3570 + $0x78] sm:$0xff]
      %v3587 = vld [vmem:[%s3570 + $0x80] sm:$0xff]
      %v3588 = vld [vmem:[%s3570 + $0x88] sm:$0xff]
      %v3589 = vld [vmem:[%s3570 + $0x90] sm:$0xff]
      %v3590 = vld [vmem:[%s3570 + $0x98] sm:$0xff]
      %v3591 = vld [vmem:[%s3570 + $0xa0] sm:$0xff]
      %v3592 = vld [vmem:[%s3570 + $0xa8] sm:$0xff]
      %v3593 = vld [vmem:[%s3570 + $0xb0] sm:$0xff]
      %v3594 = vld [vmem:[%s3570 + $0xb8] sm:$0xff]
      %v3595 = vld [vmem:[%s3570 + $0xc0] sm:$0xff]
      %v3596 = vld [vmem:[%s3570 + $0xc8] sm:$0xff]
      %v3597 = vld [vmem:[%s3570 + $0xd0] sm:$0xff]
      %v3598 = vld [vmem:[%s3570 + $0xd8] sm:$0xff]
      %v3599 = vld [vmem:[%s3570 + $0xe0] sm:$0xff]
      %v3600 = vld [vmem:[%s3570 + $0xe8] sm:$0xff]
      %v3601 = vld [vmem:[%s3570 + $0xf0] sm:$0xff]
      %v3602 = vld [vmem:[%s3570 + $0xf8] sm:$0xff]
      %v3603 = vld [vmem:[%s3570 + $0x100] sm:$0xff]
      %v3604 = vld [vmem:[%s3570 + $0x108] sm:$0xff]
      %v3605 = vld [vmem:[%s3570 + $0x110] sm:$0xff]
      %v3606 = vld [vmem:[%s3570 + $0x118] sm:$0xff]
      %v3607 = vld [vmem:[%s3570 + $0x120] sm:$0xff]
      %v3608 = vld [vmem:[%s3570 + $0x128] sm:$0xff]
      %v3609 = vld [vmem:[%s3570 + $0x130] sm:$0xff]
      %v3610 = vld [vmem:[%s3570 + $0x138] sm:$0xff]
      %v3611 = vld [vmem:[%s3570 + $0x140] sm:$0xff]
      %v3612 = vld [vmem:[%s3570 + $0x148] sm:$0xff]
      %v3613 = vld [vmem:[%s3570 + $0x150] sm:$0xff]
      %v3614 = vld [vmem:[%s3570 + $0x158] sm:$0xff]
      %v3615 = vld [vmem:[%s3570 + $0x160] sm:$0xff]
      %v3616 = vld [vmem:[%s3570 + $0x168] sm:$0xff]
      %v3617 = vld [vmem:[%s3570 + $0x170] sm:$0xff]
      %v3618 = vld [vmem:[%s3570 + $0x178] sm:$0xff]
      %v3619 = vld [vmem:[%s3570 + $0x180] sm:$0xff]
      %v3620 = vld [vmem:[%s3570 + $0x188] sm:$0xff]
      %v3621 = vld [vmem:[%s3570 + $0x190] sm:$0xff]
      %v3622 = vld [vmem:[%s3570 + $0x198] sm:$0xff]
      %v3623 = vld [vmem:[%s3570 + $0x1a0] sm:$0xff]
      %v3624 = vld [vmem:[%s3570 + $0x1a8] sm:$0xff]
      %v3625 = vld [vmem:[%s3570 + $0x1b0] sm:$0xff]
      %v3626 = vld [vmem:[%s3570 + $0x1b8] sm:$0xff]
      %v3627 = vld [vmem:[%s3570 + $0x1c0] sm:$0xff]
      %v3628 = vld [vmem:[%s3570 + $0x1c8] sm:$0xff]
      %v3629 = vld [vmem:[%s3570 + $0x1d0] sm:$0xff]
      %v3630 = vld [vmem:[%s3570 + $0x1d8] sm:$0xff]
      %v3631 = vld [vmem:[%s3570 + $0x1e0] sm:$0xff]
      %v3632 = vld [vmem:[%s3570 + $0x1e8] sm:$0xff]
      %v3633 = vld [vmem:[%s3570 + $0x1f0] sm:$0xff]
      %v3634 = vld [vmem:[%s3570 + $0x1f8] sm:$0xff]
      %v3635 = vld [vmem:[%s3570 + $0x200] sm:$0xff]
      %v3636 = vld [vmem:[%s3570 + $0x208] sm:$0xff]
      %v3637 = vld [vmem:[%s3570 + $0x210] sm:$0xff]
      %v3638 = vld [vmem:[%s3570 + $0x218] sm:$0xff]
      %v3639 = vld [vmem:[%s3570 + $0x220] sm:$0xff]
      %v3640 = vld [vmem:[%s3570 + $0x228] sm:$0xff]
      %v3641 = vld [vmem:[%s3570 + $0x230] sm:$0xff]
      %v3642 = vld [vmem:[%s3570 + $0x238] sm:$0xff]
      %v3643 = vld [vmem:[%s3570 + $0x240] sm:$0xff]
      %v3644 = vld [vmem:[%s3570 + $0x248] sm:$0xff]
      %v3645 = vld [vmem:[%s3570 + $0x250] sm:$0xff]
      %v3646 = vld [vmem:[%s3570 + $0x258] sm:$0xff]
      %v3647 = vld [vmem:[%s3570 + $0x260] sm:$0xff]
      %v3648 = vld [vmem:[%s3570 + $0x268] sm:$0xff]
      %v3649 = vld [vmem:[%s3570 + $0x270] sm:$0xff]
      %v3650 = vld [vmem:[%s3570 + $0x278] sm:$0xff]
      %v3651 = vld [vmem:[%s3570 + $0x280] sm:$0xff]
      %v3652 = vld [vmem:[%s3570 + $0x288] sm:$0xff]
      %v3653 = vld [vmem:[%s3570 + $0x290] sm:$0xff]
      %v3654 = vld [vmem:[%s3570 + $0x298] sm:$0xff]
      %v3655 = vld [vmem:[%s3570 + $0x2a0] sm:$0xff]
      %v3656 = vld [vmem:[%s3570 + $0x2a8] sm:$0xff]
      %v3657 = vld [vmem:[%s3570 + $0x2b0] sm:$0xff]
      %v3658 = vld [vmem:[%s3570 + $0x2b8] sm:$0xff]
      %v3659 = vld [vmem:[%s3570 + $0x2c0] sm:$0xff]
      %v3660 = vld [vmem:[%s3570 + $0x2c8] sm:$0xff]
      %v3661 = vld [vmem:[%s3570 + $0x2d0] sm:$0xff]
      %v3662 = vld [vmem:[%s3570 + $0x2d8] sm:$0xff]
      %v3663 = vld [vmem:[%s3570 + $0x2e0] sm:$0xff]
      %v3664 = vld [vmem:[%s3570 + $0x2e8] sm:$0xff]
      %v3665 = vld [vmem:[%s3570 + $0x2f0] sm:$0xff]
      %v3666 = vld [vmem:[%s3570 + $0x2f8] sm:$0xff]
      %v3667 = vld [vmem:[%s3570 + $0x300] sm:$0xff]
      %v3668 = vld [vmem:[%s3570 + $0x308] sm:$0xff]
      %v3669 = vld [vmem:[%s3570 + $0x310] sm:$0xff]
      %v3670 = vld [vmem:[%s3570 + $0x318] sm:$0xff]
      %v3671 = vld [vmem:[%s3570 + $0x320] sm:$0xff]
      %v3672 = vld [vmem:[%s3570 + $0x328] sm:$0xff]
      %v3673 = vld [vmem:[%s3570 + $0x330] sm:$0xff]
      %v3674 = vld [vmem:[%s3570 + $0x338] sm:$0xff]
      %v3675 = vld [vmem:[%s3570 + $0x340] sm:$0xff]
      %v3676 = vld [vmem:[%s3570 + $0x348] sm:$0xff]
      %v3677 = vld [vmem:[%s3570 + $0x350] sm:$0xff]
      %v3678 = vld [vmem:[%s3570 + $0x358] sm:$0xff]
      %v3679 = vld [vmem:[%s3570 + $0x360] sm:$0xff]
      %v3680 = vld [vmem:[%s3570 + $0x368] sm:$0xff]
      %v3681 = vld [vmem:[%s3570 + $0x370] sm:$0xff]
      %v3682 = vld [vmem:[%s3570 + $0x378] sm:$0xff]
      %v3683 = vld [vmem:[%s3570 + $0x380] sm:$0xff]
      %v3684 = vld [vmem:[%s3570 + $0x388] sm:$0xff]
      %v3685 = vld [vmem:[%s3570 + $0x390] sm:$0xff]
      %v3686 = vld [vmem:[%s3570 + $0x398] sm:$0xff]
      %v3687 = vld [vmem:[%s3570 + $0x3a0] sm:$0xff]
      %v3688 = vld [vmem:[%s3570 + $0x3a8] sm:$0xff]
      %v3689 = vld [vmem:[%s3570 + $0x3b0] sm:$0xff]
      %v3690 = vld [vmem:[%s3570 + $0x3b8] sm:$0xff]
      %v3691 = vld [vmem:[%s3570 + $0x3c0] sm:$0xff]
      %v3692 = vld [vmem:[%s3570 + $0x3c8] sm:$0xff]
      %v3693 = vld [vmem:[%s3570 + $0x3d0] sm:$0xff]
      %v3694 = vld [vmem:[%s3570 + $0x3d8] sm:$0xff]
      %v3695 = vld [vmem:[%s3570 + $0x3e0] sm:$0xff]
      %v3696 = vld [vmem:[%s3570 + $0x3e8] sm:$0xff]
      %v3697 = vld [vmem:[%s3570 + $0x3f0] sm:$0xff]
      %v3698 = vld [vmem:[%s3570 + $0x3f8] sm:$0xff]
      %3699 = vmatprep.subr.mxu0 %v3572
      %3700 = vmatpush1.msra.mxu0 %v3571
      %3701 = vmatprep.subr.mxu0 %v3580
      %3702 = vmatpush1.msra.mxu0 %v3579
      %3703 = vmatprep.subr.mxu0 %v3588
      %3704 = vmatpush1.msra.mxu0 %v3587
      %3705 = vmatprep.subr.mxu0 %v3596
      %3706 = vmatpush1.msra.mxu0 %v3595
      %3707 = vmatprep.subr.mxu0 %v3604
      %3708 = vmatpush1.msra.mxu0 %v3603
      %3709 = vmatprep.subr.mxu0 %v3612
      %3710 = vmatpush1.msra.mxu0 %v3611
      %3711 = vmatprep.subr.mxu0 %v3620
      %3712 = vmatpush1.msra.mxu0 %v3619
      %3713 = vmatprep.subr.mxu0 %v3628
      %3714 = vmatpush1.msra.mxu0 %v3627
      %3715 = vmatprep.subr.mxu0 %v3636
      %3716 = vmatpush1.msra.mxu0 %v3635
      %3717 = vmatprep.subr.mxu0 %v3644
      %3718 = vmatpush1.msra.mxu0 %v3643
      %3719 = vmatprep.subr.mxu0 %v3652
      %3720 = vmatpush1.msra.mxu0 %v3651
      %3721 = vmatprep.subr.mxu0 %v3660
      %3722 = vmatpush1.msra.mxu0 %v3659
      %3723 = vmatprep.subr.mxu0 %v3668
      %3724 = vmatpush1.msra.mxu0 %v3667
      %3725 = vmatprep.subr.mxu0 %v3676
      %3726 = vmatpush1.msra.mxu0 %v3675
      %3727 = vmatprep.subr.mxu0 %v3684
      %3728 = vmatpush1.msra.mxu0 %v3683
      %3729 = vmatprep.subr.mxu0 %v3692
      %3730 = vmatpush1.msra.mxu0 %v3691
      %3731 = vmatprep.subr.mxu0 0.0
      %3732 = vmatpush1.msra.mxu0 0.0
      %3733 = vmatprep.subr.mxu0 0.0
      %3734 = vmatpush1.msra.mxu0 0.0
      %3735 = vmatprep.subr.mxu0 0.0
      %3736 = vmatpush1.msra.mxu0 0.0
      %3737 = vmatprep.subr.mxu0 0.0
      %3738 = vmatpush1.msra.mxu0 0.0
      %3739 = vmatprep.subr.mxu0 0.0
      %3740 = vmatpush1.msra.mxu0 0.0
      %3741 = vmatprep.subr.mxu0 0.0
      %3742 = vmatpush1.msra.mxu0 0.0
      %3743 = vmatprep.subr.mxu0 0.0
      %3744 = vmatpush1.msra.mxu0 0.0
      %3745 = vmatprep.subr.mxu0 0.0
      %3746 = vmatpush1.msra.mxu0 0.0
      %3747 = vmatprep.subr.mxu0 0.0
      %3748 = vmatpush1.msra.mxu0 0.0
      %3749 = vmatprep.subr.mxu0 0.0
      %3750 = vmatpush1.msra.mxu0 0.0
      %3751 = vmatprep.subr.mxu0 0.0
      %3752 = vmatpush1.msra.mxu0 0.0
      %3753 = vmatprep.subr.mxu0 0.0
      %3754 = vmatpush1.msra.mxu0 0.0
      %3755 = vmatprep.subr.mxu0 0.0
      %3756 = vmatpush1.msra.mxu0 0.0
      %3757 = vmatprep.subr.mxu0 0.0
      %3758 = vmatpush1.msra.mxu0 0.0
      %3759 = vmatprep.subr.mxu0 0.0
      %3760 = vmatpush1.msra.mxu0 0.0
      %3761 = vmatprep.subr.mxu0 0.0
      %3762 = vmatpush1.msra.mxu0 0.0
      %3763 = vmatprep.mubr.f32.mxu0 0.0
      %3764 = vmatmul.mubr.f32.gmra.mrb[0].mxu0 %v1899
      %v3765 = vpop.f32.mrb[0].mxu0
      %v3766 = vadd.f32 0.0, %v3765
      %v3767 = vpop.f32.mrb[0].mxu0
      %v3768 = vadd.f32 0.0, %v3767
      %3769 = vdwg.mxu0
      %3770 = vmatprep.subr.mxu0 %v3574
      %3771 = vmatpush1.msra.mxu0 %v3573
      %3772 = vmatprep.subr.mxu0 %v3582
      %3773 = vmatpush1.msra.mxu0 %v3581
      %3774 = vmatprep.subr.mxu0 %v3590
      %3775 = vmatpush1.msra.mxu0 %v3589
      %3776 = vmatprep.subr.mxu0 %v3598
      %3777 = vmatpush1.msra.mxu0 %v3597
      %3778 = vmatprep.subr.mxu0 %v3606
      %3779 = vmatpush1.msra.mxu0 %v3605
      %3780 = vmatprep.subr.mxu0 %v3614
      %3781 = vmatpush1.msra.mxu0 %v3613
      %3782 = vmatprep.subr.mxu0 %v3622
      %3783 = vmatpush1.msra.mxu0 %v3621
      %3784 = vmatprep.subr.mxu0 %v3630
      %3785 = vmatpush1.msra.mxu0 %v3629
      %3786 = vmatprep.subr.mxu0 %v3638
      %3787 = vmatpush1.msra.mxu0 %v3637
      %3788 = vmatprep.subr.mxu0 %v3646
      %3789 = vmatpush1.msra.mxu0 %v3645
      %3790 = vmatprep.subr.mxu0 %v3654
      %3791 = vmatpush1.msra.mxu0 %v3653
      %3792 = vmatprep.subr.mxu0 %v3662
      %3793 = vmatpush1.msra.mxu0 %v3661
      %3794 = vmatprep.subr.mxu0 %v3670
      %3795 = vmatpush1.msra.mxu0 %v3669
      %3796 = vmatprep.subr.mxu0 %v3678
      %3797 = vmatpush1.msra.mxu0 %v3677
      %3798 = vmatprep.subr.mxu0 %v3686
      %3799 = vmatpush1.msra.mxu0 %v3685
      %3800 = vmatprep.subr.mxu0 %v3694
      %3801 = vmatpush1.msra.mxu0 %v3693
      %3802 = vmatprep.subr.mxu0 0.0
      %3803 = vmatpush1.msra.mxu0 0.0
      %3804 = vmatprep.subr.mxu0 0.0
      %3805 = vmatpush1.msra.mxu0 0.0
      %3806 = vmatprep.subr.mxu0 0.0
      %3807 = vmatpush1.msra.mxu0 0.0
      %3808 = vmatprep.subr.mxu0 0.0
      %3809 = vmatpush1.msra.mxu0 0.0
      %3810 = vmatprep.subr.mxu0 0.0
      %3811 = vmatpush1.msra.mxu0 0.0
      %3812 = vmatprep.subr.mxu0 0.0
      %3813 = vmatpush1.msra.mxu0 0.0
      %3814 = vmatprep.subr.mxu0 0.0
      %3815 = vmatpush1.msra.mxu0 0.0
      %3816 = vmatprep.subr.mxu0 0.0
      %3817 = vmatpush1.msra.mxu0 0.0
      %3818 = vmatprep.subr.mxu0 0.0
      %3819 = vmatpush1.msra.mxu0 0.0
      %3820 = vmatprep.subr.mxu0 0.0
      %3821 = vmatpush1.msra.mxu0 0.0
      %3822 = vmatprep.subr.mxu0 0.0
      %3823 = vmatpush1.msra.mxu0 0.0
      %3824 = vmatprep.subr.mxu0 0.0
      %3825 = vmatpush1.msra.mxu0 0.0
      %3826 = vmatprep.subr.mxu0 0.0
      %3827 = vmatpush1.msra.mxu0 0.0
      %3828 = vmatprep.subr.mxu0 0.0
      %3829 = vmatpush1.msra.mxu0 0.0
      %3830 = vmatprep.subr.mxu0 0.0
      %3831 = vmatpush1.msra.mxu0 0.0
      %3832 = vmatprep.subr.mxu0 0.0
      %3833 = vmatpush1.msra.mxu0 0.0
      %3834 = vmatprep.mubr.f32.mxu0 0.0
      %3835 = vmatmul.mubr.f32.gmra.mrb[0].mxu0 %v1899
      %v3836 = vpop.f32.mrb[0].mxu0
      %v3837 = vadd.f32 0.0, %v3836
      %v3838 = vpop.f32.mrb[0].mxu0
      %v3839 = vadd.f32 0.0, %v3838
      %3840 = vdwg.mxu0
      %3841 = vmatprep.subr.mxu0 %v3576
      %3842 = vmatpush1.msra.mxu0 %v3575
      %3843 = vmatprep.subr.mxu0 %v3584
      %3844 = vmatpush1.msra.mxu0 %v3583
      %3845 = vmatprep.subr.mxu0 %v3592
      %3846 = vmatpush1.msra.mxu0 %v3591
      %3847 = vmatprep.subr.mxu0 %v3600
      %3848 = vmatpush1.msra.mxu0 %v3599
      %3849 = vmatprep.subr.mxu0 %v3608
      %3850 = vmatpush1.msra.mxu0 %v3607
      %3851 = vmatprep.subr.mxu0 %v3616
      %3852 = vmatpush1.msra.mxu0 %v3615
      %3853 = vmatprep.subr.mxu0 %v3624
      %3854 = vmatpush1.msra.mxu0 %v3623
      %3855 = vmatprep.subr.mxu0 %v3632
      %3856 = vmatpush1.msra.mxu0 %v3631
      %3857 = vmatprep.subr.mxu0 %v3640
      %3858 = vmatpush1.msra.mxu0 %v3639
      %3859 = vmatprep.subr.mxu0 %v3648
      %3860 = vmatpush1.msra.mxu0 %v3647
      %3861 = vmatprep.subr.mxu0 %v3656
      %3862 = vmatpush1.msra.mxu0 %v3655
      %3863 = vmatprep.subr.mxu0 %v3664
      %3864 = vmatpush1.msra.mxu0 %v3663
      %3865 = vmatprep.subr.mxu0 %v3672
      %3866 = vmatpush1.msra.mxu0 %v3671
      %3867 = vmatprep.subr.mxu0 %v3680
      %3868 = vmatpush1.msra.mxu0 %v3679
      %3869 = vmatprep.subr.mxu0 %v3688
      %3870 = vmatpush1.msra.mxu0 %v3687
      %3871 = vmatprep.subr.mxu0 %v3696
      %3872 = vmatpush1.msra.mxu0 %v3695
      %3873 = vmatprep.subr.mxu0 0.0
      %3874 = vmatpush1.msra.mxu0 0.0
      %3875 = vmatprep.subr.mxu0 0.0
      %3876 = vmatpush1.msra.mxu0 0.0
      %3877 = vmatprep.subr.mxu0 0.0
      %3878 = vmatpush1.msra.mxu0 0.0
      %3879 = vmatprep.subr.mxu0 0.0
      %3880 = vmatpush1.msra.mxu0 0.0
      %3881 = vmatprep.subr.mxu0 0.0
      %3882 = vmatpush1.msra.mxu0 0.0
      %3883 = vmatprep.subr.mxu0 0.0
      %3884 = vmatpush1.msra.mxu0 0.0
      %3885 = vmatprep.subr.mxu0 0.0
      %3886 = vmatpush1.msra.mxu0 0.0
      %3887 = vmatprep.subr.mxu0 0.0
      %3888 = vmatpush1.msra.mxu0 0.0
      %3889 = vmatprep.subr.mxu0 0.0
      %3890 = vmatpush1.msra.mxu0 0.0
      %3891 = vmatprep.subr.mxu0 0.0
      %3892 = vmatpush1.msra.mxu0 0.0
      %3893 = vmatprep.subr.mxu0 0.0
      %3894 = vmatpush1.msra.mxu0 0.0
      %3895 = vmatprep.subr.mxu0 0.0
      %3896 = vmatpush1.msra.mxu0 0.0
      %3897 = vmatprep.subr.mxu0 0.0
      %3898 = vmatpush1.msra.mxu0 0.0
      %3899 = vmatprep.subr.mxu0 0.0
      %3900 = vmatpush1.msra.mxu0 0.0
      %3901 = vmatprep.subr.mxu0 0.0
      %3902 = vmatpush1.msra.mxu0 0.0
      %3903 = vmatprep.subr.mxu0 0.0
      %3904 = vmatpush1.msra.mxu0 0.0
      %3905 = vmatprep.mubr.f32.mxu0 0.0
      %3906 = vmatmul.mubr.f32.gmra.mrb[0].mxu0 %v1899
      %v3907 = vpop.f32.mrb[0].mxu0
      %v3908 = vadd.f32 0.0, %v3907
      %v3909 = vpop.f32.mrb[0].mxu0
      %v3910 = vadd.f32 0.0, %v3909
      %3911 = vdwg.mxu0
      %3912 = vmatprep.subr.mxu0 %v3578
      %3913 = vmatpush1.msra.mxu0 %v3577
      %3914 = vmatprep.subr.mxu0 %v3586
      %3915 = vmatpush1.msra.mxu0 %v3585
      %3916 = vmatprep.subr.mxu0 %v3594
      %3917 = vmatpush1.msra.mxu0 %v3593
      %3918 = vmatprep.subr.mxu0 %v3602
      %3919 = vmatpush1.msra.mxu0 %v3601
      %3920 = vmatprep.subr.mxu0 %v3610
      %3921 = vmatpush1.msra.mxu0 %v3609
      %3922 = vmatprep.subr.mxu0 %v3618
      %3923 = vmatpush1.msra.mxu0 %v3617
      %3924 = vmatprep.subr.mxu0 %v3626
      %3925 = vmatpush1.msra.mxu0 %v3625
      %3926 = vmatprep.subr.mxu0 %v3634
      %3927 = vmatpush1.msra.mxu0 %v3633
      %3928 = vmatprep.subr.mxu0 %v3642
      %3929 = vmatpush1.msra.mxu0 %v3641
      %3930 = vmatprep.subr.mxu0 %v3650
      %3931 = vmatpush1.msra.mxu0 %v3649
      %3932 = vmatprep.subr.mxu0 %v3658
      %3933 = vmatpush1.msra.mxu0 %v3657
      %3934 = vmatprep.subr.mxu0 %v3666
      %3935 = vmatpush1.msra.mxu0 %v3665
      %3936 = vmatprep.subr.mxu0 %v3674
      %3937 = vmatpush1.msra.mxu0 %v3673
      %3938 = vmatprep.subr.mxu0 %v3682
      %3939 = vmatpush1.msra.mxu0 %v3681
      %3940 = vmatprep.subr.mxu0 %v3690
      %3941 = vmatpush1.msra.mxu0 %v3689
      %3942 = vmatprep.subr.mxu0 %v3698
      %3943 = vmatpush1.msra.mxu0 %v3697
      %3944 = vmatprep.subr.mxu0 0.0
      %3945 = vmatpush1.msra.mxu0 0.0
      %3946 = vmatprep.subr.mxu0 0.0
      %3947 = vmatpush1.msra.mxu0 0.0
      %3948 = vmatprep.subr.mxu0 0.0
      %3949 = vmatpush1.msra.mxu0 0.0
      %3950 = vmatprep.subr.mxu0 0.0
      %3951 = vmatpush1.msra.mxu0 0.0
      %3952 = vmatprep.subr.mxu0 0.0
      %3953 = vmatpush1.msra.mxu0 0.0
      %3954 = vmatprep.subr.mxu0 0.0
      %3955 = vmatpush1.msra.mxu0 0.0
      %3956 = vmatprep.subr.mxu0 0.0
      %3957 = vmatpush1.msra.mxu0 0.0
      %3958 = vmatprep.subr.mxu0 0.0
      %3959 = vmatpush1.msra.mxu0 0.0
      %3960 = vmatprep.subr.mxu0 0.0
      %3961 = vmatpush1.msra.mxu0 0.0
      %3962 = vmatprep.subr.mxu0 0.0
      %3963 = vmatpush1.msra.mxu0 0.0
      %3964 = vmatprep.subr.mxu0 0.0
      %3965 = vmatpush1.msra.mxu0 0.0
      %3966 = vmatprep.subr.mxu0 0.0
      %3967 = vmatpush1.msra.mxu0 0.0
      %3968 = vmatprep.subr.mxu0 0.0
      %3969 = vmatpush1.msra.mxu0 0.0
      %3970 = vmatprep.subr.mxu0 0.0
      %3971 = vmatpush1.msra.mxu0 0.0
      %3972 = vmatprep.subr.mxu0 0.0
      %3973 = vmatpush1.msra.mxu0 0.0
      %3974 = vmatprep.subr.mxu0 0.0
      %3975 = vmatpush1.msra.mxu0 0.0
      %3976 = vmatprep.mubr.f32.mxu0 0.0
      %3977 = vmatmul.mubr.f32.gmra.mrb[0].mxu0 %v1899
      %v3978 = vpop.f32.mrb[0].mxu0
      %v3979 = vadd.f32 0.0, %v3978
      %v3980 = vpop.f32.mrb[0].mxu0
      %v3981 = vadd.f32 0.0, %v3980
      %3982 = vdwg.mxu0
      %v3983 = vadd.f32 %v3562, %v3766
      %v3984 = vadd.f32 %v3563, %v3768
      %v3985 = vadd.f32 %v3564, %v3837
      %v3986 = vadd.f32 %v3565, %v3839
      %v3987 = vadd.f32 %v3566, %v3908
      %v3988 = vadd.f32 %v3567, %v3910
      %v3989 = vadd.f32 %v3568, %v3979
      %v3990 = vadd.f32 %v3569, %v3981
      %s3991 = scalar_lea.vmem %s5, 5120
      %v3992 = vld [vmem:[%s3991] sm:$0xff]
      %v3993 = vld [vmem:[%s3991 + $0x8] sm:$0xff]
      %v3994 = vld [vmem:[%s3991 + $0x10] sm:$0xff]
      %v3995 = vld [vmem:[%s3991 + $0x18] sm:$0xff]
      %v3996 = vld [vmem:[%s3991 + $0x20] sm:$0xff]
      %v3997 = vld [vmem:[%s3991 + $0x28] sm:$0xff]
      %v3998 = vld [vmem:[%s3991 + $0x30] sm:$0xff]
      %v3999 = vld [vmem:[%s3991 + $0x38] sm:$0xff]
      %v4000 = vld [vmem:[%s3991 + $0x40] sm:$0xff]
      %v4001 = vld [vmem:[%s3991 + $0x48] sm:$0xff]
      %v4002 = vld [vmem:[%s3991 + $0x50] sm:$0xff]
      %v4003 = vld [vmem:[%s3991 + $0x58] sm:$0xff]
      %v4004 = vld [vmem:[%s3991 + $0x60] sm:$0xff]
      %v4005 = vld [vmem:[%s3991 + $0x68] sm:$0xff]
      %v4006 = vld [vmem:[%s3991 + $0x70] sm:$0xff]
      %v4007 = vld [vmem:[%s3991 + $0x78] sm:$0xff]
      %v4008 = vld [vmem:[%s3991 + $0x80] sm:$0xff]
      %v4009 = vld [vmem:[%s3991 + $0x88] sm:$0xff]
      %v4010 = vld [vmem:[%s3991 + $0x90] sm:$0xff]
      %v4011 = vld [vmem:[%s3991 + $0x98] sm:$0xff]
      %v4012 = vld [vmem:[%s3991 + $0xa0] sm:$0xff]
      %v4013 = vld [vmem:[%s3991 + $0xa8] sm:$0xff]
      %v4014 = vld [vmem:[%s3991 + $0xb0] sm:$0xff]
      %v4015 = vld [vmem:[%s3991 + $0xb8] sm:$0xff]
      %v4016 = vld [vmem:[%s3991 + $0xc0] sm:$0xff]
      %v4017 = vld [vmem:[%s3991 + $0xc8] sm:$0xff]
      %v4018 = vld [vmem:[%s3991 + $0xd0] sm:$0xff]
      %v4019 = vld [vmem:[%s3991 + $0xd8] sm:$0xff]
      %v4020 = vld [vmem:[%s3991 + $0xe0] sm:$0xff]
      %v4021 = vld [vmem:[%s3991 + $0xe8] sm:$0xff]
      %v4022 = vld [vmem:[%s3991 + $0xf0] sm:$0xff]
      %v4023 = vld [vmem:[%s3991 + $0xf8] sm:$0xff]
      %v4024 = vld [vmem:[%s3991 + $0x100] sm:$0xff]
      %v4025 = vld [vmem:[%s3991 + $0x108] sm:$0xff]
      %v4026 = vld [vmem:[%s3991 + $0x110] sm:$0xff]
      %v4027 = vld [vmem:[%s3991 + $0x118] sm:$0xff]
      %v4028 = vld [vmem:[%s3991 + $0x120] sm:$0xff]
      %v4029 = vld [vmem:[%s3991 + $0x128] sm:$0xff]
      %v4030 = vld [vmem:[%s3991 + $0x130] sm:$0xff]
      %v4031 = vld [vmem:[%s3991 + $0x138] sm:$0xff]
      %v4032 = vld [vmem:[%s3991 + $0x140] sm:$0xff]
      %v4033 = vld [vmem:[%s3991 + $0x148] sm:$0xff]
      %v4034 = vld [vmem:[%s3991 + $0x150] sm:$0xff]
      %v4035 = vld [vmem:[%s3991 + $0x158] sm:$0xff]
      %v4036 = vld [vmem:[%s3991 + $0x160] sm:$0xff]
      %v4037 = vld [vmem:[%s3991 + $0x168] sm:$0xff]
      %v4038 = vld [vmem:[%s3991 + $0x170] sm:$0xff]
      %v4039 = vld [vmem:[%s3991 + $0x178] sm:$0xff]
      %v4040 = vld [vmem:[%s3991 + $0x180] sm:$0xff]
      %v4041 = vld [vmem:[%s3991 + $0x188] sm:$0xff]
      %v4042 = vld [vmem:[%s3991 + $0x190] sm:$0xff]
      %v4043 = vld [vmem:[%s3991 + $0x198] sm:$0xff]
      %v4044 = vld [vmem:[%s3991 + $0x1a0] sm:$0xff]
      %v4045 = vld [vmem:[%s3991 + $0x1a8] sm:$0xff]
      %v4046 = vld [vmem:[%s3991 + $0x1b0] sm:$0xff]
      %v4047 = vld [vmem:[%s3991 + $0x1b8] sm:$0xff]
      %v4048 = vld [vmem:[%s3991 + $0x1c0] sm:$0xff]
      %v4049 = vld [vmem:[%s3991 + $0x1c8] sm:$0xff]
      %v4050 = vld [vmem:[%s3991 + $0x1d0] sm:$0xff]
      %v4051 = vld [vmem:[%s3991 + $0x1d8] sm:$0xff]
      %v4052 = vld [vmem:[%s3991 + $0x1e0] sm:$0xff]
      %v4053 = vld [vmem:[%s3991 + $0x1e8] sm:$0xff]
      %v4054 = vld [vmem:[%s3991 + $0x1f0] sm:$0xff]
      %v4055 = vld [vmem:[%s3991 + $0x1f8] sm:$0xff]
      %v4056 = vld [vmem:[%s3991 + $0x200] sm:$0xff]
      %v4057 = vld [vmem:[%s3991 + $0x208] sm:$0xff]
      %v4058 = vld [vmem:[%s3991 + $0x210] sm:$0xff]
      %v4059 = vld [vmem:[%s3991 + $0x218] sm:$0xff]
      %v4060 = vld [vmem:[%s3991 + $0x220] sm:$0xff]
      %v4061 = vld [vmem:[%s3991 + $0x228] sm:$0xff]
      %v4062 = vld [vmem:[%s3991 + $0x230] sm:$0xff]
      %v4063 = vld [vmem:[%s3991 + $0x238] sm:$0xff]
      %v4064 = vld [vmem:[%s3991 + $0x240] sm:$0xff]
      %v4065 = vld [vmem:[%s3991 + $0x248] sm:$0xff]
      %v4066 = vld [vmem:[%s3991 + $0x250] sm:$0xff]
      %v4067 = vld [vmem:[%s3991 + $0x258] sm:$0xff]
      %v4068 = vld [vmem:[%s3991 + $0x260] sm:$0xff]
      %v4069 = vld [vmem:[%s3991 + $0x268] sm:$0xff]
      %v4070 = vld [vmem:[%s3991 + $0x270] sm:$0xff]
      %v4071 = vld [vmem:[%s3991 + $0x278] sm:$0xff]
      %v4072 = vld [vmem:[%s3991 + $0x280] sm:$0xff]
      %v4073 = vld [vmem:[%s3991 + $0x288] sm:$0xff]
      %v4074 = vld [vmem:[%s3991 + $0x290] sm:$0xff]
      %v4075 = vld [vmem:[%s3991 + $0x298] sm:$0xff]
      %v4076 = vld [vmem:[%s3991 + $0x2a0] sm:$0xff]
      %v4077 = vld [vmem:[%s3991 + $0x2a8] sm:$0xff]
      %v4078 = vld [vmem:[%s3991 + $0x2b0] sm:$0xff]
      %v4079 = vld [vmem:[%s3991 + $0x2b8] sm:$0xff]
      %v4080 = vld [vmem:[%s3991 + $0x2c0] sm:$0xff]
      %v4081 = vld [vmem:[%s3991 + $0x2c8] sm:$0xff]
      %v4082 = vld [vmem:[%s3991 + $0x2d0] sm:$0xff]
      %v4083 = vld [vmem:[%s3991 + $0x2d8] sm:$0xff]
      %v4084 = vld [vmem:[%s3991 + $0x2e0] sm:$0xff]
      %v4085 = vld [vmem:[%s3991 + $0x2e8] sm:$0xff]
      %v4086 = vld [vmem:[%s3991 + $0x2f0] sm:$0xff]
      %v4087 = vld [vmem:[%s3991 + $0x2f8] sm:$0xff]
      %v4088 = vld [vmem:[%s3991 + $0x300] sm:$0xff]
      %v4089 = vld [vmem:[%s3991 + $0x308] sm:$0xff]
      %v4090 = vld [vmem:[%s3991 + $0x310] sm:$0xff]
      %v4091 = vld [vmem:[%s3991 + $0x318] sm:$0xff]
      %v4092 = vld [vmem:[%s3991 + $0x320] sm:$0xff]
      %v4093 = vld [vmem:[%s3991 + $0x328] sm:$0xff]
      %v4094 = vld [vmem:[%s3991 + $0x330] sm:$0xff]
      %v4095 = vld [vmem:[%s3991 + $0x338] sm:$0xff]
      %v4096 = vld [vmem:[%s3991 + $0x340] sm:$0xff]
      %v4097 = vld [vmem:[%s3991 + $0x348] sm:$0xff]
      %v4098 = vld [vmem:[%s3991 + $0x350] sm:$0xff]
      %v4099 = vld [vmem:[%s3991 + $0x358] sm:$0xff]
      %v4100 = vld [vmem:[%s3991 + $0x360] sm:$0xff]
      %v4101 = vld [vmem:[%s3991 + $0x368] sm:$0xff]
      %v4102 = vld [vmem:[%s3991 + $0x370] sm:$0xff]
      %v4103 = vld [vmem:[%s3991 + $0x378] sm:$0xff]
      %v4104 = vld [vmem:[%s3991 + $0x380] sm:$0xff]
      %v4105 = vld [vmem:[%s3991 + $0x388] sm:$0xff]
      %v4106 = vld [vmem:[%s3991 + $0x390] sm:$0xff]
      %v4107 = vld [vmem:[%s3991 + $0x398] sm:$0xff]
      %v4108 = vld [vmem:[%s3991 + $0x3a0] sm:$0xff]
      %v4109 = vld [vmem:[%s3991 + $0x3a8] sm:$0xff]
      %v4110 = vld [vmem:[%s3991 + $0x3b0] sm:$0xff]
      %v4111 = vld [vmem:[%s3991 + $0x3b8] sm:$0xff]
      %v4112 = vld [vmem:[%s3991 + $0x3c0] sm:$0xff]
      %v4113 = vld [vmem:[%s3991 + $0x3c8] sm:$0xff]
      %v4114 = vld [vmem:[%s3991 + $0x3d0] sm:$0xff]
      %v4115 = vld [vmem:[%s3991 + $0x3d8] sm:$0xff]
      %v4116 = vld [vmem:[%s3991 + $0x3e0] sm:$0xff]
      %v4117 = vld [vmem:[%s3991 + $0x3e8] sm:$0xff]
      %v4118 = vld [vmem:[%s3991 + $0x3f0] sm:$0xff]
      %v4119 = vld [vmem:[%s3991 + $0x3f8] sm:$0xff]
      %4120 = vmatprep.subr.mxu0 %v3993
      %4121 = vmatpush1.msra.mxu0 %v3992
      %4122 = vmatprep.subr.mxu0 %v4001
      %4123 = vmatpush1.msra.mxu0 %v4000
      %4124 = vmatprep.subr.mxu0 %v4009
      %4125 = vmatpush1.msra.mxu0 %v4008
      %4126 = vmatprep.subr.mxu0 %v4017
      %4127 = vmatpush1.msra.mxu0 %v4016
      %4128 = vmatprep.subr.mxu0 %v4025
      %4129 = vmatpush1.msra.mxu0 %v4024
      %4130 = vmatprep.subr.mxu0 %v4033
      %4131 = vmatpush1.msra.mxu0 %v4032
      %4132 = vmatprep.subr.mxu0 %v4041
      %4133 = vmatpush1.msra.mxu0 %v4040
      %4134 = vmatprep.subr.mxu0 %v4049
      %4135 = vmatpush1.msra.mxu0 %v4048
      %4136 = vmatprep.subr.mxu0 %v4057
      %4137 = vmatpush1.msra.mxu0 %v4056
      %4138 = vmatprep.subr.mxu0 %v4065
      %4139 = vmatpush1.msra.mxu0 %v4064
      %4140 = vmatprep.subr.mxu0 %v4073
      %4141 = vmatpush1.msra.mxu0 %v4072
      %4142 = vmatprep.subr.mxu0 %v4081
      %4143 = vmatpush1.msra.mxu0 %v4080
      %4144 = vmatprep.subr.mxu0 %v4089
      %4145 = vmatpush1.msra.mxu0 %v4088
      %4146 = vmatprep.subr.mxu0 %v4097
      %4147 = vmatpush1.msra.mxu0 %v4096
      %4148 = vmatprep.subr.mxu0 %v4105
      %4149 = vmatpush1.msra.mxu0 %v4104
      %4150 = vmatprep.subr.mxu0 %v4113
      %4151 = vmatpush1.msra.mxu0 %v4112
      %4152 = vmatprep.subr.mxu0 0.0
      %4153 = vmatpush1.msra.mxu0 0.0
      %4154 = vmatprep.subr.mxu0 0.0
      %4155 = vmatpush1.msra.mxu0 0.0
      %4156 = vmatprep.subr.mxu0 0.0
      %4157 = vmatpush1.msra.mxu0 0.0
      %4158 = vmatprep.subr.mxu0 0.0
      %4159 = vmatpush1.msra.mxu0 0.0
      %4160 = vmatprep.subr.mxu0 0.0
      %4161 = vmatpush1.msra.mxu0 0.0
      %4162 = vmatprep.subr.mxu0 0.0
      %4163 = vmatpush1.msra.mxu0 0.0
      %4164 = vmatprep.subr.mxu0 0.0
      %4165 = vmatpush1.msra.mxu0 0.0
      %4166 = vmatprep.subr.mxu0 0.0
      %4167 = vmatpush1.msra.mxu0 0.0
      %4168 = vmatprep.subr.mxu0 0.0
      %4169 = vmatpush1.msra.mxu0 0.0
      %4170 = vmatprep.subr.mxu0 0.0
      %4171 = vmatpush1.msra.mxu0 0.0
      %4172 = vmatprep.subr.mxu0 0.0
      %4173 = vmatpush1.msra.mxu0 0.0
      %4174 = vmatprep.subr.mxu0 0.0
      %4175 = vmatpush1.msra.mxu0 0.0
      %4176 = vmatprep.subr.mxu0 0.0
      %4177 = vmatpush1.msra.mxu0 0.0
      %4178 = vmatprep.subr.mxu0 0.0
      %4179 = vmatpush1.msra.mxu0 0.0
      %4180 = vmatprep.subr.mxu0 0.0
      %4181 = vmatpush1.msra.mxu0 0.0
      %4182 = vmatprep.subr.mxu0 0.0
      %4183 = vmatpush1.msra.mxu0 0.0
      %4184 = vmatprep.mubr.f32.mxu0 0.0
      %4185 = vmatmul.mubr.f32.gmra.mrb[0].mxu0 %v1900
      %v4186 = vpop.f32.mrb[0].mxu0
      %v4187 = vadd.f32 0.0, %v4186
      %v4188 = vpop.f32.mrb[0].mxu0
      %v4189 = vadd.f32 0.0, %v4188
      %4190 = vdwg.mxu0
      %4191 = vmatprep.subr.mxu0 %v3995
      %4192 = vmatpush1.msra.mxu0 %v3994
      %4193 = vmatprep.subr.mxu0 %v4003
      %4194 = vmatpush1.msra.mxu0 %v4002
      %4195 = vmatprep.subr.mxu0 %v4011
      %4196 = vmatpush1.msra.mxu0 %v4010
      %4197 = vmatprep.subr.mxu0 %v4019
      %4198 = vmatpush1.msra.mxu0 %v4018
      %4199 = vmatprep.subr.mxu0 %v4027
      %4200 = vmatpush1.msra.mxu0 %v4026
      %4201 = vmatprep.subr.mxu0 %v4035
      %4202 = vmatpush1.msra.mxu0 %v4034
      %4203 = vmatprep.subr.mxu0 %v4043
      %4204 = vmatpush1.msra.mxu0 %v4042
      %4205 = vmatprep.subr.mxu0 %v4051
      %4206 = vmatpush1.msra.mxu0 %v4050
      %4207 = vmatprep.subr.mxu0 %v4059
      %4208 = vmatpush1.msra.mxu0 %v4058
      %4209 = vmatprep.subr.mxu0 %v4067
      %4210 = vmatpush1.msra.mxu0 %v4066
      %4211 = vmatprep.subr.mxu0 %v4075
      %4212 = vmatpush1.msra.mxu0 %v4074
      %4213 = vmatprep.subr.mxu0 %v4083
      %4214 = vmatpush1.msra.mxu0 %v4082
      %4215 = vmatprep.subr.mxu0 %v4091
      %4216 = vmatpush1.msra.mxu0 %v4090
      %4217 = vmatprep.subr.mxu0 %v4099
      %4218 = vmatpush1.msra.mxu0 %v4098
      %4219 = vmatprep.subr.mxu0 %v4107
      %4220 = vmatpush1.msra.mxu0 %v4106
      %4221 = vmatprep.subr.mxu0 %v4115
      %4222 = vmatpush1.msra.mxu0 %v4114
      %4223 = vmatprep.subr.mxu0 0.0
      %4224 = vmatpush1.msra.mxu0 0.0
      %4225 = vmatprep.subr.mxu0 0.0
      %4226 = vmatpush1.msra.mxu0 0.0
      %4227 = vmatprep.subr.mxu0 0.0
      %4228 = vmatpush1.msra.mxu0 0.0
      %4229 = vmatprep.subr.mxu0 0.0
      %4230 = vmatpush1.msra.mxu0 0.0
      %4231 = vmatprep.subr.mxu0 0.0
      %4232 = vmatpush1.msra.mxu0 0.0
      %4233 = vmatprep.subr.mxu0 0.0
      %4234 = vmatpush1.msra.mxu0 0.0
      %4235 = vmatprep.subr.mxu0 0.0
      %4236 = vmatpush1.msra.mxu0 0.0
      %4237 = vmatprep.subr.mxu0 0.0
      %4238 = vmatpush1.msra.mxu0 0.0
      %4239 = vmatprep.subr.mxu0 0.0
      %4240 = vmatpush1.msra.mxu0 0.0
      %4241 = vmatprep.subr.mxu0 0.0
      %4242 = vmatpush1.msra.mxu0 0.0
      %4243 = vmatprep.subr.mxu0 0.0
      %4244 = vmatpush1.msra.mxu0 0.0
      %4245 = vmatprep.subr.mxu0 0.0
      %4246 = vmatpush1.msra.mxu0 0.0
      %4247 = vmatprep.subr.mxu0 0.0
      %4248 = vmatpush1.msra.mxu0 0.0
      %4249 = vmatprep.subr.mxu0 0.0
      %4250 = vmatpush1.msra.mxu0 0.0
      %4251 = vmatprep.subr.mxu0 0.0
      %4252 = vmatpush1.msra.mxu0 0.0
      %4253 = vmatprep.subr.mxu0 0.0
      %4254 = vmatpush1.msra.mxu0 0.0
      %4255 = vmatprep.mubr.f32.mxu0 0.0
      %4256 = vmatmul.mubr.f32.gmra.mrb[0].mxu0 %v1900
      %v4257 = vpop.f32.mrb[0].mxu0
      %v4258 = vadd.f32 0.0, %v4257
      %v4259 = vpop.f32.mrb[0].mxu0
      %v4260 = vadd.f32 0.0, %v4259
      %4261 = vdwg.mxu0
      %4262 = vmatprep.subr.mxu0 %v3997
      %4263 = vmatpush1.msra.mxu0 %v3996
      %4264 = vmatprep.subr.mxu0 %v4005
      %4265 = vmatpush1.msra.mxu0 %v4004
      %4266 = vmatprep.subr.mxu0 %v4013
      %4267 = vmatpush1.msra.mxu0 %v4012
      %4268 = vmatprep.subr.mxu0 %v4021
      %4269 = vmatpush1.msra.mxu0 %v4020
      %4270 = vmatprep.subr.mxu0 %v4029
      %4271 = vmatpush1.msra.mxu0 %v4028
      %4272 = vmatprep.subr.mxu0 %v4037
      %4273 = vmatpush1.msra.mxu0 %v4036
      %4274 = vmatprep.subr.mxu0 %v4045
      %4275 = vmatpush1.msra.mxu0 %v4044
      %4276 = vmatprep.subr.mxu0 %v4053
      %4277 = vmatpush1.msra.mxu0 %v4052
      %4278 = vmatprep.subr.mxu0 %v4061
      %4279 = vmatpush1.msra.mxu0 %v4060
      %4280 = vmatprep.subr.mxu0 %v4069
      %4281 = vmatpush1.msra.mxu0 %v4068
      %4282 = vmatprep.subr.mxu0 %v4077
      %4283 = vmatpush1.msra.mxu0 %v4076
      %4284 = vmatprep.subr.mxu0 %v4085
      %4285 = vmatpush1.msra.mxu0 %v4084
      %4286 = vmatprep.subr.mxu0 %v4093
      %4287 = vmatpush1.msra.mxu0 %v4092
      %4288 = vmatprep.subr.mxu0 %v4101
      %4289 = vmatpush1.msra.mxu0 %v4100
      %4290 = vmatprep.subr.mxu0 %v4109
      %4291 = vmatpush1.msra.mxu0 %v4108
      %4292 = vmatprep.subr.mxu0 %v4117
      %4293 = vmatpush1.msra.mxu0 %v4116
      %4294 = vmatprep.subr.mxu0 0.0
      %4295 = vmatpush1.msra.mxu0 0.0
      %4296 = vmatprep.subr.mxu0 0.0
      %4297 = vmatpush1.msra.mxu0 0.0
      %4298 = vmatprep.subr.mxu0 0.0
      %4299 = vmatpush1.msra.mxu0 0.0
      %4300 = vmatprep.subr.mxu0 0.0
      %4301 = vmatpush1.msra.mxu0 0.0
      %4302 = vmatprep.subr.mxu0 0.0
      %4303 = vmatpush1.msra.mxu0 0.0
      %4304 = vmatprep.subr.mxu0 0.0
      %4305 = vmatpush1.msra.mxu0 0.0
      %4306 = vmatprep.subr.mxu0 0.0
      %4307 = vmatpush1.msra.mxu0 0.0
      %4308 = vmatprep.subr.mxu0 0.0
      %4309 = vmatpush1.msra.mxu0 0.0
      %4310 = vmatprep.subr.mxu0 0.0
      %4311 = vmatpush1.msra.mxu0 0.0
      %4312 = vmatprep.subr.mxu0 0.0
      %4313 = vmatpush1.msra.mxu0 0.0
      %4314 = vmatprep.subr.mxu0 0.0
      %4315 = vmatpush1.msra.mxu0 0.0
      %4316 = vmatprep.subr.mxu0 0.0
      %4317 = vmatpush1.msra.mxu0 0.0
      %4318 = vmatprep.subr.mxu0 0.0
      %4319 = vmatpush1.msra.mxu0 0.0
      %4320 = vmatprep.subr.mxu0 0.0
      %4321 = vmatpush1.msra.mxu0 0.0
      %4322 = vmatprep.subr.mxu0 0.0
      %4323 = vmatpush1.msra.mxu0 0.0
      %4324 = vmatprep.subr.mxu0 0.0
      %4325 = vmatpush1.msra.mxu0 0.0
      %4326 = vmatprep.mubr.f32.mxu0 0.0
      %4327 = vmatmul.mubr.f32.gmra.mrb[0].mxu0 %v1900
      %v4328 = vpop.f32.mrb[0].mxu0
      %v4329 = vadd.f32 0.0, %v4328
      %v4330 = vpop.f32.mrb[0].mxu0
      %v4331 = vadd.f32 0.0, %v4330
      %4332 = vdwg.mxu0
      %4333 = vmatprep.subr.mxu0 %v3999
      %4334 = vmatpush1.msra.mxu0 %v3998
      %4335 = vmatprep.subr.mxu0 %v4007
      %4336 = vmatpush1.msra.mxu0 %v4006
      %4337 = vmatprep.subr.mxu0 %v4015
      %4338 = vmatpush1.msra.mxu0 %v4014
      %4339 = vmatprep.subr.mxu0 %v4023
      %4340 = vmatpush1.msra.mxu0 %v4022
      %4341 = vmatprep.subr.mxu0 %v4031
      %4342 = vmatpush1.msra.mxu0 %v4030
      %4343 = vmatprep.subr.mxu0 %v4039
      %4344 = vmatpush1.msra.mxu0 %v4038
      %4345 = vmatprep.subr.mxu0 %v4047
      %4346 = vmatpush1.msra.mxu0 %v4046
      %4347 = vmatprep.subr.mxu0 %v4055
      %4348 = vmatpush1.msra.mxu0 %v4054
      %4349 = vmatprep.subr.mxu0 %v4063
      %4350 = vmatpush1.msra.mxu0 %v4062
      %4351 = vmatprep.subr.mxu0 %v4071
      %4352 = vmatpush1.msra.mxu0 %v4070
      %4353 = vmatprep.subr.mxu0 %v4079
      %4354 = vmatpush1.msra.mxu0 %v4078
      %4355 = vmatprep.subr.mxu0 %v4087
      %4356 = vmatpush1.msra.mxu0 %v4086
      %4357 = vmatprep.subr.mxu0 %v4095
      %4358 = vmatpush1.msra.mxu0 %v4094
      %4359 = vmatprep.subr.mxu0 %v4103
      %4360 = vmatpush1.msra.mxu0 %v4102
      %4361 = vmatprep.subr.mxu0 %v4111
      %4362 = vmatpush1.msra.mxu0 %v4110
      %4363 = vmatprep.subr.mxu0 %v4119
      %4364 = vmatpush1.msra.mxu0 %v4118
      %4365 = vmatprep.subr.mxu0 0.0
      %4366 = vmatpush1.msra.mxu0 0.0
      %4367 = vmatprep.subr.mxu0 0.0
      %4368 = vmatpush1.msra.mxu0 0.0
      %4369 = vmatprep.subr.mxu0 0.0
      %4370 = vmatpush1.msra.mxu0 0.0
      %4371 = vmatprep.subr.mxu0 0.0
      %4372 = vmatpush1.msra.mxu0 0.0
      %4373 = vmatprep.subr.mxu0 0.0
      %4374 = vmatpush1.msra.mxu0 0.0
      %4375 = vmatprep.subr.mxu0 0.0
      %4376 = vmatpush1.msra.mxu0 0.0
      %4377 = vmatprep.subr.mxu0 0.0
      %4378 = vmatpush1.msra.mxu0 0.0
      %4379 = vmatprep.subr.mxu0 0.0
      %4380 = vmatpush1.msra.mxu0 0.0
      %4381 = vmatprep.subr.mxu0 0.0
      %4382 = vmatpush1.msra.mxu0 0.0
      %4383 = vmatprep.subr.mxu0 0.0
      %4384 = vmatpush1.msra.mxu0 0.0
      %4385 = vmatprep.subr.mxu0 0.0
      %4386 = vmatpush1.msra.mxu0 0.0
      %4387 = vmatprep.subr.mxu0 0.0
      %4388 = vmatpush1.msra.mxu0 0.0
      %4389 = vmatprep.subr.mxu0 0.0
      %4390 = vmatpush1.msra.mxu0 0.0
      %4391 = vmatprep.subr.mxu0 0.0
      %4392 = vmatpush1.msra.mxu0 0.0
      %4393 = vmatprep.subr.mxu0 0.0
      %4394 = vmatpush1.msra.mxu0 0.0
      %4395 = vmatprep.subr.mxu0 0.0
      %4396 = vmatpush1.msra.mxu0 0.0
      %4397 = vmatprep.mubr.f32.mxu0 0.0
      %4398 = vmatmul.mubr.f32.gmra.mrb[0].mxu0 %v1900
      %v4399 = vpop.f32.mrb[0].mxu0
      %v4400 = vadd.f32 0.0, %v4399
      %v4401 = vpop.f32.mrb[0].mxu0
      %v4402 = vadd.f32 0.0, %v4401
      %4403 = vdwg.mxu0
      %v4404 = vadd.f32 %v3983, %v4187
      %v4405 = vadd.f32 %v3984, %v4189
      %v4406 = vadd.f32 %v3985, %v4258
      %v4407 = vadd.f32 %v3986, %v4260
      %v4408 = vadd.f32 %v3987, %v4329
      %v4409 = vadd.f32 %v3988, %v4331
      %v4410 = vadd.f32 %v3989, %v4400
      %v4411 = vadd.f32 %v3990, %v4402
      %s4412 = scalar_lea.vmem %s5, 6144
      %v4413 = vld [vmem:[%s4412] sm:$0xff]
      %v4414 = vld [vmem:[%s4412 + $0x8] sm:$0xff]
      %v4415 = vld [vmem:[%s4412 + $0x10] sm:$0xff]
      %v4416 = vld [vmem:[%s4412 + $0x18] sm:$0xff]
      %v4417 = vld [vmem:[%s4412 + $0x20] sm:$0xff]
      %v4418 = vld [vmem:[%s4412 + $0x28] sm:$0xff]
      %v4419 = vld [vmem:[%s4412 + $0x30] sm:$0xff]
      %v4420 = vld [vmem:[%s4412 + $0x38] sm:$0xff]
      %v4421 = vld [vmem:[%s4412 + $0x40] sm:$0xff]
      %v4422 = vld [vmem:[%s4412 + $0x48] sm:$0xff]
      %v4423 = vld [vmem:[%s4412 + $0x50] sm:$0xff]
      %v4424 = vld [vmem:[%s4412 + $0x58] sm:$0xff]
      %v4425 = vld [vmem:[%s4412 + $0x60] sm:$0xff]
      %v4426 = vld [vmem:[%s4412 + $0x68] sm:$0xff]
      %v4427 = vld [vmem:[%s4412 + $0x70] sm:$0xff]
      %v4428 = vld [vmem:[%s4412 + $0x78] sm:$0xff]
      %v4429 = vld [vmem:[%s4412 + $0x80] sm:$0xff]
      %v4430 = vld [vmem:[%s4412 + $0x88] sm:$0xff]
      %v4431 = vld [vmem:[%s4412 + $0x90] sm:$0xff]
      %v4432 = vld [vmem:[%s4412 + $0x98] sm:$0xff]
      %v4433 = vld [vmem:[%s4412 + $0xa0] sm:$0xff]
      %v4434 = vld [vmem:[%s4412 + $0xa8] sm:$0xff]
      %v4435 = vld [vmem:[%s4412 + $0xb0] sm:$0xff]
      %v4436 = vld [vmem:[%s4412 + $0xb8] sm:$0xff]
      %v4437 = vld [vmem:[%s4412 + $0xc0] sm:$0xff]
      %v4438 = vld [vmem:[%s4412 + $0xc8] sm:$0xff]
      %v4439 = vld [vmem:[%s4412 + $0xd0] sm:$0xff]
      %v4440 = vld [vmem:[%s4412 + $0xd8] sm:$0xff]
      %v4441 = vld [vmem:[%s4412 + $0xe0] sm:$0xff]
      %v4442 = vld [vmem:[%s4412 + $0xe8] sm:$0xff]
      %v4443 = vld [vmem:[%s4412 + $0xf0] sm:$0xff]
      %v4444 = vld [vmem:[%s4412 + $0xf8] sm:$0xff]
      %v4445 = vld [vmem:[%s4412 + $0x100] sm:$0xff]
      %v4446 = vld [vmem:[%s4412 + $0x108] sm:$0xff]
      %v4447 = vld [vmem:[%s4412 + $0x110] sm:$0xff]
      %v4448 = vld [vmem:[%s4412 + $0x118] sm:$0xff]
      %v4449 = vld [vmem:[%s4412 + $0x120] sm:$0xff]
      %v4450 = vld [vmem:[%s4412 + $0x128] sm:$0xff]
      %v4451 = vld [vmem:[%s4412 + $0x130] sm:$0xff]
      %v4452 = vld [vmem:[%s4412 + $0x138] sm:$0xff]
      %v4453 = vld [vmem:[%s4412 + $0x140] sm:$0xff]
      %v4454 = vld [vmem:[%s4412 + $0x148] sm:$0xff]
      %v4455 = vld [vmem:[%s4412 + $0x150] sm:$0xff]
      %v4456 = vld [vmem:[%s4412 + $0x158] sm:$0xff]
      %v4457 = vld [vmem:[%s4412 + $0x160] sm:$0xff]
      %v4458 = vld [vmem:[%s4412 + $0x168] sm:$0xff]
      %v4459 = vld [vmem:[%s4412 + $0x170] sm:$0xff]
      %v4460 = vld [vmem:[%s4412 + $0x178] sm:$0xff]
      %v4461 = vld [vmem:[%s4412 + $0x180] sm:$0xff]
      %v4462 = vld [vmem:[%s4412 + $0x188] sm:$0xff]
      %v4463 = vld [vmem:[%s4412 + $0x190] sm:$0xff]
      %v4464 = vld [vmem:[%s4412 + $0x198] sm:$0xff]
      %v4465 = vld [vmem:[%s4412 + $0x1a0] sm:$0xff]
      %v4466 = vld [vmem:[%s4412 + $0x1a8] sm:$0xff]
      %v4467 = vld [vmem:[%s4412 + $0x1b0] sm:$0xff]
      %v4468 = vld [vmem:[%s4412 + $0x1b8] sm:$0xff]
      %v4469 = vld [vmem:[%s4412 + $0x1c0] sm:$0xff]
      %v4470 = vld [vmem:[%s4412 + $0x1c8] sm:$0xff]
      %v4471 = vld [vmem:[%s4412 + $0x1d0] sm:$0xff]
      %v4472 = vld [vmem:[%s4412 + $0x1d8] sm:$0xff]
      %v4473 = vld [vmem:[%s4412 + $0x1e0] sm:$0xff]
      %v4474 = vld [vmem:[%s4412 + $0x1e8] sm:$0xff]
      %v4475 = vld [vmem:[%s4412 + $0x1f0] sm:$0xff]
      %v4476 = vld [vmem:[%s4412 + $0x1f8] sm:$0xff]
      %v4477 = vld [vmem:[%s4412 + $0x200] sm:$0xff]
      %v4478 = vld [vmem:[%s4412 + $0x208] sm:$0xff]
      %v4479 = vld [vmem:[%s4412 + $0x210] sm:$0xff]
      %v4480 = vld [vmem:[%s4412 + $0x218] sm:$0xff]
      %v4481 = vld [vmem:[%s4412 + $0x220] sm:$0xff]
      %v4482 = vld [vmem:[%s4412 + $0x228] sm:$0xff]
      %v4483 = vld [vmem:[%s4412 + $0x230] sm:$0xff]
      %v4484 = vld [vmem:[%s4412 + $0x238] sm:$0xff]
      %v4485 = vld [vmem:[%s4412 + $0x240] sm:$0xff]
      %v4486 = vld [vmem:[%s4412 + $0x248] sm:$0xff]
      %v4487 = vld [vmem:[%s4412 + $0x250] sm:$0xff]
      %v4488 = vld [vmem:[%s4412 + $0x258] sm:$0xff]
      %v4489 = vld [vmem:[%s4412 + $0x260] sm:$0xff]
      %v4490 = vld [vmem:[%s4412 + $0x268] sm:$0xff]
      %v4491 = vld [vmem:[%s4412 + $0x270] sm:$0xff]
      %v4492 = vld [vmem:[%s4412 + $0x278] sm:$0xff]
      %v4493 = vld [vmem:[%s4412 + $0x280] sm:$0xff]
      %v4494 = vld [vmem:[%s4412 + $0x288] sm:$0xff]
      %v4495 = vld [vmem:[%s4412 + $0x290] sm:$0xff]
      %v4496 = vld [vmem:[%s4412 + $0x298] sm:$0xff]
      %v4497 = vld [vmem:[%s4412 + $0x2a0] sm:$0xff]
      %v4498 = vld [vmem:[%s4412 + $0x2a8] sm:$0xff]
      %v4499 = vld [vmem:[%s4412 + $0x2b0] sm:$0xff]
      %v4500 = vld [vmem:[%s4412 + $0x2b8] sm:$0xff]
      %v4501 = vld [vmem:[%s4412 + $0x2c0] sm:$0xff]
      %v4502 = vld [vmem:[%s4412 + $0x2c8] sm:$0xff]
      %v4503 = vld [vmem:[%s4412 + $0x2d0] sm:$0xff]
      %v4504 = vld [vmem:[%s4412 + $0x2d8] sm:$0xff]
      %v4505 = vld [vmem:[%s4412 + $0x2e0] sm:$0xff]
      %v4506 = vld [vmem:[%s4412 + $0x2e8] sm:$0xff]
      %v4507 = vld [vmem:[%s4412 + $0x2f0] sm:$0xff]
      %v4508 = vld [vmem:[%s4412 + $0x2f8] sm:$0xff]
      %v4509 = vld [vmem:[%s4412 + $0x300] sm:$0xff]
      %v4510 = vld [vmem:[%s4412 + $0x308] sm:$0xff]
      %v4511 = vld [vmem:[%s4412 + $0x310] sm:$0xff]
      %v4512 = vld [vmem:[%s4412 + $0x318] sm:$0xff]
      %v4513 = vld [vmem:[%s4412 + $0x320] sm:$0xff]
      %v4514 = vld [vmem:[%s4412 + $0x328] sm:$0xff]
      %v4515 = vld [vmem:[%s4412 + $0x330] sm:$0xff]
      %v4516 = vld [vmem:[%s4412 + $0x338] sm:$0xff]
      %v4517 = vld [vmem:[%s4412 + $0x340] sm:$0xff]
      %v4518 = vld [vmem:[%s4412 + $0x348] sm:$0xff]
      %v4519 = vld [vmem:[%s4412 + $0x350] sm:$0xff]
      %v4520 = vld [vmem:[%s4412 + $0x358] sm:$0xff]
      %v4521 = vld [vmem:[%s4412 + $0x360] sm:$0xff]
      %v4522 = vld [vmem:[%s4412 + $0x368] sm:$0xff]
      %v4523 = vld [vmem:[%s4412 + $0x370] sm:$0xff]
      %v4524 = vld [vmem:[%s4412 + $0x378] sm:$0xff]
      %v4525 = vld [vmem:[%s4412 + $0x380] sm:$0xff]
      %v4526 = vld [vmem:[%s4412 + $0x388] sm:$0xff]
      %v4527 = vld [vmem:[%s4412 + $0x390] sm:$0xff]
      %v4528 = vld [vmem:[%s4412 + $0x398] sm:$0xff]
      %v4529 = vld [vmem:[%s4412 + $0x3a0] sm:$0xff]
      %v4530 = vld [vmem:[%s4412 + $0x3a8] sm:$0xff]
      %v4531 = vld [vmem:[%s4412 + $0x3b0] sm:$0xff]
      %v4532 = vld [vmem:[%s4412 + $0x3b8] sm:$0xff]
      %v4533 = vld [vmem:[%s4412 + $0x3c0] sm:$0xff]
      %v4534 = vld [vmem:[%s4412 + $0x3c8] sm:$0xff]
      %v4535 = vld [vmem:[%s4412 + $0x3d0] sm:$0xff]
      %v4536 = vld [vmem:[%s4412 + $0x3d8] sm:$0xff]
      %v4537 = vld [vmem:[%s4412 + $0x3e0] sm:$0xff]
      %v4538 = vld [vmem:[%s4412 + $0x3e8] sm:$0xff]
      %v4539 = vld [vmem:[%s4412 + $0x3f0] sm:$0xff]
      %v4540 = vld [vmem:[%s4412 + $0x3f8] sm:$0xff]
      %4541 = vmatprep.subr.mxu0 %v4414
      %4542 = vmatpush1.msra.mxu0 %v4413
      %4543 = vmatprep.subr.mxu0 %v4422
      %4544 = vmatpush1.msra.mxu0 %v4421
      %4545 = vmatprep.subr.mxu0 %v4430
      %4546 = vmatpush1.msra.mxu0 %v4429
      %4547 = vmatprep.subr.mxu0 %v4438
      %4548 = vmatpush1.msra.mxu0 %v4437
      %4549 = vmatprep.subr.mxu0 %v4446
      %4550 = vmatpush1.msra.mxu0 %v4445
      %4551 = vmatprep.subr.mxu0 %v4454
      %4552 = vmatpush1.msra.mxu0 %v4453
      %4553 = vmatprep.subr.mxu0 %v4462
      %4554 = vmatpush1.msra.mxu0 %v4461
      %4555 = vmatprep.subr.mxu0 %v4470
      %4556 = vmatpush1.msra.mxu0 %v4469
      %4557 = vmatprep.subr.mxu0 %v4478
      %4558 = vmatpush1.msra.mxu0 %v4477
      %4559 = vmatprep.subr.mxu0 %v4486
      %4560 = vmatpush1.msra.mxu0 %v4485
      %4561 = vmatprep.subr.mxu0 %v4494
      %4562 = vmatpush1.msra.mxu0 %v4493
      %4563 = vmatprep.subr.mxu0 %v4502
      %4564 = vmatpush1.msra.mxu0 %v4501
      %4565 = vmatprep.subr.mxu0 %v4510
      %4566 = vmatpush1.msra.mxu0 %v4509
      %4567 = vmatprep.subr.mxu0 %v4518
      %4568 = vmatpush1.msra.mxu0 %v4517
      %4569 = vmatprep.subr.mxu0 %v4526
      %4570 = vmatpush1.msra.mxu0 %v4525
      %4571 = vmatprep.subr.mxu0 %v4534
      %4572 = vmatpush1.msra.mxu0 %v4533
      %4573 = vmatprep.subr.mxu0 0.0
      %4574 = vmatpush1.msra.mxu0 0.0
      %4575 = vmatprep.subr.mxu0 0.0
      %4576 = vmatpush1.msra.mxu0 0.0
      %4577 = vmatprep.subr.mxu0 0.0
      %4578 = vmatpush1.msra.mxu0 0.0
      %4579 = vmatprep.subr.mxu0 0.0
      %4580 = vmatpush1.msra.mxu0 0.0
      %4581 = vmatprep.subr.mxu0 0.0
      %4582 = vmatpush1.msra.mxu0 0.0
      %4583 = vmatprep.subr.mxu0 0.0
      %4584 = vmatpush1.msra.mxu0 0.0
      %4585 = vmatprep.subr.mxu0 0.0
      %4586 = vmatpush1.msra.mxu0 0.0
      %4587 = vmatprep.subr.mxu0 0.0
      %4588 = vmatpush1.msra.mxu0 0.0
      %4589 = vmatprep.subr.mxu0 0.0
      %4590 = vmatpush1.msra.mxu0 0.0
      %4591 = vmatprep.subr.mxu0 0.0
      %4592 = vmatpush1.msra.mxu0 0.0
      %4593 = vmatprep.subr.mxu0 0.0
      %4594 = vmatpush1.msra.mxu0 0.0
      %4595 = vmatprep.subr.mxu0 0.0
      %4596 = vmatpush1.msra.mxu0 0.0
      %4597 = vmatprep.subr.mxu0 0.0
      %4598 = vmatpush1.msra.mxu0 0.0
      %4599 = vmatprep.subr.mxu0 0.0
      %4600 = vmatpush1.msra.mxu0 0.0
      %4601 = vmatprep.subr.mxu0 0.0
      %4602 = vmatpush1.msra.mxu0 0.0
      %4603 = vmatprep.subr.mxu0 0.0
      %4604 = vmatpush1.msra.mxu0 0.0
      %4605 = vmatprep.mubr.f32.mxu0 0.0
      %4606 = vmatmul.mubr.f32.gmra.mrb[0].mxu0 %v1901
      %v4607 = vpop.f32.mrb[0].mxu0
      %v4608 = vadd.f32 0.0, %v4607
      %v4609 = vpop.f32.mrb[0].mxu0
      %v4610 = vadd.f32 0.0, %v4609
      %4611 = vdwg.mxu0
      %4612 = vmatprep.subr.mxu0 %v4416
      %4613 = vmatpush1.msra.mxu0 %v4415
      %4614 = vmatprep.subr.mxu0 %v4424
      %4615 = vmatpush1.msra.mxu0 %v4423
      %4616 = vmatprep.subr.mxu0 %v4432
      %4617 = vmatpush1.msra.mxu0 %v4431
      %4618 = vmatprep.subr.mxu0 %v4440
      %4619 = vmatpush1.msra.mxu0 %v4439
      %4620 = vmatprep.subr.mxu0 %v4448
      %4621 = vmatpush1.msra.mxu0 %v4447
      %4622 = vmatprep.subr.mxu0 %v4456
      %4623 = vmatpush1.msra.mxu0 %v4455
      %4624 = vmatprep.subr.mxu0 %v4464
      %4625 = vmatpush1.msra.mxu0 %v4463
      %4626 = vmatprep.subr.mxu0 %v4472
      %4627 = vmatpush1.msra.mxu0 %v4471
      %4628 = vmatprep.subr.mxu0 %v4480
      %4629 = vmatpush1.msra.mxu0 %v4479
      %4630 = vmatprep.subr.mxu0 %v4488
      %4631 = vmatpush1.msra.mxu0 %v4487
      %4632 = vmatprep.subr.mxu0 %v4496
      %4633 = vmatpush1.msra.mxu0 %v4495
      %4634 = vmatprep.subr.mxu0 %v4504
      %4635 = vmatpush1.msra.mxu0 %v4503
      %4636 = vmatprep.subr.mxu0 %v4512
      %4637 = vmatpush1.msra.mxu0 %v4511
      %4638 = vmatprep.subr.mxu0 %v4520
      %4639 = vmatpush1.msra.mxu0 %v4519
      %4640 = vmatprep.subr.mxu0 %v4528
      %4641 = vmatpush1.msra.mxu0 %v4527
      %4642 = vmatprep.subr.mxu0 %v4536
      %4643 = vmatpush1.msra.mxu0 %v4535
      %4644 = vmatprep.subr.mxu0 0.0
      %4645 = vmatpush1.msra.mxu0 0.0
      %4646 = vmatprep.subr.mxu0 0.0
      %4647 = vmatpush1.msra.mxu0 0.0
      %4648 = vmatprep.subr.mxu0 0.0
      %4649 = vmatpush1.msra.mxu0 0.0
      %4650 = vmatprep.subr.mxu0 0.0
      %4651 = vmatpush1.msra.mxu0 0.0
      %4652 = vmatprep.subr.mxu0 0.0
      %4653 = vmatpush1.msra.mxu0 0.0
      %4654 = vmatprep.subr.mxu0 0.0
      %4655 = vmatpush1.msra.mxu0 0.0
      %4656 = vmatprep.subr.mxu0 0.0
      %4657 = vmatpush1.msra.mxu0 0.0
      %4658 = vmatprep.subr.mxu0 0.0
      %4659 = vmatpush1.msra.mxu0 0.0
      %4660 = vmatprep.subr.mxu0 0.0
      %4661 = vmatpush1.msra.mxu0 0.0
      %4662 = vmatprep.subr.mxu0 0.0
      %4663 = vmatpush1.msra.mxu0 0.0
      %4664 = vmatprep.subr.mxu0 0.0
      %4665 = vmatpush1.msra.mxu0 0.0
      %4666 = vmatprep.subr.mxu0 0.0
      %4667 = vmatpush1.msra.mxu0 0.0
      %4668 = vmatprep.subr.mxu0 0.0
      %4669 = vmatpush1.msra.mxu0 0.0
      %4670 = vmatprep.subr.mxu0 0.0
      %4671 = vmatpush1.msra.mxu0 0.0
      %4672 = vmatprep.subr.mxu0 0.0
      %4673 = vmatpush1.msra.mxu0 0.0
      %4674 = vmatprep.subr.mxu0 0.0
      %4675 = vmatpush1.msra.mxu0 0.0
      %4676 = vmatprep.mubr.f32.mxu0 0.0
      %4677 = vmatmul.mubr.f32.gmra.mrb[0].mxu0 %v1901
      %v4678 = vpop.f32.mrb[0].mxu0
      %v4679 = vadd.f32 0.0, %v4678
      %v4680 = vpop.f32.mrb[0].mxu0
      %v4681 = vadd.f32 0.0, %v4680
      %4682 = vdwg.mxu0
      %4683 = vmatprep.subr.mxu0 %v4418
      %4684 = vmatpush1.msra.mxu0 %v4417
      %4685 = vmatprep.subr.mxu0 %v4426
      %4686 = vmatpush1.msra.mxu0 %v4425
      %4687 = vmatprep.subr.mxu0 %v4434
      %4688 = vmatpush1.msra.mxu0 %v4433
      %4689 = vmatprep.subr.mxu0 %v4442
      %4690 = vmatpush1.msra.mxu0 %v4441
      %4691 = vmatprep.subr.mxu0 %v4450
      %4692 = vmatpush1.msra.mxu0 %v4449
      %4693 = vmatprep.subr.mxu0 %v4458
      %4694 = vmatpush1.msra.mxu0 %v4457
      %4695 = vmatprep.subr.mxu0 %v4466
      %4696 = vmatpush1.msra.mxu0 %v4465
      %4697 = vmatprep.subr.mxu0 %v4474
      %4698 = vmatpush1.msra.mxu0 %v4473
      %4699 = vmatprep.subr.mxu0 %v4482
      %4700 = vmatpush1.msra.mxu0 %v4481
      %4701 = vmatprep.subr.mxu0 %v4490
      %4702 = vmatpush1.msra.mxu0 %v4489
      %4703 = vmatprep.subr.mxu0 %v4498
      %4704 = vmatpush1.msra.mxu0 %v4497
      %4705 = vmatprep.subr.mxu0 %v4506
      %4706 = vmatpush1.msra.mxu0 %v4505
      %4707 = vmatprep.subr.mxu0 %v4514
      %4708 = vmatpush1.msra.mxu0 %v4513
      %4709 = vmatprep.subr.mxu0 %v4522
      %4710 = vmatpush1.msra.mxu0 %v4521
      %4711 = vmatprep.subr.mxu0 %v4530
      %4712 = vmatpush1.msra.mxu0 %v4529
      %4713 = vmatprep.subr.mxu0 %v4538
      %4714 = vmatpush1.msra.mxu0 %v4537
      %4715 = vmatprep.subr.mxu0 0.0
      %4716 = vmatpush1.msra.mxu0 0.0
      %4717 = vmatprep.subr.mxu0 0.0
      %4718 = vmatpush1.msra.mxu0 0.0
      %4719 = vmatprep.subr.mxu0 0.0
      %4720 = vmatpush1.msra.mxu0 0.0
      %4721 = vmatprep.subr.mxu0 0.0
      %4722 = vmatpush1.msra.mxu0 0.0
      %4723 = vmatprep.subr.mxu0 0.0
      %4724 = vmatpush1.msra.mxu0 0.0
      %4725 = vmatprep.subr.mxu0 0.0
      %4726 = vmatpush1.msra.mxu0 0.0
      %4727 = vmatprep.subr.mxu0 0.0
      %4728 = vmatpush1.msra.mxu0 0.0
      %4729 = vmatprep.subr.mxu0 0.0
      %4730 = vmatpush1.msra.mxu0 0.0
      %4731 = vmatprep.subr.mxu0 0.0
      %4732 = vmatpush1.msra.mxu0 0.0
      %4733 = vmatprep.subr.mxu0 0.0
      %4734 = vmatpush1.msra.mxu0 0.0
      %4735 = vmatprep.subr.mxu0 0.0
      %4736 = vmatpush1.msra.mxu0 0.0
      %4737 = vmatprep.subr.mxu0 0.0
      %4738 = vmatpush1.msra.mxu0 0.0
      %4739 = vmatprep.subr.mxu0 0.0
      %4740 = vmatpush1.msra.mxu0 0.0
      %4741 = vmatprep.subr.mxu0 0.0
      %4742 = vmatpush1.msra.mxu0 0.0
      %4743 = vmatprep.subr.mxu0 0.0
      %4744 = vmatpush1.msra.mxu0 0.0
      %4745 = vmatprep.subr.mxu0 0.0
      %4746 = vmatpush1.msra.mxu0 0.0
      %4747 = vmatprep.mubr.f32.mxu0 0.0
      %4748 = vmatmul.mubr.f32.gmra.mrb[0].mxu0 %v1901
      %v4749 = vpop.f32.mrb[0].mxu0
      %v4750 = vadd.f32 0.0, %v4749
      %v4751 = vpop.f32.mrb[0].mxu0
      %v4752 = vadd.f32 0.0, %v4751
      %4753 = vdwg.mxu0
      %4754 = vmatprep.subr.mxu0 %v4420
      %4755 = vmatpush1.msra.mxu0 %v4419
      %4756 = vmatprep.subr.mxu0 %v4428
      %4757 = vmatpush1.msra.mxu0 %v4427
      %4758 = vmatprep.subr.mxu0 %v4436
      %4759 = vmatpush1.msra.mxu0 %v4435
      %4760 = vmatprep.subr.mxu0 %v4444
      %4761 = vmatpush1.msra.mxu0 %v4443
      %4762 = vmatprep.subr.mxu0 %v4452
      %4763 = vmatpush1.msra.mxu0 %v4451
      %4764 = vmatprep.subr.mxu0 %v4460
      %4765 = vmatpush1.msra.mxu0 %v4459
      %4766 = vmatprep.subr.mxu0 %v4468
      %4767 = vmatpush1.msra.mxu0 %v4467
      %4768 = vmatprep.subr.mxu0 %v4476
      %4769 = vmatpush1.msra.mxu0 %v4475
      %4770 = vmatprep.subr.mxu0 %v4484
      %4771 = vmatpush1.msra.mxu0 %v4483
      %4772 = vmatprep.subr.mxu0 %v4492
      %4773 = vmatpush1.msra.mxu0 %v4491
      %4774 = vmatprep.subr.mxu0 %v4500
      %4775 = vmatpush1.msra.mxu0 %v4499
      %4776 = vmatprep.subr.mxu0 %v4508
      %4777 = vmatpush1.msra.mxu0 %v4507
      %4778 = vmatprep.subr.mxu0 %v4516
      %4779 = vmatpush1.msra.mxu0 %v4515
      %4780 = vmatprep.subr.mxu0 %v4524
      %4781 = vmatpush1.msra.mxu0 %v4523
      %4782 = vmatprep.subr.mxu0 %v4532
      %4783 = vmatpush1.msra.mxu0 %v4531
      %4784 = vmatprep.subr.mxu0 %v4540
      %4785 = vmatpush1.msra.mxu0 %v4539
      %4786 = vmatprep.subr.mxu0 0.0
      %4787 = vmatpush1.msra.mxu0 0.0
      %4788 = vmatprep.subr.mxu0 0.0
      %4789 = vmatpush1.msra.mxu0 0.0
      %4790 = vmatprep.subr.mxu0 0.0
      %4791 = vmatpush1.msra.mxu0 0.0
      %4792 = vmatprep.subr.mxu0 0.0
      %4793 = vmatpush1.msra.mxu0 0.0
      %4794 = vmatprep.subr.mxu0 0.0
      %4795 = vmatpush1.msra.mxu0 0.0
      %4796 = vmatprep.subr.mxu0 0.0
      %4797 = vmatpush1.msra.mxu0 0.0
      %4798 = vmatprep.subr.mxu0 0.0
      %4799 = vmatpush1.msra.mxu0 0.0
      %4800 = vmatprep.subr.mxu0 0.0
      %4801 = vmatpush1.msra.mxu0 0.0
      %4802 = vmatprep.subr.mxu0 0.0
      %4803 = vmatpush1.msra.mxu0 0.0
      %4804 = vmatprep.subr.mxu0 0.0
      %4805 = vmatpush1.msra.mxu0 0.0
      %4806 = vmatprep.subr.mxu0 0.0
      %4807 = vmatpush1.msra.mxu0 0.0
      %4808 = vmatprep.subr.mxu0 0.0
      %4809 = vmatpush1.msra.mxu0 0.0
      %4810 = vmatprep.subr.mxu0 0.0
      %4811 = vmatpush1.msra.mxu0 0.0
      %4812 = vmatprep.subr.mxu0 0.0
      %4813 = vmatpush1.msra.mxu0 0.0
      %4814 = vmatprep.subr.mxu0 0.0
      %4815 = vmatpush1.msra.mxu0 0.0
      %4816 = vmatprep.subr.mxu0 0.0
      %4817 = vmatpush1.msra.mxu0 0.0
      %4818 = vmatprep.mubr.f32.mxu0 0.0
      %4819 = vmatmul.mubr.f32.gmra.mrb[0].mxu0 %v1901
      %v4820 = vpop.f32.mrb[0].mxu0
      %v4821 = vadd.f32 0.0, %v4820
      %v4822 = vpop.f32.mrb[0].mxu0
      %v4823 = vadd.f32 0.0, %v4822
      %4824 = vdwg.mxu0
      %v4825 = vadd.f32 %v4404, %v4608
      %v4826 = vadd.f32 %v4405, %v4610
      %v4827 = vadd.f32 %v4406, %v4679
      %v4828 = vadd.f32 %v4407, %v4681
      %v4829 = vadd.f32 %v4408, %v4750
      %v4830 = vadd.f32 %v4409, %v4752
      %v4831 = vadd.f32 %v4410, %v4821
      %v4832 = vadd.f32 %v4411, %v4823
      %s4833 = scalar_lea.vmem %s5, 7168
      %v4834 = vld [vmem:[%s4833] sm:$0xff]
      %v4835 = vld [vmem:[%s4833 + $0x8] sm:$0xff]
      %v4836 = vld [vmem:[%s4833 + $0x10] sm:$0xff]
      %v4837 = vld [vmem:[%s4833 + $0x18] sm:$0xff]
      %v4838 = vld [vmem:[%s4833 + $0x20] sm:$0xff]
      %v4839 = vld [vmem:[%s4833 + $0x28] sm:$0xff]
      %v4840 = vld [vmem:[%s4833 + $0x30] sm:$0xff]
      %v4841 = vld [vmem:[%s4833 + $0x38] sm:$0xff]
      %v4842 = vld [vmem:[%s4833 + $0x40] sm:$0xff]
      %v4843 = vld [vmem:[%s4833 + $0x48] sm:$0xff]
      %v4844 = vld [vmem:[%s4833 + $0x50] sm:$0xff]
      %v4845 = vld [vmem:[%s4833 + $0x58] sm:$0xff]
      %v4846 = vld [vmem:[%s4833 + $0x60] sm:$0xff]
      %v4847 = vld [vmem:[%s4833 + $0x68] sm:$0xff]
      %v4848 = vld [vmem:[%s4833 + $0x70] sm:$0xff]
      %v4849 = vld [vmem:[%s4833 + $0x78] sm:$0xff]
      %v4850 = vld [vmem:[%s4833 + $0x80] sm:$0xff]
      %v4851 = vld [vmem:[%s4833 + $0x88] sm:$0xff]
      %v4852 = vld [vmem:[%s4833 + $0x90] sm:$0xff]
      %v4853 = vld [vmem:[%s4833 + $0x98] sm:$0xff]
      %v4854 = vld [vmem:[%s4833 + $0xa0] sm:$0xff]
      %v4855 = vld [vmem:[%s4833 + $0xa8] sm:$0xff]
      %v4856 = vld [vmem:[%s4833 + $0xb0] sm:$0xff]
      %v4857 = vld [vmem:[%s4833 + $0xb8] sm:$0xff]
      %v4858 = vld [vmem:[%s4833 + $0xc0] sm:$0xff]
      %v4859 = vld [vmem:[%s4833 + $0xc8] sm:$0xff]
      %v4860 = vld [vmem:[%s4833 + $0xd0] sm:$0xff]
      %v4861 = vld [vmem:[%s4833 + $0xd8] sm:$0xff]
      %v4862 = vld [vmem:[%s4833 + $0xe0] sm:$0xff]
      %v4863 = vld [vmem:[%s4833 + $0xe8] sm:$0xff]
      %v4864 = vld [vmem:[%s4833 + $0xf0] sm:$0xff]
      %v4865 = vld [vmem:[%s4833 + $0xf8] sm:$0xff]
      %v4866 = vld [vmem:[%s4833 + $0x100] sm:$0xff]
      %v4867 = vld [vmem:[%s4833 + $0x108] sm:$0xff]
      %v4868 = vld [vmem:[%s4833 + $0x110] sm:$0xff]
      %v4869 = vld [vmem:[%s4833 + $0x118] sm:$0xff]
      %v4870 = vld [vmem:[%s4833 + $0x120] sm:$0xff]
      %v4871 = vld [vmem:[%s4833 + $0x128] sm:$0xff]
      %v4872 = vld [vmem:[%s4833 + $0x130] sm:$0xff]
      %v4873 = vld [vmem:[%s4833 + $0x138] sm:$0xff]
      %v4874 = vld [vmem:[%s4833 + $0x140] sm:$0xff]
      %v4875 = vld [vmem:[%s4833 + $0x148] sm:$0xff]
      %v4876 = vld [vmem:[%s4833 + $0x150] sm:$0xff]
      %v4877 = vld [vmem:[%s4833 + $0x158] sm:$0xff]
      %v4878 = vld [vmem:[%s4833 + $0x160] sm:$0xff]
      %v4879 = vld [vmem:[%s4833 + $0x168] sm:$0xff]
      %v4880 = vld [vmem:[%s4833 + $0x170] sm:$0xff]
      %v4881 = vld [vmem:[%s4833 + $0x178] sm:$0xff]
      %v4882 = vld [vmem:[%s4833 + $0x180] sm:$0xff]
      %v4883 = vld [vmem:[%s4833 + $0x188] sm:$0xff]
      %v4884 = vld [vmem:[%s4833 + $0x190] sm:$0xff]
      %v4885 = vld [vmem:[%s4833 + $0x198] sm:$0xff]
      %v4886 = vld [vmem:[%s4833 + $0x1a0] sm:$0xff]
      %v4887 = vld [vmem:[%s4833 + $0x1a8] sm:$0xff]
      %v4888 = vld [vmem:[%s4833 + $0x1b0] sm:$0xff]
      %v4889 = vld [vmem:[%s4833 + $0x1b8] sm:$0xff]
      %v4890 = vld [vmem:[%s4833 + $0x1c0] sm:$0xff]
      %v4891 = vld [vmem:[%s4833 + $0x1c8] sm:$0xff]
      %v4892 = vld [vmem:[%s4833 + $0x1d0] sm:$0xff]
      %v4893 = vld [vmem:[%s4833 + $0x1d8] sm:$0xff]
      %v4894 = vld [vmem:[%s4833 + $0x1e0] sm:$0xff]
      %v4895 = vld [vmem:[%s4833 + $0x1e8] sm:$0xff]
      %v4896 = vld [vmem:[%s4833 + $0x1f0] sm:$0xff]
      %v4897 = vld [vmem:[%s4833 + $0x1f8] sm:$0xff]
      %v4898 = vld [vmem:[%s4833 + $0x200] sm:$0xff]
      %v4899 = vld [vmem:[%s4833 + $0x208] sm:$0xff]
      %v4900 = vld [vmem:[%s4833 + $0x210] sm:$0xff]
      %v4901 = vld [vmem:[%s4833 + $0x218] sm:$0xff]
      %v4902 = vld [vmem:[%s4833 + $0x220] sm:$0xff]
      %v4903 = vld [vmem:[%s4833 + $0x228] sm:$0xff]
      %v4904 = vld [vmem:[%s4833 + $0x230] sm:$0xff]
      %v4905 = vld [vmem:[%s4833 + $0x238] sm:$0xff]
      %v4906 = vld [vmem:[%s4833 + $0x240] sm:$0xff]
      %v4907 = vld [vmem:[%s4833 + $0x248] sm:$0xff]
      %v4908 = vld [vmem:[%s4833 + $0x250] sm:$0xff]
      %v4909 = vld [vmem:[%s4833 + $0x258] sm:$0xff]
      %v4910 = vld [vmem:[%s4833 + $0x260] sm:$0xff]
      %v4911 = vld [vmem:[%s4833 + $0x268] sm:$0xff]
      %v4912 = vld [vmem:[%s4833 + $0x270] sm:$0xff]
      %v4913 = vld [vmem:[%s4833 + $0x278] sm:$0xff]
      %v4914 = vld [vmem:[%s4833 + $0x280] sm:$0xff]
      %v4915 = vld [vmem:[%s4833 + $0x288] sm:$0xff]
      %v4916 = vld [vmem:[%s4833 + $0x290] sm:$0xff]
      %v4917 = vld [vmem:[%s4833 + $0x298] sm:$0xff]
      %v4918 = vld [vmem:[%s4833 + $0x2a0] sm:$0xff]
      %v4919 = vld [vmem:[%s4833 + $0x2a8] sm:$0xff]
      %v4920 = vld [vmem:[%s4833 + $0x2b0] sm:$0xff]
      %v4921 = vld [vmem:[%s4833 + $0x2b8] sm:$0xff]
      %v4922 = vld [vmem:[%s4833 + $0x2c0] sm:$0xff]
      %v4923 = vld [vmem:[%s4833 + $0x2c8] sm:$0xff]
      %v4924 = vld [vmem:[%s4833 + $0x2d0] sm:$0xff]
      %v4925 = vld [vmem:[%s4833 + $0x2d8] sm:$0xff]
      %v4926 = vld [vmem:[%s4833 + $0x2e0] sm:$0xff]
      %v4927 = vld [vmem:[%s4833 + $0x2e8] sm:$0xff]
      %v4928 = vld [vmem:[%s4833 + $0x2f0] sm:$0xff]
      %v4929 = vld [vmem:[%s4833 + $0x2f8] sm:$0xff]
      %v4930 = vld [vmem:[%s4833 + $0x300] sm:$0xff]
      %v4931 = vld [vmem:[%s4833 + $0x308] sm:$0xff]
      %v4932 = vld [vmem:[%s4833 + $0x310] sm:$0xff]
      %v4933 = vld [vmem:[%s4833 + $0x318] sm:$0xff]
      %v4934 = vld [vmem:[%s4833 + $0x320] sm:$0xff]
      %v4935 = vld [vmem:[%s4833 + $0x328] sm:$0xff]
      %v4936 = vld [vmem:[%s4833 + $0x330] sm:$0xff]
      %v4937 = vld [vmem:[%s4833 + $0x338] sm:$0xff]
      %v4938 = vld [vmem:[%s4833 + $0x340] sm:$0xff]
      %v4939 = vld [vmem:[%s4833 + $0x348] sm:$0xff]
      %v4940 = vld [vmem:[%s4833 + $0x350] sm:$0xff]
      %v4941 = vld [vmem:[%s4833 + $0x358] sm:$0xff]
      %v4942 = vld [vmem:[%s4833 + $0x360] sm:$0xff]
      %v4943 = vld [vmem:[%s4833 + $0x368] sm:$0xff]
      %v4944 = vld [vmem:[%s4833 + $0x370] sm:$0xff]
      %v4945 = vld [vmem:[%s4833 + $0x378] sm:$0xff]
      %v4946 = vld [vmem:[%s4833 + $0x380] sm:$0xff]
      %v4947 = vld [vmem:[%s4833 + $0x388] sm:$0xff]
      %v4948 = vld [vmem:[%s4833 + $0x390] sm:$0xff]
      %v4949 = vld [vmem:[%s4833 + $0x398] sm:$0xff]
      %v4950 = vld [vmem:[%s4833 + $0x3a0] sm:$0xff]
      %v4951 = vld [vmem:[%s4833 + $0x3a8] sm:$0xff]
      %v4952 = vld [vmem:[%s4833 + $0x3b0] sm:$0xff]
      %v4953 = vld [vmem:[%s4833 + $0x3b8] sm:$0xff]
      %v4954 = vld [vmem:[%s4833 + $0x3c0] sm:$0xff]
      %v4955 = vld [vmem:[%s4833 + $0x3c8] sm:$0xff]
      %v4956 = vld [vmem:[%s4833 + $0x3d0] sm:$0xff]
      %v4957 = vld [vmem:[%s4833 + $0x3d8] sm:$0xff]
      %v4958 = vld [vmem:[%s4833 + $0x3e0] sm:$0xff]
      %v4959 = vld [vmem:[%s4833 + $0x3e8] sm:$0xff]
      %v4960 = vld [vmem:[%s4833 + $0x3f0] sm:$0xff]
      %v4961 = vld [vmem:[%s4833 + $0x3f8] sm:$0xff]
      %4962 = vmatprep.subr.mxu0 %v4835
      %4963 = vmatpush1.msra.mxu0 %v4834
      %4964 = vmatprep.subr.mxu0 %v4843
      %4965 = vmatpush1.msra.mxu0 %v4842
      %4966 = vmatprep.subr.mxu0 %v4851
      %4967 = vmatpush1.msra.mxu0 %v4850
      %4968 = vmatprep.subr.mxu0 %v4859
      %4969 = vmatpush1.msra.mxu0 %v4858
      %4970 = vmatprep.subr.mxu0 %v4867
      %4971 = vmatpush1.msra.mxu0 %v4866
      %4972 = vmatprep.subr.mxu0 %v4875
      %4973 = vmatpush1.msra.mxu0 %v4874
      %4974 = vmatprep.subr.mxu0 %v4883
      %4975 = vmatpush1.msra.mxu0 %v4882
      %4976 = vmatprep.subr.mxu0 %v4891
      %4977 = vmatpush1.msra.mxu0 %v4890
      %4978 = vmatprep.subr.mxu0 %v4899
      %4979 = vmatpush1.msra.mxu0 %v4898
      %4980 = vmatprep.subr.mxu0 %v4907
      %4981 = vmatpush1.msra.mxu0 %v4906
      %4982 = vmatprep.subr.mxu0 %v4915
      %4983 = vmatpush1.msra.mxu0 %v4914
      %4984 = vmatprep.subr.mxu0 %v4923
      %4985 = vmatpush1.msra.mxu0 %v4922
      %4986 = vmatprep.subr.mxu0 %v4931
      %4987 = vmatpush1.msra.mxu0 %v4930
      %4988 = vmatprep.subr.mxu0 %v4939
      %4989 = vmatpush1.msra.mxu0 %v4938
      %4990 = vmatprep.subr.mxu0 %v4947
      %4991 = vmatpush1.msra.mxu0 %v4946
      %4992 = vmatprep.subr.mxu0 %v4955
      %4993 = vmatpush1.msra.mxu0 %v4954
      %4994 = vmatprep.subr.mxu0 0.0
      %4995 = vmatpush1.msra.mxu0 0.0
      %4996 = vmatprep.subr.mxu0 0.0
      %4997 = vmatpush1.msra.mxu0 0.0
      %4998 = vmatprep.subr.mxu0 0.0
      %4999 = vmatpush1.msra.mxu0 0.0
      %5000 = vmatprep.subr.mxu0 0.0
      %5001 = vmatpush1.msra.mxu0 0.0
      %5002 = vmatprep.subr.mxu0 0.0
      %5003 = vmatpush1.msra.mxu0 0.0
      %5004 = vmatprep.subr.mxu0 0.0
      %5005 = vmatpush1.msra.mxu0 0.0
      %5006 = vmatprep.subr.mxu0 0.0
      %5007 = vmatpush1.msra.mxu0 0.0
      %5008 = vmatprep.subr.mxu0 0.0
      %5009 = vmatpush1.msra.mxu0 0.0
      %5010 = vmatprep.subr.mxu0 0.0
      %5011 = vmatpush1.msra.mxu0 0.0
      %5012 = vmatprep.subr.mxu0 0.0
      %5013 = vmatpush1.msra.mxu0 0.0
      %5014 = vmatprep.subr.mxu0 0.0
      %5015 = vmatpush1.msra.mxu0 0.0
      %5016 = vmatprep.subr.mxu0 0.0
      %5017 = vmatpush1.msra.mxu0 0.0
      %5018 = vmatprep.subr.mxu0 0.0
      %5019 = vmatpush1.msra.mxu0 0.0
      %5020 = vmatprep.subr.mxu0 0.0
      %5021 = vmatpush1.msra.mxu0 0.0
      %5022 = vmatprep.subr.mxu0 0.0
      %5023 = vmatpush1.msra.mxu0 0.0
      %5024 = vmatprep.subr.mxu0 0.0
      %5025 = vmatpush1.msra.mxu0 0.0
      %5026 = vmatprep.mubr.f32.mxu0 0.0
      %5027 = vmatmul.mubr.f32.gmra.mrb[0].mxu0 %v1902
      %v5028 = vpop.f32.mrb[0].mxu0
      %v5029 = vadd.f32 0.0, %v5028
      %v5030 = vpop.f32.mrb[0].mxu0
      %v5031 = vadd.f32 0.0, %v5030
      %5032 = vdwg.mxu0
      %5033 = vmatprep.subr.mxu0 %v4837
      %5034 = vmatpush1.msra.mxu0 %v4836
      %5035 = vmatprep.subr.mxu0 %v4845
      %5036 = vmatpush1.msra.mxu0 %v4844
      %5037 = vmatprep.subr.mxu0 %v4853
      %5038 = vmatpush1.msra.mxu0 %v4852
      %5039 = vmatprep.subr.mxu0 %v4861
      %5040 = vmatpush1.msra.mxu0 %v4860
      %5041 = vmatprep.subr.mxu0 %v4869
      %5042 = vmatpush1.msra.mxu0 %v4868
      %5043 = vmatprep.subr.mxu0 %v4877
      %5044 = vmatpush1.msra.mxu0 %v4876
      %5045 = vmatprep.subr.mxu0 %v4885
      %5046 = vmatpush1.msra.mxu0 %v4884
      %5047 = vmatprep.subr.mxu0 %v4893
      %5048 = vmatpush1.msra.mxu0 %v4892
      %5049 = vmatprep.subr.mxu0 %v4901
      %5050 = vmatpush1.msra.mxu0 %v4900
      %5051 = vmatprep.subr.mxu0 %v4909
      %5052 = vmatpush1.msra.mxu0 %v4908
      %5053 = vmatprep.subr.mxu0 %v4917
      %5054 = vmatpush1.msra.mxu0 %v4916
      %5055 = vmatprep.subr.mxu0 %v4925
      %5056 = vmatpush1.msra.mxu0 %v4924
      %5057 = vmatprep.subr.mxu0 %v4933
      %5058 = vmatpush1.msra.mxu0 %v4932
      %5059 = vmatprep.subr.mxu0 %v4941
      %5060 = vmatpush1.msra.mxu0 %v4940
      %5061 = vmatprep.subr.mxu0 %v4949
      %5062 = vmatpush1.msra.mxu0 %v4948
      %5063 = vmatprep.subr.mxu0 %v4957
      %5064 = vmatpush1.msra.mxu0 %v4956
      %5065 = vmatprep.subr.mxu0 0.0
      %5066 = vmatpush1.msra.mxu0 0.0
      %5067 = vmatprep.subr.mxu0 0.0
      %5068 = vmatpush1.msra.mxu0 0.0
      %5069 = vmatprep.subr.mxu0 0.0
      %5070 = vmatpush1.msra.mxu0 0.0
      %5071 = vmatprep.subr.mxu0 0.0
      %5072 = vmatpush1.msra.mxu0 0.0
      %5073 = vmatprep.subr.mxu0 0.0
      %5074 = vmatpush1.msra.mxu0 0.0
      %5075 = vmatprep.subr.mxu0 0.0
      %5076 = vmatpush1.msra.mxu0 0.0
      %5077 = vmatprep.subr.mxu0 0.0
      %5078 = vmatpush1.msra.mxu0 0.0
      %5079 = vmatprep.subr.mxu0 0.0
      %5080 = vmatpush1.msra.mxu0 0.0
      %5081 = vmatprep.subr.mxu0 0.0
      %5082 = vmatpush1.msra.mxu0 0.0
      %5083 = vmatprep.subr.mxu0 0.0
      %5084 = vmatpush1.msra.mxu0 0.0
      %5085 = vmatprep.subr.mxu0 0.0
      %5086 = vmatpush1.msra.mxu0 0.0
      %5087 = vmatprep.subr.mxu0 0.0
      %5088 = vmatpush1.msra.mxu0 0.0
      %5089 = vmatprep.subr.mxu0 0.0
      %5090 = vmatpush1.msra.mxu0 0.0
      %5091 = vmatprep.subr.mxu0 0.0
      %5092 = vmatpush1.msra.mxu0 0.0
      %5093 = vmatprep.subr.mxu0 0.0
      %5094 = vmatpush1.msra.mxu0 0.0
      %5095 = vmatprep.subr.mxu0 0.0
      %5096 = vmatpush1.msra.mxu0 0.0
      %5097 = vmatprep.mubr.f32.mxu0 0.0
      %5098 = vmatmul.mubr.f32.gmra.mrb[0].mxu0 %v1902
      %v5099 = vpop.f32.mrb[0].mxu0
      %v5100 = vadd.f32 0.0, %v5099
      %v5101 = vpop.f32.mrb[0].mxu0
      %v5102 = vadd.f32 0.0, %v5101
      %5103 = vdwg.mxu0
      %5104 = vmatprep.subr.mxu0 %v4839
      %5105 = vmatpush1.msra.mxu0 %v4838
      %5106 = vmatprep.subr.mxu0 %v4847
      %5107 = vmatpush1.msra.mxu0 %v4846
      %5108 = vmatprep.subr.mxu0 %v4855
      %5109 = vmatpush1.msra.mxu0 %v4854
      %5110 = vmatprep.subr.mxu0 %v4863
      %5111 = vmatpush1.msra.mxu0 %v4862
      %5112 = vmatprep.subr.mxu0 %v4871
      %5113 = vmatpush1.msra.mxu0 %v4870
      %5114 = vmatprep.subr.mxu0 %v4879
      %5115 = vmatpush1.msra.mxu0 %v4878
      %5116 = vmatprep.subr.mxu0 %v4887
      %5117 = vmatpush1.msra.mxu0 %v4886
      %5118 = vmatprep.subr.mxu0 %v4895
      %5119 = vmatpush1.msra.mxu0 %v4894
      %5120 = vmatprep.subr.mxu0 %v4903
      %5121 = vmatpush1.msra.mxu0 %v4902
      %5122 = vmatprep.subr.mxu0 %v4911
      %5123 = vmatpush1.msra.mxu0 %v4910
      %5124 = vmatprep.subr.mxu0 %v4919
      %5125 = vmatpush1.msra.mxu0 %v4918
      %5126 = vmatprep.subr.mxu0 %v4927
      %5127 = vmatpush1.msra.mxu0 %v4926
      %5128 = vmatprep.subr.mxu0 %v4935
      %5129 = vmatpush1.msra.mxu0 %v4934
      %5130 = vmatprep.subr.mxu0 %v4943
      %5131 = vmatpush1.msra.mxu0 %v4942
      %5132 = vmatprep.subr.mxu0 %v4951
      %5133 = vmatpush1.msra.mxu0 %v4950
      %5134 = vmatprep.subr.mxu0 %v4959
      %5135 = vmatpush1.msra.mxu0 %v4958
      %5136 = vmatprep.subr.mxu0 0.0
      %5137 = vmatpush1.msra.mxu0 0.0
      %5138 = vmatprep.subr.mxu0 0.0
      %5139 = vmatpush1.msra.mxu0 0.0
      %5140 = vmatprep.subr.mxu0 0.0
      %5141 = vmatpush1.msra.mxu0 0.0
      %5142 = vmatprep.subr.mxu0 0.0
      %5143 = vmatpush1.msra.mxu0 0.0
      %5144 = vmatprep.subr.mxu0 0.0
      %5145 = vmatpush1.msra.mxu0 0.0
      %5146 = vmatprep.subr.mxu0 0.0
      %5147 = vmatpush1.msra.mxu0 0.0
      %5148 = vmatprep.subr.mxu0 0.0
      %5149 = vmatpush1.msra.mxu0 0.0
      %5150 = vmatprep.subr.mxu0 0.0
      %5151 = vmatpush1.msra.mxu0 0.0
      %5152 = vmatprep.subr.mxu0 0.0
      %5153 = vmatpush1.msra.mxu0 0.0
      %5154 = vmatprep.subr.mxu0 0.0
      %5155 = vmatpush1.msra.mxu0 0.0
      %5156 = vmatprep.subr.mxu0 0.0
      %5157 = vmatpush1.msra.mxu0 0.0
      %5158 = vmatprep.subr.mxu0 0.0
      %5159 = vmatpush1.msra.mxu0 0.0
      %5160 = vmatprep.subr.mxu0 0.0
      %5161 = vmatpush1.msra.mxu0 0.0
      %5162 = vmatprep.subr.mxu0 0.0
      %5163 = vmatpush1.msra.mxu0 0.0
      %5164 = vmatprep.subr.mxu0 0.0
      %5165 = vmatpush1.msra.mxu0 0.0
      %5166 = vmatprep.subr.mxu0 0.0
      %5167 = vmatpush1.msra.mxu0 0.0
      %5168 = vmatprep.mubr.f32.mxu0 0.0
      %5169 = vmatmul.mubr.f32.gmra.mrb[0].mxu0 %v1902
      %v5170 = vpop.f32.mrb[0].mxu0
      %v5171 = vadd.f32 0.0, %v5170
      %v5172 = vpop.f32.mrb[0].mxu0
      %v5173 = vadd.f32 0.0, %v5172
      %5174 = vdwg.mxu0
      %5175 = vmatprep.subr.mxu0 %v4841
      %5176 = vmatpush1.msra.mxu0 %v4840
      %5177 = vmatprep.subr.mxu0 %v4849
      %5178 = vmatpush1.msra.mxu0 %v4848
      %5179 = vmatprep.subr.mxu0 %v4857
      %5180 = vmatpush1.msra.mxu0 %v4856
      %5181 = vmatprep.subr.mxu0 %v4865
      %5182 = vmatpush1.msra.mxu0 %v4864
      %5183 = vmatprep.subr.mxu0 %v4873
      %5184 = vmatpush1.msra.mxu0 %v4872
      %5185 = vmatprep.subr.mxu0 %v4881
      %5186 = vmatpush1.msra.mxu0 %v4880
      %5187 = vmatprep.subr.mxu0 %v4889
      %5188 = vmatpush1.msra.mxu0 %v4888
      %5189 = vmatprep.subr.mxu0 %v4897
      %5190 = vmatpush1.msra.mxu0 %v4896
      %5191 = vmatprep.subr.mxu0 %v4905
      %5192 = vmatpush1.msra.mxu0 %v4904
      %5193 = vmatprep.subr.mxu0 %v4913
      %5194 = vmatpush1.msra.mxu0 %v4912
      %5195 = vmatprep.subr.mxu0 %v4921
      %5196 = vmatpush1.msra.mxu0 %v4920
      %5197 = vmatprep.subr.mxu0 %v4929
      %5198 = vmatpush1.msra.mxu0 %v4928
      %5199 = vmatprep.subr.mxu0 %v4937
      %5200 = vmatpush1.msra.mxu0 %v4936
      %5201 = vmatprep.subr.mxu0 %v4945
      %5202 = vmatpush1.msra.mxu0 %v4944
      %5203 = vmatprep.subr.mxu0 %v4953
      %5204 = vmatpush1.msra.mxu0 %v4952
      %5205 = vmatprep.subr.mxu0 %v4961
      %5206 = vmatpush1.msra.mxu0 %v4960
      %5207 = vmatprep.subr.mxu0 0.0
      %5208 = vmatpush1.msra.mxu0 0.0
      %5209 = vmatprep.subr.mxu0 0.0
      %5210 = vmatpush1.msra.mxu0 0.0
      %5211 = vmatprep.subr.mxu0 0.0
      %5212 = vmatpush1.msra.mxu0 0.0
      %5213 = vmatprep.subr.mxu0 0.0
      %5214 = vmatpush1.msra.mxu0 0.0
      %5215 = vmatprep.subr.mxu0 0.0
      %5216 = vmatpush1.msra.mxu0 0.0
      %5217 = vmatprep.subr.mxu0 0.0
      %5218 = vmatpush1.msra.mxu0 0.0
      %5219 = vmatprep.subr.mxu0 0.0
      %5220 = vmatpush1.msra.mxu0 0.0
      %5221 = vmatprep.subr.mxu0 0.0
      %5222 = vmatpush1.msra.mxu0 0.0
      %5223 = vmatprep.subr.mxu0 0.0
      %5224 = vmatpush1.msra.mxu0 0.0
      %5225 = vmatprep.subr.mxu0 0.0
      %5226 = vmatpush1.msra.mxu0 0.0
      %5227 = vmatprep.subr.mxu0 0.0
      %5228 = vmatpush1.msra.mxu0 0.0
      %5229 = vmatprep.subr.mxu0 0.0
      %5230 = vmatpush1.msra.mxu0 0.0
      %5231 = vmatprep.subr.mxu0 0.0
      %5232 = vmatpush1.msra.mxu0 0.0
      %5233 = vmatprep.subr.mxu0 0.0
      %5234 = vmatpush1.msra.mxu0 0.0
      %5235 = vmatprep.subr.mxu0 0.0
      %5236 = vmatpush1.msra.mxu0 0.0
      %5237 = vmatprep.subr.mxu0 0.0
      %5238 = vmatpush1.msra.mxu0 0.0
      %5239 = vmatprep.mubr.f32.mxu0 0.0
      %5240 = vmatmul.mubr.f32.gmra.mrb[0].mxu0 %v1902
      %v5241 = vpop.f32.mrb[0].mxu0
      %v5242 = vadd.f32 0.0, %v5241
      %v5243 = vpop.f32.mrb[0].mxu0
      %v5244 = vadd.f32 0.0, %v5243
      %5245 = vdwg.mxu0
      %v5246 = vadd.f32 %v4825, %v5029
      %v5247 = vadd.f32 %v4826, %v5031
      %v5248 = vadd.f32 %v4827, %v5100
      %v5249 = vadd.f32 %v4828, %v5102
      %v5250 = vadd.f32 %v4829, %v5171
      %v5251 = vadd.f32 %v4830, %v5173
      %v5252 = vadd.f32 %v4831, %v5242
      %v5253 = vadd.f32 %v4832, %v5244
      %v5254 = vld [vmem:[%s6] sm:$0xff]
      %v5256 = vlaneseq
      %v5257 = vshrl.u32 %v5256, 7
      %v5258 = vsub.s32 0, %v5257
      %v5259 = vrot.slane %v5254, %v5258
      %v5260 = vlaneseq
      %v5261 = vshrl.u32 %v5260, 7
      %v5262 = vsub.s32 1, %v5261
      %v5263 = vrot.slane %v5254, %v5262
      %v5264 = vlaneseq
      %v5265 = vshrl.u32 %v5264, 7
      %v5266 = vsub.s32 2, %v5265
      %v5267 = vrot.slane %v5254, %v5266
      %v5268 = vlaneseq
      %v5269 = vshrl.u32 %v5268, 7
      %v5270 = vsub.s32 3, %v5269
      %v5271 = vrot.slane %v5254, %v5270
      %v5272 = vlaneseq
      %v5273 = vshrl.u32 %v5272, 7
      %v5274 = vsub.s32 4, %v5273
      %v5275 = vrot.slane %v5254, %v5274
      %v5276 = vlaneseq
      %v5277 = vshrl.u32 %v5276, 7
      %v5278 = vsub.s32 5, %v5277
      %v5279 = vrot.slane %v5254, %v5278
      %v5280 = vlaneseq
      %v5281 = vshrl.u32 %v5280, 7
      %v5282 = vsub.s32 6, %v5281
      %v5283 = vrot.slane %v5254, %v5282
      %v5284 = vlaneseq
      %v5285 = vshrl.u32 %v5284, 7
      %v5286 = vsub.s32 7, %v5285
      %v5287 = vrot.slane %v5254, %v5286
      %v5296 = vadd.f32 %v5246, %v5259
      %v5297 = vadd.f32 %v5247, %v5263
      %v5298 = vadd.f32 %v5248, %v5267
      %v5299 = vadd.f32 %v5249, %v5271
      %v5300 = vadd.f32 %v5250, %v5275
      %v5301 = vadd.f32 %v5251, %v5279
      %v5302 = vadd.f32 %v5252, %v5283
      %v5303 = vadd.f32 %v5253, %v5287
      %v5304 = vmax.f32 %v5296, 0.0
      %v5305 = vmax.f32 %v5297, 0.0
      %v5306 = vmax.f32 %v5298, 0.0
      %v5307 = vmax.f32 %v5299, 0.0
      %v5308 = vmax.f32 %v5300, 0.0
      %v5309 = vmax.f32 %v5301, 0.0
      %v5310 = vmax.f32 %v5302, 0.0
      %v5311 = vmax.f32 %v5303, 0.0
      %v5312 = vld [vmem:[%s7] sm:$0xff]
      %v5313 = vld [vmem:[%s7 + $0x8] sm:$0xff]
      %v5314 = vld [vmem:[%s7 + $0x10] sm:$0xff]
      %v5315 = vld [vmem:[%s7 + $0x18] sm:$0xff]
      %v5316 = vld [vmem:[%s7 + $0x20] sm:$0xff]
      %v5317 = vld [vmem:[%s7 + $0x28] sm:$0xff]
      %v5318 = vld [vmem:[%s7 + $0x30] sm:$0xff]
      %v5319 = vld [vmem:[%s7 + $0x38] sm:$0xff]
      %v5320 = vld [vmem:[%s7 + $0x40] sm:$0xff]
      %v5321 = vld [vmem:[%s7 + $0x48] sm:$0xff]
      %v5322 = vld [vmem:[%s7 + $0x50] sm:$0xff]
      %v5323 = vld [vmem:[%s7 + $0x58] sm:$0xff]
      %v5324 = vld [vmem:[%s7 + $0x60] sm:$0xff]
      %v5325 = vld [vmem:[%s7 + $0x68] sm:$0xff]
      %v5326 = vld [vmem:[%s7 + $0x70] sm:$0xff]
      %v5327 = vld [vmem:[%s7 + $0x78] sm:$0xff]
      %v5328 = vld [vmem:[%s7 + $0x80] sm:$0xff]
      %v5329 = vld [vmem:[%s7 + $0x88] sm:$0xff]
      %v5330 = vld [vmem:[%s7 + $0x90] sm:$0xff]
      %v5331 = vld [vmem:[%s7 + $0x98] sm:$0xff]
      %v5332 = vld [vmem:[%s7 + $0xa0] sm:$0xff]
      %v5333 = vld [vmem:[%s7 + $0xa8] sm:$0xff]
      %v5334 = vld [vmem:[%s7 + $0xb0] sm:$0xff]
      %v5335 = vld [vmem:[%s7 + $0xb8] sm:$0xff]
      %v5336 = vld [vmem:[%s7 + $0xc0] sm:$0xff]
      %v5337 = vld [vmem:[%s7 + $0xc8] sm:$0xff]
      %v5338 = vld [vmem:[%s7 + $0xd0] sm:$0xff]
      %v5339 = vld [vmem:[%s7 + $0xd8] sm:$0xff]
      %v5340 = vld [vmem:[%s7 + $0xe0] sm:$0xff]
      %v5341 = vld [vmem:[%s7 + $0xe8] sm:$0xff]
      %v5342 = vld [vmem:[%s7 + $0xf0] sm:$0xff]
      %v5343 = vld [vmem:[%s7 + $0xf8] sm:$0xff]
      %v5344 = vld [vmem:[%s7 + $0x100] sm:$0xff]
      %v5345 = vld [vmem:[%s7 + $0x108] sm:$0xff]
      %v5346 = vld [vmem:[%s7 + $0x110] sm:$0xff]
      %v5347 = vld [vmem:[%s7 + $0x118] sm:$0xff]
      %v5348 = vld [vmem:[%s7 + $0x120] sm:$0xff]
      %v5349 = vld [vmem:[%s7 + $0x128] sm:$0xff]
      %v5350 = vld [vmem:[%s7 + $0x130] sm:$0xff]
      %v5351 = vld [vmem:[%s7 + $0x138] sm:$0xff]
      %v5352 = vld [vmem:[%s7 + $0x140] sm:$0xff]
      %v5353 = vld [vmem:[%s7 + $0x148] sm:$0xff]
      %v5354 = vld [vmem:[%s7 + $0x150] sm:$0xff]
      %v5355 = vld [vmem:[%s7 + $0x158] sm:$0xff]
      %v5356 = vld [vmem:[%s7 + $0x160] sm:$0xff]
      %v5357 = vld [vmem:[%s7 + $0x168] sm:$0xff]
      %v5358 = vld [vmem:[%s7 + $0x170] sm:$0xff]
      %v5359 = vld [vmem:[%s7 + $0x178] sm:$0xff]
      %v5360 = vld [vmem:[%s7 + $0x180] sm:$0xff]
      %v5361 = vld [vmem:[%s7 + $0x188] sm:$0xff]
      %v5362 = vld [vmem:[%s7 + $0x190] sm:$0xff]
      %v5363 = vld [vmem:[%s7 + $0x198] sm:$0xff]
      %v5364 = vld [vmem:[%s7 + $0x1a0] sm:$0xff]
      %v5365 = vld [vmem:[%s7 + $0x1a8] sm:$0xff]
      %v5366 = vld [vmem:[%s7 + $0x1b0] sm:$0xff]
      %v5367 = vld [vmem:[%s7 + $0x1b8] sm:$0xff]
      %v5368 = vld [vmem:[%s7 + $0x1c0] sm:$0xff]
      %v5369 = vld [vmem:[%s7 + $0x1c8] sm:$0xff]
      %v5370 = vld [vmem:[%s7 + $0x1d0] sm:$0xff]
      %v5371 = vld [vmem:[%s7 + $0x1d8] sm:$0xff]
      %v5372 = vld [vmem:[%s7 + $0x1e0] sm:$0xff]
      %v5373 = vld [vmem:[%s7 + $0x1e8] sm:$0xff]
      %v5374 = vld [vmem:[%s7 + $0x1f0] sm:$0xff]
      %v5375 = vld [vmem:[%s7 + $0x1f8] sm:$0xff]
      %v5376 = vld [vmem:[%s7 + $0x200] sm:$0xff]
      %v5377 = vld [vmem:[%s7 + $0x208] sm:$0xff]
      %v5378 = vld [vmem:[%s7 + $0x210] sm:$0xff]
      %v5379 = vld [vmem:[%s7 + $0x218] sm:$0xff]
      %v5380 = vld [vmem:[%s7 + $0x220] sm:$0xff]
      %v5381 = vld [vmem:[%s7 + $0x228] sm:$0xff]
      %v5382 = vld [vmem:[%s7 + $0x230] sm:$0xff]
      %v5383 = vld [vmem:[%s7 + $0x238] sm:$0xff]
      %v5384 = vld [vmem:[%s7 + $0x240] sm:$0xff]
      %v5385 = vld [vmem:[%s7 + $0x248] sm:$0xff]
      %v5386 = vld [vmem:[%s7 + $0x250] sm:$0xff]
      %v5387 = vld [vmem:[%s7 + $0x258] sm:$0xff]
      %v5388 = vld [vmem:[%s7 + $0x260] sm:$0xff]
      %v5389 = vld [vmem:[%s7 + $0x268] sm:$0xff]
      %v5390 = vld [vmem:[%s7 + $0x270] sm:$0xff]
      %v5391 = vld [vmem:[%s7 + $0x278] sm:$0xff]
      %v5392 = vld [vmem:[%s7 + $0x280] sm:$0xff]
      %v5393 = vld [vmem:[%s7 + $0x288] sm:$0xff]
      %v5394 = vld [vmem:[%s7 + $0x290] sm:$0xff]
      %v5395 = vld [vmem:[%s7 + $0x298] sm:$0xff]
      %v5396 = vld [vmem:[%s7 + $0x2a0] sm:$0xff]
      %v5397 = vld [vmem:[%s7 + $0x2a8] sm:$0xff]
      %v5398 = vld [vmem:[%s7 + $0x2b0] sm:$0xff]
      %v5399 = vld [vmem:[%s7 + $0x2b8] sm:$0xff]
      %v5400 = vld [vmem:[%s7 + $0x2c0] sm:$0xff]
      %v5401 = vld [vmem:[%s7 + $0x2c8] sm:$0xff]
      %v5402 = vld [vmem:[%s7 + $0x2d0] sm:$0xff]
      %v5403 = vld [vmem:[%s7 + $0x2d8] sm:$0xff]
      %v5404 = vld [vmem:[%s7 + $0x2e0] sm:$0xff]
      %v5405 = vld [vmem:[%s7 + $0x2e8] sm:$0xff]
      %v5406 = vld [vmem:[%s7 + $0x2f0] sm:$0xff]
      %v5407 = vld [vmem:[%s7 + $0x2f8] sm:$0xff]
      %v5408 = vld [vmem:[%s7 + $0x300] sm:$0xff]
      %v5409 = vld [vmem:[%s7 + $0x308] sm:$0xff]
      %v5410 = vld [vmem:[%s7 + $0x310] sm:$0xff]
      %v5411 = vld [vmem:[%s7 + $0x318] sm:$0xff]
      %v5412 = vld [vmem:[%s7 + $0x320] sm:$0xff]
      %v5413 = vld [vmem:[%s7 + $0x328] sm:$0xff]
      %v5414 = vld [vmem:[%s7 + $0x330] sm:$0xff]
      %v5415 = vld [vmem:[%s7 + $0x338] sm:$0xff]
      %v5416 = vld [vmem:[%s7 + $0x340] sm:$0xff]
      %v5417 = vld [vmem:[%s7 + $0x348] sm:$0xff]
      %v5418 = vld [vmem:[%s7 + $0x350] sm:$0xff]
      %v5419 = vld [vmem:[%s7 + $0x358] sm:$0xff]
      %v5420 = vld [vmem:[%s7 + $0x360] sm:$0xff]
      %v5421 = vld [vmem:[%s7 + $0x368] sm:$0xff]
      %v5422 = vld [vmem:[%s7 + $0x370] sm:$0xff]
      %v5423 = vld [vmem:[%s7 + $0x378] sm:$0xff]
      %v5424 = vld [vmem:[%s7 + $0x380] sm:$0xff]
      %v5425 = vld [vmem:[%s7 + $0x388] sm:$0xff]
      %v5426 = vld [vmem:[%s7 + $0x390] sm:$0xff]
      %v5427 = vld [vmem:[%s7 + $0x398] sm:$0xff]
      %v5428 = vld [vmem:[%s7 + $0x3a0] sm:$0xff]
      %v5429 = vld [vmem:[%s7 + $0x3a8] sm:$0xff]
      %v5430 = vld [vmem:[%s7 + $0x3b0] sm:$0xff]
      %v5431 = vld [vmem:[%s7 + $0x3b8] sm:$0xff]
      %v5432 = vld [vmem:[%s7 + $0x3c0] sm:$0xff]
      %v5433 = vld [vmem:[%s7 + $0x3c8] sm:$0xff]
      %v5434 = vld [vmem:[%s7 + $0x3d0] sm:$0xff]
      %v5435 = vld [vmem:[%s7 + $0x3d8] sm:$0xff]
      %v5436 = vld [vmem:[%s7 + $0x3e0] sm:$0xff]
      %v5437 = vld [vmem:[%s7 + $0x3e8] sm:$0xff]
      %v5438 = vld [vmem:[%s7 + $0x3f0] sm:$0xff]
      %v5439 = vld [vmem:[%s7 + $0x3f8] sm:$0xff]
      %v5440 = vld [vmem:[%s8] sm:$0x1]
      %v5442 = vlaneseq
      %v5443 = vshrl.u32 %v5442, 7
      %v5444 = vsub.s32 0, %v5443
      %v5445 = vrot.slane %v5440, %v5444
      %5447 = vmatprep.subr.mxu0 0.0
      %5448 = vmatpush1.msra.mxu0 %v5312
      %5449 = vmatprep.subr.mxu0 0.0
      %5450 = vmatpush1.msra.mxu0 %v5313
      %5451 = vmatprep.subr.mxu0 0.0
      %5452 = vmatpush1.msra.mxu0 %v5314
      %5453 = vmatprep.subr.mxu0 0.0
      %5454 = vmatpush1.msra.mxu0 %v5315
      %5455 = vmatprep.subr.mxu0 0.0
      %5456 = vmatpush1.msra.mxu0 %v5316
      %5457 = vmatprep.subr.mxu0 0.0
      %5458 = vmatpush1.msra.mxu0 %v5317
      %5459 = vmatprep.subr.mxu0 0.0
      %5460 = vmatpush1.msra.mxu0 %v5318
      %5461 = vmatprep.subr.mxu0 0.0
      %5462 = vmatpush1.msra.mxu0 %v5319
      %5463 = vmatprep.subr.mxu0 0.0
      %5464 = vmatpush1.msra.mxu0 %v5320
      %5465 = vmatprep.subr.mxu0 0.0
      %5466 = vmatpush1.msra.mxu0 %v5321
      %5467 = vmatprep.subr.mxu0 0.0
      %5468 = vmatpush1.msra.mxu0 %v5322
      %5469 = vmatprep.subr.mxu0 0.0
      %5470 = vmatpush1.msra.mxu0 %v5323
      %5471 = vmatprep.subr.mxu0 0.0
      %5472 = vmatpush1.msra.mxu0 %v5324
      %5473 = vmatprep.subr.mxu0 0.0
      %5474 = vmatpush1.msra.mxu0 %v5325
      %5475 = vmatprep.subr.mxu0 0.0
      %5476 = vmatpush1.msra.mxu0 %v5326
      %5477 = vmatprep.subr.mxu0 0.0
      %5478 = vmatpush1.msra.mxu0 %v5327
      %5479 = vmatprep.subr.mxu0 0.0
      %5480 = vmatpush1.msra.mxu0 %v5328
      %5481 = vmatprep.subr.mxu0 0.0
      %5482 = vmatpush1.msra.mxu0 %v5329
      %5483 = vmatprep.subr.mxu0 0.0
      %5484 = vmatpush1.msra.mxu0 %v5330
      %5485 = vmatprep.subr.mxu0 0.0
      %5486 = vmatpush1.msra.mxu0 %v5331
      %5487 = vmatprep.subr.mxu0 0.0
      %5488 = vmatpush1.msra.mxu0 %v5332
      %5489 = vmatprep.subr.mxu0 0.0
      %5490 = vmatpush1.msra.mxu0 %v5333
      %5491 = vmatprep.subr.mxu0 0.0
      %5492 = vmatpush1.msra.mxu0 %v5334
      %5493 = vmatprep.subr.mxu0 0.0
      %5494 = vmatpush1.msra.mxu0 %v5335
      %5495 = vmatprep.subr.mxu0 0.0
      %5496 = vmatpush1.msra.mxu0 %v5336
      %5497 = vmatprep.subr.mxu0 0.0
      %5498 = vmatpush1.msra.mxu0 %v5337
      %5499 = vmatprep.subr.mxu0 0.0
      %5500 = vmatpush1.msra.mxu0 %v5338
      %5501 = vmatprep.subr.mxu0 0.0
      %5502 = vmatpush1.msra.mxu0 %v5339
      %5503 = vmatprep.subr.mxu0 0.0
      %5504 = vmatpush1.msra.mxu0 %v5340
      %5505 = vmatprep.subr.mxu0 0.0
      %5506 = vmatpush1.msra.mxu0 %v5341
      %5507 = vmatprep.subr.mxu0 0.0
      %5508 = vmatpush1.msra.mxu0 %v5342
      %5509 = vmatprep.subr.mxu0 0.0
      %5510 = vmatpush1.msra.mxu0 %v5343
      %5511 = vmatprep.mubr.f32.mxu0 %v5305
      %5512 = vmatmul.mubr.f32.gmra.mrb[0].mxu0 %v5304
      %v5513 = vpop.f32.mrb[0].mxu0
      %v5514 = vadd.f32 %v5445, %v5513
      %v5515 = vpop.f32.mrb[0].mxu0
      %5516 = vdwg.mxu0
      %5517 = vmatprep.subr.mxu0 0.0
      %5518 = vmatpush1.msra.mxu0 %v5344
      %5519 = vmatprep.subr.mxu0 0.0
      %5520 = vmatpush1.msra.mxu0 %v5345
      %5521 = vmatprep.subr.mxu0 0.0
      %5522 = vmatpush1.msra.mxu0 %v5346
      %5523 = vmatprep.subr.mxu0 0.0
      %5524 = vmatpush1.msra.mxu0 %v5347
      %5525 = vmatprep.subr.mxu0 0.0
      %5526 = vmatpush1.msra.mxu0 %v5348
      %5527 = vmatprep.subr.mxu0 0.0
      %5528 = vmatpush1.msra.mxu0 %v5349
      %5529 = vmatprep.subr.mxu0 0.0
      %5530 = vmatpush1.msra.mxu0 %v5350
      %5531 = vmatprep.subr.mxu0 0.0
      %5532 = vmatpush1.msra.mxu0 %v5351
      %5533 = vmatprep.subr.mxu0 0.0
      %5534 = vmatpush1.msra.mxu0 %v5352
      %5535 = vmatprep.subr.mxu0 0.0
      %5536 = vmatpush1.msra.mxu0 %v5353
      %5537 = vmatprep.subr.mxu0 0.0
      %5538 = vmatpush1.msra.mxu0 %v5354
      %5539 = vmatprep.subr.mxu0 0.0
      %5540 = vmatpush1.msra.mxu0 %v5355
      %5541 = vmatprep.subr.mxu0 0.0
      %5542 = vmatpush1.msra.mxu0 %v5356
      %5543 = vmatprep.subr.mxu0 0.0
      %5544 = vmatpush1.msra.mxu0 %v5357
      %5545 = vmatprep.subr.mxu0 0.0
      %5546 = vmatpush1.msra.mxu0 %v5358
      %5547 = vmatprep.subr.mxu0 0.0
      %5548 = vmatpush1.msra.mxu0 %v5359
      %5549 = vmatprep.subr.mxu0 0.0
      %5550 = vmatpush1.msra.mxu0 %v5360
      %5551 = vmatprep.subr.mxu0 0.0
      %5552 = vmatpush1.msra.mxu0 %v5361
      %5553 = vmatprep.subr.mxu0 0.0
      %5554 = vmatpush1.msra.mxu0 %v5362
      %5555 = vmatprep.subr.mxu0 0.0
      %5556 = vmatpush1.msra.mxu0 %v5363
      %5557 = vmatprep.subr.mxu0 0.0
      %5558 = vmatpush1.msra.mxu0 %v5364
      %5559 = vmatprep.subr.mxu0 0.0
      %5560 = vmatpush1.msra.mxu0 %v5365
      %5561 = vmatprep.subr.mxu0 0.0
      %5562 = vmatpush1.msra.mxu0 %v5366
      %5563 = vmatprep.subr.mxu0 0.0
      %5564 = vmatpush1.msra.mxu0 %v5367
      %5565 = vmatprep.subr.mxu0 0.0
      %5566 = vmatpush1.msra.mxu0 %v5368
      %5567 = vmatprep.subr.mxu0 0.0
      %5568 = vmatpush1.msra.mxu0 %v5369
      %5569 = vmatprep.subr.mxu0 0.0
      %5570 = vmatpush1.msra.mxu0 %v5370
      %5571 = vmatprep.subr.mxu0 0.0
      %5572 = vmatpush1.msra.mxu0 %v5371
      %5573 = vmatprep.subr.mxu0 0.0
      %5574 = vmatpush1.msra.mxu0 %v5372
      %5575 = vmatprep.subr.mxu0 0.0
      %5576 = vmatpush1.msra.mxu0 %v5373
      %5577 = vmatprep.subr.mxu0 0.0
      %5578 = vmatpush1.msra.mxu0 %v5374
      %5579 = vmatprep.subr.mxu0 0.0
      %5580 = vmatpush1.msra.mxu0 %v5375
      %5581 = vmatprep.mubr.f32.mxu0 %v5307
      %5582 = vmatmul.mubr.f32.gmra.mrb[0].mxu0 %v5306
      %v5583 = vpop.f32.mrb[0].mxu0
      %v5584 = vadd.f32 %v5514, %v5583
      %v5585 = vpop.f32.mrb[0].mxu0
      %5586 = vdwg.mxu0
      %5587 = vmatprep.subr.mxu0 0.0
      %5588 = vmatpush1.msra.mxu0 %v5376
      %5589 = vmatprep.subr.mxu0 0.0
      %5590 = vmatpush1.msra.mxu0 %v5377
      %5591 = vmatprep.subr.mxu0 0.0
      %5592 = vmatpush1.msra.mxu0 %v5378
      %5593 = vmatprep.subr.mxu0 0.0
      %5594 = vmatpush1.msra.mxu0 %v5379
      %5595 = vmatprep.subr.mxu0 0.0
      %5596 = vmatpush1.msra.mxu0 %v5380
      %5597 = vmatprep.subr.mxu0 0.0
      %5598 = vmatpush1.msra.mxu0 %v5381
      %5599 = vmatprep.subr.mxu0 0.0
      %5600 = vmatpush1.msra.mxu0 %v5382
      %5601 = vmatprep.subr.mxu0 0.0
      %5602 = vmatpush1.msra.mxu0 %v5383
      %5603 = vmatprep.subr.mxu0 0.0
      %5604 = vmatpush1.msra.mxu0 %v5384
      %5605 = vmatprep.subr.mxu0 0.0
      %5606 = vmatpush1.msra.mxu0 %v5385
      %5607 = vmatprep.subr.mxu0 0.0
      %5608 = vmatpush1.msra.mxu0 %v5386
      %5609 = vmatprep.subr.mxu0 0.0
      %5610 = vmatpush1.msra.mxu0 %v5387
      %5611 = vmatprep.subr.mxu0 0.0
      %5612 = vmatpush1.msra.mxu0 %v5388
      %5613 = vmatprep.subr.mxu0 0.0
      %5614 = vmatpush1.msra.mxu0 %v5389
      %5615 = vmatprep.subr.mxu0 0.0
      %5616 = vmatpush1.msra.mxu0 %v5390
      %5617 = vmatprep.subr.mxu0 0.0
      %5618 = vmatpush1.msra.mxu0 %v5391
      %5619 = vmatprep.subr.mxu0 0.0
      %5620 = vmatpush1.msra.mxu0 %v5392
      %5621 = vmatprep.subr.mxu0 0.0
      %5622 = vmatpush1.msra.mxu0 %v5393
      %5623 = vmatprep.subr.mxu0 0.0
      %5624 = vmatpush1.msra.mxu0 %v5394
      %5625 = vmatprep.subr.mxu0 0.0
      %5626 = vmatpush1.msra.mxu0 %v5395
      %5627 = vmatprep.subr.mxu0 0.0
      %5628 = vmatpush1.msra.mxu0 %v5396
      %5629 = vmatprep.subr.mxu0 0.0
      %5630 = vmatpush1.msra.mxu0 %v5397
      %5631 = vmatprep.subr.mxu0 0.0
      %5632 = vmatpush1.msra.mxu0 %v5398
      %5633 = vmatprep.subr.mxu0 0.0
      %5634 = vmatpush1.msra.mxu0 %v5399
      %5635 = vmatprep.subr.mxu0 0.0
      %5636 = vmatpush1.msra.mxu0 %v5400
      %5637 = vmatprep.subr.mxu0 0.0
      %5638 = vmatpush1.msra.mxu0 %v5401
      %5639 = vmatprep.subr.mxu0 0.0
      %5640 = vmatpush1.msra.mxu0 %v5402
      %5641 = vmatprep.subr.mxu0 0.0
      %5642 = vmatpush1.msra.mxu0 %v5403
      %5643 = vmatprep.subr.mxu0 0.0
      %5644 = vmatpush1.msra.mxu0 %v5404
      %5645 = vmatprep.subr.mxu0 0.0
      %5646 = vmatpush1.msra.mxu0 %v5405
      %5647 = vmatprep.subr.mxu0 0.0
      %5648 = vmatpush1.msra.mxu0 %v5406
      %5649 = vmatprep.subr.mxu0 0.0
      %5650 = vmatpush1.msra.mxu0 %v5407
      %5651 = vmatprep.mubr.f32.mxu0 %v5309
      %5652 = vmatmul.mubr.f32.gmra.mrb[0].mxu0 %v5308
      %v5653 = vpop.f32.mrb[0].mxu0
      %v5654 = vadd.f32 %v5584, %v5653
      %v5655 = vpop.f32.mrb[0].mxu0
      %5656 = vdwg.mxu0
      %5657 = vmatprep.subr.mxu0 0.0
      %5658 = vmatpush1.msra.mxu0 %v5408
      %5659 = vmatprep.subr.mxu0 0.0
      %5660 = vmatpush1.msra.mxu0 %v5409
      %5661 = vmatprep.subr.mxu0 0.0
      %5662 = vmatpush1.msra.mxu0 %v5410
      %5663 = vmatprep.subr.mxu0 0.0
      %5664 = vmatpush1.msra.mxu0 %v5411
      %5665 = vmatprep.subr.mxu0 0.0
      %5666 = vmatpush1.msra.mxu0 %v5412
      %5667 = vmatprep.subr.mxu0 0.0
      %5668 = vmatpush1.msra.mxu0 %v5413
      %5669 = vmatprep.subr.mxu0 0.0
      %5670 = vmatpush1.msra.mxu0 %v5414
      %5671 = vmatprep.subr.mxu0 0.0
      %5672 = vmatpush1.msra.mxu0 %v5415
      %5673 = vmatprep.subr.mxu0 0.0
      %5674 = vmatpush1.msra.mxu0 %v5416
      %5675 = vmatprep.subr.mxu0 0.0
      %5676 = vmatpush1.msra.mxu0 %v5417
      %5677 = vmatprep.subr.mxu0 0.0
      %5678 = vmatpush1.msra.mxu0 %v5418
      %5679 = vmatprep.subr.mxu0 0.0
      %5680 = vmatpush1.msra.mxu0 %v5419
      %5681 = vmatprep.subr.mxu0 0.0
      %5682 = vmatpush1.msra.mxu0 %v5420
      %5683 = vmatprep.subr.mxu0 0.0
      %5684 = vmatpush1.msra.mxu0 %v5421
      %5685 = vmatprep.subr.mxu0 0.0
      %5686 = vmatpush1.msra.mxu0 %v5422
      %5687 = vmatprep.subr.mxu0 0.0
      %5688 = vmatpush1.msra.mxu0 %v5423
      %5689 = vmatprep.subr.mxu0 0.0
      %5690 = vmatpush1.msra.mxu0 %v5424
      %5691 = vmatprep.subr.mxu0 0.0
      %5692 = vmatpush1.msra.mxu0 %v5425
      %5693 = vmatprep.subr.mxu0 0.0
      %5694 = vmatpush1.msra.mxu0 %v5426
      %5695 = vmatprep.subr.mxu0 0.0
      %5696 = vmatpush1.msra.mxu0 %v5427
      %5697 = vmatprep.subr.mxu0 0.0
      %5698 = vmatpush1.msra.mxu0 %v5428
      %5699 = vmatprep.subr.mxu0 0.0
      %5700 = vmatpush1.msra.mxu0 %v5429
      %5701 = vmatprep.subr.mxu0 0.0
      %5702 = vmatpush1.msra.mxu0 %v5430
      %5703 = vmatprep.subr.mxu0 0.0
      %5704 = vmatpush1.msra.mxu0 %v5431
      %5705 = vmatprep.subr.mxu0 0.0
      %5706 = vmatpush1.msra.mxu0 %v5432
      %5707 = vmatprep.subr.mxu0 0.0
      %5708 = vmatpush1.msra.mxu0 %v5433
      %5709 = vmatprep.subr.mxu0 0.0
      %5710 = vmatpush1.msra.mxu0 %v5434
      %5711 = vmatprep.subr.mxu0 0.0
      %5712 = vmatpush1.msra.mxu0 %v5435
      %5713 = vmatprep.subr.mxu0 0.0
      %5714 = vmatpush1.msra.mxu0 %v5436
      %5715 = vmatprep.subr.mxu0 0.0
      %5716 = vmatpush1.msra.mxu0 %v5437
      %5717 = vmatprep.subr.mxu0 0.0
      %5718 = vmatpush1.msra.mxu0 %v5438
      %5719 = vmatprep.subr.mxu0 0.0
      %5720 = vmatpush1.msra.mxu0 %v5439
      %5721 = vmatprep.mubr.f32.mxu0 %v5311
      %5722 = vmatmul.mubr.f32.gmra.mrb[0].mxu0 %v5310
      %v5723 = vpop.f32.mrb[0].mxu0
      %v5724 = vadd.f32 %v5654, %v5723
      %v5725 = vpop.f32.mrb[0].mxu0
      %5726 = vdwg.mxu0
      %5728 = vset.pattern.permute.xlu0 0
      %5729 = vperm.xlu0 %5728, %v5724
      %v5730 = vpop.permute.xlu0 %5729
      %v5732 = vadd.f32 %v5730, %v5724
      %5733 = vrot.lane.b32.xlu0 %v5724, 127
      %v5734 = vpop.permute.xlu0 %5733
      %vm5736 = vcmask 23552
      %v5737 = vsel %vm5736, %v5734, 0.0
      %5738 = vadd.xlane.f32.xlu0 %v5737
      %v5739 = vpop.xlane.xlu0 %5738
      %v5740 = vrcp.pop 3.0
      %v5741 = vmul.f32 %v5739, %v5740
      %v5742 = vsub.f32 %v5732, %v5741
      %5744 = vrot.lane.b32.xlu0 %v5742, 127
      %v5745 = vpop.permute.xlu0 %5744
      %5747 = vst.msk [vmem:[%s332] sm:$0xff] %vm5736, %v5745
      %p5748 = scmp.lt.s32.totalorder %s20, 1
      %s5749 = scalar_select %p5748, %s20, 1
      %s5750 = smul.addr %s5749, 8
      %s5751 = scalar_lea.vmem %s9, %s5750
      // Predicated region
      $region57: #{dqn_conv1d_forward.1} parent=55 // pred_check
        %p5752 = pneg %p232
      $region58: #{dqn_conv1d_forward.1} parent=55 // pred_check_branch
        %5754 = sbr.rel (%p5752) target = $region60
      $region59: #{dqn_conv1d_forward.1} parent=55 // pred_region
        _
      $region60: #{dqn_conv1d_forward.1} parent=55 // pred_fallthru
        _
    $region56: #{dqn_conv1d_forward.1} parent=5 // pred_fallthru
      _
    %p5755 = scmp.le.s32.totalorder 2, %s15
    // Predicated region
    $region61: #{dqn_conv1d_forward.1} parent=5 // pred_check
      %p5756 = pneg %p5755
    $region62: #{dqn_conv1d_forward.1} parent=5 // pred_check_branch
      %5758 = sbr.rel (%p5756) target = $region64
    $region63: #{dqn_conv1d_forward.1} parent=5 // pred_region
      %s5759 = ssub.s32 %s15, 2
      // Predicated region
      $region65: #{dqn_conv1d_forward.1} parent=63 // pred_check
        %p5760 = pneg %p238
      $region66: #{dqn_conv1d_forward.1} parent=63 // pred_check_branch
        %5762 = sbr.rel (%p5760) target = $region68
      $region67: #{dqn_conv1d_forward.1} parent=63 // pred_region
        %p5763 = scmp.lt.s32.totalorder %s21, 1
        %s5764 = scalar_select %p5763, %s21, 1
        %s5765 = smul.addr %s5764, 8
        %s5766 = scalar_lea.vmem %s9, %s5765
      $region68: #{dqn_conv1d_forward.1} parent=63 // pred_fallthru
        _
    $region64: #{dqn_conv1d_forward.1} parent=5 // pred_fallthru
      _
  $region6: #{dqn_conv1d_forward.1} parent=0 // loop_footer
    %s19 = sadd.s32 1, %s15
  $region7: #{dqn_conv1d_forward.1} parent=0 // loop_footer_branch
    %14 = sbr.rel target = $region3
  $region8: #{dqn_conv1d_forward.1} parent=0 // loop_exit
    _

</llo_original>
